<compile_context>
chip_gen: v6e
topology: v6e:2x2x1
jax: 0.10.0
libtpu: 0.0.40
codegen_flags: <defaults>
</compile_context>

<pallas_src>
import functools

import jax
import jax.numpy as jnp
from jax.experimental import pallas as pl
from jax.experimental.pallas import tpu as pltpu

_LANE = 128


def _round_up(x, m):
    return ((x + m - 1) // m) * m


# ---------------------------------------------------------------------------
# Kernels
# ---------------------------------------------------------------------------
def _gcn_layer1_kernel(a_ref, xw_ref, b_ref, w2_ref, o_ref, acc_ref, *,
                       tk, xw_resident):
    """acc = b1 + sum_k A[i,k] @ XW1[k];  o = relu(acc) @ W2   (bf16 output)."""
    k = pl.program_id(1)

    @pl.when(k == 0)
    def _():
        # fold the bias into the accumulator init
        acc_ref[...] = jnp.zeros(acc_ref.shape, acc_ref.dtype) + b_ref[...]

    if xw_resident:
        start = pl.multiple_of(k * tk, tk)
        xw = xw_ref[pl.ds(start, tk), :]
    else:
        xw = xw_ref[...]
    acc_ref[...] += jnp.dot(a_ref[...], xw, preferred_element_type=jnp.float32)

    @pl.when(k == pl.num_programs(1) - 1)
    def _():
        # fused inter-layer glue: h = relu(acc);  o = h @ W2  (feeds layer 2)
        h = jnp.maximum(acc_ref[...], 0.0).astype(jnp.bfloat16)
        o_ref[...] = jnp.dot(h, w2_ref[...],
                             preferred_element_type=jnp.float32
                             ).astype(o_ref.dtype)


def _gcn_layer2_kernel(a_ref, xw_ref, b_ref, o_ref, *, tk, xw_resident):
    """o = b2 + sum_k A[i,k] @ HW2[k]  — accumulates in the resident f32 output."""
    k = pl.program_id(1)

    @pl.when(k == 0)
    def _():
        o_ref[...] = jnp.zeros(o_ref.shape, o_ref.dtype) + b_ref[...]

    if xw_resident:
        start = pl.multiple_of(k * tk, tk)
        xw = xw_ref[pl.ds(start, tk), :]
    else:
        xw = xw_ref[...]
    o_ref[...] += jnp.dot(a_ref[...], xw, preferred_element_type=jnp.float32)


# ---------------------------------------------------------------------------
# pallas_call wrappers
# ---------------------------------------------------------------------------
def _xw_spec(n_pad, tk, f, resident):
    if resident:
        # whole XW lives in VMEM (constant block index -> DMA'd once)
        return pl.BlockSpec((n_pad, f), lambda i, k: (0, 0))
    return pl.BlockSpec((tk, f), lambda i, k: (k, 0))


def _run_layer1(a_pad, xw1_pad, b1_pad, w2_pad, *, tm, tk, xw_resident,
                vmem_limit):
    n_pad, f1 = xw1_pad.shape
    f2 = w2_pad.shape[1]
    grid = (n_pad // tm, n_pad // tk)
    kernel = functools.partial(_gcn_layer1_kernel, tk=tk,
                               xw_resident=xw_resident)
    flops = 2 * n_pad * n_pad * f1 + 2 * n_pad * f1 * f2
    bytes_accessed = n_pad * n_pad * 2 + n_pad * f1 * 2 + n_pad * f2 * 2
    return pl.pallas_call(
        kernel,
        out_shape=jax.ShapeDtypeStruct((n_pad, f2), jnp.bfloat16),
        grid=grid,
        in_specs=[
            pl.BlockSpec((tm, tk), lambda i, k: (i, k)),      # A tile
            _xw_spec(n_pad, tk, f1, xw_resident),             # XW1 (resident)
            pl.BlockSpec((1, f1), lambda i, k: (0, 0)),       # b1
            pl.BlockSpec((f1, f2), lambda i, k: (0, 0)),      # W2 (resident)
        ],
        out_specs=pl.BlockSpec((tm, f2), lambda i, k: (i, 0)),
        scratch_shapes=[pltpu.VMEM((tm, f1), jnp.float32)],
        compiler_params=pltpu.CompilerParams(
            dimension_semantics=("parallel", "arbitrary"),
            vmem_limit_bytes=vmem_limit),
        cost_estimate=pl.CostEstimate(flops=int(flops), transcendentals=0,
                                      bytes_accessed=int(bytes_accessed)),
    )(a_pad, xw1_pad, b1_pad, w2_pad)


def _run_layer2(a_pad, hw2_pad, b2_pad, *, tm, tk, xw_resident, vmem_limit):
    n_pad, f2 = hw2_pad.shape
    grid = (n_pad // tm, n_pad // tk)
    kernel = functools.partial(_gcn_layer2_kernel, tk=tk,
                               xw_resident=xw_resident)
    flops = 2 * n_pad * n_pad * f2
    bytes_accessed = n_pad * n_pad * 2 + n_pad * f2 * 2 + n_pad * f2 * 4
    return pl.pallas_call(
        kernel,
        out_shape=jax.ShapeDtypeStruct((n_pad, f2), jnp.float32),
        grid=grid,
        in_specs=[
            pl.BlockSpec((tm, tk), lambda i, k: (i, k)),      # A tile
            _xw_spec(n_pad, tk, f2, xw_resident),             # HW2 (resident)
            pl.BlockSpec((1, f2), lambda i, k: (0, 0)),       # b2
        ],
        out_specs=pl.BlockSpec((tm, f2), lambda i, k: (i, 0)),
        compiler_params=pltpu.CompilerParams(
            dimension_semantics=("parallel", "arbitrary"),
            vmem_limit_bytes=vmem_limit),
        cost_estimate=pl.CostEstimate(flops=int(flops), transcendentals=0,
                                      bytes_accessed=int(bytes_accessed)),
    )(a_pad, hw2_pad, b2_pad)


# ---------------------------------------------------------------------------
# Plain-JAX glue: symmetrically-normalized dense adjacency, exactly as PyG's
# GCNConv (add self-loops w=1, deg on dst, norm = d^-1/2[src] * w * d^-1/2[dst]),
# built directly at the padded shape (padded rows/cols stay zero).
# ---------------------------------------------------------------------------
def build_gcn_norm_adj(edge_index, edge_weight, num_nodes, n_pad,
                       dtype=jnp.float32):
    src, dst = edge_index[0], edge_index[1]
    loop = jnp.arange(num_nodes, dtype=edge_index.dtype)
    src = jnp.concatenate([src, loop])
    dst = jnp.concatenate([dst, loop])
    w = jnp.concatenate([edge_weight.astype(jnp.float32),
                         jnp.ones((num_nodes,), jnp.float32)])

    deg = jnp.zeros((num_nodes,), jnp.float32).at[dst].add(w)
    deg_inv_sqrt = jnp.where(deg > 0, 1.0 / jnp.sqrt(deg), 0.0)
    norm = deg_inv_sqrt[src] * w * deg_inv_sqrt[dst]

    # A_hat[dst, src] = norm  so that A_hat @ X aggregates messages src -> dst
    a_hat = jnp.zeros((n_pad, n_pad), jnp.float32).at[dst, src].add(norm)
    return a_hat.astype(dtype)


def _pick_layout(n, tile=1024):
    """(n_pad, tm, tk) for the Pallas path; None -> tiny-graph XLA fallback."""
    if n <= 512:
        return None
    n_pad = _round_up(n, tile)
    # keep >= 2 row tiles so both v7x TensorCores get work on the parallel axis
    tm = tile if n_pad // tile >= 2 else n_pad // 2
    return n_pad, tm, tile


def backbone_forward(x, edge_index, edge_weight, w1, b1, w2, b2):
    """h = relu(A_hat @ (X W1) + b1);  out = A_hat @ (h W2) + b2."""
    n = x.shape[0]
    h_feats = w1.shape[1]
    num_classes = w2.shape[1]

    layout = _pick_layout(n)
    if layout is None:
        # Tiny graphs: XLA fuses the whole forward in one pass; Pallas launch +
        # padding overhead would dominate.
        a = build_gcn_norm_adj(edge_index, edge_weight, n, n, jnp.float32)
        h = jnp.maximum(a @ (x @ w1) + jnp.reshape(b1, (1, -1)), 0.0)
        return a @ (h @ w2) + jnp.reshape(b2, (1, -1))

    n_pad, tm, tk = layout
    f1 = _round_up(h_feats, _LANE)       # lane-dense hidden width
    f2 = _round_up(num_classes, _LANE)   # lane-dense output width

    # A_hat built directly padded + cast to bf16 once (read by both layers).
    a_pad = build_gcn_norm_adj(edge_index, edge_weight, n, n_pad, jnp.bfloat16)

    # Hoisted tiny projection X @ W1 (plain XLA, f32), padded lane-dense bf16.
    xw1 = x.astype(jnp.float32) @ w1.astype(jnp.float32)
    xw1_pad = jnp.zeros((n_pad, f1), jnp.bfloat16).at[:n, :h_feats].set(
        xw1.astype(jnp.bfloat16))

    b1_pad = jnp.zeros((1, f1), jnp.float32).at[0, :h_feats].set(
        jnp.reshape(b1, (-1,)).astype(jnp.float32))
    b2_pad = jnp.zeros((1, f2), jnp.float32).at[0, :num_classes].set(
        jnp.reshape(b2, (-1,)).astype(jnp.float32))
    w2_pad = jnp.zeros((f1, f2), jnp.bfloat16).at[:h_feats, :num_classes].set(
        w2.astype(jnp.bfloat16))

    # Keep XW fully VMEM-resident unless the graph is huge.
    xw_bytes = n_pad * max(f1, f2) * 2
    xw_resident = xw_bytes <= (8 << 20)

    vmem_need = (2 * tm * tk * 2          # double-buffered A tile (bf16)
                 + 2 * xw_bytes           # resident XW (worst case 2 buffers)
                 + 2 * tm * f2 * 4        # output block
                 + tm * f1 * 4            # f32 accumulator scratch
                 + f1 * f2 * 2)
    vmem_limit = int(min(max(2 * vmem_need, 32 << 20), 56 << 20))

    # Layer 1 (fused epilogue emits HW2 in bf16, consumed directly by layer 2).
    hw2_pad = _run_layer1(a_pad, xw1_pad, b1_pad, w2_pad,
                          tm=tm, tk=tk, xw_resident=xw_resident,
                          vmem_limit=vmem_limit)
    out_pad = _run_layer2(a_pad, hw2_pad, b2_pad,
                          tm=tm, tk=tk, xw_resident=xw_resident,
                          vmem_limit=vmem_limit)
    return out_pad[:n, :num_classes]


def backbone_get_embedding(x, edge_index, edge_weight, w1, b1):
    """conv1 output (no ReLU), mirroring Backbone.get_embedding — plain XLA."""
    n = x.shape[0]
    a = build_gcn_norm_adj(edge_index, edge_weight, n, n, jnp.float32)
    return a @ (x @ w1) + jnp.reshape(b1, (1, -1))


def reference_forward(a_hat, x, w1, b1, w2, b2):
    h = jnp.maximum(a_hat @ (x @ w1) + jnp.reshape(b1, (1, -1)), 0.0)
    return a_hat @ (h @ w2) + jnp.reshape(b2, (1, -1))


if __name__ == "__main__":
    in_feats, h_feats, num_classes = 8, 32, 4

    key = jax.random.PRNGKey(0)
    k_w1, k_b1, k_w2, k_b2, k_data = jax.random.split(key, 5)

    lim1 = (6.0 / (in_feats + h_feats)) ** 0.5
    w1 = jax.random.uniform(k_w1, (in_feats, h_feats), jnp.float32, -lim1, lim1)
    b1 = jax.random.uniform(k_b1, (h_feats,), jnp.float32, -0.1, 0.1)
    lim2 = (6.0 / (h_feats + num_classes)) ** 0.5
    w2 = jax.random.uniform(k_w2, (h_feats, num_classes), jnp.float32, -lim2, lim2)
    b2 = jax.random.uniform(k_b2, (num_classes,), jnp.float32, -0.1, 0.1)

    fwd = jax.jit(backbone_forward)

    all_ok = True
    # (600 nodes -> Pallas path, padded to 1024, tm=512/tk=1024, grid=(2,1));
    # (16 nodes  -> tiny-graph XLA fallback path)
    for num_nodes, num_edges in [(600, 3000), (16, 40)]:
        k_x, k_e, k_ew, k_data = jax.random.split(k_data, 4)
        x = jax.random.normal(k_x, (num_nodes, in_feats), jnp.float32)
        edge_index = jax.random.randint(k_e, (2, num_edges), 0, num_nodes,
                                        jnp.int32)
        edge_weight = jax.random.uniform(k_ew, (num_edges,), jnp.float32,
                                         0.1, 1.0)

        out = jax.block_until_ready(
            fwd(x, edge_index, edge_weight, w1, b1, w2, b2))

        a_ref = build_gcn_norm_adj(edge_index, edge_weight, num_nodes,
                                   num_nodes, jnp.float32)
        ref = reference_forward(a_ref, x, w1, b1, w2, b2)

        assert out.shape == (num_nodes, num_classes)
        # bf16 A / XW / fused h@W2 -> small drift vs pure-f32 reference.
        all_ok &= bool(jnp.allclose(out, ref, atol=5e-2, rtol=5e-2))

    assert all_ok
    print("KERNEL_OK")
</pallas_src>

<mosaic_0001>
module attributes {stable_mosaic.version = 11 : i64} {
  func.func private @main(%arg0: i32) attributes {dimension_semantics = [#tpu.dimension_semantics<core_parallel>], iteration_bounds = array<i64: 2>, tpu.core_type = #tpu.core_type<sc_scalar_subcore>, window_params = []} {
    return
  }
}

module attributes {stable_mosaic.version = 11 : i64} {
  func.func private @main(%arg0: i32) attributes {dimension_semantics = [#tpu.dimension_semantics<core_parallel>], iteration_bounds = array<i64: 2>, tpu.core_type = #tpu.core_type<sc_scalar_subcore>, window_params = []} {
    return
  }
}

module attributes {stable_mosaic.version = 11 : i64} {
  func.func @_gcn_layer1_kernel(%arg0: i32, %arg1: i32, %arg2: memref<512x1024xbf16, #tpu.memory_space<vmem>>, %arg3: memref<1024x128xbf16, #tpu.memory_space<vmem>>, %arg4: memref<1x128xf32, #tpu.memory_space<vmem>>, %arg5: memref<128x128xbf16, #tpu.memory_space<vmem>>, %arg6: memref<512x128xbf16, #tpu.memory_space<vmem>>, %arg7: memref<512x128xf32, #tpu.memory_space<vmem>>) attributes {dimension_semantics = [#tpu.dimension_semantics<parallel>, #tpu.dimension_semantics<arbitrary>], iteration_bounds = array<i64: 2, 1>, scalar_prefetch = 0 : i64, scratch_operands = 1 : i64, tpu.core_type = #tpu.core_type<tc>, window_params = [{transform_indices = @transform_0, window_bounds = array<i64: 512, 1024>}, {pipeline_mode = #tpu.pipeline_mode<synchronous>, transform_indices = @transform_1, window_bounds = array<i64: 1024, 128>}, {pipeline_mode = #tpu.pipeline_mode<synchronous>, transform_indices = @transform_2, window_bounds = array<i64: 1, 128>}, {pipeline_mode = #tpu.pipeline_mode<synchronous>, transform_indices = @transform_3, window_bounds = array<i64: 128, 128>}, {transform_indices = @transform_4, window_bounds = array<i64: 512, 128>}]} {
    %c0_i32 = arith.constant 0 : i32
    %0 = arith.cmpi eq, %arg1, %c0_i32 : i32
    %1 = arith.extui %0 : i1 to i32
    %c0_i32_0 = arith.constant 0 : i32
    %2 = arith.cmpi ne, %1, %c0_i32_0 : i32
    scf.if %2 {
      %cst_9 = arith.constant 0.000000e+00 : f32
      %15 = vector.broadcast %cst_9 : f32 to vector<512x128xf32>
      %c0_10 = arith.constant 0 : index
      %c0_11 = arith.constant 0 : index
      %16 = vector.load %arg4[%c0_10, %c0_11] : memref<1x128xf32, #tpu.memory_space<vmem>>, vector<1x128xf32>
      %17 = vector.broadcast %16 : vector<1x128xf32> to vector<512x128xf32>
      %18 = arith.addf %15, %17 : vector<512x128xf32>
      %c0_12 = arith.constant 0 : index
      %c0_13 = arith.constant 0 : index
      %19 = vector.load %arg7[%c0_12, %c0_13] : memref<512x128xf32, #tpu.memory_space<vmem>>, vector<512x128xf32>
      tpu.vector_store %arg7[%c0_12, %c0_13], %18 {strides = array<i32>} : memref<512x128xf32, #tpu.memory_space<vmem>>, vector<512x128xf32>,
    } else {
    }
    %c1024_i32 = arith.constant 1024 : i32
    %3 = arith.muli %arg1, %c1024_i32 : i32
    %4 = tpu.assume_multiple %3, 1024 : i32
    %5 = arith.index_cast %4 : i32 to index
    %c0 = arith.constant 0 : index
    %6 = vector.load %arg3[%5, %c0] : memref<1024x128xbf16, #tpu.memory_space<vmem>>, vector<1024x128xbf16>
    %c0_1 = arith.constant 0 : index
    %c0_2 = arith.constant 0 : index
    %7 = vector.load %arg7[%c0_1, %c0_2] : memref<512x128xf32, #tpu.memory_space<vmem>>, vector<512x128xf32>
    %c0_3 = arith.constant 0 : index
    %c0_4 = arith.constant 0 : index
    %8 = vector.load %arg2[%c0_3, %c0_4] : memref<512x1024xbf16, #tpu.memory_space<vmem>>, vector<512x1024xbf16>
    %cst = arith.constant dense<0.000000e+00> : vector<512x128xf32>
    %9 = tpu.matmul %8, %6, %cst {dimension_numbers = #tpu.dot_dimension_numbers<[1], [0], [0], [1], [0, 0, 1, 1], [], []>} : vector<512x1024xbf16>, vector<1024x128xbf16>, vector<512x128xf32> -> vector<512x128xf32>
    %10 = arith.addf %7, %9 : vector<512x128xf32>
    %c0_5 = arith.constant 0 : index
    %c0_6 = arith.constant 0 : index
    %11 = vector.load %arg7[%c0_5, %c0_6] : memref<512x128xf32, #tpu.memory_space<vmem>>, vector<512x128xf32>
    tpu.vector_store %arg7[%c0_5, %c0_6], %10 {strides = array<i32>} : memref<512x128xf32, #tpu.memory_space<vmem>>, vector<512x128xf32>,
    %c0_i32_7 = arith.constant 0 : i32
    %12 = arith.cmpi eq, %arg1, %c0_i32_7 : i32
    %13 = arith.extui %12 : i1 to i32
    %c0_i32_8 = arith.constant 0 : i32
    %14 = arith.cmpi ne, %13, %c0_i32_8 : i32
    scf.if %14 {
      %c0_9 = arith.constant 0 : index
      %c0_10 = arith.constant 0 : index
      %15 = vector.load %arg7[%c0_9, %c0_10] : memref<512x128xf32, #tpu.memory_space<vmem>>, vector<512x128xf32>
      %cst_11 = arith.constant 0.000000e+00 : f32
      %16 = vector.broadcast %cst_11 : f32 to vector<512x128xf32>
      %17 = arith.maximumf %15, %16 : vector<512x128xf32>
      %18 = arith.truncf %17 : vector<512x128xf32> to vector<512x128xbf16>
      %c0_12 = arith.constant 0 : index
      %c0_13 = arith.constant 0 : index
      %19 = vector.load %arg5[%c0_12, %c0_13] : memref<128x128xbf16, #tpu.memory_space<vmem>>, vector<128x128xbf16>
      %cst_14 = arith.constant dense<0.000000e+00> : vector<512x128xf32>
      %20 = tpu.matmul %18, %19, %cst_14 {dimension_numbers = #tpu.dot_dimension_numbers<[1], [0], [0], [1], [0, 0, 1, 1], [], []>} : vector<512x128xbf16>, vector<128x128xbf16>, vector<512x128xf32> -> vector<512x128xf32>
      %21 = arith.truncf %20 : vector<512x128xf32> to vector<512x128xbf16>
      %c0_15 = arith.constant 0 : index
      %c0_16 = arith.constant 0 : index
      %22 = vector.load %arg6[%c0_15, %c0_16] : memref<512x128xbf16, #tpu.memory_space<vmem>>, vector<512x128xbf16>
      tpu.vector_store %arg6[%c0_15, %c0_16], %21 {strides = array<i32>} : memref<512x128xbf16, #tpu.memory_space<vmem>>, vector<512x128xbf16>,
    } else {
    }
    return
  }
  func.func @transform_0(%arg0: i32, %arg1: i32) -> (i32, i32) {
    %c0_i32 = arith.constant 0 : i32
    return %arg0, %arg1 : i32, i32
  }
  func.func @transform_1(%arg0: i32, %arg1: i32) -> (i32, i32) {
    %c0_i32 = arith.constant 0 : i32
    %c0_i32_0 = arith.constant 0 : i32
    %c0_i32_1 = arith.constant 0 : i32
    return %c0_i32, %c0_i32_0 : i32, i32
  }
  func.func @transform_2(%arg0: i32, %arg1: i32) -> (i32, i32) {
    %c0_i32 = arith.constant 0 : i32
    %c0_i32_0 = arith.constant 0 : i32
    %c0_i32_1 = arith.constant 0 : i32
    return %c0_i32, %c0_i32_0 : i32, i32
  }
  func.func @transform_3(%arg0: i32, %arg1: i32) -> (i32, i32) {
    %c0_i32 = arith.constant 0 : i32
    %c0_i32_0 = arith.constant 0 : i32
    %c0_i32_1 = arith.constant 0 : i32
    return %c0_i32, %c0_i32_0 : i32, i32
  }
  func.func @transform_4(%arg0: i32, %arg1: i32) -> (i32, i32) {
    %c0_i32 = arith.constant 0 : i32
    %c0_i32_0 = arith.constant 0 : i32
    return %arg0, %c0_i32 : i32, i32
  }
}

module attributes {stable_mosaic.version = 11 : i64} {
  func.func @_gcn_layer2_kernel(%arg0: i32, %arg1: i32, %arg2: memref<512x1024xbf16, #tpu.memory_space<vmem>>, %arg3: memref<1024x128xbf16, #tpu.memory_space<vmem>>, %arg4: memref<1x128xf32, #tpu.memory_space<vmem>>, %arg5: memref<512x128xf32, #tpu.memory_space<vmem>>) attributes {dimension_semantics = [#tpu.dimension_semantics<parallel>, #tpu.dimension_semantics<arbitrary>], iteration_bounds = array<i64: 2, 1>, scalar_prefetch = 0 : i64, scratch_operands = 0 : i64, tpu.core_type = #tpu.core_type<tc>, window_params = [{transform_indices = @transform_0, window_bounds = array<i64: 512, 1024>}, {pipeline_mode = #tpu.pipeline_mode<synchronous>, transform_indices = @transform_1, window_bounds = array<i64: 1024, 128>}, {pipeline_mode = #tpu.pipeline_mode<synchronous>, transform_indices = @transform_2, window_bounds = array<i64: 1, 128>}, {transform_indices = @transform_3, window_bounds = array<i64: 512, 128>}]} {
    %c0_i32 = arith.constant 0 : i32
    %0 = arith.cmpi eq, %arg1, %c0_i32 : i32
    %1 = arith.extui %0 : i1 to i32
    %c0_i32_0 = arith.constant 0 : i32
    %2 = arith.cmpi ne, %1, %c0_i32_0 : i32
    scf.if %2 {
      %cst_7 = arith.constant 0.000000e+00 : f32
      %12 = vector.broadcast %cst_7 : f32 to vector<512x128xf32>
      %c0_8 = arith.constant 0 : index
      %c0_9 = arith.constant 0 : index
      %13 = vector.load %arg4[%c0_8, %c0_9] : memref<1x128xf32, #tpu.memory_space<vmem>>, vector<1x128xf32>
      %14 = vector.broadcast %13 : vector<1x128xf32> to vector<512x128xf32>
      %15 = arith.addf %12, %14 : vector<512x128xf32>
      %c0_10 = arith.constant 0 : index
      %c0_11 = arith.constant 0 : index
      %16 = vector.load %arg5[%c0_10, %c0_11] : memref<512x128xf32, #tpu.memory_space<vmem>>, vector<512x128xf32>
      tpu.vector_store %arg5[%c0_10, %c0_11], %15 {strides = array<i32>} : memref<512x128xf32, #tpu.memory_space<vmem>>, vector<512x128xf32>,
    } else {
    }
    %c1024_i32 = arith.constant 1024 : i32
    %3 = arith.muli %arg1, %c1024_i32 : i32
    %4 = tpu.assume_multiple %3, 1024 : i32
    %5 = arith.index_cast %4 : i32 to index
    %c0 = arith.constant 0 : index
    %6 = vector.load %arg3[%5, %c0] : memref<1024x128xbf16, #tpu.memory_space<vmem>>, vector<1024x128xbf16>
    %c0_1 = arith.constant 0 : index
    %c0_2 = arith.constant 0 : index
    %7 = vector.load %arg5[%c0_1, %c0_2] : memref<512x128xf32, #tpu.memory_space<vmem>>, vector<512x128xf32>
    %c0_3 = arith.constant 0 : index
    %c0_4 = arith.constant 0 : index
    %8 = vector.load %arg2[%c0_3, %c0_4] : memref<512x1024xbf16, #tpu.memory_space<vmem>>, vector<512x1024xbf16>
    %cst = arith.constant dense<0.000000e+00> : vector<512x128xf32>
    %9 = tpu.matmul %8, %6, %cst {dimension_numbers = #tpu.dot_dimension_numbers<[1], [0], [0], [1], [0, 0, 1, 1], [], []>} : vector<512x1024xbf16>, vector<1024x128xbf16>, vector<512x128xf32> -> vector<512x128xf32>
    %10 = arith.addf %7, %9 : vector<512x128xf32>
    %c0_5 = arith.constant 0 : index
    %c0_6 = arith.constant 0 : index
    %11 = vector.load %arg5[%c0_5, %c0_6] : memref<512x128xf32, #tpu.memory_space<vmem>>, vector<512x128xf32>
    tpu.vector_store %arg5[%c0_5, %c0_6], %10 {strides = array<i32>} : memref<512x128xf32, #tpu.memory_space<vmem>>, vector<512x128xf32>,
    return
  }
  func.func @transform_0(%arg0: i32, %arg1: i32) -> (i32, i32) {
    %c0_i32 = arith.constant 0 : i32
    return %arg0, %arg1 : i32, i32
  }
  func.func @transform_1(%arg0: i32, %arg1: i32) -> (i32, i32) {
    %c0_i32 = arith.constant 0 : i32
    %c0_i32_0 = arith.constant 0 : i32
    %c0_i32_1 = arith.constant 0 : i32
    return %c0_i32, %c0_i32_0 : i32, i32
  }
  func.func @transform_2(%arg0: i32, %arg1: i32) -> (i32, i32) {
    %c0_i32 = arith.constant 0 : i32
    %c0_i32_0 = arith.constant 0 : i32
    %c0_i32_1 = arith.constant 0 : i32
    return %c0_i32, %c0_i32_0 : i32, i32
  }
  func.func @transform_3(%arg0: i32, %arg1: i32) -> (i32, i32) {
    %c0_i32 = arith.constant 0 : i32
    %c0_i32_0 = arith.constant 0 : i32
    return %arg0, %c0_i32 : i32, i32
  }
}

</mosaic_0001>

<llo_original>
// kernel: backbone_forward.3
$region0: #{backbone_forward.3}
  #allocation0 [shape = 'u32[]', space=smem, size = 0x4, offset = 0x4, fixed_abs, tag = 'smem constant byte address 0x4 - core index']
  #allocation1 [shape = 'u32[144,128]{1,0:T(1,128)}', space=vmem, size = 0x12000, scoped, tag = 'internal scratch']
  %s0 = inlined_call_operand.vmem [shape: bf16[1024,1024], index: 0, kind: input, shape index: {}]
  %s1 = inlined_call_operand.vmem [shape: bf16[1024,128], index: 1, kind: input, shape index: {}]
  %s2 = inlined_call_operand.vmem [shape: f32[1,128], index: 2, kind: input, shape index: {}]
  %s3 = inlined_call_operand.vmem [shape: f32[1024,128], index: 3, kind: output, shape index: {}]
  %s4 = sld [smem:[#allocation0]]
  $region49: #{backbone_forward.3} parent=0
    _
  %s6 = ssub.s32 1, %s4
  %s7 = scalar_select 0, %s6, %s4
  loop: start=0, step=1, limit=4
  $region2: #{backbone_forward.3} parent=0 // loop_pre_header
    _
  $region3: #{backbone_forward.3} parent=0 // loop_header
    %s9 = sphi 0, %s13
    %p10 = scmp.ge.s32.totalorder %s9, 4
    %s16 = sphi 0, %s28
    %s17 = sphi 0, %s24
    %s18 = sphi 0, %s16
    %s19 = sphi 0, %s17
    %s20 = sphi 0, %s18
    %s21 = sphi 0, %s19
    %s33 = sphi 0, %s35
    %s36 = sphi 0, %s33
    %s37 = sphi 0, %s36
    %s53 = sphi 0, %s37
    %s57 = sphi 0, %s57
    %s59 = sphi 0, %s57
    %s60 = sphi 0, %s59
    %s74 = sphi 0, %s60
    %s78 = sphi 0, %s78
    %s80 = sphi 0, %s78
    %s81 = sphi 0, %s80
    %s95 = sphi 0, %s81
    %s101 = sphi 0, %s103
    %s104 = sphi 0, %s101
    %s105 = sphi 0, %s104
    %s121 = sphi 0, %s105
  $region4: #{backbone_forward.3} parent=0 // loop_header_branch
    %12 = sbr.rel (%p10) target = $region8
  $region5: #{backbone_forward.3} parent=0 // loop_body
    %s14 = ssub.s32 %s9, 1
    %s15 = ssub.s32 %s9, 2
    %s22 = sadd.s32 1, %s17
    %p23 = scmp.ge.s32.totalorder %s22, 1
    %s24 = scalar_select %p23, 0, %s22
    %s25 = sadd.s32 1, %s16
    %s26 = scalar_select %p23, %s25, %s16
    %p27 = scmp.ge.s32.totalorder %s26, 2
    %s28 = scalar_select %p27, 0, %s26
    %s29 = ssub.s32 %s16, %s28
    %s30 = ssub.s32 %s17, %s24
    %s31 = sor.u32 %s29, %s30
    %p32 = scmp.eq.s32.totalorder %s31, 0
    %s34 = sadd.s32 %s33, 1
    %s35 = scalar_select %p32, %s33, %s34
    %p38 = pneg %p32
    %p39 = scmp.eq.s32.totalorder %s9, 1
    %p40 = por %p38, %p39
    %p41 = scmp.ne.s32.totalorder %s33, %s36
    %p42 = scmp.eq.s32.totalorder %s9, 0
    %p43 = por %p41, %p42
    %p44 = scmp.ne.s32.totalorder %s33, %s36
    %p45 = scmp.eq.s32.totalorder %s14, 1
    %p46 = por %p44, %p45
    %p47 = scmp.ne.s32.totalorder %s36, %s37
    %p48 = scmp.eq.s32.totalorder %s14, 0
    %p49 = por %p47, %p48
    %p50 = scmp.ne.s32.totalorder %s36, %s37
    %p51 = scmp.eq.s32.totalorder %s15, 1
    %p52 = por %p50, %p51
    %p54 = scmp.ne.s32.totalorder %s37, %s53
    %p55 = scmp.eq.s32.totalorder %s15, 0
    %p56 = por %p54, %p55
    %s58 = sadd.s32 %s57, 1
    %p61 = scmp.eq.s32.totalorder %s9, 1
    %p62 = scmp.ne.s32.totalorder %s57, %s59
    %p63 = scmp.eq.s32.totalorder %s9, 0
    %p64 = por %p62, %p63
    %p65 = scmp.ne.s32.totalorder %s57, %s59
    %p66 = scmp.eq.s32.totalorder %s14, 1
    %p67 = por %p65, %p66
    %p68 = scmp.ne.s32.totalorder %s59, %s60
    %p69 = scmp.eq.s32.totalorder %s14, 0
    %p70 = por %p68, %p69
    %p71 = scmp.ne.s32.totalorder %s59, %s60
    %p72 = scmp.eq.s32.totalorder %s15, 1
    %p73 = por %p71, %p72
    %p75 = scmp.ne.s32.totalorder %s60, %s74
    %p76 = scmp.eq.s32.totalorder %s15, 0
    %p77 = por %p75, %p76
    %s79 = sadd.s32 %s78, 1
    %p82 = scmp.eq.s32.totalorder %s9, 1
    %p83 = scmp.ne.s32.totalorder %s78, %s80
    %p84 = scmp.eq.s32.totalorder %s9, 0
    %p85 = por %p83, %p84
    %p86 = scmp.ne.s32.totalorder %s78, %s80
    %p87 = scmp.eq.s32.totalorder %s14, 1
    %p88 = por %p86, %p87
    %p89 = scmp.ne.s32.totalorder %s80, %s81
    %p90 = scmp.eq.s32.totalorder %s14, 0
    %p91 = por %p89, %p90
    %p92 = scmp.ne.s32.totalorder %s80, %s81
    %p93 = scmp.eq.s32.totalorder %s15, 1
    %p94 = por %p92, %p93
    %p96 = scmp.ne.s32.totalorder %s81, %s95
    %p97 = scmp.eq.s32.totalorder %s15, 0
    %p98 = por %p96, %p97
    %s99 = ssub.s32 %s16, %s28
    %p100 = scmp.eq.s32.totalorder %s99, 0
    %s102 = sadd.s32 %s101, 1
    %s103 = scalar_select %p100, %s101, %s102
    %p106 = pneg %p100
    %p107 = scmp.eq.s32.totalorder %s9, 1
    %p108 = por %p106, %p107
    %p109 = scmp.ne.s32.totalorder %s101, %s104
    %p110 = scmp.eq.s32.totalorder %s9, 0
    %p111 = por %p109, %p110
    %p112 = scmp.ne.s32.totalorder %s101, %s104
    %p113 = scmp.eq.s32.totalorder %s14, 1
    %p114 = por %p112, %p113
    %p115 = scmp.ne.s32.totalorder %s104, %s105
    %p116 = scmp.eq.s32.totalorder %s14, 0
    %p117 = por %p115, %p116
    %p118 = scmp.ne.s32.totalorder %s104, %s105
    %p119 = scmp.eq.s32.totalorder %s15, 1
    %p120 = por %p118, %p119
    %p122 = scmp.ne.s32.totalorder %s105, %s121
    %p123 = scmp.eq.s32.totalorder %s15, 0
    %p124 = por %p122, %p123
    %p125 = scmp.le.s32.totalorder 1, %s9
    %p126 = scmp.lt.s32.totalorder %s9, 3
    %p127 = pnand %p125, %p126
    %p128 = pneg %p127
    // Predicated region
    $region9: #{backbone_forward.3} parent=5 // pred_check
      _
    $region10: #{backbone_forward.3} parent=5 // pred_check_branch
      %130 = sbr.rel (%p127) target = $region12
    $region11: #{backbone_forward.3} parent=5 // pred_region
      %s131 = ssub.s32 %s9, 1
      // Predicated region
      $region13: #{backbone_forward.3} parent=11 // pred_check
        %p132 = pneg %p70
      $region14: #{backbone_forward.3} parent=11 // pred_check_branch
        %134 = sbr.rel (%p132) target = $region16
      $region15: #{backbone_forward.3} parent=11 // pred_region
        _
      $region16: #{backbone_forward.3} parent=11 // pred_fallthru
        _
      // Predicated region
      $region17: #{backbone_forward.3} parent=11 // pred_check
        %p135 = pneg %p91
      $region18: #{backbone_forward.3} parent=11 // pred_check_branch
        %137 = sbr.rel (%p135) target = $region20
      $region19: #{backbone_forward.3} parent=11 // pred_region
        _
      $region20: #{backbone_forward.3} parent=11 // pred_fallthru
        _
    $region12: #{backbone_forward.3} parent=5 // pred_fallthru
      _
    %p138 = scmp.lt.s32.totalorder %s9, 2
    // Predicated region
    $region21: #{backbone_forward.3} parent=5 // pred_check
      %p139 = pneg %p138
    $region22: #{backbone_forward.3} parent=5 // pred_check_branch
      %141 = sbr.rel (%p139) target = $region24
    $region23: #{backbone_forward.3} parent=5 // pred_region
      // Predicated region
      $region25: #{backbone_forward.3} parent=23 // pred_check
        %p142 = pneg %p43
      $region26: #{backbone_forward.3} parent=23 // pred_check_branch
        %144 = sbr.rel (%p142) target = $region28
      $region27: #{backbone_forward.3} parent=23 // pred_region
        %s145 = smul.u32 64, %s16
        %s146 = smul.u32 8, %s17
        %p147 = scmp.lt.s32.totalorder %s145, 127
        %s148 = scalar_select %p147, %s145, 127
        %p149 = scmp.lt.s32.totalorder %s146, 7
        %s150 = scalar_select %p149, %s146, 7
        %s151 = smul.addr %s148, 8
        %s152 = sadd.s32 %s150, %s151
        %s153 = smul.addr %s152, 4
        %s154 = scalar_lea.vmem %s0, %s153
        %s155 = smul.u32 64, %s16
        %s156 = smul.u32 8, %s17
      $region28: #{backbone_forward.3} parent=23 // pred_fallthru
        _
    $region24: #{backbone_forward.3} parent=5 // pred_fallthru
      _
    %p157 = scmp.le.s32.totalorder 1, %s9
    %p158 = scmp.lt.s32.totalorder %s9, 3
    %p159 = pnand %p157, %p158
    %p160 = pneg %p159
    // Predicated region
    $region29: #{backbone_forward.3} parent=5 // pred_check
      _
    $region30: #{backbone_forward.3} parent=5 // pred_check_branch
      %162 = sbr.rel (%p159) target = $region32
    $region31: #{backbone_forward.3} parent=5 // pred_region
      %s163 = ssub.s32 %s9, 1
      %s164 = smul.u32 64, %s18
      %s165 = smul.u32 8, %s19
      %p166 = scmp.lt.s32.totalorder %s164, 127
      %s167 = scalar_select %p166, %s164, 127
      %p168 = scmp.lt.s32.totalorder %s165, 7
      %s169 = scalar_select %p168, %s165, 7
      %s170 = smul.addr %s167, 8
      %s171 = sadd.s32 %s169, %s170
      %s172 = smul.addr %s171, 4
      %s173 = scalar_lea.vmem %s0, %s172
      %p174 = pneg %p49
      %p175 = pneg %p46
      %p176 = pneg %p70
      %p177 = pneg %p67
      %p178 = pneg %p91
      %p179 = pneg %p88
      %p180 = pneg %p117
      %p181 = pneg %p114
      %s182 = smul.u32 64, %s18
      %p183 = scmp.lt.s32.totalorder %s182, 127
      %s184 = scalar_select %p183, %s182, 127
      %s185 = smul.addr %s184, 8
      %s186 = scalar_lea.vmem %s3, %s185
      %s187 = smul.u32 64, %s18
      %s188 = smul.u32 8, %s19
      %p189 = scmp.lt.s32.totalorder %s187, 127
      %s190 = scalar_select %p189, %s187, 127
      %p191 = scmp.lt.s32.totalorder %s188, 7
      %s192 = scalar_select %p191, %s188, 7
      %s193 = smul.addr %s190, 8
      %s194 = sadd.s32 %s192, %s193
      %s195 = smul.addr %s194, 4
      %s196 = scalar_lea.vmem %s0, %s195
      %s197 = smul.u32 64, %s18
      %s198 = smul.u32 8, %s19
      %s199 = smul.u32 64, %s18
      %p200 = scmp.lt.s32.totalorder %s199, 127
      %s201 = scalar_select %p200, %s199, 127
      %s202 = smul.addr %s201, 8
      %s203 = scalar_lea.vmem %s3, %s202
      %s204 = smul.u32 64, %s18
      %p206 = scmp.eq.s32.totalorder %s19, 0
      // Predicated region
      $region33: #{backbone_forward.3} parent=31 // pred_check
        %p207 = pneg %p206
      $region34: #{backbone_forward.3} parent=31 // pred_check_branch
        %209 = sbr.rel (%p207) target = $region36
      $region35: #{backbone_forward.3} parent=31 // pred_region
        %v210 = vld [vmem:[%s2] sm:$0x1]
        %v212 = vlaneseq
        %v213 = vshrl.u32 %v212, 7
        %v214 = vsub.s32 0, %v213
        %v215 = vrot.slane %v210, %v214
        %v217 = vadd.f32 %v215, 0.0
        %218 = vst [vmem:[%s203] sm:$0xff] %v217
        %219 = vst [vmem:[%s203 + $0x8] sm:$0xff] %v217
        %220 = vst [vmem:[%s203 + $0x10] sm:$0xff] %v217
        %221 = vst [vmem:[%s203 + $0x18] sm:$0xff] %v217
        %222 = vst [vmem:[%s203 + $0x20] sm:$0xff] %v217
        %223 = vst [vmem:[%s203 + $0x28] sm:$0xff] %v217
        %224 = vst [vmem:[%s203 + $0x30] sm:$0xff] %v217
        %225 = vst [vmem:[%s203 + $0x38] sm:$0xff] %v217
        %226 = vst [vmem:[%s203 + $0x40] sm:$0xff] %v217
        %227 = vst [vmem:[%s203 + $0x48] sm:$0xff] %v217
        %228 = vst [vmem:[%s203 + $0x50] sm:$0xff] %v217
        %229 = vst [vmem:[%s203 + $0x58] sm:$0xff] %v217
        %230 = vst [vmem:[%s203 + $0x60] sm:$0xff] %v217
        %231 = vst [vmem:[%s203 + $0x68] sm:$0xff] %v217
        %232 = vst [vmem:[%s203 + $0x70] sm:$0xff] %v217
        %233 = vst [vmem:[%s203 + $0x78] sm:$0xff] %v217
        %234 = vst [vmem:[%s203 + $0x80] sm:$0xff] %v217
        %235 = vst [vmem:[%s203 + $0x88] sm:$0xff] %v217
        %236 = vst [vmem:[%s203 + $0x90] sm:$0xff] %v217
        %237 = vst [vmem:[%s203 + $0x98] sm:$0xff] %v217
        %238 = vst [vmem:[%s203 + $0xa0] sm:$0xff] %v217
        %239 = vst [vmem:[%s203 + $0xa8] sm:$0xff] %v217
        %240 = vst [vmem:[%s203 + $0xb0] sm:$0xff] %v217
        %241 = vst [vmem:[%s203 + $0xb8] sm:$0xff] %v217
        %242 = vst [vmem:[%s203 + $0xc0] sm:$0xff] %v217
        %243 = vst [vmem:[%s203 + $0xc8] sm:$0xff] %v217
        %244 = vst [vmem:[%s203 + $0xd0] sm:$0xff] %v217
        %245 = vst [vmem:[%s203 + $0xd8] sm:$0xff] %v217
        %246 = vst [vmem:[%s203 + $0xe0] sm:$0xff] %v217
        %247 = vst [vmem:[%s203 + $0xe8] sm:$0xff] %v217
        %248 = vst [vmem:[%s203 + $0xf0] sm:$0xff] %v217
        %249 = vst [vmem:[%s203 + $0xf8] sm:$0xff] %v217
        %250 = vst [vmem:[%s203 + $0x100] sm:$0xff] %v217
        %251 = vst [vmem:[%s203 + $0x108] sm:$0xff] %v217
        %252 = vst [vmem:[%s203 + $0x110] sm:$0xff] %v217
        %253 = vst [vmem:[%s203 + $0x118] sm:$0xff] %v217
        %254 = vst [vmem:[%s203 + $0x120] sm:$0xff] %v217
        %255 = vst [vmem:[%s203 + $0x128] sm:$0xff] %v217
        %256 = vst [vmem:[%s203 + $0x130] sm:$0xff] %v217
        %257 = vst [vmem:[%s203 + $0x138] sm:$0xff] %v217
        %258 = vst [vmem:[%s203 + $0x140] sm:$0xff] %v217
        %259 = vst [vmem:[%s203 + $0x148] sm:$0xff] %v217
        %260 = vst [vmem:[%s203 + $0x150] sm:$0xff] %v217
        %261 = vst [vmem:[%s203 + $0x158] sm:$0xff] %v217
        %262 = vst [vmem:[%s203 + $0x160] sm:$0xff] %v217
        %263 = vst [vmem:[%s203 + $0x168] sm:$0xff] %v217
        %264 = vst [vmem:[%s203 + $0x170] sm:$0xff] %v217
        %265 = vst [vmem:[%s203 + $0x178] sm:$0xff] %v217
        %266 = vst [vmem:[%s203 + $0x180] sm:$0xff] %v217
        %267 = vst [vmem:[%s203 + $0x188] sm:$0xff] %v217
        %268 = vst [vmem:[%s203 + $0x190] sm:$0xff] %v217
        %269 = vst [vmem:[%s203 + $0x198] sm:$0xff] %v217
        %270 = vst [vmem:[%s203 + $0x1a0] sm:$0xff] %v217
        %271 = vst [vmem:[%s203 + $0x1a8] sm:$0xff] %v217
        %272 = vst [vmem:[%s203 + $0x1b0] sm:$0xff] %v217
        %273 = vst [vmem:[%s203 + $0x1b8] sm:$0xff] %v217
        %274 = vst [vmem:[%s203 + $0x1c0] sm:$0xff] %v217
        %275 = vst [vmem:[%s203 + $0x1c8] sm:$0xff] %v217
        %276 = vst [vmem:[%s203 + $0x1d0] sm:$0xff] %v217
        %277 = vst [vmem:[%s203 + $0x1d8] sm:$0xff] %v217
        %278 = vst [vmem:[%s203 + $0x1e0] sm:$0xff] %v217
        %279 = vst [vmem:[%s203 + $0x1e8] sm:$0xff] %v217
        %280 = vst [vmem:[%s203 + $0x1f0] sm:$0xff] %v217
        %281 = vst [vmem:[%s203 + $0x1f8] sm:$0xff] %v217
      $region36: #{backbone_forward.3} parent=31 // pred_fallthru
        _
      %s282 = smul.u32 %s19, 1024
      %s283 = sshra.s32 %s282, 3
      %s284 = sand.u32 %s282, 7
      %s285 = smul.addr %s283, 4
      %s286 = scalar_lea.vmem %s1, %s285
      %v287 = vld [vmem:[%s286] sm:$0xf]
      %v288 = vld [vmem:[%s286 + $0x4] sm:$0xf]
      %v289 = vld [vmem:[%s286 + $0x8] sm:$0xf]
      %v290 = vld [vmem:[%s286 + $0xc] sm:$0xf]
      %v291 = vld [vmem:[%s286 + $0x10] sm:$0xf]
      %v292 = vld [vmem:[%s286 + $0x14] sm:$0xf]
      %v293 = vld [vmem:[%s286 + $0x18] sm:$0xf]
      %v294 = vld [vmem:[%s286 + $0x1c] sm:$0xf]
      %v295 = vld [vmem:[%s286 + $0x20] sm:$0xf]
      %v296 = vld [vmem:[%s286 + $0x24] sm:$0xf]
      %v297 = vld [vmem:[%s286 + $0x28] sm:$0xf]
      %v298 = vld [vmem:[%s286 + $0x2c] sm:$0xf]
      %v299 = vld [vmem:[%s286 + $0x30] sm:$0xf]
      %v300 = vld [vmem:[%s286 + $0x34] sm:$0xf]
      %v301 = vld [vmem:[%s286 + $0x38] sm:$0xf]
      %v302 = vld [vmem:[%s286 + $0x3c] sm:$0xf]
      %v303 = vld [vmem:[%s286 + $0x40] sm:$0xf]
      %v304 = vld [vmem:[%s286 + $0x44] sm:$0xf]
      %v305 = vld [vmem:[%s286 + $0x48] sm:$0xf]
      %v306 = vld [vmem:[%s286 + $0x4c] sm:$0xf]
      %v307 = vld [vmem:[%s286 + $0x50] sm:$0xf]
      %v308 = vld [vmem:[%s286 + $0x54] sm:$0xf]
      %v309 = vld [vmem:[%s286 + $0x58] sm:$0xf]
      %v310 = vld [vmem:[%s286 + $0x5c] sm:$0xf]
      %v311 = vld [vmem:[%s286 + $0x60] sm:$0xf]
      %v312 = vld [vmem:[%s286 + $0x64] sm:$0xf]
      %v313 = vld [vmem:[%s286 + $0x68] sm:$0xf]
      %v314 = vld [vmem:[%s286 + $0x6c] sm:$0xf]
      %v315 = vld [vmem:[%s286 + $0x70] sm:$0xf]
      %v316 = vld [vmem:[%s286 + $0x74] sm:$0xf]
      %v317 = vld [vmem:[%s286 + $0x78] sm:$0xf]
      %v318 = vld [vmem:[%s286 + $0x7c] sm:$0xf]
      %v319 = vld [vmem:[%s286 + $0x80] sm:$0xf]
      %v320 = vld [vmem:[%s286 + $0x84] sm:$0xf]
      %v321 = vld [vmem:[%s286 + $0x88] sm:$0xf]
      %v322 = vld [vmem:[%s286 + $0x8c] sm:$0xf]
      %v323 = vld [vmem:[%s286 + $0x90] sm:$0xf]
      %v324 = vld [vmem:[%s286 + $0x94] sm:$0xf]
      %v325 = vld [vmem:[%s286 + $0x98] sm:$0xf]
      %v326 = vld [vmem:[%s286 + $0x9c] sm:$0xf]
      %v327 = vld [vmem:[%s286 + $0xa0] sm:$0xf]
      %v328 = vld [vmem:[%s286 + $0xa4] sm:$0xf]
      %v329 = vld [vmem:[%s286 + $0xa8] sm:$0xf]
      %v330 = vld [vmem:[%s286 + $0xac] sm:$0xf]
      %v331 = vld [vmem:[%s286 + $0xb0] sm:$0xf]
      %v332 = vld [vmem:[%s286 + $0xb4] sm:$0xf]
      %v333 = vld [vmem:[%s286 + $0xb8] sm:$0xf]
      %v334 = vld [vmem:[%s286 + $0xbc] sm:$0xf]
      %v335 = vld [vmem:[%s286 + $0xc0] sm:$0xf]
      %v336 = vld [vmem:[%s286 + $0xc4] sm:$0xf]
      %v337 = vld [vmem:[%s286 + $0xc8] sm:$0xf]
      %v338 = vld [vmem:[%s286 + $0xcc] sm:$0xf]
      %v339 = vld [vmem:[%s286 + $0xd0] sm:$0xf]
      %v340 = vld [vmem:[%s286 + $0xd4] sm:$0xf]
      %v341 = vld [vmem:[%s286 + $0xd8] sm:$0xf]
      %v342 = vld [vmem:[%s286 + $0xdc] sm:$0xf]
      %v343 = vld [vmem:[%s286 + $0xe0] sm:$0xf]
      %v344 = vld [vmem:[%s286 + $0xe4] sm:$0xf]
      %v345 = vld [vmem:[%s286 + $0xe8] sm:$0xf]
      %v346 = vld [vmem:[%s286 + $0xec] sm:$0xf]
      %v347 = vld [vmem:[%s286 + $0xf0] sm:$0xf]
      %v348 = vld [vmem:[%s286 + $0xf4] sm:$0xf]
      %v349 = vld [vmem:[%s286 + $0xf8] sm:$0xf]
      %v350 = vld [vmem:[%s286 + $0xfc] sm:$0xf]
      %v351 = vld [vmem:[%s286 + $0x100] sm:$0xf]
      %v352 = vld [vmem:[%s286 + $0x104] sm:$0xf]
      %v353 = vld [vmem:[%s286 + $0x108] sm:$0xf]
      %v354 = vld [vmem:[%s286 + $0x10c] sm:$0xf]
      %v355 = vld [vmem:[%s286 + $0x110] sm:$0xf]
      %v356 = vld [vmem:[%s286 + $0x114] sm:$0xf]
      %v357 = vld [vmem:[%s286 + $0x118] sm:$0xf]
      %v358 = vld [vmem:[%s286 + $0x11c] sm:$0xf]
      %v359 = vld [vmem:[%s286 + $0x120] sm:$0xf]
      %v360 = vld [vmem:[%s286 + $0x124] sm:$0xf]
      %v361 = vld [vmem:[%s286 + $0x128] sm:$0xf]
      %v362 = vld [vmem:[%s286 + $0x12c] sm:$0xf]
      %v363 = vld [vmem:[%s286 + $0x130] sm:$0xf]
      %v364 = vld [vmem:[%s286 + $0x134] sm:$0xf]
      %v365 = vld [vmem:[%s286 + $0x138] sm:$0xf]
      %v366 = vld [vmem:[%s286 + $0x13c] sm:$0xf]
      %v367 = vld [vmem:[%s286 + $0x140] sm:$0xf]
      %v368 = vld [vmem:[%s286 + $0x144] sm:$0xf]
      %v369 = vld [vmem:[%s286 + $0x148] sm:$0xf]
      %v370 = vld [vmem:[%s286 + $0x14c] sm:$0xf]
      %v371 = vld [vmem:[%s286 + $0x150] sm:$0xf]
      %v372 = vld [vmem:[%s286 + $0x154] sm:$0xf]
      %v373 = vld [vmem:[%s286 + $0x158] sm:$0xf]
      %v374 = vld [vmem:[%s286 + $0x15c] sm:$0xf]
      %v375 = vld [vmem:[%s286 + $0x160] sm:$0xf]
      %v376 = vld [vmem:[%s286 + $0x164] sm:$0xf]
      %v377 = vld [vmem:[%s286 + $0x168] sm:$0xf]
      %v378 = vld [vmem:[%s286 + $0x16c] sm:$0xf]
      %v379 = vld [vmem:[%s286 + $0x170] sm:$0xf]
      %v380 = vld [vmem:[%s286 + $0x174] sm:$0xf]
      %v381 = vld [vmem:[%s286 + $0x178] sm:$0xf]
      %v382 = vld [vmem:[%s286 + $0x17c] sm:$0xf]
      %v383 = vld [vmem:[%s286 + $0x180] sm:$0xf]
      %v384 = vld [vmem:[%s286 + $0x184] sm:$0xf]
      %v385 = vld [vmem:[%s286 + $0x188] sm:$0xf]
      %v386 = vld [vmem:[%s286 + $0x18c] sm:$0xf]
      %v387 = vld [vmem:[%s286 + $0x190] sm:$0xf]
      %v388 = vld [vmem:[%s286 + $0x194] sm:$0xf]
      %v389 = vld [vmem:[%s286 + $0x198] sm:$0xf]
      %v390 = vld [vmem:[%s286 + $0x19c] sm:$0xf]
      %v391 = vld [vmem:[%s286 + $0x1a0] sm:$0xf]
      %v392 = vld [vmem:[%s286 + $0x1a4] sm:$0xf]
      %v393 = vld [vmem:[%s286 + $0x1a8] sm:$0xf]
      %v394 = vld [vmem:[%s286 + $0x1ac] sm:$0xf]
      %v395 = vld [vmem:[%s286 + $0x1b0] sm:$0xf]
      %v396 = vld [vmem:[%s286 + $0x1b4] sm:$0xf]
      %v397 = vld [vmem:[%s286 + $0x1b8] sm:$0xf]
      %v398 = vld [vmem:[%s286 + $0x1bc] sm:$0xf]
      %v399 = vld [vmem:[%s286 + $0x1c0] sm:$0xf]
      %v400 = vld [vmem:[%s286 + $0x1c4] sm:$0xf]
      %v401 = vld [vmem:[%s286 + $0x1c8] sm:$0xf]
      %v402 = vld [vmem:[%s286 + $0x1cc] sm:$0xf]
      %v403 = vld [vmem:[%s286 + $0x1d0] sm:$0xf]
      %v404 = vld [vmem:[%s286 + $0x1d4] sm:$0xf]
      %v405 = vld [vmem:[%s286 + $0x1d8] sm:$0xf]
      %v406 = vld [vmem:[%s286 + $0x1dc] sm:$0xf]
      %v407 = vld [vmem:[%s286 + $0x1e0] sm:$0xf]
      %v408 = vld [vmem:[%s286 + $0x1e4] sm:$0xf]
      %v409 = vld [vmem:[%s286 + $0x1e8] sm:$0xf]
      %v410 = vld [vmem:[%s286 + $0x1ec] sm:$0xf]
      %v411 = vld [vmem:[%s286 + $0x1f0] sm:$0xf]
      %v412 = vld [vmem:[%s286 + $0x1f4] sm:$0xf]
      %v413 = vld [vmem:[%s286 + $0x1f8] sm:$0xf]
      %v414 = vld [vmem:[%s286 + $0x1fc] sm:$0xf]
      %v415 = vld [vmem:[%s203] sm:$0xff]
      %v416 = vld [vmem:[%s203 + $0x8] sm:$0xff]
      %v417 = vld [vmem:[%s203 + $0x10] sm:$0xff]
      %v418 = vld [vmem:[%s203 + $0x18] sm:$0xff]
      %v419 = vld [vmem:[%s203 + $0x20] sm:$0xff]
      %v420 = vld [vmem:[%s203 + $0x28] sm:$0xff]
      %v421 = vld [vmem:[%s203 + $0x30] sm:$0xff]
      %v422 = vld [vmem:[%s203 + $0x38] sm:$0xff]
      %v423 = vld [vmem:[%s203 + $0x40] sm:$0xff]
      %v424 = vld [vmem:[%s203 + $0x48] sm:$0xff]
      %v425 = vld [vmem:[%s203 + $0x50] sm:$0xff]
      %v426 = vld [vmem:[%s203 + $0x58] sm:$0xff]
      %v427 = vld [vmem:[%s203 + $0x60] sm:$0xff]
      %v428 = vld [vmem:[%s203 + $0x68] sm:$0xff]
      %v429 = vld [vmem:[%s203 + $0x70] sm:$0xff]
      %v430 = vld [vmem:[%s203 + $0x78] sm:$0xff]
      %v431 = vld [vmem:[%s203 + $0x80] sm:$0xff]
      %v432 = vld [vmem:[%s203 + $0x88] sm:$0xff]
      %v433 = vld [vmem:[%s203 + $0x90] sm:$0xff]
      %v434 = vld [vmem:[%s203 + $0x98] sm:$0xff]
      %v435 = vld [vmem:[%s203 + $0xa0] sm:$0xff]
      %v436 = vld [vmem:[%s203 + $0xa8] sm:$0xff]
      %v437 = vld [vmem:[%s203 + $0xb0] sm:$0xff]
      %v438 = vld [vmem:[%s203 + $0xb8] sm:$0xff]
      %v439 = vld [vmem:[%s203 + $0xc0] sm:$0xff]
      %v440 = vld [vmem:[%s203 + $0xc8] sm:$0xff]
      %v441 = vld [vmem:[%s203 + $0xd0] sm:$0xff]
      %v442 = vld [vmem:[%s203 + $0xd8] sm:$0xff]
      %v443 = vld [vmem:[%s203 + $0xe0] sm:$0xff]
      %v444 = vld [vmem:[%s203 + $0xe8] sm:$0xff]
      %v445 = vld [vmem:[%s203 + $0xf0] sm:$0xff]
      %v446 = vld [vmem:[%s203 + $0xf8] sm:$0xff]
      %v447 = vld [vmem:[%s203 + $0x100] sm:$0xff]
      %v448 = vld [vmem:[%s203 + $0x108] sm:$0xff]
      %v449 = vld [vmem:[%s203 + $0x110] sm:$0xff]
      %v450 = vld [vmem:[%s203 + $0x118] sm:$0xff]
      %v451 = vld [vmem:[%s203 + $0x120] sm:$0xff]
      %v452 = vld [vmem:[%s203 + $0x128] sm:$0xff]
      %v453 = vld [vmem:[%s203 + $0x130] sm:$0xff]
      %v454 = vld [vmem:[%s203 + $0x138] sm:$0xff]
      %v455 = vld [vmem:[%s203 + $0x140] sm:$0xff]
      %v456 = vld [vmem:[%s203 + $0x148] sm:$0xff]
      %v457 = vld [vmem:[%s203 + $0x150] sm:$0xff]
      %v458 = vld [vmem:[%s203 + $0x158] sm:$0xff]
      %v459 = vld [vmem:[%s203 + $0x160] sm:$0xff]
      %v460 = vld [vmem:[%s203 + $0x168] sm:$0xff]
      %v461 = vld [vmem:[%s203 + $0x170] sm:$0xff]
      %v462 = vld [vmem:[%s203 + $0x178] sm:$0xff]
      %v463 = vld [vmem:[%s203 + $0x180] sm:$0xff]
      %v464 = vld [vmem:[%s203 + $0x188] sm:$0xff]
      %v465 = vld [vmem:[%s203 + $0x190] sm:$0xff]
      %v466 = vld [vmem:[%s203 + $0x198] sm:$0xff]
      %v467 = vld [vmem:[%s203 + $0x1a0] sm:$0xff]
      %v468 = vld [vmem:[%s203 + $0x1a8] sm:$0xff]
      %v469 = vld [vmem:[%s203 + $0x1b0] sm:$0xff]
      %v470 = vld [vmem:[%s203 + $0x1b8] sm:$0xff]
      %v471 = vld [vmem:[%s203 + $0x1c0] sm:$0xff]
      %v472 = vld [vmem:[%s203 + $0x1c8] sm:$0xff]
      %v473 = vld [vmem:[%s203 + $0x1d0] sm:$0xff]
      %v474 = vld [vmem:[%s203 + $0x1d8] sm:$0xff]
      %v475 = vld [vmem:[%s203 + $0x1e0] sm:$0xff]
      %v476 = vld [vmem:[%s203 + $0x1e8] sm:$0xff]
      %v477 = vld [vmem:[%s203 + $0x1f0] sm:$0xff]
      %v478 = vld [vmem:[%s203 + $0x1f8] sm:$0xff]
      %v479 = vld [vmem:[%s196] sm:$0xff]
      %v480 = vld [vmem:[%s196 + $0x8] sm:$0xff]
      %v481 = vld [vmem:[%s196 + $0x10] sm:$0xff]
      %v482 = vld [vmem:[%s196 + $0x18] sm:$0xff]
      %v483 = vld [vmem:[%s196 + $0x20] sm:$0xff]
      %v484 = vld [vmem:[%s196 + $0x28] sm:$0xff]
      %v485 = vld [vmem:[%s196 + $0x30] sm:$0xff]
      %v486 = vld [vmem:[%s196 + $0x38] sm:$0xff]
      %v487 = vld [vmem:[%s196 + $0x40] sm:$0xff]
      %v488 = vld [vmem:[%s196 + $0x48] sm:$0xff]
      %v489 = vld [vmem:[%s196 + $0x50] sm:$0xff]
      %v490 = vld [vmem:[%s196 + $0x58] sm:$0xff]
      %v491 = vld [vmem:[%s196 + $0x60] sm:$0xff]
      %v492 = vld [vmem:[%s196 + $0x68] sm:$0xff]
      %v493 = vld [vmem:[%s196 + $0x70] sm:$0xff]
      %v494 = vld [vmem:[%s196 + $0x78] sm:$0xff]
      %v495 = vld [vmem:[%s196 + $0x80] sm:$0xff]
      %v496 = vld [vmem:[%s196 + $0x88] sm:$0xff]
      %v497 = vld [vmem:[%s196 + $0x90] sm:$0xff]
      %v498 = vld [vmem:[%s196 + $0x98] sm:$0xff]
      %v499 = vld [vmem:[%s196 + $0xa0] sm:$0xff]
      %v500 = vld [vmem:[%s196 + $0xa8] sm:$0xff]
      %v501 = vld [vmem:[%s196 + $0xb0] sm:$0xff]
      %v502 = vld [vmem:[%s196 + $0xb8] sm:$0xff]
      %v503 = vld [vmem:[%s196 + $0xc0] sm:$0xff]
      %v504 = vld [vmem:[%s196 + $0xc8] sm:$0xff]
      %v505 = vld [vmem:[%s196 + $0xd0] sm:$0xff]
      %v506 = vld [vmem:[%s196 + $0xd8] sm:$0xff]
      %v507 = vld [vmem:[%s196 + $0xe0] sm:$0xff]
      %v508 = vld [vmem:[%s196 + $0xe8] sm:$0xff]
      %v509 = vld [vmem:[%s196 + $0xf0] sm:$0xff]
      %v510 = vld [vmem:[%s196 + $0xf8] sm:$0xff]
      %v511 = vld [vmem:[%s196 + $0x100] sm:$0xff]
      %v512 = vld [vmem:[%s196 + $0x108] sm:$0xff]
      %v513 = vld [vmem:[%s196 + $0x110] sm:$0xff]
      %v514 = vld [vmem:[%s196 + $0x118] sm:$0xff]
      %v515 = vld [vmem:[%s196 + $0x120] sm:$0xff]
      %v516 = vld [vmem:[%s196 + $0x128] sm:$0xff]
      %v517 = vld [vmem:[%s196 + $0x130] sm:$0xff]
      %v518 = vld [vmem:[%s196 + $0x138] sm:$0xff]
      %v519 = vld [vmem:[%s196 + $0x140] sm:$0xff]
      %v520 = vld [vmem:[%s196 + $0x148] sm:$0xff]
      %v521 = vld [vmem:[%s196 + $0x150] sm:$0xff]
      %v522 = vld [vmem:[%s196 + $0x158] sm:$0xff]
      %v523 = vld [vmem:[%s196 + $0x160] sm:$0xff]
      %v524 = vld [vmem:[%s196 + $0x168] sm:$0xff]
      %v525 = vld [vmem:[%s196 + $0x170] sm:$0xff]
      %v526 = vld [vmem:[%s196 + $0x178] sm:$0xff]
      %v527 = vld [vmem:[%s196 + $0x180] sm:$0xff]
      %v528 = vld [vmem:[%s196 + $0x188] sm:$0xff]
      %v529 = vld [vmem:[%s196 + $0x190] sm:$0xff]
      %v530 = vld [vmem:[%s196 + $0x198] sm:$0xff]
      %v531 = vld [vmem:[%s196 + $0x1a0] sm:$0xff]
      %v532 = vld [vmem:[%s196 + $0x1a8] sm:$0xff]
      %v533 = vld [vmem:[%s196 + $0x1b0] sm:$0xff]
      %v534 = vld [vmem:[%s196 + $0x1b8] sm:$0xff]
      %v535 = vld [vmem:[%s196 + $0x1c0] sm:$0xff]
      %v536 = vld [vmem:[%s196 + $0x1c8] sm:$0xff]
      %v537 = vld [vmem:[%s196 + $0x1d0] sm:$0xff]
      %v538 = vld [vmem:[%s196 + $0x1d8] sm:$0xff]
      %v539 = vld [vmem:[%s196 + $0x1e0] sm:$0xff]
      %v540 = vld [vmem:[%s196 + $0x1e8] sm:$0xff]
      %v541 = vld [vmem:[%s196 + $0x1f0] sm:$0xff]
      %v542 = vld [vmem:[%s196 + $0x1f8] sm:$0xff]
      %v543 = vld [vmem:[%s196 + $0x200] sm:$0xff]
      %v544 = vld [vmem:[%s196 + $0x208] sm:$0xff]
      %v545 = vld [vmem:[%s196 + $0x210] sm:$0xff]
      %v546 = vld [vmem:[%s196 + $0x218] sm:$0xff]
      %v547 = vld [vmem:[%s196 + $0x220] sm:$0xff]
      %v548 = vld [vmem:[%s196 + $0x228] sm:$0xff]
      %v549 = vld [vmem:[%s196 + $0x230] sm:$0xff]
      %v550 = vld [vmem:[%s196 + $0x238] sm:$0xff]
      %v551 = vld [vmem:[%s196 + $0x240] sm:$0xff]
      %v552 = vld [vmem:[%s196 + $0x248] sm:$0xff]
      %v553 = vld [vmem:[%s196 + $0x250] sm:$0xff]
      %v554 = vld [vmem:[%s196 + $0x258] sm:$0xff]
      %v555 = vld [vmem:[%s196 + $0x260] sm:$0xff]
      %v556 = vld [vmem:[%s196 + $0x268] sm:$0xff]
      %v557 = vld [vmem:[%s196 + $0x270] sm:$0xff]
      %v558 = vld [vmem:[%s196 + $0x278] sm:$0xff]
      %v559 = vld [vmem:[%s196 + $0x280] sm:$0xff]
      %v560 = vld [vmem:[%s196 + $0x288] sm:$0xff]
      %v561 = vld [vmem:[%s196 + $0x290] sm:$0xff]
      %v562 = vld [vmem:[%s196 + $0x298] sm:$0xff]
      %v563 = vld [vmem:[%s196 + $0x2a0] sm:$0xff]
      %v564 = vld [vmem:[%s196 + $0x2a8] sm:$0xff]
      %v565 = vld [vmem:[%s196 + $0x2b0] sm:$0xff]
      %v566 = vld [vmem:[%s196 + $0x2b8] sm:$0xff]
      %v567 = vld [vmem:[%s196 + $0x2c0] sm:$0xff]
      %v568 = vld [vmem:[%s196 + $0x2c8] sm:$0xff]
      %v569 = vld [vmem:[%s196 + $0x2d0] sm:$0xff]
      %v570 = vld [vmem:[%s196 + $0x2d8] sm:$0xff]
      %v571 = vld [vmem:[%s196 + $0x2e0] sm:$0xff]
      %v572 = vld [vmem:[%s196 + $0x2e8] sm:$0xff]
      %v573 = vld [vmem:[%s196 + $0x2f0] sm:$0xff]
      %v574 = vld [vmem:[%s196 + $0x2f8] sm:$0xff]
      %v575 = vld [vmem:[%s196 + $0x300] sm:$0xff]
      %v576 = vld [vmem:[%s196 + $0x308] sm:$0xff]
      %v577 = vld [vmem:[%s196 + $0x310] sm:$0xff]
      %v578 = vld [vmem:[%s196 + $0x318] sm:$0xff]
      %v579 = vld [vmem:[%s196 + $0x320] sm:$0xff]
      %v580 = vld [vmem:[%s196 + $0x328] sm:$0xff]
      %v581 = vld [vmem:[%s196 + $0x330] sm:$0xff]
      %v582 = vld [vmem:[%s196 + $0x338] sm:$0xff]
      %v583 = vld [vmem:[%s196 + $0x340] sm:$0xff]
      %v584 = vld [vmem:[%s196 + $0x348] sm:$0xff]
      %v585 = vld [vmem:[%s196 + $0x350] sm:$0xff]
      %v586 = vld [vmem:[%s196 + $0x358] sm:$0xff]
      %v587 = vld [vmem:[%s196 + $0x360] sm:$0xff]
      %v588 = vld [vmem:[%s196 + $0x368] sm:$0xff]
      %v589 = vld [vmem:[%s196 + $0x370] sm:$0xff]
      %v590 = vld [vmem:[%s196 + $0x378] sm:$0xff]
      %v591 = vld [vmem:[%s196 + $0x380] sm:$0xff]
      %v592 = vld [vmem:[%s196 + $0x388] sm:$0xff]
      %v593 = vld [vmem:[%s196 + $0x390] sm:$0xff]
      %v594 = vld [vmem:[%s196 + $0x398] sm:$0xff]
      %v595 = vld [vmem:[%s196 + $0x3a0] sm:$0xff]
      %v596 = vld [vmem:[%s196 + $0x3a8] sm:$0xff]
      %v597 = vld [vmem:[%s196 + $0x3b0] sm:$0xff]
      %v598 = vld [vmem:[%s196 + $0x3b8] sm:$0xff]
      %v599 = vld [vmem:[%s196 + $0x3c0] sm:$0xff]
      %v600 = vld [vmem:[%s196 + $0x3c8] sm:$0xff]
      %v601 = vld [vmem:[%s196 + $0x3d0] sm:$0xff]
      %v602 = vld [vmem:[%s196 + $0x3d8] sm:$0xff]
      %v603 = vld [vmem:[%s196 + $0x3e0] sm:$0xff]
      %v604 = vld [vmem:[%s196 + $0x3e8] sm:$0xff]
      %v605 = vld [vmem:[%s196 + $0x3f0] sm:$0xff]
      %v606 = vld [vmem:[%s196 + $0x3f8] sm:$0xff]
      %v607 = vld [vmem:[%s196 + $0x400] sm:$0xff]
      %v608 = vld [vmem:[%s196 + $0x408] sm:$0xff]
      %v609 = vld [vmem:[%s196 + $0x410] sm:$0xff]
      %v610 = vld [vmem:[%s196 + $0x418] sm:$0xff]
      %v611 = vld [vmem:[%s196 + $0x420] sm:$0xff]
      %v612 = vld [vmem:[%s196 + $0x428] sm:$0xff]
      %v613 = vld [vmem:[%s196 + $0x430] sm:$0xff]
      %v614 = vld [vmem:[%s196 + $0x438] sm:$0xff]
      %v615 = vld [vmem:[%s196 + $0x440] sm:$0xff]
      %v616 = vld [vmem:[%s196 + $0x448] sm:$0xff]
      %v617 = vld [vmem:[%s196 + $0x450] sm:$0xff]
      %v618 = vld [vmem:[%s196 + $0x458] sm:$0xff]
      %v619 = vld [vmem:[%s196 + $0x460] sm:$0xff]
      %v620 = vld [vmem:[%s196 + $0x468] sm:$0xff]
      %v621 = vld [vmem:[%s196 + $0x470] sm:$0xff]
      %v622 = vld [vmem:[%s196 + $0x478] sm:$0xff]
      %v623 = vld [vmem:[%s196 + $0x480] sm:$0xff]
      %v624 = vld [vmem:[%s196 + $0x488] sm:$0xff]
      %v625 = vld [vmem:[%s196 + $0x490] sm:$0xff]
      %v626 = vld [vmem:[%s196 + $0x498] sm:$0xff]
      %v627 = vld [vmem:[%s196 + $0x4a0] sm:$0xff]
      %v628 = vld [vmem:[%s196 + $0x4a8] sm:$0xff]
      %v629 = vld [vmem:[%s196 + $0x4b0] sm:$0xff]
      %v630 = vld [vmem:[%s196 + $0x4b8] sm:$0xff]
      %v631 = vld [vmem:[%s196 + $0x4c0] sm:$0xff]
      %v632 = vld [vmem:[%s196 + $0x4c8] sm:$0xff]
      %v633 = vld [vmem:[%s196 + $0x4d0] sm:$0xff]
      %v634 = vld [vmem:[%s196 + $0x4d8] sm:$0xff]
      %v635 = vld [vmem:[%s196 + $0x4e0] sm:$0xff]
      %v636 = vld [vmem:[%s196 + $0x4e8] sm:$0xff]
      %v637 = vld [vmem:[%s196 + $0x4f0] sm:$0xff]
      %v638 = vld [vmem:[%s196 + $0x4f8] sm:$0xff]
      %v639 = vld [vmem:[%s196 + $0x500] sm:$0xff]
      %v640 = vld [vmem:[%s196 + $0x508] sm:$0xff]
      %v641 = vld [vmem:[%s196 + $0x510] sm:$0xff]
      %v642 = vld [vmem:[%s196 + $0x518] sm:$0xff]
      %v643 = vld [vmem:[%s196 + $0x520] sm:$0xff]
      %v644 = vld [vmem:[%s196 + $0x528] sm:$0xff]
      %v645 = vld [vmem:[%s196 + $0x530] sm:$0xff]
      %v646 = vld [vmem:[%s196 + $0x538] sm:$0xff]
      %v647 = vld [vmem:[%s196 + $0x540] sm:$0xff]
      %v648 = vld [vmem:[%s196 + $0x548] sm:$0xff]
      %v649 = vld [vmem:[%s196 + $0x550] sm:$0xff]
      %v650 = vld [vmem:[%s196 + $0x558] sm:$0xff]
      %v651 = vld [vmem:[%s196 + $0x560] sm:$0xff]
      %v652 = vld [vmem:[%s196 + $0x568] sm:$0xff]
      %v653 = vld [vmem:[%s196 + $0x570] sm:$0xff]
      %v654 = vld [vmem:[%s196 + $0x578] sm:$0xff]
      %v655 = vld [vmem:[%s196 + $0x580] sm:$0xff]
      %v656 = vld [vmem:[%s196 + $0x588] sm:$0xff]
      %v657 = vld [vmem:[%s196 + $0x590] sm:$0xff]
      %v658 = vld [vmem:[%s196 + $0x598] sm:$0xff]
      %v659 = vld [vmem:[%s196 + $0x5a0] sm:$0xff]
      %v660 = vld [vmem:[%s196 + $0x5a8] sm:$0xff]
      %v661 = vld [vmem:[%s196 + $0x5b0] sm:$0xff]
      %v662 = vld [vmem:[%s196 + $0x5b8] sm:$0xff]
      %v663 = vld [vmem:[%s196 + $0x5c0] sm:$0xff]
      %v664 = vld [vmem:[%s196 + $0x5c8] sm:$0xff]
      %v665 = vld [vmem:[%s196 + $0x5d0] sm:$0xff]
      %v666 = vld [vmem:[%s196 + $0x5d8] sm:$0xff]
      %v667 = vld [vmem:[%s196 + $0x5e0] sm:$0xff]
      %v668 = vld [vmem:[%s196 + $0x5e8] sm:$0xff]
      %v669 = vld [vmem:[%s196 + $0x5f0] sm:$0xff]
      %v670 = vld [vmem:[%s196 + $0x5f8] sm:$0xff]
      %v671 = vld [vmem:[%s196 + $0x600] sm:$0xff]
      %v672 = vld [vmem:[%s196 + $0x608] sm:$0xff]
      %v673 = vld [vmem:[%s196 + $0x610] sm:$0xff]
      %v674 = vld [vmem:[%s196 + $0x618] sm:$0xff]
      %v675 = vld [vmem:[%s196 + $0x620] sm:$0xff]
      %v676 = vld [vmem:[%s196 + $0x628] sm:$0xff]
      %v677 = vld [vmem:[%s196 + $0x630] sm:$0xff]
      %v678 = vld [vmem:[%s196 + $0x638] sm:$0xff]
      %v679 = vld [vmem:[%s196 + $0x640] sm:$0xff]
      %v680 = vld [vmem:[%s196 + $0x648] sm:$0xff]
      %v681 = vld [vmem:[%s196 + $0x650] sm:$0xff]
      %v682 = vld [vmem:[%s196 + $0x658] sm:$0xff]
      %v683 = vld [vmem:[%s196 + $0x660] sm:$0xff]
      %v684 = vld [vmem:[%s196 + $0x668] sm:$0xff]
      %v685 = vld [vmem:[%s196 + $0x670] sm:$0xff]
      %v686 = vld [vmem:[%s196 + $0x678] sm:$0xff]
      %v687 = vld [vmem:[%s196 + $0x680] sm:$0xff]
      %v688 = vld [vmem:[%s196 + $0x688] sm:$0xff]
      %v689 = vld [vmem:[%s196 + $0x690] sm:$0xff]
      %v690 = vld [vmem:[%s196 + $0x698] sm:$0xff]
      %v691 = vld [vmem:[%s196 + $0x6a0] sm:$0xff]
      %v692 = vld [vmem:[%s196 + $0x6a8] sm:$0xff]
      %v693 = vld [vmem:[%s196 + $0x6b0] sm:$0xff]
      %v694 = vld [vmem:[%s196 + $0x6b8] sm:$0xff]
      %v695 = vld [vmem:[%s196 + $0x6c0] sm:$0xff]
      %v696 = vld [vmem:[%s196 + $0x6c8] sm:$0xff]
      %v697 = vld [vmem:[%s196 + $0x6d0] sm:$0xff]
      %v698 = vld [vmem:[%s196 + $0x6d8] sm:$0xff]
      %v699 = vld [vmem:[%s196 + $0x6e0] sm:$0xff]
      %v700 = vld [vmem:[%s196 + $0x6e8] sm:$0xff]
      %v701 = vld [vmem:[%s196 + $0x6f0] sm:$0xff]
      %v702 = vld [vmem:[%s196 + $0x6f8] sm:$0xff]
      %v703 = vld [vmem:[%s196 + $0x700] sm:$0xff]
      %v704 = vld [vmem:[%s196 + $0x708] sm:$0xff]
      %v705 = vld [vmem:[%s196 + $0x710] sm:$0xff]
      %v706 = vld [vmem:[%s196 + $0x718] sm:$0xff]
      %v707 = vld [vmem:[%s196 + $0x720] sm:$0xff]
      %v708 = vld [vmem:[%s196 + $0x728] sm:$0xff]
      %v709 = vld [vmem:[%s196 + $0x730] sm:$0xff]
      %v710 = vld [vmem:[%s196 + $0x738] sm:$0xff]
      %v711 = vld [vmem:[%s196 + $0x740] sm:$0xff]
      %v712 = vld [vmem:[%s196 + $0x748] sm:$0xff]
      %v713 = vld [vmem:[%s196 + $0x750] sm:$0xff]
      %v714 = vld [vmem:[%s196 + $0x758] sm:$0xff]
      %v715 = vld [vmem:[%s196 + $0x760] sm:$0xff]
      %v716 = vld [vmem:[%s196 + $0x768] sm:$0xff]
      %v717 = vld [vmem:[%s196 + $0x770] sm:$0xff]
      %v718 = vld [vmem:[%s196 + $0x778] sm:$0xff]
      %v719 = vld [vmem:[%s196 + $0x780] sm:$0xff]
      %v720 = vld [vmem:[%s196 + $0x788] sm:$0xff]
      %v721 = vld [vmem:[%s196 + $0x790] sm:$0xff]
      %v722 = vld [vmem:[%s196 + $0x798] sm:$0xff]
      %v723 = vld [vmem:[%s196 + $0x7a0] sm:$0xff]
      %v724 = vld [vmem:[%s196 + $0x7a8] sm:$0xff]
      %v725 = vld [vmem:[%s196 + $0x7b0] sm:$0xff]
      %v726 = vld [vmem:[%s196 + $0x7b8] sm:$0xff]
      %v727 = vld [vmem:[%s196 + $0x7c0] sm:$0xff]
      %v728 = vld [vmem:[%s196 + $0x7c8] sm:$0xff]
      %v729 = vld [vmem:[%s196 + $0x7d0] sm:$0xff]
      %v730 = vld [vmem:[%s196 + $0x7d8] sm:$0xff]
      %v731 = vld [vmem:[%s196 + $0x7e0] sm:$0xff]
      %v732 = vld [vmem:[%s196 + $0x7e8] sm:$0xff]
      %v733 = vld [vmem:[%s196 + $0x7f0] sm:$0xff]
      %v734 = vld [vmem:[%s196 + $0x7f8] sm:$0xff]
      %v991 = vunpack.c.l.b16 %v479
      %v992 = vunpack.c.h.b16 %v479
      %v993 = vunpack.c.l.b16 %v480
      %v994 = vunpack.c.h.b16 %v480
      %v995 = vunpack.c.l.b16 %v481
      %v996 = vunpack.c.h.b16 %v481
      %v997 = vunpack.c.l.b16 %v482
      %v998 = vunpack.c.h.b16 %v482
      %v999 = vunpack.c.l.b16 %v483
      %v1000 = vunpack.c.h.b16 %v483
      %v1001 = vunpack.c.l.b16 %v484
      %v1002 = vunpack.c.h.b16 %v484
      %v1003 = vunpack.c.l.b16 %v485
      %v1004 = vunpack.c.h.b16 %v485
      %v1005 = vunpack.c.l.b16 %v486
      %v1006 = vunpack.c.h.b16 %v486
      %v1007 = vunpack.c.l.b16 %v487
      %v1008 = vunpack.c.h.b16 %v487
      %v1009 = vunpack.c.l.b16 %v488
      %v1010 = vunpack.c.h.b16 %v488
      %v1011 = vunpack.c.l.b16 %v489
      %v1012 = vunpack.c.h.b16 %v489
      %v1013 = vunpack.c.l.b16 %v490
      %v1014 = vunpack.c.h.b16 %v490
      %v1015 = vunpack.c.l.b16 %v491
      %v1016 = vunpack.c.h.b16 %v491
      %v1017 = vunpack.c.l.b16 %v492
      %v1018 = vunpack.c.h.b16 %v492
      %v1019 = vunpack.c.l.b16 %v493
      %v1020 = vunpack.c.h.b16 %v493
      %v1021 = vunpack.c.l.b16 %v494
      %v1022 = vunpack.c.h.b16 %v494
      %v1023 = vunpack.c.l.b16 %v495
      %v1024 = vunpack.c.h.b16 %v495
      %v1025 = vunpack.c.l.b16 %v496
      %v1026 = vunpack.c.h.b16 %v496
      %v1027 = vunpack.c.l.b16 %v497
      %v1028 = vunpack.c.h.b16 %v497
      %v1029 = vunpack.c.l.b16 %v498
      %v1030 = vunpack.c.h.b16 %v498
      %v1031 = vunpack.c.l.b16 %v499
      %v1032 = vunpack.c.h.b16 %v499
      %v1033 = vunpack.c.l.b16 %v500
      %v1034 = vunpack.c.h.b16 %v500
      %v1035 = vunpack.c.l.b16 %v501
      %v1036 = vunpack.c.h.b16 %v501
      %v1037 = vunpack.c.l.b16 %v502
      %v1038 = vunpack.c.h.b16 %v502
      %v1039 = vunpack.c.l.b16 %v503
      %v1040 = vunpack.c.h.b16 %v503
      %v1041 = vunpack.c.l.b16 %v504
      %v1042 = vunpack.c.h.b16 %v504
      %v1043 = vunpack.c.l.b16 %v505
      %v1044 = vunpack.c.h.b16 %v505
      %v1045 = vunpack.c.l.b16 %v506
      %v1046 = vunpack.c.h.b16 %v506
      %v1047 = vunpack.c.l.b16 %v507
      %v1048 = vunpack.c.h.b16 %v507
      %v1049 = vunpack.c.l.b16 %v508
      %v1050 = vunpack.c.h.b16 %v508
      %v1051 = vunpack.c.l.b16 %v509
      %v1052 = vunpack.c.h.b16 %v509
      %v1053 = vunpack.c.l.b16 %v510
      %v1054 = vunpack.c.h.b16 %v510
      %v1055 = vunpack.c.l.b16 %v511
      %v1056 = vunpack.c.h.b16 %v511
      %v1057 = vunpack.c.l.b16 %v512
      %v1058 = vunpack.c.h.b16 %v512
      %v1059 = vunpack.c.l.b16 %v513
      %v1060 = vunpack.c.h.b16 %v513
      %v1061 = vunpack.c.l.b16 %v514
      %v1062 = vunpack.c.h.b16 %v514
      %v1063 = vunpack.c.l.b16 %v515
      %v1064 = vunpack.c.h.b16 %v515
      %v1065 = vunpack.c.l.b16 %v516
      %v1066 = vunpack.c.h.b16 %v516
      %v1067 = vunpack.c.l.b16 %v517
      %v1068 = vunpack.c.h.b16 %v517
      %v1069 = vunpack.c.l.b16 %v518
      %v1070 = vunpack.c.h.b16 %v518
      %v1071 = vunpack.c.l.b16 %v519
      %v1072 = vunpack.c.h.b16 %v519
      %v1073 = vunpack.c.l.b16 %v520
      %v1074 = vunpack.c.h.b16 %v520
      %v1075 = vunpack.c.l.b16 %v521
      %v1076 = vunpack.c.h.b16 %v521
      %v1077 = vunpack.c.l.b16 %v522
      %v1078 = vunpack.c.h.b16 %v522
      %v1079 = vunpack.c.l.b16 %v523
      %v1080 = vunpack.c.h.b16 %v523
      %v1081 = vunpack.c.l.b16 %v524
      %v1082 = vunpack.c.h.b16 %v524
      %v1083 = vunpack.c.l.b16 %v525
      %v1084 = vunpack.c.h.b16 %v525
      %v1085 = vunpack.c.l.b16 %v526
      %v1086 = vunpack.c.h.b16 %v526
      %v1087 = vunpack.c.l.b16 %v527
      %v1088 = vunpack.c.h.b16 %v527
      %v1089 = vunpack.c.l.b16 %v528
      %v1090 = vunpack.c.h.b16 %v528
      %v1091 = vunpack.c.l.b16 %v529
      %v1092 = vunpack.c.h.b16 %v529
      %v1093 = vunpack.c.l.b16 %v530
      %v1094 = vunpack.c.h.b16 %v530
      %v1095 = vunpack.c.l.b16 %v531
      %v1096 = vunpack.c.h.b16 %v531
      %v1097 = vunpack.c.l.b16 %v532
      %v1098 = vunpack.c.h.b16 %v532
      %v1099 = vunpack.c.l.b16 %v533
      %v1100 = vunpack.c.h.b16 %v533
      %v1101 = vunpack.c.l.b16 %v534
      %v1102 = vunpack.c.h.b16 %v534
      %v1103 = vunpack.c.l.b16 %v535
      %v1104 = vunpack.c.h.b16 %v535
      %v1105 = vunpack.c.l.b16 %v536
      %v1106 = vunpack.c.h.b16 %v536
      %v1107 = vunpack.c.l.b16 %v537
      %v1108 = vunpack.c.h.b16 %v537
      %v1109 = vunpack.c.l.b16 %v538
      %v1110 = vunpack.c.h.b16 %v538
      %v1111 = vunpack.c.l.b16 %v539
      %v1112 = vunpack.c.h.b16 %v539
      %v1113 = vunpack.c.l.b16 %v540
      %v1114 = vunpack.c.h.b16 %v540
      %v1115 = vunpack.c.l.b16 %v541
      %v1116 = vunpack.c.h.b16 %v541
      %v1117 = vunpack.c.l.b16 %v542
      %v1118 = vunpack.c.h.b16 %v542
      %v1119 = vunpack.c.l.b16 %v543
      %v1120 = vunpack.c.h.b16 %v543
      %v1121 = vunpack.c.l.b16 %v544
      %v1122 = vunpack.c.h.b16 %v544
      %v1123 = vunpack.c.l.b16 %v545
      %v1124 = vunpack.c.h.b16 %v545
      %v1125 = vunpack.c.l.b16 %v546
      %v1126 = vunpack.c.h.b16 %v546
      %v1127 = vunpack.c.l.b16 %v547
      %v1128 = vunpack.c.h.b16 %v547
      %v1129 = vunpack.c.l.b16 %v548
      %v1130 = vunpack.c.h.b16 %v548
      %v1131 = vunpack.c.l.b16 %v549
      %v1132 = vunpack.c.h.b16 %v549
      %v1133 = vunpack.c.l.b16 %v550
      %v1134 = vunpack.c.h.b16 %v550
      %v1135 = vunpack.c.l.b16 %v551
      %v1136 = vunpack.c.h.b16 %v551
      %v1137 = vunpack.c.l.b16 %v552
      %v1138 = vunpack.c.h.b16 %v552
      %v1139 = vunpack.c.l.b16 %v553
      %v1140 = vunpack.c.h.b16 %v553
      %v1141 = vunpack.c.l.b16 %v554
      %v1142 = vunpack.c.h.b16 %v554
      %v1143 = vunpack.c.l.b16 %v555
      %v1144 = vunpack.c.h.b16 %v555
      %v1145 = vunpack.c.l.b16 %v556
      %v1146 = vunpack.c.h.b16 %v556
      %v1147 = vunpack.c.l.b16 %v557
      %v1148 = vunpack.c.h.b16 %v557
      %v1149 = vunpack.c.l.b16 %v558
      %v1150 = vunpack.c.h.b16 %v558
      %v1151 = vunpack.c.l.b16 %v559
      %v1152 = vunpack.c.h.b16 %v559
      %v1153 = vunpack.c.l.b16 %v560
      %v1154 = vunpack.c.h.b16 %v560
      %v1155 = vunpack.c.l.b16 %v561
      %v1156 = vunpack.c.h.b16 %v561
      %v1157 = vunpack.c.l.b16 %v562
      %v1158 = vunpack.c.h.b16 %v562
      %v1159 = vunpack.c.l.b16 %v563
      %v1160 = vunpack.c.h.b16 %v563
      %v1161 = vunpack.c.l.b16 %v564
      %v1162 = vunpack.c.h.b16 %v564
      %v1163 = vunpack.c.l.b16 %v565
      %v1164 = vunpack.c.h.b16 %v565
      %v1165 = vunpack.c.l.b16 %v566
      %v1166 = vunpack.c.h.b16 %v566
      %v1167 = vunpack.c.l.b16 %v567
      %v1168 = vunpack.c.h.b16 %v567
      %v1169 = vunpack.c.l.b16 %v568
      %v1170 = vunpack.c.h.b16 %v568
      %v1171 = vunpack.c.l.b16 %v569
      %v1172 = vunpack.c.h.b16 %v569
      %v1173 = vunpack.c.l.b16 %v570
      %v1174 = vunpack.c.h.b16 %v570
      %v1175 = vunpack.c.l.b16 %v571
      %v1176 = vunpack.c.h.b16 %v571
      %v1177 = vunpack.c.l.b16 %v572
      %v1178 = vunpack.c.h.b16 %v572
      %v1179 = vunpack.c.l.b16 %v573
      %v1180 = vunpack.c.h.b16 %v573
      %v1181 = vunpack.c.l.b16 %v574
      %v1182 = vunpack.c.h.b16 %v574
      %v1183 = vunpack.c.l.b16 %v575
      %v1184 = vunpack.c.h.b16 %v575
      %v1185 = vunpack.c.l.b16 %v576
      %v1186 = vunpack.c.h.b16 %v576
      %v1187 = vunpack.c.l.b16 %v577
      %v1188 = vunpack.c.h.b16 %v577
      %v1189 = vunpack.c.l.b16 %v578
      %v1190 = vunpack.c.h.b16 %v578
      %v1191 = vunpack.c.l.b16 %v579
      %v1192 = vunpack.c.h.b16 %v579
      %v1193 = vunpack.c.l.b16 %v580
      %v1194 = vunpack.c.h.b16 %v580
      %v1195 = vunpack.c.l.b16 %v581
      %v1196 = vunpack.c.h.b16 %v581
      %v1197 = vunpack.c.l.b16 %v582
      %v1198 = vunpack.c.h.b16 %v582
      %v1199 = vunpack.c.l.b16 %v583
      %v1200 = vunpack.c.h.b16 %v583
      %v1201 = vunpack.c.l.b16 %v584
      %v1202 = vunpack.c.h.b16 %v584
      %v1203 = vunpack.c.l.b16 %v585
      %v1204 = vunpack.c.h.b16 %v585
      %v1205 = vunpack.c.l.b16 %v586
      %v1206 = vunpack.c.h.b16 %v586
      %v1207 = vunpack.c.l.b16 %v587
      %v1208 = vunpack.c.h.b16 %v587
      %v1209 = vunpack.c.l.b16 %v588
      %v1210 = vunpack.c.h.b16 %v588
      %v1211 = vunpack.c.l.b16 %v589
      %v1212 = vunpack.c.h.b16 %v589
      %v1213 = vunpack.c.l.b16 %v590
      %v1214 = vunpack.c.h.b16 %v590
      %v1215 = vunpack.c.l.b16 %v591
      %v1216 = vunpack.c.h.b16 %v591
      %v1217 = vunpack.c.l.b16 %v592
      %v1218 = vunpack.c.h.b16 %v592
      %v1219 = vunpack.c.l.b16 %v593
      %v1220 = vunpack.c.h.b16 %v593
      %v1221 = vunpack.c.l.b16 %v594
      %v1222 = vunpack.c.h.b16 %v594
      %v1223 = vunpack.c.l.b16 %v595
      %v1224 = vunpack.c.h.b16 %v595
      %v1225 = vunpack.c.l.b16 %v596
      %v1226 = vunpack.c.h.b16 %v596
      %v1227 = vunpack.c.l.b16 %v597
      %v1228 = vunpack.c.h.b16 %v597
      %v1229 = vunpack.c.l.b16 %v598
      %v1230 = vunpack.c.h.b16 %v598
      %v1231 = vunpack.c.l.b16 %v599
      %v1232 = vunpack.c.h.b16 %v599
      %v1233 = vunpack.c.l.b16 %v600
      %v1234 = vunpack.c.h.b16 %v600
      %v1235 = vunpack.c.l.b16 %v601
      %v1236 = vunpack.c.h.b16 %v601
      %v1237 = vunpack.c.l.b16 %v602
      %v1238 = vunpack.c.h.b16 %v602
      %v1239 = vunpack.c.l.b16 %v603
      %v1240 = vunpack.c.h.b16 %v603
      %v1241 = vunpack.c.l.b16 %v604
      %v1242 = vunpack.c.h.b16 %v604
      %v1243 = vunpack.c.l.b16 %v605
      %v1244 = vunpack.c.h.b16 %v605
      %v1245 = vunpack.c.l.b16 %v606
      %v1246 = vunpack.c.h.b16 %v606
      %v1247 = vunpack.c.l.b16 %v607
      %v1248 = vunpack.c.h.b16 %v607
      %v1249 = vunpack.c.l.b16 %v608
      %v1250 = vunpack.c.h.b16 %v608
      %v1251 = vunpack.c.l.b16 %v609
      %v1252 = vunpack.c.h.b16 %v609
      %v1253 = vunpack.c.l.b16 %v610
      %v1254 = vunpack.c.h.b16 %v610
      %v1255 = vunpack.c.l.b16 %v611
      %v1256 = vunpack.c.h.b16 %v611
      %v1257 = vunpack.c.l.b16 %v612
      %v1258 = vunpack.c.h.b16 %v612
      %v1259 = vunpack.c.l.b16 %v613
      %v1260 = vunpack.c.h.b16 %v613
      %v1261 = vunpack.c.l.b16 %v614
      %v1262 = vunpack.c.h.b16 %v614
      %v1263 = vunpack.c.l.b16 %v615
      %v1264 = vunpack.c.h.b16 %v615
      %v1265 = vunpack.c.l.b16 %v616
      %v1266 = vunpack.c.h.b16 %v616
      %v1267 = vunpack.c.l.b16 %v617
      %v1268 = vunpack.c.h.b16 %v617
      %v1269 = vunpack.c.l.b16 %v618
      %v1270 = vunpack.c.h.b16 %v618
      %v1271 = vunpack.c.l.b16 %v619
      %v1272 = vunpack.c.h.b16 %v619
      %v1273 = vunpack.c.l.b16 %v620
      %v1274 = vunpack.c.h.b16 %v620
      %v1275 = vunpack.c.l.b16 %v621
      %v1276 = vunpack.c.h.b16 %v621
      %v1277 = vunpack.c.l.b16 %v622
      %v1278 = vunpack.c.h.b16 %v622
      %v1279 = vunpack.c.l.b16 %v623
      %v1280 = vunpack.c.h.b16 %v623
      %v1281 = vunpack.c.l.b16 %v624
      %v1282 = vunpack.c.h.b16 %v624
      %v1283 = vunpack.c.l.b16 %v625
      %v1284 = vunpack.c.h.b16 %v625
      %v1285 = vunpack.c.l.b16 %v626
      %v1286 = vunpack.c.h.b16 %v626
      %v1287 = vunpack.c.l.b16 %v627
      %v1288 = vunpack.c.h.b16 %v627
      %v1289 = vunpack.c.l.b16 %v628
      %v1290 = vunpack.c.h.b16 %v628
      %v1291 = vunpack.c.l.b16 %v629
      %v1292 = vunpack.c.h.b16 %v629
      %v1293 = vunpack.c.l.b16 %v630
      %v1294 = vunpack.c.h.b16 %v630
      %v1295 = vunpack.c.l.b16 %v631
      %v1296 = vunpack.c.h.b16 %v631
      %v1297 = vunpack.c.l.b16 %v632
      %v1298 = vunpack.c.h.b16 %v632
      %v1299 = vunpack.c.l.b16 %v633
      %v1300 = vunpack.c.h.b16 %v633
      %v1301 = vunpack.c.l.b16 %v634
      %v1302 = vunpack.c.h.b16 %v634
      %v1303 = vunpack.c.l.b16 %v635
      %v1304 = vunpack.c.h.b16 %v635
      %v1305 = vunpack.c.l.b16 %v636
      %v1306 = vunpack.c.h.b16 %v636
      %v1307 = vunpack.c.l.b16 %v637
      %v1308 = vunpack.c.h.b16 %v637
      %v1309 = vunpack.c.l.b16 %v638
      %v1310 = vunpack.c.h.b16 %v638
      %v1311 = vunpack.c.l.b16 %v639
      %v1312 = vunpack.c.h.b16 %v639
      %v1313 = vunpack.c.l.b16 %v640
      %v1314 = vunpack.c.h.b16 %v640
      %v1315 = vunpack.c.l.b16 %v641
      %v1316 = vunpack.c.h.b16 %v641
      %v1317 = vunpack.c.l.b16 %v642
      %v1318 = vunpack.c.h.b16 %v642
      %v1319 = vunpack.c.l.b16 %v643
      %v1320 = vunpack.c.h.b16 %v643
      %v1321 = vunpack.c.l.b16 %v644
      %v1322 = vunpack.c.h.b16 %v644
      %v1323 = vunpack.c.l.b16 %v645
      %v1324 = vunpack.c.h.b16 %v645
      %v1325 = vunpack.c.l.b16 %v646
      %v1326 = vunpack.c.h.b16 %v646
      %v1327 = vunpack.c.l.b16 %v647
      %v1328 = vunpack.c.h.b16 %v647
      %v1329 = vunpack.c.l.b16 %v648
      %v1330 = vunpack.c.h.b16 %v648
      %v1331 = vunpack.c.l.b16 %v649
      %v1332 = vunpack.c.h.b16 %v649
      %v1333 = vunpack.c.l.b16 %v650
      %v1334 = vunpack.c.h.b16 %v650
      %v1335 = vunpack.c.l.b16 %v651
      %v1336 = vunpack.c.h.b16 %v651
      %v1337 = vunpack.c.l.b16 %v652
      %v1338 = vunpack.c.h.b16 %v652
      %v1339 = vunpack.c.l.b16 %v653
      %v1340 = vunpack.c.h.b16 %v653
      %v1341 = vunpack.c.l.b16 %v654
      %v1342 = vunpack.c.h.b16 %v654
      %v1343 = vunpack.c.l.b16 %v655
      %v1344 = vunpack.c.h.b16 %v655
      %v1345 = vunpack.c.l.b16 %v656
      %v1346 = vunpack.c.h.b16 %v656
      %v1347 = vunpack.c.l.b16 %v657
      %v1348 = vunpack.c.h.b16 %v657
      %v1349 = vunpack.c.l.b16 %v658
      %v1350 = vunpack.c.h.b16 %v658
      %v1351 = vunpack.c.l.b16 %v659
      %v1352 = vunpack.c.h.b16 %v659
      %v1353 = vunpack.c.l.b16 %v660
      %v1354 = vunpack.c.h.b16 %v660
      %v1355 = vunpack.c.l.b16 %v661
      %v1356 = vunpack.c.h.b16 %v661
      %v1357 = vunpack.c.l.b16 %v662
      %v1358 = vunpack.c.h.b16 %v662
      %v1359 = vunpack.c.l.b16 %v663
      %v1360 = vunpack.c.h.b16 %v663
      %v1361 = vunpack.c.l.b16 %v664
      %v1362 = vunpack.c.h.b16 %v664
      %v1363 = vunpack.c.l.b16 %v665
      %v1364 = vunpack.c.h.b16 %v665
      %v1365 = vunpack.c.l.b16 %v666
      %v1366 = vunpack.c.h.b16 %v666
      %v1367 = vunpack.c.l.b16 %v667
      %v1368 = vunpack.c.h.b16 %v667
      %v1369 = vunpack.c.l.b16 %v668
      %v1370 = vunpack.c.h.b16 %v668
      %v1371 = vunpack.c.l.b16 %v669
      %v1372 = vunpack.c.h.b16 %v669
      %v1373 = vunpack.c.l.b16 %v670
      %v1374 = vunpack.c.h.b16 %v670
      %v1375 = vunpack.c.l.b16 %v671
      %v1376 = vunpack.c.h.b16 %v671
      %v1377 = vunpack.c.l.b16 %v672
      %v1378 = vunpack.c.h.b16 %v672
      %v1379 = vunpack.c.l.b16 %v673
      %v1380 = vunpack.c.h.b16 %v673
      %v1381 = vunpack.c.l.b16 %v674
      %v1382 = vunpack.c.h.b16 %v674
      %v1383 = vunpack.c.l.b16 %v675
      %v1384 = vunpack.c.h.b16 %v675
      %v1385 = vunpack.c.l.b16 %v676
      %v1386 = vunpack.c.h.b16 %v676
      %v1387 = vunpack.c.l.b16 %v677
      %v1388 = vunpack.c.h.b16 %v677
      %v1389 = vunpack.c.l.b16 %v678
      %v1390 = vunpack.c.h.b16 %v678
      %v1391 = vunpack.c.l.b16 %v679
      %v1392 = vunpack.c.h.b16 %v679
      %v1393 = vunpack.c.l.b16 %v680
      %v1394 = vunpack.c.h.b16 %v680
      %v1395 = vunpack.c.l.b16 %v681
      %v1396 = vunpack.c.h.b16 %v681
      %v1397 = vunpack.c.l.b16 %v682
      %v1398 = vunpack.c.h.b16 %v682
      %v1399 = vunpack.c.l.b16 %v683
      %v1400 = vunpack.c.h.b16 %v683
      %v1401 = vunpack.c.l.b16 %v684
      %v1402 = vunpack.c.h.b16 %v684
      %v1403 = vunpack.c.l.b16 %v685
      %v1404 = vunpack.c.h.b16 %v685
      %v1405 = vunpack.c.l.b16 %v686
      %v1406 = vunpack.c.h.b16 %v686
      %v1407 = vunpack.c.l.b16 %v687
      %v1408 = vunpack.c.h.b16 %v687
      %v1409 = vunpack.c.l.b16 %v688
      %v1410 = vunpack.c.h.b16 %v688
      %v1411 = vunpack.c.l.b16 %v689
      %v1412 = vunpack.c.h.b16 %v689
      %v1413 = vunpack.c.l.b16 %v690
      %v1414 = vunpack.c.h.b16 %v690
      %v1415 = vunpack.c.l.b16 %v691
      %v1416 = vunpack.c.h.b16 %v691
      %v1417 = vunpack.c.l.b16 %v692
      %v1418 = vunpack.c.h.b16 %v692
      %v1419 = vunpack.c.l.b16 %v693
      %v1420 = vunpack.c.h.b16 %v693
      %v1421 = vunpack.c.l.b16 %v694
      %v1422 = vunpack.c.h.b16 %v694
      %v1423 = vunpack.c.l.b16 %v695
      %v1424 = vunpack.c.h.b16 %v695
      %v1425 = vunpack.c.l.b16 %v696
      %v1426 = vunpack.c.h.b16 %v696
      %v1427 = vunpack.c.l.b16 %v697
      %v1428 = vunpack.c.h.b16 %v697
      %v1429 = vunpack.c.l.b16 %v698
      %v1430 = vunpack.c.h.b16 %v698
      %v1431 = vunpack.c.l.b16 %v699
      %v1432 = vunpack.c.h.b16 %v699
      %v1433 = vunpack.c.l.b16 %v700
      %v1434 = vunpack.c.h.b16 %v700
      %v1435 = vunpack.c.l.b16 %v701
      %v1436 = vunpack.c.h.b16 %v701
      %v1437 = vunpack.c.l.b16 %v702
      %v1438 = vunpack.c.h.b16 %v702
      %v1439 = vunpack.c.l.b16 %v703
      %v1440 = vunpack.c.h.b16 %v703
      %v1441 = vunpack.c.l.b16 %v704
      %v1442 = vunpack.c.h.b16 %v704
      %v1443 = vunpack.c.l.b16 %v705
      %v1444 = vunpack.c.h.b16 %v705
      %v1445 = vunpack.c.l.b16 %v706
      %v1446 = vunpack.c.h.b16 %v706
      %v1447 = vunpack.c.l.b16 %v707
      %v1448 = vunpack.c.h.b16 %v707
      %v1449 = vunpack.c.l.b16 %v708
      %v1450 = vunpack.c.h.b16 %v708
      %v1451 = vunpack.c.l.b16 %v709
      %v1452 = vunpack.c.h.b16 %v709
      %v1453 = vunpack.c.l.b16 %v710
      %v1454 = vunpack.c.h.b16 %v710
      %v1455 = vunpack.c.l.b16 %v711
      %v1456 = vunpack.c.h.b16 %v711
      %v1457 = vunpack.c.l.b16 %v712
      %v1458 = vunpack.c.h.b16 %v712
      %v1459 = vunpack.c.l.b16 %v713
      %v1460 = vunpack.c.h.b16 %v713
      %v1461 = vunpack.c.l.b16 %v714
      %v1462 = vunpack.c.h.b16 %v714
      %v1463 = vunpack.c.l.b16 %v715
      %v1464 = vunpack.c.h.b16 %v715
      %v1465 = vunpack.c.l.b16 %v716
      %v1466 = vunpack.c.h.b16 %v716
      %v1467 = vunpack.c.l.b16 %v717
      %v1468 = vunpack.c.h.b16 %v717
      %v1469 = vunpack.c.l.b16 %v718
      %v1470 = vunpack.c.h.b16 %v718
      %v1471 = vunpack.c.l.b16 %v719
      %v1472 = vunpack.c.h.b16 %v719
      %v1473 = vunpack.c.l.b16 %v720
      %v1474 = vunpack.c.h.b16 %v720
      %v1475 = vunpack.c.l.b16 %v721
      %v1476 = vunpack.c.h.b16 %v721
      %v1477 = vunpack.c.l.b16 %v722
      %v1478 = vunpack.c.h.b16 %v722
      %v1479 = vunpack.c.l.b16 %v723
      %v1480 = vunpack.c.h.b16 %v723
      %v1481 = vunpack.c.l.b16 %v724
      %v1482 = vunpack.c.h.b16 %v724
      %v1483 = vunpack.c.l.b16 %v725
      %v1484 = vunpack.c.h.b16 %v725
      %v1485 = vunpack.c.l.b16 %v726
      %v1486 = vunpack.c.h.b16 %v726
      %v1487 = vunpack.c.l.b16 %v727
      %v1488 = vunpack.c.h.b16 %v727
      %v1489 = vunpack.c.l.b16 %v728
      %v1490 = vunpack.c.h.b16 %v728
      %v1491 = vunpack.c.l.b16 %v729
      %v1492 = vunpack.c.h.b16 %v729
      %v1493 = vunpack.c.l.b16 %v730
      %v1494 = vunpack.c.h.b16 %v730
      %v1495 = vunpack.c.l.b16 %v731
      %v1496 = vunpack.c.h.b16 %v731
      %v1497 = vunpack.c.l.b16 %v732
      %v1498 = vunpack.c.h.b16 %v732
      %v1499 = vunpack.c.l.b16 %v733
      %v1500 = vunpack.c.h.b16 %v733
      %v1501 = vunpack.c.l.b16 %v734
      %v1502 = vunpack.c.h.b16 %v734
      %v1503 = vpack.c.b16 %v999, %v991
      %v1504 = vpack.c.b16 %v1000, %v992
      %v1505 = vpack.c.b16 %v1001, %v993
      %v1506 = vpack.c.b16 %v1002, %v994
      %v1507 = vpack.c.b16 %v1003, %v995
      %v1508 = vpack.c.b16 %v1004, %v996
      %v1509 = vpack.c.b16 %v1005, %v997
      %v1510 = vpack.c.b16 %v1006, %v998
      %v1511 = vpack.c.b16 %v1015, %v1007
      %v1512 = vpack.c.b16 %v1016, %v1008
      %v1513 = vpack.c.b16 %v1017, %v1009
      %v1514 = vpack.c.b16 %v1018, %v1010
      %v1515 = vpack.c.b16 %v1019, %v1011
      %v1516 = vpack.c.b16 %v1020, %v1012
      %v1517 = vpack.c.b16 %v1021, %v1013
      %v1518 = vpack.c.b16 %v1022, %v1014
      %v1519 = vpack.c.b16 %v1031, %v1023
      %v1520 = vpack.c.b16 %v1032, %v1024
      %v1521 = vpack.c.b16 %v1033, %v1025
      %v1522 = vpack.c.b16 %v1034, %v1026
      %v1523 = vpack.c.b16 %v1035, %v1027
      %v1524 = vpack.c.b16 %v1036, %v1028
      %v1525 = vpack.c.b16 %v1037, %v1029
      %v1526 = vpack.c.b16 %v1038, %v1030
      %v1527 = vpack.c.b16 %v1047, %v1039
      %v1528 = vpack.c.b16 %v1048, %v1040
      %v1529 = vpack.c.b16 %v1049, %v1041
      %v1530 = vpack.c.b16 %v1050, %v1042
      %v1531 = vpack.c.b16 %v1051, %v1043
      %v1532 = vpack.c.b16 %v1052, %v1044
      %v1533 = vpack.c.b16 %v1053, %v1045
      %v1534 = vpack.c.b16 %v1054, %v1046
      %v1535 = vpack.c.b16 %v1063, %v1055
      %v1536 = vpack.c.b16 %v1064, %v1056
      %v1537 = vpack.c.b16 %v1065, %v1057
      %v1538 = vpack.c.b16 %v1066, %v1058
      %v1539 = vpack.c.b16 %v1067, %v1059
      %v1540 = vpack.c.b16 %v1068, %v1060
      %v1541 = vpack.c.b16 %v1069, %v1061
      %v1542 = vpack.c.b16 %v1070, %v1062
      %v1543 = vpack.c.b16 %v1079, %v1071
      %v1544 = vpack.c.b16 %v1080, %v1072
      %v1545 = vpack.c.b16 %v1081, %v1073
      %v1546 = vpack.c.b16 %v1082, %v1074
      %v1547 = vpack.c.b16 %v1083, %v1075
      %v1548 = vpack.c.b16 %v1084, %v1076
      %v1549 = vpack.c.b16 %v1085, %v1077
      %v1550 = vpack.c.b16 %v1086, %v1078
      %v1551 = vpack.c.b16 %v1095, %v1087
      %v1552 = vpack.c.b16 %v1096, %v1088
      %v1553 = vpack.c.b16 %v1097, %v1089
      %v1554 = vpack.c.b16 %v1098, %v1090
      %v1555 = vpack.c.b16 %v1099, %v1091
      %v1556 = vpack.c.b16 %v1100, %v1092
      %v1557 = vpack.c.b16 %v1101, %v1093
      %v1558 = vpack.c.b16 %v1102, %v1094
      %v1559 = vpack.c.b16 %v1111, %v1103
      %v1560 = vpack.c.b16 %v1112, %v1104
      %v1561 = vpack.c.b16 %v1113, %v1105
      %v1562 = vpack.c.b16 %v1114, %v1106
      %v1563 = vpack.c.b16 %v1115, %v1107
      %v1564 = vpack.c.b16 %v1116, %v1108
      %v1565 = vpack.c.b16 %v1117, %v1109
      %v1566 = vpack.c.b16 %v1118, %v1110
      %v1567 = vpack.c.b16 %v1127, %v1119
      %v1568 = vpack.c.b16 %v1128, %v1120
      %v1569 = vpack.c.b16 %v1129, %v1121
      %v1570 = vpack.c.b16 %v1130, %v1122
      %v1571 = vpack.c.b16 %v1131, %v1123
      %v1572 = vpack.c.b16 %v1132, %v1124
      %v1573 = vpack.c.b16 %v1133, %v1125
      %v1574 = vpack.c.b16 %v1134, %v1126
      %v1575 = vpack.c.b16 %v1143, %v1135
      %v1576 = vpack.c.b16 %v1144, %v1136
      %v1577 = vpack.c.b16 %v1145, %v1137
      %v1578 = vpack.c.b16 %v1146, %v1138
      %v1579 = vpack.c.b16 %v1147, %v1139
      %v1580 = vpack.c.b16 %v1148, %v1140
      %v1581 = vpack.c.b16 %v1149, %v1141
      %v1582 = vpack.c.b16 %v1150, %v1142
      %v1583 = vpack.c.b16 %v1159, %v1151
      %v1584 = vpack.c.b16 %v1160, %v1152
      %v1585 = vpack.c.b16 %v1161, %v1153
      %v1586 = vpack.c.b16 %v1162, %v1154
      %v1587 = vpack.c.b16 %v1163, %v1155
      %v1588 = vpack.c.b16 %v1164, %v1156
      %v1589 = vpack.c.b16 %v1165, %v1157
      %v1590 = vpack.c.b16 %v1166, %v1158
      %v1591 = vpack.c.b16 %v1175, %v1167
      %v1592 = vpack.c.b16 %v1176, %v1168
      %v1593 = vpack.c.b16 %v1177, %v1169
      %v1594 = vpack.c.b16 %v1178, %v1170
      %v1595 = vpack.c.b16 %v1179, %v1171
      %v1596 = vpack.c.b16 %v1180, %v1172
      %v1597 = vpack.c.b16 %v1181, %v1173
      %v1598 = vpack.c.b16 %v1182, %v1174
      %v1599 = vpack.c.b16 %v1191, %v1183
      %v1600 = vpack.c.b16 %v1192, %v1184
      %v1601 = vpack.c.b16 %v1193, %v1185
      %v1602 = vpack.c.b16 %v1194, %v1186
      %v1603 = vpack.c.b16 %v1195, %v1187
      %v1604 = vpack.c.b16 %v1196, %v1188
      %v1605 = vpack.c.b16 %v1197, %v1189
      %v1606 = vpack.c.b16 %v1198, %v1190
      %v1607 = vpack.c.b16 %v1207, %v1199
      %v1608 = vpack.c.b16 %v1208, %v1200
      %v1609 = vpack.c.b16 %v1209, %v1201
      %v1610 = vpack.c.b16 %v1210, %v1202
      %v1611 = vpack.c.b16 %v1211, %v1203
      %v1612 = vpack.c.b16 %v1212, %v1204
      %v1613 = vpack.c.b16 %v1213, %v1205
      %v1614 = vpack.c.b16 %v1214, %v1206
      %v1615 = vpack.c.b16 %v1223, %v1215
      %v1616 = vpack.c.b16 %v1224, %v1216
      %v1617 = vpack.c.b16 %v1225, %v1217
      %v1618 = vpack.c.b16 %v1226, %v1218
      %v1619 = vpack.c.b16 %v1227, %v1219
      %v1620 = vpack.c.b16 %v1228, %v1220
      %v1621 = vpack.c.b16 %v1229, %v1221
      %v1622 = vpack.c.b16 %v1230, %v1222
      %v1623 = vpack.c.b16 %v1239, %v1231
      %v1624 = vpack.c.b16 %v1240, %v1232
      %v1625 = vpack.c.b16 %v1241, %v1233
      %v1626 = vpack.c.b16 %v1242, %v1234
      %v1627 = vpack.c.b16 %v1243, %v1235
      %v1628 = vpack.c.b16 %v1244, %v1236
      %v1629 = vpack.c.b16 %v1245, %v1237
      %v1630 = vpack.c.b16 %v1246, %v1238
      %v1631 = vpack.c.b16 %v1255, %v1247
      %v1632 = vpack.c.b16 %v1256, %v1248
      %v1633 = vpack.c.b16 %v1257, %v1249
      %v1634 = vpack.c.b16 %v1258, %v1250
      %v1635 = vpack.c.b16 %v1259, %v1251
      %v1636 = vpack.c.b16 %v1260, %v1252
      %v1637 = vpack.c.b16 %v1261, %v1253
      %v1638 = vpack.c.b16 %v1262, %v1254
      %v1639 = vpack.c.b16 %v1271, %v1263
      %v1640 = vpack.c.b16 %v1272, %v1264
      %v1641 = vpack.c.b16 %v1273, %v1265
      %v1642 = vpack.c.b16 %v1274, %v1266
      %v1643 = vpack.c.b16 %v1275, %v1267
      %v1644 = vpack.c.b16 %v1276, %v1268
      %v1645 = vpack.c.b16 %v1277, %v1269
      %v1646 = vpack.c.b16 %v1278, %v1270
      %v1647 = vpack.c.b16 %v1287, %v1279
      %v1648 = vpack.c.b16 %v1288, %v1280
      %v1649 = vpack.c.b16 %v1289, %v1281
      %v1650 = vpack.c.b16 %v1290, %v1282
      %v1651 = vpack.c.b16 %v1291, %v1283
      %v1652 = vpack.c.b16 %v1292, %v1284
      %v1653 = vpack.c.b16 %v1293, %v1285
      %v1654 = vpack.c.b16 %v1294, %v1286
      %v1655 = vpack.c.b16 %v1303, %v1295
      %v1656 = vpack.c.b16 %v1304, %v1296
      %v1657 = vpack.c.b16 %v1305, %v1297
      %v1658 = vpack.c.b16 %v1306, %v1298
      %v1659 = vpack.c.b16 %v1307, %v1299
      %v1660 = vpack.c.b16 %v1308, %v1300
      %v1661 = vpack.c.b16 %v1309, %v1301
      %v1662 = vpack.c.b16 %v1310, %v1302
      %v1663 = vpack.c.b16 %v1319, %v1311
      %v1664 = vpack.c.b16 %v1320, %v1312
      %v1665 = vpack.c.b16 %v1321, %v1313
      %v1666 = vpack.c.b16 %v1322, %v1314
      %v1667 = vpack.c.b16 %v1323, %v1315
      %v1668 = vpack.c.b16 %v1324, %v1316
      %v1669 = vpack.c.b16 %v1325, %v1317
      %v1670 = vpack.c.b16 %v1326, %v1318
      %v1671 = vpack.c.b16 %v1335, %v1327
      %v1672 = vpack.c.b16 %v1336, %v1328
      %v1673 = vpack.c.b16 %v1337, %v1329
      %v1674 = vpack.c.b16 %v1338, %v1330
      %v1675 = vpack.c.b16 %v1339, %v1331
      %v1676 = vpack.c.b16 %v1340, %v1332
      %v1677 = vpack.c.b16 %v1341, %v1333
      %v1678 = vpack.c.b16 %v1342, %v1334
      %v1679 = vpack.c.b16 %v1351, %v1343
      %v1680 = vpack.c.b16 %v1352, %v1344
      %v1681 = vpack.c.b16 %v1353, %v1345
      %v1682 = vpack.c.b16 %v1354, %v1346
      %v1683 = vpack.c.b16 %v1355, %v1347
      %v1684 = vpack.c.b16 %v1356, %v1348
      %v1685 = vpack.c.b16 %v1357, %v1349
      %v1686 = vpack.c.b16 %v1358, %v1350
      %v1687 = vpack.c.b16 %v1367, %v1359
      %v1688 = vpack.c.b16 %v1368, %v1360
      %v1689 = vpack.c.b16 %v1369, %v1361
      %v1690 = vpack.c.b16 %v1370, %v1362
      %v1691 = vpack.c.b16 %v1371, %v1363
      %v1692 = vpack.c.b16 %v1372, %v1364
      %v1693 = vpack.c.b16 %v1373, %v1365
      %v1694 = vpack.c.b16 %v1374, %v1366
      %v1695 = vpack.c.b16 %v1383, %v1375
      %v1696 = vpack.c.b16 %v1384, %v1376
      %v1697 = vpack.c.b16 %v1385, %v1377
      %v1698 = vpack.c.b16 %v1386, %v1378
      %v1699 = vpack.c.b16 %v1387, %v1379
      %v1700 = vpack.c.b16 %v1388, %v1380
      %v1701 = vpack.c.b16 %v1389, %v1381
      %v1702 = vpack.c.b16 %v1390, %v1382
      %v1703 = vpack.c.b16 %v1399, %v1391
      %v1704 = vpack.c.b16 %v1400, %v1392
      %v1705 = vpack.c.b16 %v1401, %v1393
      %v1706 = vpack.c.b16 %v1402, %v1394
      %v1707 = vpack.c.b16 %v1403, %v1395
      %v1708 = vpack.c.b16 %v1404, %v1396
      %v1709 = vpack.c.b16 %v1405, %v1397
      %v1710 = vpack.c.b16 %v1406, %v1398
      %v1711 = vpack.c.b16 %v1415, %v1407
      %v1712 = vpack.c.b16 %v1416, %v1408
      %v1713 = vpack.c.b16 %v1417, %v1409
      %v1714 = vpack.c.b16 %v1418, %v1410
      %v1715 = vpack.c.b16 %v1419, %v1411
      %v1716 = vpack.c.b16 %v1420, %v1412
      %v1717 = vpack.c.b16 %v1421, %v1413
      %v1718 = vpack.c.b16 %v1422, %v1414
      %v1719 = vpack.c.b16 %v1431, %v1423
      %v1720 = vpack.c.b16 %v1432, %v1424
      %v1721 = vpack.c.b16 %v1433, %v1425
      %v1722 = vpack.c.b16 %v1434, %v1426
      %v1723 = vpack.c.b16 %v1435, %v1427
      %v1724 = vpack.c.b16 %v1436, %v1428
      %v1725 = vpack.c.b16 %v1437, %v1429
      %v1726 = vpack.c.b16 %v1438, %v1430
      %v1727 = vpack.c.b16 %v1447, %v1439
      %v1728 = vpack.c.b16 %v1448, %v1440
      %v1729 = vpack.c.b16 %v1449, %v1441
      %v1730 = vpack.c.b16 %v1450, %v1442
      %v1731 = vpack.c.b16 %v1451, %v1443
      %v1732 = vpack.c.b16 %v1452, %v1444
      %v1733 = vpack.c.b16 %v1453, %v1445
      %v1734 = vpack.c.b16 %v1454, %v1446
      %v1735 = vpack.c.b16 %v1463, %v1455
      %v1736 = vpack.c.b16 %v1464, %v1456
      %v1737 = vpack.c.b16 %v1465, %v1457
      %v1738 = vpack.c.b16 %v1466, %v1458
      %v1739 = vpack.c.b16 %v1467, %v1459
      %v1740 = vpack.c.b16 %v1468, %v1460
      %v1741 = vpack.c.b16 %v1469, %v1461
      %v1742 = vpack.c.b16 %v1470, %v1462
      %v1743 = vpack.c.b16 %v1479, %v1471
      %v1744 = vpack.c.b16 %v1480, %v1472
      %v1745 = vpack.c.b16 %v1481, %v1473
      %v1746 = vpack.c.b16 %v1482, %v1474
      %v1747 = vpack.c.b16 %v1483, %v1475
      %v1748 = vpack.c.b16 %v1484, %v1476
      %v1749 = vpack.c.b16 %v1485, %v1477
      %v1750 = vpack.c.b16 %v1486, %v1478
      %v1751 = vpack.c.b16 %v1495, %v1487
      %v1752 = vpack.c.b16 %v1496, %v1488
      %v1753 = vpack.c.b16 %v1497, %v1489
      %v1754 = vpack.c.b16 %v1498, %v1490
      %v1755 = vpack.c.b16 %v1499, %v1491
      %v1756 = vpack.c.b16 %v1500, %v1492
      %v1757 = vpack.c.b16 %v1501, %v1493
      %v1758 = vpack.c.b16 %v1502, %v1494
      %v2143 = vunpack.c.l.b16 %v287
      %v2144 = vunpack.c.l.b16 %v288
      %v2145 = vunpack.c.l.b16 %v289
      %v2146 = vunpack.c.l.b16 %v290
      %v2147 = vunpack.c.l.b16 %v291
      %v2148 = vunpack.c.l.b16 %v292
      %v2149 = vunpack.c.l.b16 %v293
      %v2150 = vunpack.c.l.b16 %v294
      %v2151 = vunpack.c.l.b16 %v295
      %v2152 = vunpack.c.l.b16 %v296
      %v2153 = vunpack.c.l.b16 %v297
      %v2154 = vunpack.c.l.b16 %v298
      %v2155 = vunpack.c.l.b16 %v299
      %v2156 = vunpack.c.l.b16 %v300
      %v2157 = vunpack.c.l.b16 %v301
      %v2158 = vunpack.c.l.b16 %v302
      %v2159 = vunpack.c.l.b16 %v303
      %v2160 = vunpack.c.l.b16 %v304
      %v2161 = vunpack.c.l.b16 %v305
      %v2162 = vunpack.c.l.b16 %v306
      %v2163 = vunpack.c.l.b16 %v307
      %v2164 = vunpack.c.l.b16 %v308
      %v2165 = vunpack.c.l.b16 %v309
      %v2166 = vunpack.c.l.b16 %v310
      %v2167 = vunpack.c.l.b16 %v311
      %v2168 = vunpack.c.l.b16 %v312
      %v2169 = vunpack.c.l.b16 %v313
      %v2170 = vunpack.c.l.b16 %v314
      %v2171 = vunpack.c.l.b16 %v315
      %v2172 = vunpack.c.l.b16 %v316
      %v2173 = vunpack.c.l.b16 %v317
      %v2174 = vunpack.c.l.b16 %v318
      %v2175 = vunpack.c.l.b16 %v319
      %v2176 = vunpack.c.l.b16 %v320
      %v2177 = vunpack.c.l.b16 %v321
      %v2178 = vunpack.c.l.b16 %v322
      %v2179 = vunpack.c.l.b16 %v323
      %v2180 = vunpack.c.l.b16 %v324
      %v2181 = vunpack.c.l.b16 %v325
      %v2182 = vunpack.c.l.b16 %v326
      %v2183 = vunpack.c.l.b16 %v327
      %v2184 = vunpack.c.l.b16 %v328
      %v2185 = vunpack.c.l.b16 %v329
      %v2186 = vunpack.c.l.b16 %v330
      %v2187 = vunpack.c.l.b16 %v331
      %v2188 = vunpack.c.l.b16 %v332
      %v2189 = vunpack.c.l.b16 %v333
      %v2190 = vunpack.c.l.b16 %v334
      %v2191 = vunpack.c.l.b16 %v335
      %v2192 = vunpack.c.l.b16 %v336
      %v2193 = vunpack.c.l.b16 %v337
      %v2194 = vunpack.c.l.b16 %v338
      %v2195 = vunpack.c.l.b16 %v339
      %v2196 = vunpack.c.l.b16 %v340
      %v2197 = vunpack.c.l.b16 %v341
      %v2198 = vunpack.c.l.b16 %v342
      %v2199 = vunpack.c.l.b16 %v343
      %v2200 = vunpack.c.l.b16 %v344
      %v2201 = vunpack.c.l.b16 %v345
      %v2202 = vunpack.c.l.b16 %v346
      %v2203 = vunpack.c.l.b16 %v347
      %v2204 = vunpack.c.l.b16 %v348
      %v2205 = vunpack.c.l.b16 %v349
      %v2206 = vunpack.c.l.b16 %v350
      %v2207 = vunpack.c.l.b16 %v351
      %v2208 = vunpack.c.l.b16 %v352
      %v2209 = vunpack.c.l.b16 %v353
      %v2210 = vunpack.c.l.b16 %v354
      %v2211 = vunpack.c.l.b16 %v355
      %v2212 = vunpack.c.l.b16 %v356
      %v2213 = vunpack.c.l.b16 %v357
      %v2214 = vunpack.c.l.b16 %v358
      %v2215 = vunpack.c.l.b16 %v359
      %v2216 = vunpack.c.l.b16 %v360
      %v2217 = vunpack.c.l.b16 %v361
      %v2218 = vunpack.c.l.b16 %v362
      %v2219 = vunpack.c.l.b16 %v363
      %v2220 = vunpack.c.l.b16 %v364
      %v2221 = vunpack.c.l.b16 %v365
      %v2222 = vunpack.c.l.b16 %v366
      %v2223 = vunpack.c.l.b16 %v367
      %v2224 = vunpack.c.l.b16 %v368
      %v2225 = vunpack.c.l.b16 %v369
      %v2226 = vunpack.c.l.b16 %v370
      %v2227 = vunpack.c.l.b16 %v371
      %v2228 = vunpack.c.l.b16 %v372
      %v2229 = vunpack.c.l.b16 %v373
      %v2230 = vunpack.c.l.b16 %v374
      %v2231 = vunpack.c.l.b16 %v375
      %v2232 = vunpack.c.l.b16 %v376
      %v2233 = vunpack.c.l.b16 %v377
      %v2234 = vunpack.c.l.b16 %v378
      %v2235 = vunpack.c.l.b16 %v379
      %v2236 = vunpack.c.l.b16 %v380
      %v2237 = vunpack.c.l.b16 %v381
      %v2238 = vunpack.c.l.b16 %v382
      %v2239 = vunpack.c.l.b16 %v383
      %v2240 = vunpack.c.l.b16 %v384
      %v2241 = vunpack.c.l.b16 %v385
      %v2242 = vunpack.c.l.b16 %v386
      %v2243 = vunpack.c.l.b16 %v387
      %v2244 = vunpack.c.l.b16 %v388
      %v2245 = vunpack.c.l.b16 %v389
      %v2246 = vunpack.c.l.b16 %v390
      %v2247 = vunpack.c.l.b16 %v391
      %v2248 = vunpack.c.l.b16 %v392
      %v2249 = vunpack.c.l.b16 %v393
      %v2250 = vunpack.c.l.b16 %v394
      %v2251 = vunpack.c.l.b16 %v395
      %v2252 = vunpack.c.l.b16 %v396
      %v2253 = vunpack.c.l.b16 %v397
      %v2254 = vunpack.c.l.b16 %v398
      %v2255 = vunpack.c.l.b16 %v399
      %v2256 = vunpack.c.l.b16 %v400
      %v2257 = vunpack.c.l.b16 %v401
      %v2258 = vunpack.c.l.b16 %v402
      %v2259 = vunpack.c.l.b16 %v403
      %v2260 = vunpack.c.l.b16 %v404
      %v2261 = vunpack.c.l.b16 %v405
      %v2262 = vunpack.c.l.b16 %v406
      %v2263 = vunpack.c.l.b16 %v407
      %v2264 = vunpack.c.l.b16 %v408
      %v2265 = vunpack.c.l.b16 %v409
      %v2266 = vunpack.c.l.b16 %v410
      %v2267 = vunpack.c.l.b16 %v411
      %v2268 = vunpack.c.l.b16 %v412
      %v2269 = vunpack.c.l.b16 %v413
      %v2270 = vunpack.c.l.b16 %v414
      %v2271 = vpack.c.b16 %v2144, %v2143
      %v2272 = vpack.c.b16 %v2146, %v2145
      %v2273 = vpack.c.b16 %v2148, %v2147
      %v2274 = vpack.c.b16 %v2150, %v2149
      %v2275 = vpack.c.b16 %v2152, %v2151
      %v2276 = vpack.c.b16 %v2154, %v2153
      %v2277 = vpack.c.b16 %v2156, %v2155
      %v2278 = vpack.c.b16 %v2158, %v2157
      %v2279 = vpack.c.b16 %v2160, %v2159
      %v2280 = vpack.c.b16 %v2162, %v2161
      %v2281 = vpack.c.b16 %v2164, %v2163
      %v2282 = vpack.c.b16 %v2166, %v2165
      %v2283 = vpack.c.b16 %v2168, %v2167
      %v2284 = vpack.c.b16 %v2170, %v2169
      %v2285 = vpack.c.b16 %v2172, %v2171
      %v2286 = vpack.c.b16 %v2174, %v2173
      %v2287 = vpack.c.b16 %v2176, %v2175
      %v2288 = vpack.c.b16 %v2178, %v2177
      %v2289 = vpack.c.b16 %v2180, %v2179
      %v2290 = vpack.c.b16 %v2182, %v2181
      %v2291 = vpack.c.b16 %v2184, %v2183
      %v2292 = vpack.c.b16 %v2186, %v2185
      %v2293 = vpack.c.b16 %v2188, %v2187
      %v2294 = vpack.c.b16 %v2190, %v2189
      %v2295 = vpack.c.b16 %v2192, %v2191
      %v2296 = vpack.c.b16 %v2194, %v2193
      %v2297 = vpack.c.b16 %v2196, %v2195
      %v2298 = vpack.c.b16 %v2198, %v2197
      %v2299 = vpack.c.b16 %v2200, %v2199
      %v2300 = vpack.c.b16 %v2202, %v2201
      %v2301 = vpack.c.b16 %v2204, %v2203
      %v2302 = vpack.c.b16 %v2206, %v2205
      %v2303 = vpack.c.b16 %v2208, %v2207
      %v2304 = vpack.c.b16 %v2210, %v2209
      %v2305 = vpack.c.b16 %v2212, %v2211
      %v2306 = vpack.c.b16 %v2214, %v2213
      %v2307 = vpack.c.b16 %v2216, %v2215
      %v2308 = vpack.c.b16 %v2218, %v2217
      %v2309 = vpack.c.b16 %v2220, %v2219
      %v2310 = vpack.c.b16 %v2222, %v2221
      %v2311 = vpack.c.b16 %v2224, %v2223
      %v2312 = vpack.c.b16 %v2226, %v2225
      %v2313 = vpack.c.b16 %v2228, %v2227
      %v2314 = vpack.c.b16 %v2230, %v2229
      %v2315 = vpack.c.b16 %v2232, %v2231
      %v2316 = vpack.c.b16 %v2234, %v2233
      %v2317 = vpack.c.b16 %v2236, %v2235
      %v2318 = vpack.c.b16 %v2238, %v2237
      %v2319 = vpack.c.b16 %v2240, %v2239
      %v2320 = vpack.c.b16 %v2242, %v2241
      %v2321 = vpack.c.b16 %v2244, %v2243
      %v2322 = vpack.c.b16 %v2246, %v2245
      %v2323 = vpack.c.b16 %v2248, %v2247
      %v2324 = vpack.c.b16 %v2250, %v2249
      %v2325 = vpack.c.b16 %v2252, %v2251
      %v2326 = vpack.c.b16 %v2254, %v2253
      %v2327 = vpack.c.b16 %v2256, %v2255
      %v2328 = vpack.c.b16 %v2258, %v2257
      %v2329 = vpack.c.b16 %v2260, %v2259
      %v2330 = vpack.c.b16 %v2262, %v2261
      %v2331 = vpack.c.b16 %v2264, %v2263
      %v2332 = vpack.c.b16 %v2266, %v2265
      %v2333 = vpack.c.b16 %v2268, %v2267
      %v2334 = vpack.c.b16 %v2270, %v2269
      %2399 = vmatprep.subr.bf16.mxu0 0
      %2400 = vmatpush1.bf16.msra.mxu0 %v2278
      %2401 = vmatprep.subr.bf16.mxu0 0
      %2402 = vmatpush1.bf16.msra.mxu0 %v2277
      %2403 = vmatprep.subr.bf16.mxu0 0
      %2404 = vmatpush1.bf16.msra.mxu0 %v2276
      %2405 = vmatprep.subr.bf16.mxu0 0
      %2406 = vmatpush1.bf16.msra.mxu0 %v2275
      %2407 = vmatprep.subr.bf16.mxu0 0
      %2408 = vmatpush1.bf16.msra.mxu0 %v2274
      %2409 = vmatprep.subr.bf16.mxu0 0
      %2410 = vmatpush1.bf16.msra.mxu0 %v2273
      %2411 = vmatprep.subr.bf16.mxu0 0
      %2412 = vmatpush1.bf16.msra.mxu0 %v2272
      %2413 = vmatprep.subr.bf16.mxu0 0
      %2414 = vmatpush1.bf16.msra.mxu0 %v2271
      %2415 = vmatprep.subr.bf16.mxu0 0
      %2416 = vmatpush2.bf16.msra.mxu0 %v2286
      %2417 = vmatprep.subr.bf16.mxu0 0
      %2418 = vmatpush2.bf16.msra.mxu0 %v2285
      %2419 = vmatprep.subr.bf16.mxu0 0
      %2420 = vmatpush2.bf16.msra.mxu0 %v2284
      %2421 = vmatprep.subr.bf16.mxu0 0
      %2422 = vmatpush2.bf16.msra.mxu0 %v2283
      %2423 = vmatprep.subr.bf16.mxu0 0
      %2424 = vmatpush2.bf16.msra.mxu0 %v2282
      %2425 = vmatprep.subr.bf16.mxu0 0
      %2426 = vmatpush2.bf16.msra.mxu0 %v2281
      %2427 = vmatprep.subr.bf16.mxu0 0
      %2428 = vmatpush2.bf16.msra.mxu0 %v2280
      %2429 = vmatprep.subr.bf16.mxu0 0
      %2430 = vmatpush2.bf16.msra.mxu0 %v2279
      %2431 = vmatprep.mubr.bf16.mxu0 %v1504
      %2432 = vmatmul.mubr.bf16.gmra.mxu0 %v1503
      %v2433 = vpop.f32.mrf.mxu0
      %v2434 = vadd.f32 0.0, %v2433
      %v2435 = vpop.f32.mrf.mxu0
      %v2436 = vpop.f32.mrf.mxu0
      %v2437 = vadd.f32 0.0, %v2436
      %v2438 = vpop.f32.mrf.mxu0
      %2439 = vmatprep.mubr.bf16.mxu0 %v1512
      %2440 = vmatmul.mubr.bf16.gmra.mxu0 %v1511
      %v2441 = vpop.f32.mrf.mxu0
      %v2442 = vadd.f32 0.0, %v2441
      %v2443 = vpop.f32.mrf.mxu0
      %v2444 = vpop.f32.mrf.mxu0
      %v2445 = vadd.f32 0.0, %v2444
      %v2446 = vpop.f32.mrf.mxu0
      %2447 = vmatprep.mubr.bf16.mxu0 %v1520
      %2448 = vmatmul.mubr.bf16.gmra.mxu0 %v1519
      %v2449 = vpop.f32.mrf.mxu0
      %v2450 = vadd.f32 0.0, %v2449
      %v2451 = vpop.f32.mrf.mxu0
      %v2452 = vpop.f32.mrf.mxu0
      %v2453 = vadd.f32 0.0, %v2452
      %v2454 = vpop.f32.mrf.mxu0
      %2455 = vmatprep.mubr.bf16.mxu0 %v1528
      %2456 = vmatmul.mubr.bf16.gmra.mxu0 %v1527
      %v2457 = vpop.f32.mrf.mxu0
      %v2458 = vadd.f32 0.0, %v2457
      %v2459 = vpop.f32.mrf.mxu0
      %v2460 = vpop.f32.mrf.mxu0
      %v2461 = vadd.f32 0.0, %v2460
      %v2462 = vpop.f32.mrf.mxu0
      %2463 = vmatprep.mubr.bf16.mxu0 %v1536
      %2464 = vmatmul.mubr.bf16.gmra.mxu0 %v1535
      %v2465 = vpop.f32.mrf.mxu0
      %v2466 = vadd.f32 0.0, %v2465
      %v2467 = vpop.f32.mrf.mxu0
      %v2468 = vpop.f32.mrf.mxu0
      %v2469 = vadd.f32 0.0, %v2468
      %v2470 = vpop.f32.mrf.mxu0
      %2471 = vmatprep.mubr.bf16.mxu0 %v1544
      %2472 = vmatmul.mubr.bf16.gmra.mxu0 %v1543
      %v2473 = vpop.f32.mrf.mxu0
      %v2474 = vadd.f32 0.0, %v2473
      %v2475 = vpop.f32.mrf.mxu0
      %v2476 = vpop.f32.mrf.mxu0
      %v2477 = vadd.f32 0.0, %v2476
      %v2478 = vpop.f32.mrf.mxu0
      %2479 = vmatprep.mubr.bf16.mxu0 %v1552
      %2480 = vmatmul.mubr.bf16.gmra.mxu0 %v1551
      %v2481 = vpop.f32.mrf.mxu0
      %v2482 = vadd.f32 0.0, %v2481
      %v2483 = vpop.f32.mrf.mxu0
      %v2484 = vpop.f32.mrf.mxu0
      %v2485 = vadd.f32 0.0, %v2484
      %v2486 = vpop.f32.mrf.mxu0
      %2487 = vmatprep.mubr.bf16.mxu0 %v1560
      %2488 = vmatmul.mubr.bf16.gmra.mxu0 %v1559
      %v2489 = vpop.f32.mrf.mxu0
      %v2490 = vadd.f32 0.0, %v2489
      %v2491 = vpop.f32.mrf.mxu0
      %v2492 = vpop.f32.mrf.mxu0
      %v2493 = vadd.f32 0.0, %v2492
      %v2494 = vpop.f32.mrf.mxu0
      %2495 = vmatprep.mubr.bf16.mxu0 %v1568
      %2496 = vmatmul.mubr.bf16.gmra.mxu0 %v1567
      %v2497 = vpop.f32.mrf.mxu0
      %v2498 = vadd.f32 0.0, %v2497
      %v2499 = vpop.f32.mrf.mxu0
      %v2500 = vpop.f32.mrf.mxu0
      %v2501 = vadd.f32 0.0, %v2500
      %v2502 = vpop.f32.mrf.mxu0
      %2503 = vmatprep.mubr.bf16.mxu0 %v1576
      %2504 = vmatmul.mubr.bf16.gmra.mxu0 %v1575
      %v2505 = vpop.f32.mrf.mxu0
      %v2506 = vadd.f32 0.0, %v2505
      %v2507 = vpop.f32.mrf.mxu0
      %v2508 = vpop.f32.mrf.mxu0
      %v2509 = vadd.f32 0.0, %v2508
      %v2510 = vpop.f32.mrf.mxu0
      %2511 = vmatprep.mubr.bf16.mxu0 %v1584
      %2512 = vmatmul.mubr.bf16.gmra.mxu0 %v1583
      %v2513 = vpop.f32.mrf.mxu0
      %v2514 = vadd.f32 0.0, %v2513
      %v2515 = vpop.f32.mrf.mxu0
      %v2516 = vpop.f32.mrf.mxu0
      %v2517 = vadd.f32 0.0, %v2516
      %v2518 = vpop.f32.mrf.mxu0
      %2519 = vmatprep.mubr.bf16.mxu0 %v1592
      %2520 = vmatmul.mubr.bf16.gmra.mxu0 %v1591
      %v2521 = vpop.f32.mrf.mxu0
      %v2522 = vadd.f32 0.0, %v2521
      %v2523 = vpop.f32.mrf.mxu0
      %v2524 = vpop.f32.mrf.mxu0
      %v2525 = vadd.f32 0.0, %v2524
      %v2526 = vpop.f32.mrf.mxu0
      %2527 = vmatprep.mubr.bf16.mxu0 %v1600
      %2528 = vmatmul.mubr.bf16.gmra.mxu0 %v1599
      %v2529 = vpop.f32.mrf.mxu0
      %v2530 = vadd.f32 0.0, %v2529
      %v2531 = vpop.f32.mrf.mxu0
      %v2532 = vpop.f32.mrf.mxu0
      %v2533 = vadd.f32 0.0, %v2532
      %v2534 = vpop.f32.mrf.mxu0
      %2535 = vmatprep.mubr.bf16.mxu0 %v1608
      %2536 = vmatmul.mubr.bf16.gmra.mxu0 %v1607
      %v2537 = vpop.f32.mrf.mxu0
      %v2538 = vadd.f32 0.0, %v2537
      %v2539 = vpop.f32.mrf.mxu0
      %v2540 = vpop.f32.mrf.mxu0
      %v2541 = vadd.f32 0.0, %v2540
      %v2542 = vpop.f32.mrf.mxu0
      %2543 = vmatprep.mubr.bf16.mxu0 %v1616
      %2544 = vmatmul.mubr.bf16.gmra.mxu0 %v1615
      %v2545 = vpop.f32.mrf.mxu0
      %v2546 = vadd.f32 0.0, %v2545
      %v2547 = vpop.f32.mrf.mxu0
      %v2548 = vpop.f32.mrf.mxu0
      %v2549 = vadd.f32 0.0, %v2548
      %v2550 = vpop.f32.mrf.mxu0
      %2551 = vmatprep.mubr.bf16.mxu0 %v1624
      %2552 = vmatmul.mubr.bf16.gmra.mxu0 %v1623
      %v2553 = vpop.f32.mrf.mxu0
      %v2554 = vadd.f32 0.0, %v2553
      %v2555 = vpop.f32.mrf.mxu0
      %v2556 = vpop.f32.mrf.mxu0
      %v2557 = vadd.f32 0.0, %v2556
      %v2558 = vpop.f32.mrf.mxu0
      %2559 = vmatprep.mubr.bf16.mxu0 %v1632
      %2560 = vmatmul.mubr.bf16.gmra.mxu0 %v1631
      %v2561 = vpop.f32.mrf.mxu0
      %v2562 = vadd.f32 0.0, %v2561
      %v2563 = vpop.f32.mrf.mxu0
      %v2564 = vpop.f32.mrf.mxu0
      %v2565 = vadd.f32 0.0, %v2564
      %v2566 = vpop.f32.mrf.mxu0
      %2567 = vmatprep.mubr.bf16.mxu0 %v1640
      %2568 = vmatmul.mubr.bf16.gmra.mxu0 %v1639
      %v2569 = vpop.f32.mrf.mxu0
      %v2570 = vadd.f32 0.0, %v2569
      %v2571 = vpop.f32.mrf.mxu0
      %v2572 = vpop.f32.mrf.mxu0
      %v2573 = vadd.f32 0.0, %v2572
      %v2574 = vpop.f32.mrf.mxu0
      %2575 = vmatprep.mubr.bf16.mxu0 %v1648
      %2576 = vmatmul.mubr.bf16.gmra.mxu0 %v1647
      %v2577 = vpop.f32.mrf.mxu0
      %v2578 = vadd.f32 0.0, %v2577
      %v2579 = vpop.f32.mrf.mxu0
      %v2580 = vpop.f32.mrf.mxu0
      %v2581 = vadd.f32 0.0, %v2580
      %v2582 = vpop.f32.mrf.mxu0
      %2583 = vmatprep.mubr.bf16.mxu0 %v1656
      %2584 = vmatmul.mubr.bf16.gmra.mxu0 %v1655
      %v2585 = vpop.f32.mrf.mxu0
      %v2586 = vadd.f32 0.0, %v2585
      %v2587 = vpop.f32.mrf.mxu0
      %v2588 = vpop.f32.mrf.mxu0
      %v2589 = vadd.f32 0.0, %v2588
      %v2590 = vpop.f32.mrf.mxu0
      %2591 = vmatprep.mubr.bf16.mxu0 %v1664
      %2592 = vmatmul.mubr.bf16.gmra.mxu0 %v1663
      %v2593 = vpop.f32.mrf.mxu0
      %v2594 = vadd.f32 0.0, %v2593
      %v2595 = vpop.f32.mrf.mxu0
      %v2596 = vpop.f32.mrf.mxu0
      %v2597 = vadd.f32 0.0, %v2596
      %v2598 = vpop.f32.mrf.mxu0
      %2599 = vmatprep.mubr.bf16.mxu0 %v1672
      %2600 = vmatmul.mubr.bf16.gmra.mxu0 %v1671
      %v2601 = vpop.f32.mrf.mxu0
      %v2602 = vadd.f32 0.0, %v2601
      %v2603 = vpop.f32.mrf.mxu0
      %v2604 = vpop.f32.mrf.mxu0
      %v2605 = vadd.f32 0.0, %v2604
      %v2606 = vpop.f32.mrf.mxu0
      %2607 = vmatprep.mubr.bf16.mxu0 %v1680
      %2608 = vmatmul.mubr.bf16.gmra.mxu0 %v1679
      %v2609 = vpop.f32.mrf.mxu0
      %v2610 = vadd.f32 0.0, %v2609
      %v2611 = vpop.f32.mrf.mxu0
      %v2612 = vpop.f32.mrf.mxu0
      %v2613 = vadd.f32 0.0, %v2612
      %v2614 = vpop.f32.mrf.mxu0
      %2615 = vmatprep.mubr.bf16.mxu0 %v1688
      %2616 = vmatmul.mubr.bf16.gmra.mxu0 %v1687
      %v2617 = vpop.f32.mrf.mxu0
      %v2618 = vadd.f32 0.0, %v2617
      %v2619 = vpop.f32.mrf.mxu0
      %v2620 = vpop.f32.mrf.mxu0
      %v2621 = vadd.f32 0.0, %v2620
      %v2622 = vpop.f32.mrf.mxu0
      %2623 = vmatprep.mubr.bf16.mxu0 %v1696
      %2624 = vmatmul.mubr.bf16.gmra.mxu0 %v1695
      %v2625 = vpop.f32.mrf.mxu0
      %v2626 = vadd.f32 0.0, %v2625
      %v2627 = vpop.f32.mrf.mxu0
      %v2628 = vpop.f32.mrf.mxu0
      %v2629 = vadd.f32 0.0, %v2628
      %v2630 = vpop.f32.mrf.mxu0
      %2631 = vmatprep.mubr.bf16.mxu0 %v1704
      %2632 = vmatmul.mubr.bf16.gmra.mxu0 %v1703
      %v2633 = vpop.f32.mrf.mxu0
      %v2634 = vadd.f32 0.0, %v2633
      %v2635 = vpop.f32.mrf.mxu0
      %v2636 = vpop.f32.mrf.mxu0
      %v2637 = vadd.f32 0.0, %v2636
      %v2638 = vpop.f32.mrf.mxu0
      %2639 = vmatprep.mubr.bf16.mxu0 %v1712
      %2640 = vmatmul.mubr.bf16.gmra.mxu0 %v1711
      %v2641 = vpop.f32.mrf.mxu0
      %v2642 = vadd.f32 0.0, %v2641
      %v2643 = vpop.f32.mrf.mxu0
      %v2644 = vpop.f32.mrf.mxu0
      %v2645 = vadd.f32 0.0, %v2644
      %v2646 = vpop.f32.mrf.mxu0
      %2647 = vmatprep.mubr.bf16.mxu0 %v1720
      %2648 = vmatmul.mubr.bf16.gmra.mxu0 %v1719
      %v2649 = vpop.f32.mrf.mxu0
      %v2650 = vadd.f32 0.0, %v2649
      %v2651 = vpop.f32.mrf.mxu0
      %v2652 = vpop.f32.mrf.mxu0
      %v2653 = vadd.f32 0.0, %v2652
      %v2654 = vpop.f32.mrf.mxu0
      %2655 = vmatprep.mubr.bf16.mxu0 %v1728
      %2656 = vmatmul.mubr.bf16.gmra.mxu0 %v1727
      %v2657 = vpop.f32.mrf.mxu0
      %v2658 = vadd.f32 0.0, %v2657
      %v2659 = vpop.f32.mrf.mxu0
      %v2660 = vpop.f32.mrf.mxu0
      %v2661 = vadd.f32 0.0, %v2660
      %v2662 = vpop.f32.mrf.mxu0
      %2663 = vmatprep.mubr.bf16.mxu0 %v1736
      %2664 = vmatmul.mubr.bf16.gmra.mxu0 %v1735
      %v2665 = vpop.f32.mrf.mxu0
      %v2666 = vadd.f32 0.0, %v2665
      %v2667 = vpop.f32.mrf.mxu0
      %v2668 = vpop.f32.mrf.mxu0
      %v2669 = vadd.f32 0.0, %v2668
      %v2670 = vpop.f32.mrf.mxu0
      %2671 = vmatprep.mubr.bf16.mxu0 %v1744
      %2672 = vmatmul.mubr.bf16.gmra.mxu0 %v1743
      %v2673 = vpop.f32.mrf.mxu0
      %v2674 = vadd.f32 0.0, %v2673
      %v2675 = vpop.f32.mrf.mxu0
      %v2676 = vpop.f32.mrf.mxu0
      %v2677 = vadd.f32 0.0, %v2676
      %v2678 = vpop.f32.mrf.mxu0
      %2679 = vmatprep.mubr.bf16.mxu0 %v1752
      %2680 = vmatmul.mubr.bf16.gmra.mxu0 %v1751
      %v2681 = vpop.f32.mrf.mxu0
      %v2682 = vadd.f32 0.0, %v2681
      %v2683 = vpop.f32.mrf.mxu0
      %v2684 = vpop.f32.mrf.mxu0
      %v2685 = vadd.f32 0.0, %v2684
      %v2686 = vpop.f32.mrf.mxu0
      %2687 = vdwg.mxu0
      %2688 = vmatprep.subr.bf16.mxu0 0
      %2689 = vmatpush1.bf16.msra.mxu0 %v2294
      %2690 = vmatprep.subr.bf16.mxu0 0
      %2691 = vmatpush1.bf16.msra.mxu0 %v2293
      %2692 = vmatprep.subr.bf16.mxu0 0
      %2693 = vmatpush1.bf16.msra.mxu0 %v2292
      %2694 = vmatprep.subr.bf16.mxu0 0
      %2695 = vmatpush1.bf16.msra.mxu0 %v2291
      %2696 = vmatprep.subr.bf16.mxu0 0
      %2697 = vmatpush1.bf16.msra.mxu0 %v2290
      %2698 = vmatprep.subr.bf16.mxu0 0
      %2699 = vmatpush1.bf16.msra.mxu0 %v2289
      %2700 = vmatprep.subr.bf16.mxu0 0
      %2701 = vmatpush1.bf16.msra.mxu0 %v2288
      %2702 = vmatprep.subr.bf16.mxu0 0
      %2703 = vmatpush1.bf16.msra.mxu0 %v2287
      %2704 = vmatprep.subr.bf16.mxu0 0
      %2705 = vmatpush2.bf16.msra.mxu0 %v2302
      %2706 = vmatprep.subr.bf16.mxu0 0
      %2707 = vmatpush2.bf16.msra.mxu0 %v2301
      %2708 = vmatprep.subr.bf16.mxu0 0
      %2709 = vmatpush2.bf16.msra.mxu0 %v2300
      %2710 = vmatprep.subr.bf16.mxu0 0
      %2711 = vmatpush2.bf16.msra.mxu0 %v2299
      %2712 = vmatprep.subr.bf16.mxu0 0
      %2713 = vmatpush2.bf16.msra.mxu0 %v2298
      %2714 = vmatprep.subr.bf16.mxu0 0
      %2715 = vmatpush2.bf16.msra.mxu0 %v2297
      %2716 = vmatprep.subr.bf16.mxu0 0
      %2717 = vmatpush2.bf16.msra.mxu0 %v2296
      %2718 = vmatprep.subr.bf16.mxu0 0
      %2719 = vmatpush2.bf16.msra.mxu0 %v2295
      %2720 = vmatprep.mubr.bf16.mxu0 %v1506
      %2721 = vmatmul.mubr.bf16.gmra.mxu0 %v1505
      %v2722 = vpop.f32.mrf.mxu0
      %v2723 = vadd.f32 %v2434, %v2722
      %v2724 = vpop.f32.mrf.mxu0
      %v2725 = vpop.f32.mrf.mxu0
      %v2726 = vadd.f32 %v2437, %v2725
      %v2727 = vpop.f32.mrf.mxu0
      %2728 = vmatprep.mubr.bf16.mxu0 %v1514
      %2729 = vmatmul.mubr.bf16.gmra.mxu0 %v1513
      %v2730 = vpop.f32.mrf.mxu0
      %v2731 = vadd.f32 %v2442, %v2730
      %v2732 = vpop.f32.mrf.mxu0
      %v2733 = vpop.f32.mrf.mxu0
      %v2734 = vadd.f32 %v2445, %v2733
      %v2735 = vpop.f32.mrf.mxu0
      %2736 = vmatprep.mubr.bf16.mxu0 %v1522
      %2737 = vmatmul.mubr.bf16.gmra.mxu0 %v1521
      %v2738 = vpop.f32.mrf.mxu0
      %v2739 = vadd.f32 %v2450, %v2738
      %v2740 = vpop.f32.mrf.mxu0
      %v2741 = vpop.f32.mrf.mxu0
      %v2742 = vadd.f32 %v2453, %v2741
      %v2743 = vpop.f32.mrf.mxu0
      %2744 = vmatprep.mubr.bf16.mxu0 %v1530
      %2745 = vmatmul.mubr.bf16.gmra.mxu0 %v1529
      %v2746 = vpop.f32.mrf.mxu0
      %v2747 = vadd.f32 %v2458, %v2746
      %v2748 = vpop.f32.mrf.mxu0
      %v2749 = vpop.f32.mrf.mxu0
      %v2750 = vadd.f32 %v2461, %v2749
      %v2751 = vpop.f32.mrf.mxu0
      %2752 = vmatprep.mubr.bf16.mxu0 %v1538
      %2753 = vmatmul.mubr.bf16.gmra.mxu0 %v1537
      %v2754 = vpop.f32.mrf.mxu0
      %v2755 = vadd.f32 %v2466, %v2754
      %v2756 = vpop.f32.mrf.mxu0
      %v2757 = vpop.f32.mrf.mxu0
      %v2758 = vadd.f32 %v2469, %v2757
      %v2759 = vpop.f32.mrf.mxu0
      %2760 = vmatprep.mubr.bf16.mxu0 %v1546
      %2761 = vmatmul.mubr.bf16.gmra.mxu0 %v1545
      %v2762 = vpop.f32.mrf.mxu0
      %v2763 = vadd.f32 %v2474, %v2762
      %v2764 = vpop.f32.mrf.mxu0
      %v2765 = vpop.f32.mrf.mxu0
      %v2766 = vadd.f32 %v2477, %v2765
      %v2767 = vpop.f32.mrf.mxu0
      %2768 = vmatprep.mubr.bf16.mxu0 %v1554
      %2769 = vmatmul.mubr.bf16.gmra.mxu0 %v1553
      %v2770 = vpop.f32.mrf.mxu0
      %v2771 = vadd.f32 %v2482, %v2770
      %v2772 = vpop.f32.mrf.mxu0
      %v2773 = vpop.f32.mrf.mxu0
      %v2774 = vadd.f32 %v2485, %v2773
      %v2775 = vpop.f32.mrf.mxu0
      %2776 = vmatprep.mubr.bf16.mxu0 %v1562
      %2777 = vmatmul.mubr.bf16.gmra.mxu0 %v1561
      %v2778 = vpop.f32.mrf.mxu0
      %v2779 = vadd.f32 %v2490, %v2778
      %v2780 = vpop.f32.mrf.mxu0
      %v2781 = vpop.f32.mrf.mxu0
      %v2782 = vadd.f32 %v2493, %v2781
      %v2783 = vpop.f32.mrf.mxu0
      %2784 = vmatprep.mubr.bf16.mxu0 %v1570
      %2785 = vmatmul.mubr.bf16.gmra.mxu0 %v1569
      %v2786 = vpop.f32.mrf.mxu0
      %v2787 = vadd.f32 %v2498, %v2786
      %v2788 = vpop.f32.mrf.mxu0
      %v2789 = vpop.f32.mrf.mxu0
      %v2790 = vadd.f32 %v2501, %v2789
      %v2791 = vpop.f32.mrf.mxu0
      %2792 = vmatprep.mubr.bf16.mxu0 %v1578
      %2793 = vmatmul.mubr.bf16.gmra.mxu0 %v1577
      %v2794 = vpop.f32.mrf.mxu0
      %v2795 = vadd.f32 %v2506, %v2794
      %v2796 = vpop.f32.mrf.mxu0
      %v2797 = vpop.f32.mrf.mxu0
      %v2798 = vadd.f32 %v2509, %v2797
      %v2799 = vpop.f32.mrf.mxu0
      %2800 = vmatprep.mubr.bf16.mxu0 %v1586
      %2801 = vmatmul.mubr.bf16.gmra.mxu0 %v1585
      %v2802 = vpop.f32.mrf.mxu0
      %v2803 = vadd.f32 %v2514, %v2802
      %v2804 = vpop.f32.mrf.mxu0
      %v2805 = vpop.f32.mrf.mxu0
      %v2806 = vadd.f32 %v2517, %v2805
      %v2807 = vpop.f32.mrf.mxu0
      %2808 = vmatprep.mubr.bf16.mxu0 %v1594
      %2809 = vmatmul.mubr.bf16.gmra.mxu0 %v1593
      %v2810 = vpop.f32.mrf.mxu0
      %v2811 = vadd.f32 %v2522, %v2810
      %v2812 = vpop.f32.mrf.mxu0
      %v2813 = vpop.f32.mrf.mxu0
      %v2814 = vadd.f32 %v2525, %v2813
      %v2815 = vpop.f32.mrf.mxu0
      %2816 = vmatprep.mubr.bf16.mxu0 %v1602
      %2817 = vmatmul.mubr.bf16.gmra.mxu0 %v1601
      %v2818 = vpop.f32.mrf.mxu0
      %v2819 = vadd.f32 %v2530, %v2818
      %v2820 = vpop.f32.mrf.mxu0
      %v2821 = vpop.f32.mrf.mxu0
      %v2822 = vadd.f32 %v2533, %v2821
      %v2823 = vpop.f32.mrf.mxu0
      %2824 = vmatprep.mubr.bf16.mxu0 %v1610
      %2825 = vmatmul.mubr.bf16.gmra.mxu0 %v1609
      %v2826 = vpop.f32.mrf.mxu0
      %v2827 = vadd.f32 %v2538, %v2826
      %v2828 = vpop.f32.mrf.mxu0
      %v2829 = vpop.f32.mrf.mxu0
      %v2830 = vadd.f32 %v2541, %v2829
      %v2831 = vpop.f32.mrf.mxu0
      %2832 = vmatprep.mubr.bf16.mxu0 %v1618
      %2833 = vmatmul.mubr.bf16.gmra.mxu0 %v1617
      %v2834 = vpop.f32.mrf.mxu0
      %v2835 = vadd.f32 %v2546, %v2834
      %v2836 = vpop.f32.mrf.mxu0
      %v2837 = vpop.f32.mrf.mxu0
      %v2838 = vadd.f32 %v2549, %v2837
      %v2839 = vpop.f32.mrf.mxu0
      %2840 = vmatprep.mubr.bf16.mxu0 %v1626
      %2841 = vmatmul.mubr.bf16.gmra.mxu0 %v1625
      %v2842 = vpop.f32.mrf.mxu0
      %v2843 = vadd.f32 %v2554, %v2842
      %v2844 = vpop.f32.mrf.mxu0
      %v2845 = vpop.f32.mrf.mxu0
      %v2846 = vadd.f32 %v2557, %v2845
      %v2847 = vpop.f32.mrf.mxu0
      %2848 = vmatprep.mubr.bf16.mxu0 %v1634
      %2849 = vmatmul.mubr.bf16.gmra.mxu0 %v1633
      %v2850 = vpop.f32.mrf.mxu0
      %v2851 = vadd.f32 %v2562, %v2850
      %v2852 = vpop.f32.mrf.mxu0
      %v2853 = vpop.f32.mrf.mxu0
      %v2854 = vadd.f32 %v2565, %v2853
      %v2855 = vpop.f32.mrf.mxu0
      %2856 = vmatprep.mubr.bf16.mxu0 %v1642
      %2857 = vmatmul.mubr.bf16.gmra.mxu0 %v1641
      %v2858 = vpop.f32.mrf.mxu0
      %v2859 = vadd.f32 %v2570, %v2858
      %v2860 = vpop.f32.mrf.mxu0
      %v2861 = vpop.f32.mrf.mxu0
      %v2862 = vadd.f32 %v2573, %v2861
      %v2863 = vpop.f32.mrf.mxu0
      %2864 = vmatprep.mubr.bf16.mxu0 %v1650
      %2865 = vmatmul.mubr.bf16.gmra.mxu0 %v1649
      %v2866 = vpop.f32.mrf.mxu0
      %v2867 = vadd.f32 %v2578, %v2866
      %v2868 = vpop.f32.mrf.mxu0
      %v2869 = vpop.f32.mrf.mxu0
      %v2870 = vadd.f32 %v2581, %v2869
      %v2871 = vpop.f32.mrf.mxu0
      %2872 = vmatprep.mubr.bf16.mxu0 %v1658
      %2873 = vmatmul.mubr.bf16.gmra.mxu0 %v1657
      %v2874 = vpop.f32.mrf.mxu0
      %v2875 = vadd.f32 %v2586, %v2874
      %v2876 = vpop.f32.mrf.mxu0
      %v2877 = vpop.f32.mrf.mxu0
      %v2878 = vadd.f32 %v2589, %v2877
      %v2879 = vpop.f32.mrf.mxu0
      %2880 = vmatprep.mubr.bf16.mxu0 %v1666
      %2881 = vmatmul.mubr.bf16.gmra.mxu0 %v1665
      %v2882 = vpop.f32.mrf.mxu0
      %v2883 = vadd.f32 %v2594, %v2882
      %v2884 = vpop.f32.mrf.mxu0
      %v2885 = vpop.f32.mrf.mxu0
      %v2886 = vadd.f32 %v2597, %v2885
      %v2887 = vpop.f32.mrf.mxu0
      %2888 = vmatprep.mubr.bf16.mxu0 %v1674
      %2889 = vmatmul.mubr.bf16.gmra.mxu0 %v1673
      %v2890 = vpop.f32.mrf.mxu0
      %v2891 = vadd.f32 %v2602, %v2890
      %v2892 = vpop.f32.mrf.mxu0
      %v2893 = vpop.f32.mrf.mxu0
      %v2894 = vadd.f32 %v2605, %v2893
      %v2895 = vpop.f32.mrf.mxu0
      %2896 = vmatprep.mubr.bf16.mxu0 %v1682
      %2897 = vmatmul.mubr.bf16.gmra.mxu0 %v1681
      %v2898 = vpop.f32.mrf.mxu0
      %v2899 = vadd.f32 %v2610, %v2898
      %v2900 = vpop.f32.mrf.mxu0
      %v2901 = vpop.f32.mrf.mxu0
      %v2902 = vadd.f32 %v2613, %v2901
      %v2903 = vpop.f32.mrf.mxu0
      %2904 = vmatprep.mubr.bf16.mxu0 %v1690
      %2905 = vmatmul.mubr.bf16.gmra.mxu0 %v1689
      %v2906 = vpop.f32.mrf.mxu0
      %v2907 = vadd.f32 %v2618, %v2906
      %v2908 = vpop.f32.mrf.mxu0
      %v2909 = vpop.f32.mrf.mxu0
      %v2910 = vadd.f32 %v2621, %v2909
      %v2911 = vpop.f32.mrf.mxu0
      %2912 = vmatprep.mubr.bf16.mxu0 %v1698
      %2913 = vmatmul.mubr.bf16.gmra.mxu0 %v1697
      %v2914 = vpop.f32.mrf.mxu0
      %v2915 = vadd.f32 %v2626, %v2914
      %v2916 = vpop.f32.mrf.mxu0
      %v2917 = vpop.f32.mrf.mxu0
      %v2918 = vadd.f32 %v2629, %v2917
      %v2919 = vpop.f32.mrf.mxu0
      %2920 = vmatprep.mubr.bf16.mxu0 %v1706
      %2921 = vmatmul.mubr.bf16.gmra.mxu0 %v1705
      %v2922 = vpop.f32.mrf.mxu0
      %v2923 = vadd.f32 %v2634, %v2922
      %v2924 = vpop.f32.mrf.mxu0
      %v2925 = vpop.f32.mrf.mxu0
      %v2926 = vadd.f32 %v2637, %v2925
      %v2927 = vpop.f32.mrf.mxu0
      %2928 = vmatprep.mubr.bf16.mxu0 %v1714
      %2929 = vmatmul.mubr.bf16.gmra.mxu0 %v1713
      %v2930 = vpop.f32.mrf.mxu0
      %v2931 = vadd.f32 %v2642, %v2930
      %v2932 = vpop.f32.mrf.mxu0
      %v2933 = vpop.f32.mrf.mxu0
      %v2934 = vadd.f32 %v2645, %v2933
      %v2935 = vpop.f32.mrf.mxu0
      %2936 = vmatprep.mubr.bf16.mxu0 %v1722
      %2937 = vmatmul.mubr.bf16.gmra.mxu0 %v1721
      %v2938 = vpop.f32.mrf.mxu0
      %v2939 = vadd.f32 %v2650, %v2938
      %v2940 = vpop.f32.mrf.mxu0
      %v2941 = vpop.f32.mrf.mxu0
      %v2942 = vadd.f32 %v2653, %v2941
      %v2943 = vpop.f32.mrf.mxu0
      %2944 = vmatprep.mubr.bf16.mxu0 %v1730
      %2945 = vmatmul.mubr.bf16.gmra.mxu0 %v1729
      %v2946 = vpop.f32.mrf.mxu0
      %v2947 = vadd.f32 %v2658, %v2946
      %v2948 = vpop.f32.mrf.mxu0
      %v2949 = vpop.f32.mrf.mxu0
      %v2950 = vadd.f32 %v2661, %v2949
      %v2951 = vpop.f32.mrf.mxu0
      %2952 = vmatprep.mubr.bf16.mxu0 %v1738
      %2953 = vmatmul.mubr.bf16.gmra.mxu0 %v1737
      %v2954 = vpop.f32.mrf.mxu0
      %v2955 = vadd.f32 %v2666, %v2954
      %v2956 = vpop.f32.mrf.mxu0
      %v2957 = vpop.f32.mrf.mxu0
      %v2958 = vadd.f32 %v2669, %v2957
      %v2959 = vpop.f32.mrf.mxu0
      %2960 = vmatprep.mubr.bf16.mxu0 %v1746
      %2961 = vmatmul.mubr.bf16.gmra.mxu0 %v1745
      %v2962 = vpop.f32.mrf.mxu0
      %v2963 = vadd.f32 %v2674, %v2962
      %v2964 = vpop.f32.mrf.mxu0
      %v2965 = vpop.f32.mrf.mxu0
      %v2966 = vadd.f32 %v2677, %v2965
      %v2967 = vpop.f32.mrf.mxu0
      %2968 = vmatprep.mubr.bf16.mxu0 %v1754
      %2969 = vmatmul.mubr.bf16.gmra.mxu0 %v1753
      %v2970 = vpop.f32.mrf.mxu0
      %v2971 = vadd.f32 %v2682, %v2970
      %v2972 = vpop.f32.mrf.mxu0
      %v2973 = vpop.f32.mrf.mxu0
      %v2974 = vadd.f32 %v2685, %v2973
      %v2975 = vpop.f32.mrf.mxu0
      %2976 = vdwg.mxu0
      %2977 = vmatprep.subr.bf16.mxu0 0
      %2978 = vmatpush1.bf16.msra.mxu0 %v2310
      %2979 = vmatprep.subr.bf16.mxu0 0
      %2980 = vmatpush1.bf16.msra.mxu0 %v2309
      %2981 = vmatprep.subr.bf16.mxu0 0
      %2982 = vmatpush1.bf16.msra.mxu0 %v2308
      %2983 = vmatprep.subr.bf16.mxu0 0
      %2984 = vmatpush1.bf16.msra.mxu0 %v2307
      %2985 = vmatprep.subr.bf16.mxu0 0
      %2986 = vmatpush1.bf16.msra.mxu0 %v2306
      %2987 = vmatprep.subr.bf16.mxu0 0
      %2988 = vmatpush1.bf16.msra.mxu0 %v2305
      %2989 = vmatprep.subr.bf16.mxu0 0
      %2990 = vmatpush1.bf16.msra.mxu0 %v2304
      %2991 = vmatprep.subr.bf16.mxu0 0
      %2992 = vmatpush1.bf16.msra.mxu0 %v2303
      %2993 = vmatprep.subr.bf16.mxu0 0
      %2994 = vmatpush2.bf16.msra.mxu0 %v2318
      %2995 = vmatprep.subr.bf16.mxu0 0
      %2996 = vmatpush2.bf16.msra.mxu0 %v2317
      %2997 = vmatprep.subr.bf16.mxu0 0
      %2998 = vmatpush2.bf16.msra.mxu0 %v2316
      %2999 = vmatprep.subr.bf16.mxu0 0
      %3000 = vmatpush2.bf16.msra.mxu0 %v2315
      %3001 = vmatprep.subr.bf16.mxu0 0
      %3002 = vmatpush2.bf16.msra.mxu0 %v2314
      %3003 = vmatprep.subr.bf16.mxu0 0
      %3004 = vmatpush2.bf16.msra.mxu0 %v2313
      %3005 = vmatprep.subr.bf16.mxu0 0
      %3006 = vmatpush2.bf16.msra.mxu0 %v2312
      %3007 = vmatprep.subr.bf16.mxu0 0
      %3008 = vmatpush2.bf16.msra.mxu0 %v2311
      %3009 = vmatprep.mubr.bf16.mxu0 %v1508
      %3010 = vmatmul.mubr.bf16.gmra.mxu0 %v1507
      %v3011 = vpop.f32.mrf.mxu0
      %v3012 = vadd.f32 %v2723, %v3011
      %v3013 = vpop.f32.mrf.mxu0
      %v3014 = vpop.f32.mrf.mxu0
      %v3015 = vadd.f32 %v2726, %v3014
      %v3016 = vpop.f32.mrf.mxu0
      %3017 = vmatprep.mubr.bf16.mxu0 %v1516
      %3018 = vmatmul.mubr.bf16.gmra.mxu0 %v1515
      %v3019 = vpop.f32.mrf.mxu0
      %v3020 = vadd.f32 %v2731, %v3019
      %v3021 = vpop.f32.mrf.mxu0
      %v3022 = vpop.f32.mrf.mxu0
      %v3023 = vadd.f32 %v2734, %v3022
      %v3024 = vpop.f32.mrf.mxu0
      %3025 = vmatprep.mubr.bf16.mxu0 %v1524
      %3026 = vmatmul.mubr.bf16.gmra.mxu0 %v1523
      %v3027 = vpop.f32.mrf.mxu0
      %v3028 = vadd.f32 %v2739, %v3027
      %v3029 = vpop.f32.mrf.mxu0
      %v3030 = vpop.f32.mrf.mxu0
      %v3031 = vadd.f32 %v2742, %v3030
      %v3032 = vpop.f32.mrf.mxu0
      %3033 = vmatprep.mubr.bf16.mxu0 %v1532
      %3034 = vmatmul.mubr.bf16.gmra.mxu0 %v1531
      %v3035 = vpop.f32.mrf.mxu0
      %v3036 = vadd.f32 %v2747, %v3035
      %v3037 = vpop.f32.mrf.mxu0
      %v3038 = vpop.f32.mrf.mxu0
      %v3039 = vadd.f32 %v2750, %v3038
      %v3040 = vpop.f32.mrf.mxu0
      %3041 = vmatprep.mubr.bf16.mxu0 %v1540
      %3042 = vmatmul.mubr.bf16.gmra.mxu0 %v1539
      %v3043 = vpop.f32.mrf.mxu0
      %v3044 = vadd.f32 %v2755, %v3043
      %v3045 = vpop.f32.mrf.mxu0
      %v3046 = vpop.f32.mrf.mxu0
      %v3047 = vadd.f32 %v2758, %v3046
      %v3048 = vpop.f32.mrf.mxu0
      %3049 = vmatprep.mubr.bf16.mxu0 %v1548
      %3050 = vmatmul.mubr.bf16.gmra.mxu0 %v1547
      %v3051 = vpop.f32.mrf.mxu0
      %v3052 = vadd.f32 %v2763, %v3051
      %v3053 = vpop.f32.mrf.mxu0
      %v3054 = vpop.f32.mrf.mxu0
      %v3055 = vadd.f32 %v2766, %v3054
      %v3056 = vpop.f32.mrf.mxu0
      %3057 = vmatprep.mubr.bf16.mxu0 %v1556
      %3058 = vmatmul.mubr.bf16.gmra.mxu0 %v1555
      %v3059 = vpop.f32.mrf.mxu0
      %v3060 = vadd.f32 %v2771, %v3059
      %v3061 = vpop.f32.mrf.mxu0
      %v3062 = vpop.f32.mrf.mxu0
      %v3063 = vadd.f32 %v2774, %v3062
      %v3064 = vpop.f32.mrf.mxu0
      %3065 = vmatprep.mubr.bf16.mxu0 %v1564
      %3066 = vmatmul.mubr.bf16.gmra.mxu0 %v1563
      %v3067 = vpop.f32.mrf.mxu0
      %v3068 = vadd.f32 %v2779, %v3067
      %v3069 = vpop.f32.mrf.mxu0
      %v3070 = vpop.f32.mrf.mxu0
      %v3071 = vadd.f32 %v2782, %v3070
      %v3072 = vpop.f32.mrf.mxu0
      %3073 = vmatprep.mubr.bf16.mxu0 %v1572
      %3074 = vmatmul.mubr.bf16.gmra.mxu0 %v1571
      %v3075 = vpop.f32.mrf.mxu0
      %v3076 = vadd.f32 %v2787, %v3075
      %v3077 = vpop.f32.mrf.mxu0
      %v3078 = vpop.f32.mrf.mxu0
      %v3079 = vadd.f32 %v2790, %v3078
      %v3080 = vpop.f32.mrf.mxu0
      %3081 = vmatprep.mubr.bf16.mxu0 %v1580
      %3082 = vmatmul.mubr.bf16.gmra.mxu0 %v1579
      %v3083 = vpop.f32.mrf.mxu0
      %v3084 = vadd.f32 %v2795, %v3083
      %v3085 = vpop.f32.mrf.mxu0
      %v3086 = vpop.f32.mrf.mxu0
      %v3087 = vadd.f32 %v2798, %v3086
      %v3088 = vpop.f32.mrf.mxu0
      %3089 = vmatprep.mubr.bf16.mxu0 %v1588
      %3090 = vmatmul.mubr.bf16.gmra.mxu0 %v1587
      %v3091 = vpop.f32.mrf.mxu0
      %v3092 = vadd.f32 %v2803, %v3091
      %v3093 = vpop.f32.mrf.mxu0
      %v3094 = vpop.f32.mrf.mxu0
      %v3095 = vadd.f32 %v2806, %v3094
      %v3096 = vpop.f32.mrf.mxu0
      %3097 = vmatprep.mubr.bf16.mxu0 %v1596
      %3098 = vmatmul.mubr.bf16.gmra.mxu0 %v1595
      %v3099 = vpop.f32.mrf.mxu0
      %v3100 = vadd.f32 %v2811, %v3099
      %v3101 = vpop.f32.mrf.mxu0
      %v3102 = vpop.f32.mrf.mxu0
      %v3103 = vadd.f32 %v2814, %v3102
      %v3104 = vpop.f32.mrf.mxu0
      %3105 = vmatprep.mubr.bf16.mxu0 %v1604
      %3106 = vmatmul.mubr.bf16.gmra.mxu0 %v1603
      %v3107 = vpop.f32.mrf.mxu0
      %v3108 = vadd.f32 %v2819, %v3107
      %v3109 = vpop.f32.mrf.mxu0
      %v3110 = vpop.f32.mrf.mxu0
      %v3111 = vadd.f32 %v2822, %v3110
      %v3112 = vpop.f32.mrf.mxu0
      %3113 = vmatprep.mubr.bf16.mxu0 %v1612
      %3114 = vmatmul.mubr.bf16.gmra.mxu0 %v1611
      %v3115 = vpop.f32.mrf.mxu0
      %v3116 = vadd.f32 %v2827, %v3115
      %v3117 = vpop.f32.mrf.mxu0
      %v3118 = vpop.f32.mrf.mxu0
      %v3119 = vadd.f32 %v2830, %v3118
      %v3120 = vpop.f32.mrf.mxu0
      %3121 = vmatprep.mubr.bf16.mxu0 %v1620
      %3122 = vmatmul.mubr.bf16.gmra.mxu0 %v1619
      %v3123 = vpop.f32.mrf.mxu0
      %v3124 = vadd.f32 %v2835, %v3123
      %v3125 = vpop.f32.mrf.mxu0
      %v3126 = vpop.f32.mrf.mxu0
      %v3127 = vadd.f32 %v2838, %v3126
      %v3128 = vpop.f32.mrf.mxu0
      %3129 = vmatprep.mubr.bf16.mxu0 %v1628
      %3130 = vmatmul.mubr.bf16.gmra.mxu0 %v1627
      %v3131 = vpop.f32.mrf.mxu0
      %v3132 = vadd.f32 %v2843, %v3131
      %v3133 = vpop.f32.mrf.mxu0
      %v3134 = vpop.f32.mrf.mxu0
      %v3135 = vadd.f32 %v2846, %v3134
      %v3136 = vpop.f32.mrf.mxu0
      %3137 = vmatprep.mubr.bf16.mxu0 %v1636
      %3138 = vmatmul.mubr.bf16.gmra.mxu0 %v1635
      %v3139 = vpop.f32.mrf.mxu0
      %v3140 = vadd.f32 %v2851, %v3139
      %v3141 = vpop.f32.mrf.mxu0
      %v3142 = vpop.f32.mrf.mxu0
      %v3143 = vadd.f32 %v2854, %v3142
      %v3144 = vpop.f32.mrf.mxu0
      %3145 = vmatprep.mubr.bf16.mxu0 %v1644
      %3146 = vmatmul.mubr.bf16.gmra.mxu0 %v1643
      %v3147 = vpop.f32.mrf.mxu0
      %v3148 = vadd.f32 %v2859, %v3147
      %v3149 = vpop.f32.mrf.mxu0
      %v3150 = vpop.f32.mrf.mxu0
      %v3151 = vadd.f32 %v2862, %v3150
      %v3152 = vpop.f32.mrf.mxu0
      %3153 = vmatprep.mubr.bf16.mxu0 %v1652
      %3154 = vmatmul.mubr.bf16.gmra.mxu0 %v1651
      %v3155 = vpop.f32.mrf.mxu0
      %v3156 = vadd.f32 %v2867, %v3155
      %v3157 = vpop.f32.mrf.mxu0
      %v3158 = vpop.f32.mrf.mxu0
      %v3159 = vadd.f32 %v2870, %v3158
      %v3160 = vpop.f32.mrf.mxu0
      %3161 = vmatprep.mubr.bf16.mxu0 %v1660
      %3162 = vmatmul.mubr.bf16.gmra.mxu0 %v1659
      %v3163 = vpop.f32.mrf.mxu0
      %v3164 = vadd.f32 %v2875, %v3163
      %v3165 = vpop.f32.mrf.mxu0
      %v3166 = vpop.f32.mrf.mxu0
      %v3167 = vadd.f32 %v2878, %v3166
      %v3168 = vpop.f32.mrf.mxu0
      %3169 = vmatprep.mubr.bf16.mxu0 %v1668
      %3170 = vmatmul.mubr.bf16.gmra.mxu0 %v1667
      %v3171 = vpop.f32.mrf.mxu0
      %v3172 = vadd.f32 %v2883, %v3171
      %v3173 = vpop.f32.mrf.mxu0
      %v3174 = vpop.f32.mrf.mxu0
      %v3175 = vadd.f32 %v2886, %v3174
      %v3176 = vpop.f32.mrf.mxu0
      %3177 = vmatprep.mubr.bf16.mxu0 %v1676
      %3178 = vmatmul.mubr.bf16.gmra.mxu0 %v1675
      %v3179 = vpop.f32.mrf.mxu0
      %v3180 = vadd.f32 %v2891, %v3179
      %v3181 = vpop.f32.mrf.mxu0
      %v3182 = vpop.f32.mrf.mxu0
      %v3183 = vadd.f32 %v2894, %v3182
      %v3184 = vpop.f32.mrf.mxu0
      %3185 = vmatprep.mubr.bf16.mxu0 %v1684
      %3186 = vmatmul.mubr.bf16.gmra.mxu0 %v1683
      %v3187 = vpop.f32.mrf.mxu0
      %v3188 = vadd.f32 %v2899, %v3187
      %v3189 = vpop.f32.mrf.mxu0
      %v3190 = vpop.f32.mrf.mxu0
      %v3191 = vadd.f32 %v2902, %v3190
      %v3192 = vpop.f32.mrf.mxu0
      %3193 = vmatprep.mubr.bf16.mxu0 %v1692
      %3194 = vmatmul.mubr.bf16.gmra.mxu0 %v1691
      %v3195 = vpop.f32.mrf.mxu0
      %v3196 = vadd.f32 %v2907, %v3195
      %v3197 = vpop.f32.mrf.mxu0
      %v3198 = vpop.f32.mrf.mxu0
      %v3199 = vadd.f32 %v2910, %v3198
      %v3200 = vpop.f32.mrf.mxu0
      %3201 = vmatprep.mubr.bf16.mxu0 %v1700
      %3202 = vmatmul.mubr.bf16.gmra.mxu0 %v1699
      %v3203 = vpop.f32.mrf.mxu0
      %v3204 = vadd.f32 %v2915, %v3203
      %v3205 = vpop.f32.mrf.mxu0
      %v3206 = vpop.f32.mrf.mxu0
      %v3207 = vadd.f32 %v2918, %v3206
      %v3208 = vpop.f32.mrf.mxu0
      %3209 = vmatprep.mubr.bf16.mxu0 %v1708
      %3210 = vmatmul.mubr.bf16.gmra.mxu0 %v1707
      %v3211 = vpop.f32.mrf.mxu0
      %v3212 = vadd.f32 %v2923, %v3211
      %v3213 = vpop.f32.mrf.mxu0
      %v3214 = vpop.f32.mrf.mxu0
      %v3215 = vadd.f32 %v2926, %v3214
      %v3216 = vpop.f32.mrf.mxu0
      %3217 = vmatprep.mubr.bf16.mxu0 %v1716
      %3218 = vmatmul.mubr.bf16.gmra.mxu0 %v1715
      %v3219 = vpop.f32.mrf.mxu0
      %v3220 = vadd.f32 %v2931, %v3219
      %v3221 = vpop.f32.mrf.mxu0
      %v3222 = vpop.f32.mrf.mxu0
      %v3223 = vadd.f32 %v2934, %v3222
      %v3224 = vpop.f32.mrf.mxu0
      %3225 = vmatprep.mubr.bf16.mxu0 %v1724
      %3226 = vmatmul.mubr.bf16.gmra.mxu0 %v1723
      %v3227 = vpop.f32.mrf.mxu0
      %v3228 = vadd.f32 %v2939, %v3227
      %v3229 = vpop.f32.mrf.mxu0
      %v3230 = vpop.f32.mrf.mxu0
      %v3231 = vadd.f32 %v2942, %v3230
      %v3232 = vpop.f32.mrf.mxu0
      %3233 = vmatprep.mubr.bf16.mxu0 %v1732
      %3234 = vmatmul.mubr.bf16.gmra.mxu0 %v1731
      %v3235 = vpop.f32.mrf.mxu0
      %v3236 = vadd.f32 %v2947, %v3235
      %v3237 = vpop.f32.mrf.mxu0
      %v3238 = vpop.f32.mrf.mxu0
      %v3239 = vadd.f32 %v2950, %v3238
      %v3240 = vpop.f32.mrf.mxu0
      %3241 = vmatprep.mubr.bf16.mxu0 %v1740
      %3242 = vmatmul.mubr.bf16.gmra.mxu0 %v1739
      %v3243 = vpop.f32.mrf.mxu0
      %v3244 = vadd.f32 %v2955, %v3243
      %v3245 = vpop.f32.mrf.mxu0
      %v3246 = vpop.f32.mrf.mxu0
      %v3247 = vadd.f32 %v2958, %v3246
      %v3248 = vpop.f32.mrf.mxu0
      %3249 = vmatprep.mubr.bf16.mxu0 %v1748
      %3250 = vmatmul.mubr.bf16.gmra.mxu0 %v1747
      %v3251 = vpop.f32.mrf.mxu0
      %v3252 = vadd.f32 %v2963, %v3251
      %v3253 = vpop.f32.mrf.mxu0
      %v3254 = vpop.f32.mrf.mxu0
      %v3255 = vadd.f32 %v2966, %v3254
      %v3256 = vpop.f32.mrf.mxu0
      %3257 = vmatprep.mubr.bf16.mxu0 %v1756
      %3258 = vmatmul.mubr.bf16.gmra.mxu0 %v1755
      %v3259 = vpop.f32.mrf.mxu0
      %v3260 = vadd.f32 %v2971, %v3259
      %v3261 = vpop.f32.mrf.mxu0
      %v3262 = vpop.f32.mrf.mxu0
      %v3263 = vadd.f32 %v2974, %v3262
      %v3264 = vpop.f32.mrf.mxu0
      %3265 = vdwg.mxu0
      %3266 = vmatprep.subr.bf16.mxu0 0
      %3267 = vmatpush1.bf16.msra.mxu0 %v2326
      %3268 = vmatprep.subr.bf16.mxu0 0
      %3269 = vmatpush1.bf16.msra.mxu0 %v2325
      %3270 = vmatprep.subr.bf16.mxu0 0
      %3271 = vmatpush1.bf16.msra.mxu0 %v2324
      %3272 = vmatprep.subr.bf16.mxu0 0
      %3273 = vmatpush1.bf16.msra.mxu0 %v2323
      %3274 = vmatprep.subr.bf16.mxu0 0
      %3275 = vmatpush1.bf16.msra.mxu0 %v2322
      %3276 = vmatprep.subr.bf16.mxu0 0
      %3277 = vmatpush1.bf16.msra.mxu0 %v2321
      %3278 = vmatprep.subr.bf16.mxu0 0
      %3279 = vmatpush1.bf16.msra.mxu0 %v2320
      %3280 = vmatprep.subr.bf16.mxu0 0
      %3281 = vmatpush1.bf16.msra.mxu0 %v2319
      %3282 = vmatprep.subr.bf16.mxu0 0
      %3283 = vmatpush2.bf16.msra.mxu0 %v2334
      %3284 = vmatprep.subr.bf16.mxu0 0
      %3285 = vmatpush2.bf16.msra.mxu0 %v2333
      %3286 = vmatprep.subr.bf16.mxu0 0
      %3287 = vmatpush2.bf16.msra.mxu0 %v2332
      %3288 = vmatprep.subr.bf16.mxu0 0
      %3289 = vmatpush2.bf16.msra.mxu0 %v2331
      %3290 = vmatprep.subr.bf16.mxu0 0
      %3291 = vmatpush2.bf16.msra.mxu0 %v2330
      %3292 = vmatprep.subr.bf16.mxu0 0
      %3293 = vmatpush2.bf16.msra.mxu0 %v2329
      %3294 = vmatprep.subr.bf16.mxu0 0
      %3295 = vmatpush2.bf16.msra.mxu0 %v2328
      %3296 = vmatprep.subr.bf16.mxu0 0
      %3297 = vmatpush2.bf16.msra.mxu0 %v2327
      %3298 = vmatprep.mubr.bf16.mxu0 %v1510
      %3299 = vmatmul.mubr.bf16.gmra.mxu0 %v1509
      %v3300 = vpop.f32.mrf.mxu0
      %v3301 = vadd.f32 %v3012, %v3300
      %v3302 = vpop.f32.mrf.mxu0
      %v3303 = vpop.f32.mrf.mxu0
      %v3304 = vadd.f32 %v3015, %v3303
      %v3305 = vpop.f32.mrf.mxu0
      %3306 = vmatprep.mubr.bf16.mxu0 %v1518
      %3307 = vmatmul.mubr.bf16.gmra.mxu0 %v1517
      %v3308 = vpop.f32.mrf.mxu0
      %v3309 = vadd.f32 %v3020, %v3308
      %v3310 = vpop.f32.mrf.mxu0
      %v3311 = vpop.f32.mrf.mxu0
      %v3312 = vadd.f32 %v3023, %v3311
      %v3313 = vpop.f32.mrf.mxu0
      %3314 = vmatprep.mubr.bf16.mxu0 %v1526
      %3315 = vmatmul.mubr.bf16.gmra.mxu0 %v1525
      %v3316 = vpop.f32.mrf.mxu0
      %v3317 = vadd.f32 %v3028, %v3316
      %v3318 = vpop.f32.mrf.mxu0
      %v3319 = vpop.f32.mrf.mxu0
      %v3320 = vadd.f32 %v3031, %v3319
      %v3321 = vpop.f32.mrf.mxu0
      %3322 = vmatprep.mubr.bf16.mxu0 %v1534
      %3323 = vmatmul.mubr.bf16.gmra.mxu0 %v1533
      %v3324 = vpop.f32.mrf.mxu0
      %v3325 = vadd.f32 %v3036, %v3324
      %v3326 = vpop.f32.mrf.mxu0
      %v3327 = vpop.f32.mrf.mxu0
      %v3328 = vadd.f32 %v3039, %v3327
      %v3329 = vpop.f32.mrf.mxu0
      %3330 = vmatprep.mubr.bf16.mxu0 %v1542
      %3331 = vmatmul.mubr.bf16.gmra.mxu0 %v1541
      %v3332 = vpop.f32.mrf.mxu0
      %v3333 = vadd.f32 %v3044, %v3332
      %v3334 = vpop.f32.mrf.mxu0
      %v3335 = vpop.f32.mrf.mxu0
      %v3336 = vadd.f32 %v3047, %v3335
      %v3337 = vpop.f32.mrf.mxu0
      %3338 = vmatprep.mubr.bf16.mxu0 %v1550
      %3339 = vmatmul.mubr.bf16.gmra.mxu0 %v1549
      %v3340 = vpop.f32.mrf.mxu0
      %v3341 = vadd.f32 %v3052, %v3340
      %v3342 = vpop.f32.mrf.mxu0
      %v3343 = vpop.f32.mrf.mxu0
      %v3344 = vadd.f32 %v3055, %v3343
      %v3345 = vpop.f32.mrf.mxu0
      %3346 = vmatprep.mubr.bf16.mxu0 %v1558
      %3347 = vmatmul.mubr.bf16.gmra.mxu0 %v1557
      %v3348 = vpop.f32.mrf.mxu0
      %v3349 = vadd.f32 %v3060, %v3348
      %v3350 = vpop.f32.mrf.mxu0
      %v3351 = vpop.f32.mrf.mxu0
      %v3352 = vadd.f32 %v3063, %v3351
      %v3353 = vpop.f32.mrf.mxu0
      %3354 = vmatprep.mubr.bf16.mxu0 %v1566
      %3355 = vmatmul.mubr.bf16.gmra.mxu0 %v1565
      %v3356 = vpop.f32.mrf.mxu0
      %v3357 = vadd.f32 %v3068, %v3356
      %v3358 = vpop.f32.mrf.mxu0
      %v3359 = vpop.f32.mrf.mxu0
      %v3360 = vadd.f32 %v3071, %v3359
      %v3361 = vpop.f32.mrf.mxu0
      %3362 = vmatprep.mubr.bf16.mxu0 %v1574
      %3363 = vmatmul.mubr.bf16.gmra.mxu0 %v1573
      %v3364 = vpop.f32.mrf.mxu0
      %v3365 = vadd.f32 %v3076, %v3364
      %v3366 = vpop.f32.mrf.mxu0
      %v3367 = vpop.f32.mrf.mxu0
      %v3368 = vadd.f32 %v3079, %v3367
      %v3369 = vpop.f32.mrf.mxu0
      %3370 = vmatprep.mubr.bf16.mxu0 %v1582
      %3371 = vmatmul.mubr.bf16.gmra.mxu0 %v1581
      %v3372 = vpop.f32.mrf.mxu0
      %v3373 = vadd.f32 %v3084, %v3372
      %v3374 = vpop.f32.mrf.mxu0
      %v3375 = vpop.f32.mrf.mxu0
      %v3376 = vadd.f32 %v3087, %v3375
      %v3377 = vpop.f32.mrf.mxu0
      %3378 = vmatprep.mubr.bf16.mxu0 %v1590
      %3379 = vmatmul.mubr.bf16.gmra.mxu0 %v1589
      %v3380 = vpop.f32.mrf.mxu0
      %v3381 = vadd.f32 %v3092, %v3380
      %v3382 = vpop.f32.mrf.mxu0
      %v3383 = vpop.f32.mrf.mxu0
      %v3384 = vadd.f32 %v3095, %v3383
      %v3385 = vpop.f32.mrf.mxu0
      %3386 = vmatprep.mubr.bf16.mxu0 %v1598
      %3387 = vmatmul.mubr.bf16.gmra.mxu0 %v1597
      %v3388 = vpop.f32.mrf.mxu0
      %v3389 = vadd.f32 %v3100, %v3388
      %v3390 = vpop.f32.mrf.mxu0
      %v3391 = vpop.f32.mrf.mxu0
      %v3392 = vadd.f32 %v3103, %v3391
      %v3393 = vpop.f32.mrf.mxu0
      %3394 = vmatprep.mubr.bf16.mxu0 %v1606
      %3395 = vmatmul.mubr.bf16.gmra.mxu0 %v1605
      %v3396 = vpop.f32.mrf.mxu0
      %v3397 = vadd.f32 %v3108, %v3396
      %v3398 = vpop.f32.mrf.mxu0
      %v3399 = vpop.f32.mrf.mxu0
      %v3400 = vadd.f32 %v3111, %v3399
      %v3401 = vpop.f32.mrf.mxu0
      %3402 = vmatprep.mubr.bf16.mxu0 %v1614
      %3403 = vmatmul.mubr.bf16.gmra.mxu0 %v1613
      %v3404 = vpop.f32.mrf.mxu0
      %v3405 = vadd.f32 %v3116, %v3404
      %v3406 = vpop.f32.mrf.mxu0
      %v3407 = vpop.f32.mrf.mxu0
      %v3408 = vadd.f32 %v3119, %v3407
      %v3409 = vpop.f32.mrf.mxu0
      %3410 = vmatprep.mubr.bf16.mxu0 %v1622
      %3411 = vmatmul.mubr.bf16.gmra.mxu0 %v1621
      %v3412 = vpop.f32.mrf.mxu0
      %v3413 = vadd.f32 %v3124, %v3412
      %v3414 = vpop.f32.mrf.mxu0
      %v3415 = vpop.f32.mrf.mxu0
      %v3416 = vadd.f32 %v3127, %v3415
      %v3417 = vpop.f32.mrf.mxu0
      %3418 = vmatprep.mubr.bf16.mxu0 %v1630
      %3419 = vmatmul.mubr.bf16.gmra.mxu0 %v1629
      %v3420 = vpop.f32.mrf.mxu0
      %v3421 = vadd.f32 %v3132, %v3420
      %v3422 = vpop.f32.mrf.mxu0
      %v3423 = vpop.f32.mrf.mxu0
      %v3424 = vadd.f32 %v3135, %v3423
      %v3425 = vpop.f32.mrf.mxu0
      %3426 = vmatprep.mubr.bf16.mxu0 %v1638
      %3427 = vmatmul.mubr.bf16.gmra.mxu0 %v1637
      %v3428 = vpop.f32.mrf.mxu0
      %v3429 = vadd.f32 %v3140, %v3428
      %v3430 = vpop.f32.mrf.mxu0
      %v3431 = vpop.f32.mrf.mxu0
      %v3432 = vadd.f32 %v3143, %v3431
      %v3433 = vpop.f32.mrf.mxu0
      %3434 = vmatprep.mubr.bf16.mxu0 %v1646
      %3435 = vmatmul.mubr.bf16.gmra.mxu0 %v1645
      %v3436 = vpop.f32.mrf.mxu0
      %v3437 = vadd.f32 %v3148, %v3436
      %v3438 = vpop.f32.mrf.mxu0
      %v3439 = vpop.f32.mrf.mxu0
      %v3440 = vadd.f32 %v3151, %v3439
      %v3441 = vpop.f32.mrf.mxu0
      %3442 = vmatprep.mubr.bf16.mxu0 %v1654
      %3443 = vmatmul.mubr.bf16.gmra.mxu0 %v1653
      %v3444 = vpop.f32.mrf.mxu0
      %v3445 = vadd.f32 %v3156, %v3444
      %v3446 = vpop.f32.mrf.mxu0
      %v3447 = vpop.f32.mrf.mxu0
      %v3448 = vadd.f32 %v3159, %v3447
      %v3449 = vpop.f32.mrf.mxu0
      %3450 = vmatprep.mubr.bf16.mxu0 %v1662
      %3451 = vmatmul.mubr.bf16.gmra.mxu0 %v1661
      %v3452 = vpop.f32.mrf.mxu0
      %v3453 = vadd.f32 %v3164, %v3452
      %v3454 = vpop.f32.mrf.mxu0
      %v3455 = vpop.f32.mrf.mxu0
      %v3456 = vadd.f32 %v3167, %v3455
      %v3457 = vpop.f32.mrf.mxu0
      %3458 = vmatprep.mubr.bf16.mxu0 %v1670
      %3459 = vmatmul.mubr.bf16.gmra.mxu0 %v1669
      %v3460 = vpop.f32.mrf.mxu0
      %v3461 = vadd.f32 %v3172, %v3460
      %v3462 = vpop.f32.mrf.mxu0
      %v3463 = vpop.f32.mrf.mxu0
      %v3464 = vadd.f32 %v3175, %v3463
      %v3465 = vpop.f32.mrf.mxu0
      %3466 = vmatprep.mubr.bf16.mxu0 %v1678
      %3467 = vmatmul.mubr.bf16.gmra.mxu0 %v1677
      %v3468 = vpop.f32.mrf.mxu0
      %v3469 = vadd.f32 %v3180, %v3468
      %v3470 = vpop.f32.mrf.mxu0
      %v3471 = vpop.f32.mrf.mxu0
      %v3472 = vadd.f32 %v3183, %v3471
      %v3473 = vpop.f32.mrf.mxu0
      %3474 = vmatprep.mubr.bf16.mxu0 %v1686
      %3475 = vmatmul.mubr.bf16.gmra.mxu0 %v1685
      %v3476 = vpop.f32.mrf.mxu0
      %v3477 = vadd.f32 %v3188, %v3476
      %v3478 = vpop.f32.mrf.mxu0
      %v3479 = vpop.f32.mrf.mxu0
      %v3480 = vadd.f32 %v3191, %v3479
      %v3481 = vpop.f32.mrf.mxu0
      %3482 = vmatprep.mubr.bf16.mxu0 %v1694
      %3483 = vmatmul.mubr.bf16.gmra.mxu0 %v1693
      %v3484 = vpop.f32.mrf.mxu0
      %v3485 = vadd.f32 %v3196, %v3484
      %v3486 = vpop.f32.mrf.mxu0
      %v3487 = vpop.f32.mrf.mxu0
      %v3488 = vadd.f32 %v3199, %v3487
      %v3489 = vpop.f32.mrf.mxu0
      %3490 = vmatprep.mubr.bf16.mxu0 %v1702
      %3491 = vmatmul.mubr.bf16.gmra.mxu0 %v1701
      %v3492 = vpop.f32.mrf.mxu0
      %v3493 = vadd.f32 %v3204, %v3492
      %v3494 = vpop.f32.mrf.mxu0
      %v3495 = vpop.f32.mrf.mxu0
      %v3496 = vadd.f32 %v3207, %v3495
      %v3497 = vpop.f32.mrf.mxu0
      %3498 = vmatprep.mubr.bf16.mxu0 %v1710
      %3499 = vmatmul.mubr.bf16.gmra.mxu0 %v1709
      %v3500 = vpop.f32.mrf.mxu0
      %v3501 = vadd.f32 %v3212, %v3500
      %v3502 = vpop.f32.mrf.mxu0
      %v3503 = vpop.f32.mrf.mxu0
      %v3504 = vadd.f32 %v3215, %v3503
      %v3505 = vpop.f32.mrf.mxu0
      %3506 = vmatprep.mubr.bf16.mxu0 %v1718
      %3507 = vmatmul.mubr.bf16.gmra.mxu0 %v1717
      %v3508 = vpop.f32.mrf.mxu0
      %v3509 = vadd.f32 %v3220, %v3508
      %v3510 = vpop.f32.mrf.mxu0
      %v3511 = vpop.f32.mrf.mxu0
      %v3512 = vadd.f32 %v3223, %v3511
      %v3513 = vpop.f32.mrf.mxu0
      %3514 = vmatprep.mubr.bf16.mxu0 %v1726
      %3515 = vmatmul.mubr.bf16.gmra.mxu0 %v1725
      %v3516 = vpop.f32.mrf.mxu0
      %v3517 = vadd.f32 %v3228, %v3516
      %v3518 = vpop.f32.mrf.mxu0
      %v3519 = vpop.f32.mrf.mxu0
      %v3520 = vadd.f32 %v3231, %v3519
      %v3521 = vpop.f32.mrf.mxu0
      %3522 = vmatprep.mubr.bf16.mxu0 %v1734
      %3523 = vmatmul.mubr.bf16.gmra.mxu0 %v1733
      %v3524 = vpop.f32.mrf.mxu0
      %v3525 = vadd.f32 %v3236, %v3524
      %v3526 = vpop.f32.mrf.mxu0
      %v3527 = vpop.f32.mrf.mxu0
      %v3528 = vadd.f32 %v3239, %v3527
      %v3529 = vpop.f32.mrf.mxu0
      %3530 = vmatprep.mubr.bf16.mxu0 %v1742
      %3531 = vmatmul.mubr.bf16.gmra.mxu0 %v1741
      %v3532 = vpop.f32.mrf.mxu0
      %v3533 = vadd.f32 %v3244, %v3532
      %v3534 = vpop.f32.mrf.mxu0
      %v3535 = vpop.f32.mrf.mxu0
      %v3536 = vadd.f32 %v3247, %v3535
      %v3537 = vpop.f32.mrf.mxu0
      %3538 = vmatprep.mubr.bf16.mxu0 %v1750
      %3539 = vmatmul.mubr.bf16.gmra.mxu0 %v1749
      %v3540 = vpop.f32.mrf.mxu0
      %v3541 = vadd.f32 %v3252, %v3540
      %v3542 = vpop.f32.mrf.mxu0
      %v3543 = vpop.f32.mrf.mxu0
      %v3544 = vadd.f32 %v3255, %v3543
      %v3545 = vpop.f32.mrf.mxu0
      %3546 = vmatprep.mubr.bf16.mxu0 %v1758
      %3547 = vmatmul.mubr.bf16.gmra.mxu0 %v1757
      %v3548 = vpop.f32.mrf.mxu0
      %v3549 = vadd.f32 %v3260, %v3548
      %v3550 = vpop.f32.mrf.mxu0
      %v3551 = vpop.f32.mrf.mxu0
      %v3552 = vadd.f32 %v3263, %v3551
      %v3553 = vpop.f32.mrf.mxu0
      %3554 = vdwg.mxu0
      %v3555 = vadd.f32 %v415, %v3301
      %v3556 = vadd.f32 %v416, %v3304
      %v3557 = vadd.f32 %v417, %v3309
      %v3558 = vadd.f32 %v418, %v3312
      %v3559 = vadd.f32 %v419, %v3317
      %v3560 = vadd.f32 %v420, %v3320
      %v3561 = vadd.f32 %v421, %v3325
      %v3562 = vadd.f32 %v422, %v3328
      %v3563 = vadd.f32 %v423, %v3333
      %v3564 = vadd.f32 %v424, %v3336
      %v3565 = vadd.f32 %v425, %v3341
      %v3566 = vadd.f32 %v426, %v3344
      %v3567 = vadd.f32 %v427, %v3349
      %v3568 = vadd.f32 %v428, %v3352
      %v3569 = vadd.f32 %v429, %v3357
      %v3570 = vadd.f32 %v430, %v3360
      %v3571 = vadd.f32 %v431, %v3365
      %v3572 = vadd.f32 %v432, %v3368
      %v3573 = vadd.f32 %v433, %v3373
      %v3574 = vadd.f32 %v434, %v3376
      %v3575 = vadd.f32 %v435, %v3381
      %v3576 = vadd.f32 %v436, %v3384
      %v3577 = vadd.f32 %v437, %v3389
      %v3578 = vadd.f32 %v438, %v3392
      %v3579 = vadd.f32 %v439, %v3397
      %v3580 = vadd.f32 %v440, %v3400
      %v3581 = vadd.f32 %v441, %v3405
      %v3582 = vadd.f32 %v442, %v3408
      %v3583 = vadd.f32 %v443, %v3413
      %v3584 = vadd.f32 %v444, %v3416
      %v3585 = vadd.f32 %v445, %v3421
      %v3586 = vadd.f32 %v446, %v3424
      %v3587 = vadd.f32 %v447, %v3429
      %v3588 = vadd.f32 %v448, %v3432
      %v3589 = vadd.f32 %v449, %v3437
      %v3590 = vadd.f32 %v450, %v3440
      %v3591 = vadd.f32 %v451, %v3445
      %v3592 = vadd.f32 %v452, %v3448
      %v3593 = vadd.f32 %v453, %v3453
      %v3594 = vadd.f32 %v454, %v3456
      %v3595 = vadd.f32 %v455, %v3461
      %v3596 = vadd.f32 %v456, %v3464
      %v3597 = vadd.f32 %v457, %v3469
      %v3598 = vadd.f32 %v458, %v3472
      %v3599 = vadd.f32 %v459, %v3477
      %v3600 = vadd.f32 %v460, %v3480
      %v3601 = vadd.f32 %v461, %v3485
      %v3602 = vadd.f32 %v462, %v3488
      %v3603 = vadd.f32 %v463, %v3493
      %v3604 = vadd.f32 %v464, %v3496
      %v3605 = vadd.f32 %v465, %v3501
      %v3606 = vadd.f32 %v466, %v3504
      %v3607 = vadd.f32 %v467, %v3509
      %v3608 = vadd.f32 %v468, %v3512
      %v3609 = vadd.f32 %v469, %v3517
      %v3610 = vadd.f32 %v470, %v3520
      %v3611 = vadd.f32 %v471, %v3525
      %v3612 = vadd.f32 %v472, %v3528
      %v3613 = vadd.f32 %v473, %v3533
      %v3614 = vadd.f32 %v474, %v3536
      %v3615 = vadd.f32 %v475, %v3541
      %v3616 = vadd.f32 %v476, %v3544
      %v3617 = vadd.f32 %v477, %v3549
      %v3618 = vadd.f32 %v478, %v3552
      %3619 = vst [vmem:[%s203] sm:$0xff] %v3555
      %3620 = vst [vmem:[%s203 + $0x8] sm:$0xff] %v3556
      %3621 = vst [vmem:[%s203 + $0x10] sm:$0xff] %v3557
      %3622 = vst [vmem:[%s203 + $0x18] sm:$0xff] %v3558
      %3623 = vst [vmem:[%s203 + $0x20] sm:$0xff] %v3559
      %3624 = vst [vmem:[%s203 + $0x28] sm:$0xff] %v3560
      %3625 = vst [vmem:[%s203 + $0x30] sm:$0xff] %v3561
      %3626 = vst [vmem:[%s203 + $0x38] sm:$0xff] %v3562
      %3627 = vst [vmem:[%s203 + $0x40] sm:$0xff] %v3563
      %3628 = vst [vmem:[%s203 + $0x48] sm:$0xff] %v3564
      %3629 = vst [vmem:[%s203 + $0x50] sm:$0xff] %v3565
      %3630 = vst [vmem:[%s203 + $0x58] sm:$0xff] %v3566
      %3631 = vst [vmem:[%s203 + $0x60] sm:$0xff] %v3567
      %3632 = vst [vmem:[%s203 + $0x68] sm:$0xff] %v3568
      %3633 = vst [vmem:[%s203 + $0x70] sm:$0xff] %v3569
      %3634 = vst [vmem:[%s203 + $0x78] sm:$0xff] %v3570
      %3635 = vst [vmem:[%s203 + $0x80] sm:$0xff] %v3571
      %3636 = vst [vmem:[%s203 + $0x88] sm:$0xff] %v3572
      %3637 = vst [vmem:[%s203 + $0x90] sm:$0xff] %v3573
      %3638 = vst [vmem:[%s203 + $0x98] sm:$0xff] %v3574
      %3639 = vst [vmem:[%s203 + $0xa0] sm:$0xff] %v3575
      %3640 = vst [vmem:[%s203 + $0xa8] sm:$0xff] %v3576
      %3641 = vst [vmem:[%s203 + $0xb0] sm:$0xff] %v3577
      %3642 = vst [vmem:[%s203 + $0xb8] sm:$0xff] %v3578
      %3643 = vst [vmem:[%s203 + $0xc0] sm:$0xff] %v3579
      %3644 = vst [vmem:[%s203 + $0xc8] sm:$0xff] %v3580
      %3645 = vst [vmem:[%s203 + $0xd0] sm:$0xff] %v3581
      %3646 = vst [vmem:[%s203 + $0xd8] sm:$0xff] %v3582
      %3647 = vst [vmem:[%s203 + $0xe0] sm:$0xff] %v3583
      %3648 = vst [vmem:[%s203 + $0xe8] sm:$0xff] %v3584
      %3649 = vst [vmem:[%s203 + $0xf0] sm:$0xff] %v3585
      %3650 = vst [vmem:[%s203 + $0xf8] sm:$0xff] %v3586
      %3651 = vst [vmem:[%s203 + $0x100] sm:$0xff] %v3587
      %3652 = vst [vmem:[%s203 + $0x108] sm:$0xff] %v3588
      %3653 = vst [vmem:[%s203 + $0x110] sm:$0xff] %v3589
      %3654 = vst [vmem:[%s203 + $0x118] sm:$0xff] %v3590
      %3655 = vst [vmem:[%s203 + $0x120] sm:$0xff] %v3591
      %3656 = vst [vmem:[%s203 + $0x128] sm:$0xff] %v3592
      %3657 = vst [vmem:[%s203 + $0x130] sm:$0xff] %v3593
      %3658 = vst [vmem:[%s203 + $0x138] sm:$0xff] %v3594
      %3659 = vst [vmem:[%s203 + $0x140] sm:$0xff] %v3595
      %3660 = vst [vmem:[%s203 + $0x148] sm:$0xff] %v3596
      %3661 = vst [vmem:[%s203 + $0x150] sm:$0xff] %v3597
      %3662 = vst [vmem:[%s203 + $0x158] sm:$0xff] %v3598
      %3663 = vst [vmem:[%s203 + $0x160] sm:$0xff] %v3599
      %3664 = vst [vmem:[%s203 + $0x168] sm:$0xff] %v3600
      %3665 = vst [vmem:[%s203 + $0x170] sm:$0xff] %v3601
      %3666 = vst [vmem:[%s203 + $0x178] sm:$0xff] %v3602
      %3667 = vst [vmem:[%s203 + $0x180] sm:$0xff] %v3603
      %3668 = vst [vmem:[%s203 + $0x188] sm:$0xff] %v3604
      %3669 = vst [vmem:[%s203 + $0x190] sm:$0xff] %v3605
      %3670 = vst [vmem:[%s203 + $0x198] sm:$0xff] %v3606
      %3671 = vst [vmem:[%s203 + $0x1a0] sm:$0xff] %v3607
      %3672 = vst [vmem:[%s203 + $0x1a8] sm:$0xff] %v3608
      %3673 = vst [vmem:[%s203 + $0x1b0] sm:$0xff] %v3609
      %3674 = vst [vmem:[%s203 + $0x1b8] sm:$0xff] %v3610
      %3675 = vst [vmem:[%s203 + $0x1c0] sm:$0xff] %v3611
      %3676 = vst [vmem:[%s203 + $0x1c8] sm:$0xff] %v3612
      %3677 = vst [vmem:[%s203 + $0x1d0] sm:$0xff] %v3613
      %3678 = vst [vmem:[%s203 + $0x1d8] sm:$0xff] %v3614
      %3679 = vst [vmem:[%s203 + $0x1e0] sm:$0xff] %v3615
      %3680 = vst [vmem:[%s203 + $0x1e8] sm:$0xff] %v3616
      %3681 = vst [vmem:[%s203 + $0x1f0] sm:$0xff] %v3617
      %3682 = vst [vmem:[%s203 + $0x1f8] sm:$0xff] %v3618
      %s3683 = smul.u32 64, %s18
      %p3684 = scmp.lt.s32.totalorder %s3683, 127
      %s3685 = scalar_select %p3684, %s3683, 127
      %s3686 = smul.addr %s3685, 8
      %s3687 = scalar_lea.vmem %s3, %s3686
      // Predicated region
      $region37: #{backbone_forward.3} parent=31 // pred_check
        %p3688 = pneg %p114
      $region38: #{backbone_forward.3} parent=31 // pred_check_branch
        %3690 = sbr.rel (%p3688) target = $region40
      $region39: #{backbone_forward.3} parent=31 // pred_region
        %s3691 = smul.u32 64, %s18
      $region40: #{backbone_forward.3} parent=31 // pred_fallthru
        _
    $region32: #{backbone_forward.3} parent=5 // pred_fallthru
      _
    %p3692 = scmp.le.s32.totalorder 2, %s9
    // Predicated region
    $region41: #{backbone_forward.3} parent=5 // pred_check
      %p3693 = pneg %p3692
    $region42: #{backbone_forward.3} parent=5 // pred_check_branch
      %3695 = sbr.rel (%p3693) target = $region44
    $region43: #{backbone_forward.3} parent=5 // pred_region
      %s3696 = ssub.s32 %s9, 2
      // Predicated region
      $region45: #{backbone_forward.3} parent=43 // pred_check
        %p3697 = pneg %p120
      $region46: #{backbone_forward.3} parent=43 // pred_check_branch
        %3699 = sbr.rel (%p3697) target = $region48
      $region47: #{backbone_forward.3} parent=43 // pred_region
        %s3700 = smul.u32 64, %s20
        %p3701 = scmp.lt.s32.totalorder %s3700, 127
        %s3702 = scalar_select %p3701, %s3700, 127
        %s3703 = smul.addr %s3702, 8
        %s3704 = scalar_lea.vmem %s3, %s3703
      $region48: #{backbone_forward.3} parent=43 // pred_fallthru
        _
    $region44: #{backbone_forward.3} parent=5 // pred_fallthru
      _
  $region6: #{backbone_forward.3} parent=0 // loop_footer
    %s13 = sadd.s32 1, %s9
  $region7: #{backbone_forward.3} parent=0 // loop_footer_branch
    %8 = sbr.rel target = $region3
  $region8: #{backbone_forward.3} parent=0 // loop_exit
    _

// kernel: backbone_forward.2
$region0: #{backbone_forward.2}
  #allocation0 [shape = 'u32[]', space=smem, size = 0x4, offset = 0x4, fixed_abs, tag = 'smem constant byte address 0x4 - core index']
  #allocation1 [shape = 'u32[144,128]{1,0:T(1,128)}', space=vmem, size = 0x12000, scoped, tag = 'internal scratch']
  #allocation2 [shape = 'f32[512,128]{1,0:T(8,128)}', space=vmem, size = 0x40000, scoped, tag = 'scratch operand']
  %s0 = inlined_call_operand.vmem [shape: bf16[1024,1024], index: 0, kind: input, shape index: {}]
  %s1 = inlined_call_operand.vmem [shape: bf16[1024,128], index: 1, kind: input, shape index: {}]
  %s2 = inlined_call_operand.vmem [shape: f32[1,128], index: 2, kind: input, shape index: {}]
  %s3 = inlined_call_operand.vmem [shape: bf16[128,128], index: 3, kind: input, shape index: {}]
  %s4 = inlined_call_operand.vmem [shape: bf16[1024,128], index: 4, kind: output, shape index: {}]
  %s5 = sld [smem:[#allocation0]]
  $region57: #{backbone_forward.2} parent=0
    _
  %s7 = ssub.s32 1, %s5
  %s8 = scalar_select 0, %s7, %s5
  loop: start=0, step=1, limit=4
  $region2: #{backbone_forward.2} parent=0 // loop_pre_header
    _
  $region3: #{backbone_forward.2} parent=0 // loop_header
    %s10 = sphi 0, %s14
    %p11 = scmp.ge.s32.totalorder %s10, 4
    %s17 = sphi 0, %s29
    %s18 = sphi 0, %s25
    %s19 = sphi 0, %s17
    %s20 = sphi 0, %s18
    %s21 = sphi 0, %s19
    %s22 = sphi 0, %s20
    %s34 = sphi 0, %s36
    %s37 = sphi 0, %s34
    %s38 = sphi 0, %s37
    %s54 = sphi 0, %s38
    %s58 = sphi 0, %s58
    %s60 = sphi 0, %s58
    %s61 = sphi 0, %s60
    %s75 = sphi 0, %s61
    %s79 = sphi 0, %s79
    %s81 = sphi 0, %s79
    %s82 = sphi 0, %s81
    %s96 = sphi 0, %s82
    %s100 = sphi 0, %s100
    %s102 = sphi 0, %s100
    %s103 = sphi 0, %s102
    %s117 = sphi 0, %s103
    %s123 = sphi 0, %s125
    %s126 = sphi 0, %s123
    %s127 = sphi 0, %s126
    %s143 = sphi 0, %s127
  $region4: #{backbone_forward.2} parent=0 // loop_header_branch
    %13 = sbr.rel (%p11) target = $region8
  $region5: #{backbone_forward.2} parent=0 // loop_body
    %s15 = ssub.s32 %s10, 1
    %s16 = ssub.s32 %s10, 2
    %s23 = sadd.s32 1, %s18
    %p24 = scmp.ge.s32.totalorder %s23, 1
    %s25 = scalar_select %p24, 0, %s23
    %s26 = sadd.s32 1, %s17
    %s27 = scalar_select %p24, %s26, %s17
    %p28 = scmp.ge.s32.totalorder %s27, 2
    %s29 = scalar_select %p28, 0, %s27
    %s30 = ssub.s32 %s17, %s29
    %s31 = ssub.s32 %s18, %s25
    %s32 = sor.u32 %s30, %s31
    %p33 = scmp.eq.s32.totalorder %s32, 0
    %s35 = sadd.s32 %s34, 1
    %s36 = scalar_select %p33, %s34, %s35
    %p39 = pneg %p33
    %p40 = scmp.eq.s32.totalorder %s10, 1
    %p41 = por %p39, %p40
    %p42 = scmp.ne.s32.totalorder %s34, %s37
    %p43 = scmp.eq.s32.totalorder %s10, 0
    %p44 = por %p42, %p43
    %p45 = scmp.ne.s32.totalorder %s34, %s37
    %p46 = scmp.eq.s32.totalorder %s15, 1
    %p47 = por %p45, %p46
    %p48 = scmp.ne.s32.totalorder %s37, %s38
    %p49 = scmp.eq.s32.totalorder %s15, 0
    %p50 = por %p48, %p49
    %p51 = scmp.ne.s32.totalorder %s37, %s38
    %p52 = scmp.eq.s32.totalorder %s16, 1
    %p53 = por %p51, %p52
    %p55 = scmp.ne.s32.totalorder %s38, %s54
    %p56 = scmp.eq.s32.totalorder %s16, 0
    %p57 = por %p55, %p56
    %s59 = sadd.s32 %s58, 1
    %p62 = scmp.eq.s32.totalorder %s10, 1
    %p63 = scmp.ne.s32.totalorder %s58, %s60
    %p64 = scmp.eq.s32.totalorder %s10, 0
    %p65 = por %p63, %p64
    %p66 = scmp.ne.s32.totalorder %s58, %s60
    %p67 = scmp.eq.s32.totalorder %s15, 1
    %p68 = por %p66, %p67
    %p69 = scmp.ne.s32.totalorder %s60, %s61
    %p70 = scmp.eq.s32.totalorder %s15, 0
    %p71 = por %p69, %p70
    %p72 = scmp.ne.s32.totalorder %s60, %s61
    %p73 = scmp.eq.s32.totalorder %s16, 1
    %p74 = por %p72, %p73
    %p76 = scmp.ne.s32.totalorder %s61, %s75
    %p77 = scmp.eq.s32.totalorder %s16, 0
    %p78 = por %p76, %p77
    %s80 = sadd.s32 %s79, 1
    %p83 = scmp.eq.s32.totalorder %s10, 1
    %p84 = scmp.ne.s32.totalorder %s79, %s81
    %p85 = scmp.eq.s32.totalorder %s10, 0
    %p86 = por %p84, %p85
    %p87 = scmp.ne.s32.totalorder %s79, %s81
    %p88 = scmp.eq.s32.totalorder %s15, 1
    %p89 = por %p87, %p88
    %p90 = scmp.ne.s32.totalorder %s81, %s82
    %p91 = scmp.eq.s32.totalorder %s15, 0
    %p92 = por %p90, %p91
    %p93 = scmp.ne.s32.totalorder %s81, %s82
    %p94 = scmp.eq.s32.totalorder %s16, 1
    %p95 = por %p93, %p94
    %p97 = scmp.ne.s32.totalorder %s82, %s96
    %p98 = scmp.eq.s32.totalorder %s16, 0
    %p99 = por %p97, %p98
    %s101 = sadd.s32 %s100, 1
    %p104 = scmp.eq.s32.totalorder %s10, 1
    %p105 = scmp.ne.s32.totalorder %s100, %s102
    %p106 = scmp.eq.s32.totalorder %s10, 0
    %p107 = por %p105, %p106
    %p108 = scmp.ne.s32.totalorder %s100, %s102
    %p109 = scmp.eq.s32.totalorder %s15, 1
    %p110 = por %p108, %p109
    %p111 = scmp.ne.s32.totalorder %s102, %s103
    %p112 = scmp.eq.s32.totalorder %s15, 0
    %p113 = por %p111, %p112
    %p114 = scmp.ne.s32.totalorder %s102, %s103
    %p115 = scmp.eq.s32.totalorder %s16, 1
    %p116 = por %p114, %p115
    %p118 = scmp.ne.s32.totalorder %s103, %s117
    %p119 = scmp.eq.s32.totalorder %s16, 0
    %p120 = por %p118, %p119
    %s121 = ssub.s32 %s17, %s29
    %p122 = scmp.eq.s32.totalorder %s121, 0
    %s124 = sadd.s32 %s123, 1
    %s125 = scalar_select %p122, %s123, %s124
    %p128 = pneg %p122
    %p129 = scmp.eq.s32.totalorder %s10, 1
    %p130 = por %p128, %p129
    %p131 = scmp.ne.s32.totalorder %s123, %s126
    %p132 = scmp.eq.s32.totalorder %s10, 0
    %p133 = por %p131, %p132
    %p134 = scmp.ne.s32.totalorder %s123, %s126
    %p135 = scmp.eq.s32.totalorder %s15, 1
    %p136 = por %p134, %p135
    %p137 = scmp.ne.s32.totalorder %s126, %s127
    %p138 = scmp.eq.s32.totalorder %s15, 0
    %p139 = por %p137, %p138
    %p140 = scmp.ne.s32.totalorder %s126, %s127
    %p141 = scmp.eq.s32.totalorder %s16, 1
    %p142 = por %p140, %p141
    %p144 = scmp.ne.s32.totalorder %s127, %s143
    %p145 = scmp.eq.s32.totalorder %s16, 0
    %p146 = por %p144, %p145
    %p147 = scmp.le.s32.totalorder 1, %s10
    %p148 = scmp.lt.s32.totalorder %s10, 3
    %p149 = pnand %p147, %p148
    %p150 = pneg %p149
    // Predicated region
    $region9: #{backbone_forward.2} parent=5 // pred_check
      _
    $region10: #{backbone_forward.2} parent=5 // pred_check_branch
      %152 = sbr.rel (%p149) target = $region12
    $region11: #{backbone_forward.2} parent=5 // pred_region
      %s153 = ssub.s32 %s10, 1
      // Predicated region
      $region13: #{backbone_forward.2} parent=11 // pred_check
        %p154 = pneg %p71
      $region14: #{backbone_forward.2} parent=11 // pred_check_branch
        %156 = sbr.rel (%p154) target = $region16
      $region15: #{backbone_forward.2} parent=11 // pred_region
        _
      $region16: #{backbone_forward.2} parent=11 // pred_fallthru
        _
      // Predicated region
      $region17: #{backbone_forward.2} parent=11 // pred_check
        %p157 = pneg %p92
      $region18: #{backbone_forward.2} parent=11 // pred_check_branch
        %159 = sbr.rel (%p157) target = $region20
      $region19: #{backbone_forward.2} parent=11 // pred_region
        _
      $region20: #{backbone_forward.2} parent=11 // pred_fallthru
        _
      // Predicated region
      $region21: #{backbone_forward.2} parent=11 // pred_check
        %p160 = pneg %p113
      $region22: #{backbone_forward.2} parent=11 // pred_check_branch
        %162 = sbr.rel (%p160) target = $region24
      $region23: #{backbone_forward.2} parent=11 // pred_region
        _
      $region24: #{backbone_forward.2} parent=11 // pred_fallthru
        _
    $region12: #{backbone_forward.2} parent=5 // pred_fallthru
      _
    %p163 = scmp.lt.s32.totalorder %s10, 2
    // Predicated region
    $region25: #{backbone_forward.2} parent=5 // pred_check
      %p164 = pneg %p163
    $region26: #{backbone_forward.2} parent=5 // pred_check_branch
      %166 = sbr.rel (%p164) target = $region28
    $region27: #{backbone_forward.2} parent=5 // pred_region
      // Predicated region
      $region29: #{backbone_forward.2} parent=27 // pred_check
        %p167 = pneg %p44
      $region30: #{backbone_forward.2} parent=27 // pred_check_branch
        %169 = sbr.rel (%p167) target = $region32
      $region31: #{backbone_forward.2} parent=27 // pred_region
        %s170 = smul.u32 64, %s17
        %s171 = smul.u32 8, %s18
        %p172 = scmp.lt.s32.totalorder %s170, 127
        %s173 = scalar_select %p172, %s170, 127
        %p174 = scmp.lt.s32.totalorder %s171, 7
        %s175 = scalar_select %p174, %s171, 7
        %s176 = smul.addr %s173, 8
        %s177 = sadd.s32 %s175, %s176
        %s178 = smul.addr %s177, 4
        %s179 = scalar_lea.vmem %s0, %s178
        %s180 = smul.u32 64, %s17
        %s181 = smul.u32 8, %s18
      $region32: #{backbone_forward.2} parent=27 // pred_fallthru
        _
    $region28: #{backbone_forward.2} parent=5 // pred_fallthru
      _
    %p182 = scmp.le.s32.totalorder 1, %s10
    %p183 = scmp.lt.s32.totalorder %s10, 3
    %p184 = pnand %p182, %p183
    %p185 = pneg %p184
    // Predicated region
    $region33: #{backbone_forward.2} parent=5 // pred_check
      _
    $region34: #{backbone_forward.2} parent=5 // pred_check_branch
      %187 = sbr.rel (%p184) target = $region36
    $region35: #{backbone_forward.2} parent=5 // pred_region
      %s188 = ssub.s32 %s10, 1
      %s189 = smul.u32 64, %s19
      %s190 = smul.u32 8, %s20
      %p191 = scmp.lt.s32.totalorder %s189, 127
      %s192 = scalar_select %p191, %s189, 127
      %p193 = scmp.lt.s32.totalorder %s190, 7
      %s194 = scalar_select %p193, %s190, 7
      %s195 = smul.addr %s192, 8
      %s196 = sadd.s32 %s194, %s195
      %s197 = smul.addr %s196, 4
      %s198 = scalar_lea.vmem %s0, %s197
      %p199 = pneg %p50
      %p200 = pneg %p47
      %p201 = pneg %p71
      %p202 = pneg %p68
      %p203 = pneg %p92
      %p204 = pneg %p89
      %p205 = pneg %p113
      %p206 = pneg %p110
      %p207 = pneg %p139
      %p208 = pneg %p136
      %s209 = smul.u32 64, %s19
      %p210 = scmp.lt.s32.totalorder %s209, 127
      %s211 = scalar_select %p210, %s209, 127
      %s212 = smul.addr %s211, 4
      %s213 = scalar_lea.vmem %s4, %s212
      %s214 = smul.u32 64, %s19
      %s215 = smul.u32 8, %s20
      %p216 = scmp.lt.s32.totalorder %s214, 127
      %s217 = scalar_select %p216, %s214, 127
      %p218 = scmp.lt.s32.totalorder %s215, 7
      %s219 = scalar_select %p218, %s215, 7
      %s220 = smul.addr %s217, 8
      %s221 = sadd.s32 %s219, %s220
      %s222 = smul.addr %s221, 4
      %s223 = scalar_lea.vmem %s0, %s222
      %s224 = smul.u32 64, %s19
      %s225 = smul.u32 8, %s20
      %s226 = smul.u32 64, %s19
      %p227 = scmp.lt.s32.totalorder %s226, 127
      %s228 = scalar_select %p227, %s226, 127
      %s229 = smul.addr %s228, 4
      %s230 = scalar_lea.vmem %s4, %s229
      %s231 = smul.u32 64, %s19
      %p233 = scmp.eq.s32.totalorder %s20, 0
      // Predicated region
      $region37: #{backbone_forward.2} parent=35 // pred_check
        %p234 = pneg %p233
      $region38: #{backbone_forward.2} parent=35 // pred_check_branch
        %236 = sbr.rel (%p234) target = $region40
      $region39: #{backbone_forward.2} parent=35 // pred_region
        %v237 = vld [vmem:[%s2] sm:$0x1]
        %v239 = vlaneseq
        %v240 = vshrl.u32 %v239, 7
        %v241 = vsub.s32 0, %v240
        %v242 = vrot.slane %v237, %v241
        %v244 = vadd.f32 %v242, 0.0
        %245 = vst [vmem:[#allocation2] sm:$0xff] %v244
        %246 = vst [vmem:[#allocation2 + $0x8] sm:$0xff] %v244
        %247 = vst [vmem:[#allocation2 + $0x10] sm:$0xff] %v244
        %248 = vst [vmem:[#allocation2 + $0x18] sm:$0xff] %v244
        %249 = vst [vmem:[#allocation2 + $0x20] sm:$0xff] %v244
        %250 = vst [vmem:[#allocation2 + $0x28] sm:$0xff] %v244
        %251 = vst [vmem:[#allocation2 + $0x30] sm:$0xff] %v244
        %252 = vst [vmem:[#allocation2 + $0x38] sm:$0xff] %v244
        %253 = vst [vmem:[#allocation2 + $0x40] sm:$0xff] %v244
        %254 = vst [vmem:[#allocation2 + $0x48] sm:$0xff] %v244
        %255 = vst [vmem:[#allocation2 + $0x50] sm:$0xff] %v244
        %256 = vst [vmem:[#allocation2 + $0x58] sm:$0xff] %v244
        %257 = vst [vmem:[#allocation2 + $0x60] sm:$0xff] %v244
        %258 = vst [vmem:[#allocation2 + $0x68] sm:$0xff] %v244
        %259 = vst [vmem:[#allocation2 + $0x70] sm:$0xff] %v244
        %260 = vst [vmem:[#allocation2 + $0x78] sm:$0xff] %v244
        %261 = vst [vmem:[#allocation2 + $0x80] sm:$0xff] %v244
        %262 = vst [vmem:[#allocation2 + $0x88] sm:$0xff] %v244
        %263 = vst [vmem:[#allocation2 + $0x90] sm:$0xff] %v244
        %264 = vst [vmem:[#allocation2 + $0x98] sm:$0xff] %v244
        %265 = vst [vmem:[#allocation2 + $0xa0] sm:$0xff] %v244
        %266 = vst [vmem:[#allocation2 + $0xa8] sm:$0xff] %v244
        %267 = vst [vmem:[#allocation2 + $0xb0] sm:$0xff] %v244
        %268 = vst [vmem:[#allocation2 + $0xb8] sm:$0xff] %v244
        %269 = vst [vmem:[#allocation2 + $0xc0] sm:$0xff] %v244
        %270 = vst [vmem:[#allocation2 + $0xc8] sm:$0xff] %v244
        %271 = vst [vmem:[#allocation2 + $0xd0] sm:$0xff] %v244
        %272 = vst [vmem:[#allocation2 + $0xd8] sm:$0xff] %v244
        %273 = vst [vmem:[#allocation2 + $0xe0] sm:$0xff] %v244
        %274 = vst [vmem:[#allocation2 + $0xe8] sm:$0xff] %v244
        %275 = vst [vmem:[#allocation2 + $0xf0] sm:$0xff] %v244
        %276 = vst [vmem:[#allocation2 + $0xf8] sm:$0xff] %v244
        %277 = vst [vmem:[#allocation2 + $0x100] sm:$0xff] %v244
        %278 = vst [vmem:[#allocation2 + $0x108] sm:$0xff] %v244
        %279 = vst [vmem:[#allocation2 + $0x110] sm:$0xff] %v244
        %280 = vst [vmem:[#allocation2 + $0x118] sm:$0xff] %v244
        %281 = vst [vmem:[#allocation2 + $0x120] sm:$0xff] %v244
        %282 = vst [vmem:[#allocation2 + $0x128] sm:$0xff] %v244
        %283 = vst [vmem:[#allocation2 + $0x130] sm:$0xff] %v244
        %284 = vst [vmem:[#allocation2 + $0x138] sm:$0xff] %v244
        %285 = vst [vmem:[#allocation2 + $0x140] sm:$0xff] %v244
        %286 = vst [vmem:[#allocation2 + $0x148] sm:$0xff] %v244
        %287 = vst [vmem:[#allocation2 + $0x150] sm:$0xff] %v244
        %288 = vst [vmem:[#allocation2 + $0x158] sm:$0xff] %v244
        %289 = vst [vmem:[#allocation2 + $0x160] sm:$0xff] %v244
        %290 = vst [vmem:[#allocation2 + $0x168] sm:$0xff] %v244
        %291 = vst [vmem:[#allocation2 + $0x170] sm:$0xff] %v244
        %292 = vst [vmem:[#allocation2 + $0x178] sm:$0xff] %v244
        %293 = vst [vmem:[#allocation2 + $0x180] sm:$0xff] %v244
        %294 = vst [vmem:[#allocation2 + $0x188] sm:$0xff] %v244
        %295 = vst [vmem:[#allocation2 + $0x190] sm:$0xff] %v244
        %296 = vst [vmem:[#allocation2 + $0x198] sm:$0xff] %v244
        %297 = vst [vmem:[#allocation2 + $0x1a0] sm:$0xff] %v244
        %298 = vst [vmem:[#allocation2 + $0x1a8] sm:$0xff] %v244
        %299 = vst [vmem:[#allocation2 + $0x1b0] sm:$0xff] %v244
        %300 = vst [vmem:[#allocation2 + $0x1b8] sm:$0xff] %v244
        %301 = vst [vmem:[#allocation2 + $0x1c0] sm:$0xff] %v244
        %302 = vst [vmem:[#allocation2 + $0x1c8] sm:$0xff] %v244
        %303 = vst [vmem:[#allocation2 + $0x1d0] sm:$0xff] %v244
        %304 = vst [vmem:[#allocation2 + $0x1d8] sm:$0xff] %v244
        %305 = vst [vmem:[#allocation2 + $0x1e0] sm:$0xff] %v244
        %306 = vst [vmem:[#allocation2 + $0x1e8] sm:$0xff] %v244
        %307 = vst [vmem:[#allocation2 + $0x1f0] sm:$0xff] %v244
        %308 = vst [vmem:[#allocation2 + $0x1f8] sm:$0xff] %v244
      $region40: #{backbone_forward.2} parent=35 // pred_fallthru
        _
      %s309 = smul.u32 %s20, 1024
      %s310 = sshra.s32 %s309, 3
      %s311 = sand.u32 %s309, 7
      %s312 = smul.addr %s310, 4
      %s313 = scalar_lea.vmem %s1, %s312
      %v314 = vld [vmem:[%s313] sm:$0xf]
      %v315 = vld [vmem:[%s313 + $0x4] sm:$0xf]
      %v316 = vld [vmem:[%s313 + $0x8] sm:$0xf]
      %v317 = vld [vmem:[%s313 + $0xc] sm:$0xf]
      %v318 = vld [vmem:[%s313 + $0x10] sm:$0xf]
      %v319 = vld [vmem:[%s313 + $0x14] sm:$0xf]
      %v320 = vld [vmem:[%s313 + $0x18] sm:$0xf]
      %v321 = vld [vmem:[%s313 + $0x1c] sm:$0xf]
      %v322 = vld [vmem:[%s313 + $0x20] sm:$0xf]
      %v323 = vld [vmem:[%s313 + $0x24] sm:$0xf]
      %v324 = vld [vmem:[%s313 + $0x28] sm:$0xf]
      %v325 = vld [vmem:[%s313 + $0x2c] sm:$0xf]
      %v326 = vld [vmem:[%s313 + $0x30] sm:$0xf]
      %v327 = vld [vmem:[%s313 + $0x34] sm:$0xf]
      %v328 = vld [vmem:[%s313 + $0x38] sm:$0xf]
      %v329 = vld [vmem:[%s313 + $0x3c] sm:$0xf]
      %v330 = vld [vmem:[%s313 + $0x40] sm:$0xf]
      %v331 = vld [vmem:[%s313 + $0x44] sm:$0xf]
      %v332 = vld [vmem:[%s313 + $0x48] sm:$0xf]
      %v333 = vld [vmem:[%s313 + $0x4c] sm:$0xf]
      %v334 = vld [vmem:[%s313 + $0x50] sm:$0xf]
      %v335 = vld [vmem:[%s313 + $0x54] sm:$0xf]
      %v336 = vld [vmem:[%s313 + $0x58] sm:$0xf]
      %v337 = vld [vmem:[%s313 + $0x5c] sm:$0xf]
      %v338 = vld [vmem:[%s313 + $0x60] sm:$0xf]
      %v339 = vld [vmem:[%s313 + $0x64] sm:$0xf]
      %v340 = vld [vmem:[%s313 + $0x68] sm:$0xf]
      %v341 = vld [vmem:[%s313 + $0x6c] sm:$0xf]
      %v342 = vld [vmem:[%s313 + $0x70] sm:$0xf]
      %v343 = vld [vmem:[%s313 + $0x74] sm:$0xf]
      %v344 = vld [vmem:[%s313 + $0x78] sm:$0xf]
      %v345 = vld [vmem:[%s313 + $0x7c] sm:$0xf]
      %v346 = vld [vmem:[%s313 + $0x80] sm:$0xf]
      %v347 = vld [vmem:[%s313 + $0x84] sm:$0xf]
      %v348 = vld [vmem:[%s313 + $0x88] sm:$0xf]
      %v349 = vld [vmem:[%s313 + $0x8c] sm:$0xf]
      %v350 = vld [vmem:[%s313 + $0x90] sm:$0xf]
      %v351 = vld [vmem:[%s313 + $0x94] sm:$0xf]
      %v352 = vld [vmem:[%s313 + $0x98] sm:$0xf]
      %v353 = vld [vmem:[%s313 + $0x9c] sm:$0xf]
      %v354 = vld [vmem:[%s313 + $0xa0] sm:$0xf]
      %v355 = vld [vmem:[%s313 + $0xa4] sm:$0xf]
      %v356 = vld [vmem:[%s313 + $0xa8] sm:$0xf]
      %v357 = vld [vmem:[%s313 + $0xac] sm:$0xf]
      %v358 = vld [vmem:[%s313 + $0xb0] sm:$0xf]
      %v359 = vld [vmem:[%s313 + $0xb4] sm:$0xf]
      %v360 = vld [vmem:[%s313 + $0xb8] sm:$0xf]
      %v361 = vld [vmem:[%s313 + $0xbc] sm:$0xf]
      %v362 = vld [vmem:[%s313 + $0xc0] sm:$0xf]
      %v363 = vld [vmem:[%s313 + $0xc4] sm:$0xf]
      %v364 = vld [vmem:[%s313 + $0xc8] sm:$0xf]
      %v365 = vld [vmem:[%s313 + $0xcc] sm:$0xf]
      %v366 = vld [vmem:[%s313 + $0xd0] sm:$0xf]
      %v367 = vld [vmem:[%s313 + $0xd4] sm:$0xf]
      %v368 = vld [vmem:[%s313 + $0xd8] sm:$0xf]
      %v369 = vld [vmem:[%s313 + $0xdc] sm:$0xf]
      %v370 = vld [vmem:[%s313 + $0xe0] sm:$0xf]
      %v371 = vld [vmem:[%s313 + $0xe4] sm:$0xf]
      %v372 = vld [vmem:[%s313 + $0xe8] sm:$0xf]
      %v373 = vld [vmem:[%s313 + $0xec] sm:$0xf]
      %v374 = vld [vmem:[%s313 + $0xf0] sm:$0xf]
      %v375 = vld [vmem:[%s313 + $0xf4] sm:$0xf]
      %v376 = vld [vmem:[%s313 + $0xf8] sm:$0xf]
      %v377 = vld [vmem:[%s313 + $0xfc] sm:$0xf]
      %v378 = vld [vmem:[%s313 + $0x100] sm:$0xf]
      %v379 = vld [vmem:[%s313 + $0x104] sm:$0xf]
      %v380 = vld [vmem:[%s313 + $0x108] sm:$0xf]
      %v381 = vld [vmem:[%s313 + $0x10c] sm:$0xf]
      %v382 = vld [vmem:[%s313 + $0x110] sm:$0xf]
      %v383 = vld [vmem:[%s313 + $0x114] sm:$0xf]
      %v384 = vld [vmem:[%s313 + $0x118] sm:$0xf]
      %v385 = vld [vmem:[%s313 + $0x11c] sm:$0xf]
      %v386 = vld [vmem:[%s313 + $0x120] sm:$0xf]
      %v387 = vld [vmem:[%s313 + $0x124] sm:$0xf]
      %v388 = vld [vmem:[%s313 + $0x128] sm:$0xf]
      %v389 = vld [vmem:[%s313 + $0x12c] sm:$0xf]
      %v390 = vld [vmem:[%s313 + $0x130] sm:$0xf]
      %v391 = vld [vmem:[%s313 + $0x134] sm:$0xf]
      %v392 = vld [vmem:[%s313 + $0x138] sm:$0xf]
      %v393 = vld [vmem:[%s313 + $0x13c] sm:$0xf]
      %v394 = vld [vmem:[%s313 + $0x140] sm:$0xf]
      %v395 = vld [vmem:[%s313 + $0x144] sm:$0xf]
      %v396 = vld [vmem:[%s313 + $0x148] sm:$0xf]
      %v397 = vld [vmem:[%s313 + $0x14c] sm:$0xf]
      %v398 = vld [vmem:[%s313 + $0x150] sm:$0xf]
      %v399 = vld [vmem:[%s313 + $0x154] sm:$0xf]
      %v400 = vld [vmem:[%s313 + $0x158] sm:$0xf]
      %v401 = vld [vmem:[%s313 + $0x15c] sm:$0xf]
      %v402 = vld [vmem:[%s313 + $0x160] sm:$0xf]
      %v403 = vld [vmem:[%s313 + $0x164] sm:$0xf]
      %v404 = vld [vmem:[%s313 + $0x168] sm:$0xf]
      %v405 = vld [vmem:[%s313 + $0x16c] sm:$0xf]
      %v406 = vld [vmem:[%s313 + $0x170] sm:$0xf]
      %v407 = vld [vmem:[%s313 + $0x174] sm:$0xf]
      %v408 = vld [vmem:[%s313 + $0x178] sm:$0xf]
      %v409 = vld [vmem:[%s313 + $0x17c] sm:$0xf]
      %v410 = vld [vmem:[%s313 + $0x180] sm:$0xf]
      %v411 = vld [vmem:[%s313 + $0x184] sm:$0xf]
      %v412 = vld [vmem:[%s313 + $0x188] sm:$0xf]
      %v413 = vld [vmem:[%s313 + $0x18c] sm:$0xf]
      %v414 = vld [vmem:[%s313 + $0x190] sm:$0xf]
      %v415 = vld [vmem:[%s313 + $0x194] sm:$0xf]
      %v416 = vld [vmem:[%s313 + $0x198] sm:$0xf]
      %v417 = vld [vmem:[%s313 + $0x19c] sm:$0xf]
      %v418 = vld [vmem:[%s313 + $0x1a0] sm:$0xf]
      %v419 = vld [vmem:[%s313 + $0x1a4] sm:$0xf]
      %v420 = vld [vmem:[%s313 + $0x1a8] sm:$0xf]
      %v421 = vld [vmem:[%s313 + $0x1ac] sm:$0xf]
      %v422 = vld [vmem:[%s313 + $0x1b0] sm:$0xf]
      %v423 = vld [vmem:[%s313 + $0x1b4] sm:$0xf]
      %v424 = vld [vmem:[%s313 + $0x1b8] sm:$0xf]
      %v425 = vld [vmem:[%s313 + $0x1bc] sm:$0xf]
      %v426 = vld [vmem:[%s313 + $0x1c0] sm:$0xf]
      %v427 = vld [vmem:[%s313 + $0x1c4] sm:$0xf]
      %v428 = vld [vmem:[%s313 + $0x1c8] sm:$0xf]
      %v429 = vld [vmem:[%s313 + $0x1cc] sm:$0xf]
      %v430 = vld [vmem:[%s313 + $0x1d0] sm:$0xf]
      %v431 = vld [vmem:[%s313 + $0x1d4] sm:$0xf]
      %v432 = vld [vmem:[%s313 + $0x1d8] sm:$0xf]
      %v433 = vld [vmem:[%s313 + $0x1dc] sm:$0xf]
      %v434 = vld [vmem:[%s313 + $0x1e0] sm:$0xf]
      %v435 = vld [vmem:[%s313 + $0x1e4] sm:$0xf]
      %v436 = vld [vmem:[%s313 + $0x1e8] sm:$0xf]
      %v437 = vld [vmem:[%s313 + $0x1ec] sm:$0xf]
      %v438 = vld [vmem:[%s313 + $0x1f0] sm:$0xf]
      %v439 = vld [vmem:[%s313 + $0x1f4] sm:$0xf]
      %v440 = vld [vmem:[%s313 + $0x1f8] sm:$0xf]
      %v441 = vld [vmem:[%s313 + $0x1fc] sm:$0xf]
      %v442 = vld [vmem:[#allocation2] sm:$0xff]
      %v443 = vld [vmem:[#allocation2 + $0x8] sm:$0xff]
      %v444 = vld [vmem:[#allocation2 + $0x10] sm:$0xff]
      %v445 = vld [vmem:[#allocation2 + $0x18] sm:$0xff]
      %v446 = vld [vmem:[#allocation2 + $0x20] sm:$0xff]
      %v447 = vld [vmem:[#allocation2 + $0x28] sm:$0xff]
      %v448 = vld [vmem:[#allocation2 + $0x30] sm:$0xff]
      %v449 = vld [vmem:[#allocation2 + $0x38] sm:$0xff]
      %v450 = vld [vmem:[#allocation2 + $0x40] sm:$0xff]
      %v451 = vld [vmem:[#allocation2 + $0x48] sm:$0xff]
      %v452 = vld [vmem:[#allocation2 + $0x50] sm:$0xff]
      %v453 = vld [vmem:[#allocation2 + $0x58] sm:$0xff]
      %v454 = vld [vmem:[#allocation2 + $0x60] sm:$0xff]
      %v455 = vld [vmem:[#allocation2 + $0x68] sm:$0xff]
      %v456 = vld [vmem:[#allocation2 + $0x70] sm:$0xff]
      %v457 = vld [vmem:[#allocation2 + $0x78] sm:$0xff]
      %v458 = vld [vmem:[#allocation2 + $0x80] sm:$0xff]
      %v459 = vld [vmem:[#allocation2 + $0x88] sm:$0xff]
      %v460 = vld [vmem:[#allocation2 + $0x90] sm:$0xff]
      %v461 = vld [vmem:[#allocation2 + $0x98] sm:$0xff]
      %v462 = vld [vmem:[#allocation2 + $0xa0] sm:$0xff]
      %v463 = vld [vmem:[#allocation2 + $0xa8] sm:$0xff]
      %v464 = vld [vmem:[#allocation2 + $0xb0] sm:$0xff]
      %v465 = vld [vmem:[#allocation2 + $0xb8] sm:$0xff]
      %v466 = vld [vmem:[#allocation2 + $0xc0] sm:$0xff]
      %v467 = vld [vmem:[#allocation2 + $0xc8] sm:$0xff]
      %v468 = vld [vmem:[#allocation2 + $0xd0] sm:$0xff]
      %v469 = vld [vmem:[#allocation2 + $0xd8] sm:$0xff]
      %v470 = vld [vmem:[#allocation2 + $0xe0] sm:$0xff]
      %v471 = vld [vmem:[#allocation2 + $0xe8] sm:$0xff]
      %v472 = vld [vmem:[#allocation2 + $0xf0] sm:$0xff]
      %v473 = vld [vmem:[#allocation2 + $0xf8] sm:$0xff]
      %v474 = vld [vmem:[#allocation2 + $0x100] sm:$0xff]
      %v475 = vld [vmem:[#allocation2 + $0x108] sm:$0xff]
      %v476 = vld [vmem:[#allocation2 + $0x110] sm:$0xff]
      %v477 = vld [vmem:[#allocation2 + $0x118] sm:$0xff]
      %v478 = vld [vmem:[#allocation2 + $0x120] sm:$0xff]
      %v479 = vld [vmem:[#allocation2 + $0x128] sm:$0xff]
      %v480 = vld [vmem:[#allocation2 + $0x130] sm:$0xff]
      %v481 = vld [vmem:[#allocation2 + $0x138] sm:$0xff]
      %v482 = vld [vmem:[#allocation2 + $0x140] sm:$0xff]
      %v483 = vld [vmem:[#allocation2 + $0x148] sm:$0xff]
      %v484 = vld [vmem:[#allocation2 + $0x150] sm:$0xff]
      %v485 = vld [vmem:[#allocation2 + $0x158] sm:$0xff]
      %v486 = vld [vmem:[#allocation2 + $0x160] sm:$0xff]
      %v487 = vld [vmem:[#allocation2 + $0x168] sm:$0xff]
      %v488 = vld [vmem:[#allocation2 + $0x170] sm:$0xff]
      %v489 = vld [vmem:[#allocation2 + $0x178] sm:$0xff]
      %v490 = vld [vmem:[#allocation2 + $0x180] sm:$0xff]
      %v491 = vld [vmem:[#allocation2 + $0x188] sm:$0xff]
      %v492 = vld [vmem:[#allocation2 + $0x190] sm:$0xff]
      %v493 = vld [vmem:[#allocation2 + $0x198] sm:$0xff]
      %v494 = vld [vmem:[#allocation2 + $0x1a0] sm:$0xff]
      %v495 = vld [vmem:[#allocation2 + $0x1a8] sm:$0xff]
      %v496 = vld [vmem:[#allocation2 + $0x1b0] sm:$0xff]
      %v497 = vld [vmem:[#allocation2 + $0x1b8] sm:$0xff]
      %v498 = vld [vmem:[#allocation2 + $0x1c0] sm:$0xff]
      %v499 = vld [vmem:[#allocation2 + $0x1c8] sm:$0xff]
      %v500 = vld [vmem:[#allocation2 + $0x1d0] sm:$0xff]
      %v501 = vld [vmem:[#allocation2 + $0x1d8] sm:$0xff]
      %v502 = vld [vmem:[#allocation2 + $0x1e0] sm:$0xff]
      %v503 = vld [vmem:[#allocation2 + $0x1e8] sm:$0xff]
      %v504 = vld [vmem:[#allocation2 + $0x1f0] sm:$0xff]
      %v505 = vld [vmem:[#allocation2 + $0x1f8] sm:$0xff]
      %v506 = vld [vmem:[%s223] sm:$0xff]
      %v507 = vld [vmem:[%s223 + $0x8] sm:$0xff]
      %v508 = vld [vmem:[%s223 + $0x10] sm:$0xff]
      %v509 = vld [vmem:[%s223 + $0x18] sm:$0xff]
      %v510 = vld [vmem:[%s223 + $0x20] sm:$0xff]
      %v511 = vld [vmem:[%s223 + $0x28] sm:$0xff]
      %v512 = vld [vmem:[%s223 + $0x30] sm:$0xff]
      %v513 = vld [vmem:[%s223 + $0x38] sm:$0xff]
      %v514 = vld [vmem:[%s223 + $0x40] sm:$0xff]
      %v515 = vld [vmem:[%s223 + $0x48] sm:$0xff]
      %v516 = vld [vmem:[%s223 + $0x50] sm:$0xff]
      %v517 = vld [vmem:[%s223 + $0x58] sm:$0xff]
      %v518 = vld [vmem:[%s223 + $0x60] sm:$0xff]
      %v519 = vld [vmem:[%s223 + $0x68] sm:$0xff]
      %v520 = vld [vmem:[%s223 + $0x70] sm:$0xff]
      %v521 = vld [vmem:[%s223 + $0x78] sm:$0xff]
      %v522 = vld [vmem:[%s223 + $0x80] sm:$0xff]
      %v523 = vld [vmem:[%s223 + $0x88] sm:$0xff]
      %v524 = vld [vmem:[%s223 + $0x90] sm:$0xff]
      %v525 = vld [vmem:[%s223 + $0x98] sm:$0xff]
      %v526 = vld [vmem:[%s223 + $0xa0] sm:$0xff]
      %v527 = vld [vmem:[%s223 + $0xa8] sm:$0xff]
      %v528 = vld [vmem:[%s223 + $0xb0] sm:$0xff]
      %v529 = vld [vmem:[%s223 + $0xb8] sm:$0xff]
      %v530 = vld [vmem:[%s223 + $0xc0] sm:$0xff]
      %v531 = vld [vmem:[%s223 + $0xc8] sm:$0xff]
      %v532 = vld [vmem:[%s223 + $0xd0] sm:$0xff]
      %v533 = vld [vmem:[%s223 + $0xd8] sm:$0xff]
      %v534 = vld [vmem:[%s223 + $0xe0] sm:$0xff]
      %v535 = vld [vmem:[%s223 + $0xe8] sm:$0xff]
      %v536 = vld [vmem:[%s223 + $0xf0] sm:$0xff]
      %v537 = vld [vmem:[%s223 + $0xf8] sm:$0xff]
      %v538 = vld [vmem:[%s223 + $0x100] sm:$0xff]
      %v539 = vld [vmem:[%s223 + $0x108] sm:$0xff]
      %v540 = vld [vmem:[%s223 + $0x110] sm:$0xff]
      %v541 = vld [vmem:[%s223 + $0x118] sm:$0xff]
      %v542 = vld [vmem:[%s223 + $0x120] sm:$0xff]
      %v543 = vld [vmem:[%s223 + $0x128] sm:$0xff]
      %v544 = vld [vmem:[%s223 + $0x130] sm:$0xff]
      %v545 = vld [vmem:[%s223 + $0x138] sm:$0xff]
      %v546 = vld [vmem:[%s223 + $0x140] sm:$0xff]
      %v547 = vld [vmem:[%s223 + $0x148] sm:$0xff]
      %v548 = vld [vmem:[%s223 + $0x150] sm:$0xff]
      %v549 = vld [vmem:[%s223 + $0x158] sm:$0xff]
      %v550 = vld [vmem:[%s223 + $0x160] sm:$0xff]
      %v551 = vld [vmem:[%s223 + $0x168] sm:$0xff]
      %v552 = vld [vmem:[%s223 + $0x170] sm:$0xff]
      %v553 = vld [vmem:[%s223 + $0x178] sm:$0xff]
      %v554 = vld [vmem:[%s223 + $0x180] sm:$0xff]
      %v555 = vld [vmem:[%s223 + $0x188] sm:$0xff]
      %v556 = vld [vmem:[%s223 + $0x190] sm:$0xff]
      %v557 = vld [vmem:[%s223 + $0x198] sm:$0xff]
      %v558 = vld [vmem:[%s223 + $0x1a0] sm:$0xff]
      %v559 = vld [vmem:[%s223 + $0x1a8] sm:$0xff]
      %v560 = vld [vmem:[%s223 + $0x1b0] sm:$0xff]
      %v561 = vld [vmem:[%s223 + $0x1b8] sm:$0xff]
      %v562 = vld [vmem:[%s223 + $0x1c0] sm:$0xff]
      %v563 = vld [vmem:[%s223 + $0x1c8] sm:$0xff]
      %v564 = vld [vmem:[%s223 + $0x1d0] sm:$0xff]
      %v565 = vld [vmem:[%s223 + $0x1d8] sm:$0xff]
      %v566 = vld [vmem:[%s223 + $0x1e0] sm:$0xff]
      %v567 = vld [vmem:[%s223 + $0x1e8] sm:$0xff]
      %v568 = vld [vmem:[%s223 + $0x1f0] sm:$0xff]
      %v569 = vld [vmem:[%s223 + $0x1f8] sm:$0xff]
      %v570 = vld [vmem:[%s223 + $0x200] sm:$0xff]
      %v571 = vld [vmem:[%s223 + $0x208] sm:$0xff]
      %v572 = vld [vmem:[%s223 + $0x210] sm:$0xff]
      %v573 = vld [vmem:[%s223 + $0x218] sm:$0xff]
      %v574 = vld [vmem:[%s223 + $0x220] sm:$0xff]
      %v575 = vld [vmem:[%s223 + $0x228] sm:$0xff]
      %v576 = vld [vmem:[%s223 + $0x230] sm:$0xff]
      %v577 = vld [vmem:[%s223 + $0x238] sm:$0xff]
      %v578 = vld [vmem:[%s223 + $0x240] sm:$0xff]
      %v579 = vld [vmem:[%s223 + $0x248] sm:$0xff]
      %v580 = vld [vmem:[%s223 + $0x250] sm:$0xff]
      %v581 = vld [vmem:[%s223 + $0x258] sm:$0xff]
      %v582 = vld [vmem:[%s223 + $0x260] sm:$0xff]
      %v583 = vld [vmem:[%s223 + $0x268] sm:$0xff]
      %v584 = vld [vmem:[%s223 + $0x270] sm:$0xff]
      %v585 = vld [vmem:[%s223 + $0x278] sm:$0xff]
      %v586 = vld [vmem:[%s223 + $0x280] sm:$0xff]
      %v587 = vld [vmem:[%s223 + $0x288] sm:$0xff]
      %v588 = vld [vmem:[%s223 + $0x290] sm:$0xff]
      %v589 = vld [vmem:[%s223 + $0x298] sm:$0xff]
      %v590 = vld [vmem:[%s223 + $0x2a0] sm:$0xff]
      %v591 = vld [vmem:[%s223 + $0x2a8] sm:$0xff]
      %v592 = vld [vmem:[%s223 + $0x2b0] sm:$0xff]
      %v593 = vld [vmem:[%s223 + $0x2b8] sm:$0xff]
      %v594 = vld [vmem:[%s223 + $0x2c0] sm:$0xff]
      %v595 = vld [vmem:[%s223 + $0x2c8] sm:$0xff]
      %v596 = vld [vmem:[%s223 + $0x2d0] sm:$0xff]
      %v597 = vld [vmem:[%s223 + $0x2d8] sm:$0xff]
      %v598 = vld [vmem:[%s223 + $0x2e0] sm:$0xff]
      %v599 = vld [vmem:[%s223 + $0x2e8] sm:$0xff]
      %v600 = vld [vmem:[%s223 + $0x2f0] sm:$0xff]
      %v601 = vld [vmem:[%s223 + $0x2f8] sm:$0xff]
      %v602 = vld [vmem:[%s223 + $0x300] sm:$0xff]
      %v603 = vld [vmem:[%s223 + $0x308] sm:$0xff]
      %v604 = vld [vmem:[%s223 + $0x310] sm:$0xff]
      %v605 = vld [vmem:[%s223 + $0x318] sm:$0xff]
      %v606 = vld [vmem:[%s223 + $0x320] sm:$0xff]
      %v607 = vld [vmem:[%s223 + $0x328] sm:$0xff]
      %v608 = vld [vmem:[%s223 + $0x330] sm:$0xff]
      %v609 = vld [vmem:[%s223 + $0x338] sm:$0xff]
      %v610 = vld [vmem:[%s223 + $0x340] sm:$0xff]
      %v611 = vld [vmem:[%s223 + $0x348] sm:$0xff]
      %v612 = vld [vmem:[%s223 + $0x350] sm:$0xff]
      %v613 = vld [vmem:[%s223 + $0x358] sm:$0xff]
      %v614 = vld [vmem:[%s223 + $0x360] sm:$0xff]
      %v615 = vld [vmem:[%s223 + $0x368] sm:$0xff]
      %v616 = vld [vmem:[%s223 + $0x370] sm:$0xff]
      %v617 = vld [vmem:[%s223 + $0x378] sm:$0xff]
      %v618 = vld [vmem:[%s223 + $0x380] sm:$0xff]
      %v619 = vld [vmem:[%s223 + $0x388] sm:$0xff]
      %v620 = vld [vmem:[%s223 + $0x390] sm:$0xff]
      %v621 = vld [vmem:[%s223 + $0x398] sm:$0xff]
      %v622 = vld [vmem:[%s223 + $0x3a0] sm:$0xff]
      %v623 = vld [vmem:[%s223 + $0x3a8] sm:$0xff]
      %v624 = vld [vmem:[%s223 + $0x3b0] sm:$0xff]
      %v625 = vld [vmem:[%s223 + $0x3b8] sm:$0xff]
      %v626 = vld [vmem:[%s223 + $0x3c0] sm:$0xff]
      %v627 = vld [vmem:[%s223 + $0x3c8] sm:$0xff]
      %v628 = vld [vmem:[%s223 + $0x3d0] sm:$0xff]
      %v629 = vld [vmem:[%s223 + $0x3d8] sm:$0xff]
      %v630 = vld [vmem:[%s223 + $0x3e0] sm:$0xff]
      %v631 = vld [vmem:[%s223 + $0x3e8] sm:$0xff]
      %v632 = vld [vmem:[%s223 + $0x3f0] sm:$0xff]
      %v633 = vld [vmem:[%s223 + $0x3f8] sm:$0xff]
      %v634 = vld [vmem:[%s223 + $0x400] sm:$0xff]
      %v635 = vld [vmem:[%s223 + $0x408] sm:$0xff]
      %v636 = vld [vmem:[%s223 + $0x410] sm:$0xff]
      %v637 = vld [vmem:[%s223 + $0x418] sm:$0xff]
      %v638 = vld [vmem:[%s223 + $0x420] sm:$0xff]
      %v639 = vld [vmem:[%s223 + $0x428] sm:$0xff]
      %v640 = vld [vmem:[%s223 + $0x430] sm:$0xff]
      %v641 = vld [vmem:[%s223 + $0x438] sm:$0xff]
      %v642 = vld [vmem:[%s223 + $0x440] sm:$0xff]
      %v643 = vld [vmem:[%s223 + $0x448] sm:$0xff]
      %v644 = vld [vmem:[%s223 + $0x450] sm:$0xff]
      %v645 = vld [vmem:[%s223 + $0x458] sm:$0xff]
      %v646 = vld [vmem:[%s223 + $0x460] sm:$0xff]
      %v647 = vld [vmem:[%s223 + $0x468] sm:$0xff]
      %v648 = vld [vmem:[%s223 + $0x470] sm:$0xff]
      %v649 = vld [vmem:[%s223 + $0x478] sm:$0xff]
      %v650 = vld [vmem:[%s223 + $0x480] sm:$0xff]
      %v651 = vld [vmem:[%s223 + $0x488] sm:$0xff]
      %v652 = vld [vmem:[%s223 + $0x490] sm:$0xff]
      %v653 = vld [vmem:[%s223 + $0x498] sm:$0xff]
      %v654 = vld [vmem:[%s223 + $0x4a0] sm:$0xff]
      %v655 = vld [vmem:[%s223 + $0x4a8] sm:$0xff]
      %v656 = vld [vmem:[%s223 + $0x4b0] sm:$0xff]
      %v657 = vld [vmem:[%s223 + $0x4b8] sm:$0xff]
      %v658 = vld [vmem:[%s223 + $0x4c0] sm:$0xff]
      %v659 = vld [vmem:[%s223 + $0x4c8] sm:$0xff]
      %v660 = vld [vmem:[%s223 + $0x4d0] sm:$0xff]
      %v661 = vld [vmem:[%s223 + $0x4d8] sm:$0xff]
      %v662 = vld [vmem:[%s223 + $0x4e0] sm:$0xff]
      %v663 = vld [vmem:[%s223 + $0x4e8] sm:$0xff]
      %v664 = vld [vmem:[%s223 + $0x4f0] sm:$0xff]
      %v665 = vld [vmem:[%s223 + $0x4f8] sm:$0xff]
      %v666 = vld [vmem:[%s223 + $0x500] sm:$0xff]
      %v667 = vld [vmem:[%s223 + $0x508] sm:$0xff]
      %v668 = vld [vmem:[%s223 + $0x510] sm:$0xff]
      %v669 = vld [vmem:[%s223 + $0x518] sm:$0xff]
      %v670 = vld [vmem:[%s223 + $0x520] sm:$0xff]
      %v671 = vld [vmem:[%s223 + $0x528] sm:$0xff]
      %v672 = vld [vmem:[%s223 + $0x530] sm:$0xff]
      %v673 = vld [vmem:[%s223 + $0x538] sm:$0xff]
      %v674 = vld [vmem:[%s223 + $0x540] sm:$0xff]
      %v675 = vld [vmem:[%s223 + $0x548] sm:$0xff]
      %v676 = vld [vmem:[%s223 + $0x550] sm:$0xff]
      %v677 = vld [vmem:[%s223 + $0x558] sm:$0xff]
      %v678 = vld [vmem:[%s223 + $0x560] sm:$0xff]
      %v679 = vld [vmem:[%s223 + $0x568] sm:$0xff]
      %v680 = vld [vmem:[%s223 + $0x570] sm:$0xff]
      %v681 = vld [vmem:[%s223 + $0x578] sm:$0xff]
      %v682 = vld [vmem:[%s223 + $0x580] sm:$0xff]
      %v683 = vld [vmem:[%s223 + $0x588] sm:$0xff]
      %v684 = vld [vmem:[%s223 + $0x590] sm:$0xff]
      %v685 = vld [vmem:[%s223 + $0x598] sm:$0xff]
      %v686 = vld [vmem:[%s223 + $0x5a0] sm:$0xff]
      %v687 = vld [vmem:[%s223 + $0x5a8] sm:$0xff]
      %v688 = vld [vmem:[%s223 + $0x5b0] sm:$0xff]
      %v689 = vld [vmem:[%s223 + $0x5b8] sm:$0xff]
      %v690 = vld [vmem:[%s223 + $0x5c0] sm:$0xff]
      %v691 = vld [vmem:[%s223 + $0x5c8] sm:$0xff]
      %v692 = vld [vmem:[%s223 + $0x5d0] sm:$0xff]
      %v693 = vld [vmem:[%s223 + $0x5d8] sm:$0xff]
      %v694 = vld [vmem:[%s223 + $0x5e0] sm:$0xff]
      %v695 = vld [vmem:[%s223 + $0x5e8] sm:$0xff]
      %v696 = vld [vmem:[%s223 + $0x5f0] sm:$0xff]
      %v697 = vld [vmem:[%s223 + $0x5f8] sm:$0xff]
      %v698 = vld [vmem:[%s223 + $0x600] sm:$0xff]
      %v699 = vld [vmem:[%s223 + $0x608] sm:$0xff]
      %v700 = vld [vmem:[%s223 + $0x610] sm:$0xff]
      %v701 = vld [vmem:[%s223 + $0x618] sm:$0xff]
      %v702 = vld [vmem:[%s223 + $0x620] sm:$0xff]
      %v703 = vld [vmem:[%s223 + $0x628] sm:$0xff]
      %v704 = vld [vmem:[%s223 + $0x630] sm:$0xff]
      %v705 = vld [vmem:[%s223 + $0x638] sm:$0xff]
      %v706 = vld [vmem:[%s223 + $0x640] sm:$0xff]
      %v707 = vld [vmem:[%s223 + $0x648] sm:$0xff]
      %v708 = vld [vmem:[%s223 + $0x650] sm:$0xff]
      %v709 = vld [vmem:[%s223 + $0x658] sm:$0xff]
      %v710 = vld [vmem:[%s223 + $0x660] sm:$0xff]
      %v711 = vld [vmem:[%s223 + $0x668] sm:$0xff]
      %v712 = vld [vmem:[%s223 + $0x670] sm:$0xff]
      %v713 = vld [vmem:[%s223 + $0x678] sm:$0xff]
      %v714 = vld [vmem:[%s223 + $0x680] sm:$0xff]
      %v715 = vld [vmem:[%s223 + $0x688] sm:$0xff]
      %v716 = vld [vmem:[%s223 + $0x690] sm:$0xff]
      %v717 = vld [vmem:[%s223 + $0x698] sm:$0xff]
      %v718 = vld [vmem:[%s223 + $0x6a0] sm:$0xff]
      %v719 = vld [vmem:[%s223 + $0x6a8] sm:$0xff]
      %v720 = vld [vmem:[%s223 + $0x6b0] sm:$0xff]
      %v721 = vld [vmem:[%s223 + $0x6b8] sm:$0xff]
      %v722 = vld [vmem:[%s223 + $0x6c0] sm:$0xff]
      %v723 = vld [vmem:[%s223 + $0x6c8] sm:$0xff]
      %v724 = vld [vmem:[%s223 + $0x6d0] sm:$0xff]
      %v725 = vld [vmem:[%s223 + $0x6d8] sm:$0xff]
      %v726 = vld [vmem:[%s223 + $0x6e0] sm:$0xff]
      %v727 = vld [vmem:[%s223 + $0x6e8] sm:$0xff]
      %v728 = vld [vmem:[%s223 + $0x6f0] sm:$0xff]
      %v729 = vld [vmem:[%s223 + $0x6f8] sm:$0xff]
      %v730 = vld [vmem:[%s223 + $0x700] sm:$0xff]
      %v731 = vld [vmem:[%s223 + $0x708] sm:$0xff]
      %v732 = vld [vmem:[%s223 + $0x710] sm:$0xff]
      %v733 = vld [vmem:[%s223 + $0x718] sm:$0xff]
      %v734 = vld [vmem:[%s223 + $0x720] sm:$0xff]
      %v735 = vld [vmem:[%s223 + $0x728] sm:$0xff]
      %v736 = vld [vmem:[%s223 + $0x730] sm:$0xff]
      %v737 = vld [vmem:[%s223 + $0x738] sm:$0xff]
      %v738 = vld [vmem:[%s223 + $0x740] sm:$0xff]
      %v739 = vld [vmem:[%s223 + $0x748] sm:$0xff]
      %v740 = vld [vmem:[%s223 + $0x750] sm:$0xff]
      %v741 = vld [vmem:[%s223 + $0x758] sm:$0xff]
      %v742 = vld [vmem:[%s223 + $0x760] sm:$0xff]
      %v743 = vld [vmem:[%s223 + $0x768] sm:$0xff]
      %v744 = vld [vmem:[%s223 + $0x770] sm:$0xff]
      %v745 = vld [vmem:[%s223 + $0x778] sm:$0xff]
      %v746 = vld [vmem:[%s223 + $0x780] sm:$0xff]
      %v747 = vld [vmem:[%s223 + $0x788] sm:$0xff]
      %v748 = vld [vmem:[%s223 + $0x790] sm:$0xff]
      %v749 = vld [vmem:[%s223 + $0x798] sm:$0xff]
      %v750 = vld [vmem:[%s223 + $0x7a0] sm:$0xff]
      %v751 = vld [vmem:[%s223 + $0x7a8] sm:$0xff]
      %v752 = vld [vmem:[%s223 + $0x7b0] sm:$0xff]
      %v753 = vld [vmem:[%s223 + $0x7b8] sm:$0xff]
      %v754 = vld [vmem:[%s223 + $0x7c0] sm:$0xff]
      %v755 = vld [vmem:[%s223 + $0x7c8] sm:$0xff]
      %v756 = vld [vmem:[%s223 + $0x7d0] sm:$0xff]
      %v757 = vld [vmem:[%s223 + $0x7d8] sm:$0xff]
      %v758 = vld [vmem:[%s223 + $0x7e0] sm:$0xff]
      %v759 = vld [vmem:[%s223 + $0x7e8] sm:$0xff]
      %v760 = vld [vmem:[%s223 + $0x7f0] sm:$0xff]
      %v761 = vld [vmem:[%s223 + $0x7f8] sm:$0xff]
      %v1018 = vunpack.c.l.b16 %v506
      %v1019 = vunpack.c.h.b16 %v506
      %v1020 = vunpack.c.l.b16 %v507
      %v1021 = vunpack.c.h.b16 %v507
      %v1022 = vunpack.c.l.b16 %v508
      %v1023 = vunpack.c.h.b16 %v508
      %v1024 = vunpack.c.l.b16 %v509
      %v1025 = vunpack.c.h.b16 %v509
      %v1026 = vunpack.c.l.b16 %v510
      %v1027 = vunpack.c.h.b16 %v510
      %v1028 = vunpack.c.l.b16 %v511
      %v1029 = vunpack.c.h.b16 %v511
      %v1030 = vunpack.c.l.b16 %v512
      %v1031 = vunpack.c.h.b16 %v512
      %v1032 = vunpack.c.l.b16 %v513
      %v1033 = vunpack.c.h.b16 %v513
      %v1034 = vunpack.c.l.b16 %v514
      %v1035 = vunpack.c.h.b16 %v514
      %v1036 = vunpack.c.l.b16 %v515
      %v1037 = vunpack.c.h.b16 %v515
      %v1038 = vunpack.c.l.b16 %v516
      %v1039 = vunpack.c.h.b16 %v516
      %v1040 = vunpack.c.l.b16 %v517
      %v1041 = vunpack.c.h.b16 %v517
      %v1042 = vunpack.c.l.b16 %v518
      %v1043 = vunpack.c.h.b16 %v518
      %v1044 = vunpack.c.l.b16 %v519
      %v1045 = vunpack.c.h.b16 %v519
      %v1046 = vunpack.c.l.b16 %v520
      %v1047 = vunpack.c.h.b16 %v520
      %v1048 = vunpack.c.l.b16 %v521
      %v1049 = vunpack.c.h.b16 %v521
      %v1050 = vunpack.c.l.b16 %v522
      %v1051 = vunpack.c.h.b16 %v522
      %v1052 = vunpack.c.l.b16 %v523
      %v1053 = vunpack.c.h.b16 %v523
      %v1054 = vunpack.c.l.b16 %v524
      %v1055 = vunpack.c.h.b16 %v524
      %v1056 = vunpack.c.l.b16 %v525
      %v1057 = vunpack.c.h.b16 %v525
      %v1058 = vunpack.c.l.b16 %v526
      %v1059 = vunpack.c.h.b16 %v526
      %v1060 = vunpack.c.l.b16 %v527
      %v1061 = vunpack.c.h.b16 %v527
      %v1062 = vunpack.c.l.b16 %v528
      %v1063 = vunpack.c.h.b16 %v528
      %v1064 = vunpack.c.l.b16 %v529
      %v1065 = vunpack.c.h.b16 %v529
      %v1066 = vunpack.c.l.b16 %v530
      %v1067 = vunpack.c.h.b16 %v530
      %v1068 = vunpack.c.l.b16 %v531
      %v1069 = vunpack.c.h.b16 %v531
      %v1070 = vunpack.c.l.b16 %v532
      %v1071 = vunpack.c.h.b16 %v532
      %v1072 = vunpack.c.l.b16 %v533
      %v1073 = vunpack.c.h.b16 %v533
      %v1074 = vunpack.c.l.b16 %v534
      %v1075 = vunpack.c.h.b16 %v534
      %v1076 = vunpack.c.l.b16 %v535
      %v1077 = vunpack.c.h.b16 %v535
      %v1078 = vunpack.c.l.b16 %v536
      %v1079 = vunpack.c.h.b16 %v536
      %v1080 = vunpack.c.l.b16 %v537
      %v1081 = vunpack.c.h.b16 %v537
      %v1082 = vunpack.c.l.b16 %v538
      %v1083 = vunpack.c.h.b16 %v538
      %v1084 = vunpack.c.l.b16 %v539
      %v1085 = vunpack.c.h.b16 %v539
      %v1086 = vunpack.c.l.b16 %v540
      %v1087 = vunpack.c.h.b16 %v540
      %v1088 = vunpack.c.l.b16 %v541
      %v1089 = vunpack.c.h.b16 %v541
      %v1090 = vunpack.c.l.b16 %v542
      %v1091 = vunpack.c.h.b16 %v542
      %v1092 = vunpack.c.l.b16 %v543
      %v1093 = vunpack.c.h.b16 %v543
      %v1094 = vunpack.c.l.b16 %v544
      %v1095 = vunpack.c.h.b16 %v544
      %v1096 = vunpack.c.l.b16 %v545
      %v1097 = vunpack.c.h.b16 %v545
      %v1098 = vunpack.c.l.b16 %v546
      %v1099 = vunpack.c.h.b16 %v546
      %v1100 = vunpack.c.l.b16 %v547
      %v1101 = vunpack.c.h.b16 %v547
      %v1102 = vunpack.c.l.b16 %v548
      %v1103 = vunpack.c.h.b16 %v548
      %v1104 = vunpack.c.l.b16 %v549
      %v1105 = vunpack.c.h.b16 %v549
      %v1106 = vunpack.c.l.b16 %v550
      %v1107 = vunpack.c.h.b16 %v550
      %v1108 = vunpack.c.l.b16 %v551
      %v1109 = vunpack.c.h.b16 %v551
      %v1110 = vunpack.c.l.b16 %v552
      %v1111 = vunpack.c.h.b16 %v552
      %v1112 = vunpack.c.l.b16 %v553
      %v1113 = vunpack.c.h.b16 %v553
      %v1114 = vunpack.c.l.b16 %v554
      %v1115 = vunpack.c.h.b16 %v554
      %v1116 = vunpack.c.l.b16 %v555
      %v1117 = vunpack.c.h.b16 %v555
      %v1118 = vunpack.c.l.b16 %v556
      %v1119 = vunpack.c.h.b16 %v556
      %v1120 = vunpack.c.l.b16 %v557
      %v1121 = vunpack.c.h.b16 %v557
      %v1122 = vunpack.c.l.b16 %v558
      %v1123 = vunpack.c.h.b16 %v558
      %v1124 = vunpack.c.l.b16 %v559
      %v1125 = vunpack.c.h.b16 %v559
      %v1126 = vunpack.c.l.b16 %v560
      %v1127 = vunpack.c.h.b16 %v560
      %v1128 = vunpack.c.l.b16 %v561
      %v1129 = vunpack.c.h.b16 %v561
      %v1130 = vunpack.c.l.b16 %v562
      %v1131 = vunpack.c.h.b16 %v562
      %v1132 = vunpack.c.l.b16 %v563
      %v1133 = vunpack.c.h.b16 %v563
      %v1134 = vunpack.c.l.b16 %v564
      %v1135 = vunpack.c.h.b16 %v564
      %v1136 = vunpack.c.l.b16 %v565
      %v1137 = vunpack.c.h.b16 %v565
      %v1138 = vunpack.c.l.b16 %v566
      %v1139 = vunpack.c.h.b16 %v566
      %v1140 = vunpack.c.l.b16 %v567
      %v1141 = vunpack.c.h.b16 %v567
      %v1142 = vunpack.c.l.b16 %v568
      %v1143 = vunpack.c.h.b16 %v568
      %v1144 = vunpack.c.l.b16 %v569
      %v1145 = vunpack.c.h.b16 %v569
      %v1146 = vunpack.c.l.b16 %v570
      %v1147 = vunpack.c.h.b16 %v570
      %v1148 = vunpack.c.l.b16 %v571
      %v1149 = vunpack.c.h.b16 %v571
      %v1150 = vunpack.c.l.b16 %v572
      %v1151 = vunpack.c.h.b16 %v572
      %v1152 = vunpack.c.l.b16 %v573
      %v1153 = vunpack.c.h.b16 %v573
      %v1154 = vunpack.c.l.b16 %v574
      %v1155 = vunpack.c.h.b16 %v574
      %v1156 = vunpack.c.l.b16 %v575
      %v1157 = vunpack.c.h.b16 %v575
      %v1158 = vunpack.c.l.b16 %v576
      %v1159 = vunpack.c.h.b16 %v576
      %v1160 = vunpack.c.l.b16 %v577
      %v1161 = vunpack.c.h.b16 %v577
      %v1162 = vunpack.c.l.b16 %v578
      %v1163 = vunpack.c.h.b16 %v578
      %v1164 = vunpack.c.l.b16 %v579
      %v1165 = vunpack.c.h.b16 %v579
      %v1166 = vunpack.c.l.b16 %v580
      %v1167 = vunpack.c.h.b16 %v580
      %v1168 = vunpack.c.l.b16 %v581
      %v1169 = vunpack.c.h.b16 %v581
      %v1170 = vunpack.c.l.b16 %v582
      %v1171 = vunpack.c.h.b16 %v582
      %v1172 = vunpack.c.l.b16 %v583
      %v1173 = vunpack.c.h.b16 %v583
      %v1174 = vunpack.c.l.b16 %v584
      %v1175 = vunpack.c.h.b16 %v584
      %v1176 = vunpack.c.l.b16 %v585
      %v1177 = vunpack.c.h.b16 %v585
      %v1178 = vunpack.c.l.b16 %v586
      %v1179 = vunpack.c.h.b16 %v586
      %v1180 = vunpack.c.l.b16 %v587
      %v1181 = vunpack.c.h.b16 %v587
      %v1182 = vunpack.c.l.b16 %v588
      %v1183 = vunpack.c.h.b16 %v588
      %v1184 = vunpack.c.l.b16 %v589
      %v1185 = vunpack.c.h.b16 %v589
      %v1186 = vunpack.c.l.b16 %v590
      %v1187 = vunpack.c.h.b16 %v590
      %v1188 = vunpack.c.l.b16 %v591
      %v1189 = vunpack.c.h.b16 %v591
      %v1190 = vunpack.c.l.b16 %v592
      %v1191 = vunpack.c.h.b16 %v592
      %v1192 = vunpack.c.l.b16 %v593
      %v1193 = vunpack.c.h.b16 %v593
      %v1194 = vunpack.c.l.b16 %v594
      %v1195 = vunpack.c.h.b16 %v594
      %v1196 = vunpack.c.l.b16 %v595
      %v1197 = vunpack.c.h.b16 %v595
      %v1198 = vunpack.c.l.b16 %v596
      %v1199 = vunpack.c.h.b16 %v596
      %v1200 = vunpack.c.l.b16 %v597
      %v1201 = vunpack.c.h.b16 %v597
      %v1202 = vunpack.c.l.b16 %v598
      %v1203 = vunpack.c.h.b16 %v598
      %v1204 = vunpack.c.l.b16 %v599
      %v1205 = vunpack.c.h.b16 %v599
      %v1206 = vunpack.c.l.b16 %v600
      %v1207 = vunpack.c.h.b16 %v600
      %v1208 = vunpack.c.l.b16 %v601
      %v1209 = vunpack.c.h.b16 %v601
      %v1210 = vunpack.c.l.b16 %v602
      %v1211 = vunpack.c.h.b16 %v602
      %v1212 = vunpack.c.l.b16 %v603
      %v1213 = vunpack.c.h.b16 %v603
      %v1214 = vunpack.c.l.b16 %v604
      %v1215 = vunpack.c.h.b16 %v604
      %v1216 = vunpack.c.l.b16 %v605
      %v1217 = vunpack.c.h.b16 %v605
      %v1218 = vunpack.c.l.b16 %v606
      %v1219 = vunpack.c.h.b16 %v606
      %v1220 = vunpack.c.l.b16 %v607
      %v1221 = vunpack.c.h.b16 %v607
      %v1222 = vunpack.c.l.b16 %v608
      %v1223 = vunpack.c.h.b16 %v608
      %v1224 = vunpack.c.l.b16 %v609
      %v1225 = vunpack.c.h.b16 %v609
      %v1226 = vunpack.c.l.b16 %v610
      %v1227 = vunpack.c.h.b16 %v610
      %v1228 = vunpack.c.l.b16 %v611
      %v1229 = vunpack.c.h.b16 %v611
      %v1230 = vunpack.c.l.b16 %v612
      %v1231 = vunpack.c.h.b16 %v612
      %v1232 = vunpack.c.l.b16 %v613
      %v1233 = vunpack.c.h.b16 %v613
      %v1234 = vunpack.c.l.b16 %v614
      %v1235 = vunpack.c.h.b16 %v614
      %v1236 = vunpack.c.l.b16 %v615
      %v1237 = vunpack.c.h.b16 %v615
      %v1238 = vunpack.c.l.b16 %v616
      %v1239 = vunpack.c.h.b16 %v616
      %v1240 = vunpack.c.l.b16 %v617
      %v1241 = vunpack.c.h.b16 %v617
      %v1242 = vunpack.c.l.b16 %v618
      %v1243 = vunpack.c.h.b16 %v618
      %v1244 = vunpack.c.l.b16 %v619
      %v1245 = vunpack.c.h.b16 %v619
      %v1246 = vunpack.c.l.b16 %v620
      %v1247 = vunpack.c.h.b16 %v620
      %v1248 = vunpack.c.l.b16 %v621
      %v1249 = vunpack.c.h.b16 %v621
      %v1250 = vunpack.c.l.b16 %v622
      %v1251 = vunpack.c.h.b16 %v622
      %v1252 = vunpack.c.l.b16 %v623
      %v1253 = vunpack.c.h.b16 %v623
      %v1254 = vunpack.c.l.b16 %v624
      %v1255 = vunpack.c.h.b16 %v624
      %v1256 = vunpack.c.l.b16 %v625
      %v1257 = vunpack.c.h.b16 %v625
      %v1258 = vunpack.c.l.b16 %v626
      %v1259 = vunpack.c.h.b16 %v626
      %v1260 = vunpack.c.l.b16 %v627
      %v1261 = vunpack.c.h.b16 %v627
      %v1262 = vunpack.c.l.b16 %v628
      %v1263 = vunpack.c.h.b16 %v628
      %v1264 = vunpack.c.l.b16 %v629
      %v1265 = vunpack.c.h.b16 %v629
      %v1266 = vunpack.c.l.b16 %v630
      %v1267 = vunpack.c.h.b16 %v630
      %v1268 = vunpack.c.l.b16 %v631
      %v1269 = vunpack.c.h.b16 %v631
      %v1270 = vunpack.c.l.b16 %v632
      %v1271 = vunpack.c.h.b16 %v632
      %v1272 = vunpack.c.l.b16 %v633
      %v1273 = vunpack.c.h.b16 %v633
      %v1274 = vunpack.c.l.b16 %v634
      %v1275 = vunpack.c.h.b16 %v634
      %v1276 = vunpack.c.l.b16 %v635
      %v1277 = vunpack.c.h.b16 %v635
      %v1278 = vunpack.c.l.b16 %v636
      %v1279 = vunpack.c.h.b16 %v636
      %v1280 = vunpack.c.l.b16 %v637
      %v1281 = vunpack.c.h.b16 %v637
      %v1282 = vunpack.c.l.b16 %v638
      %v1283 = vunpack.c.h.b16 %v638
      %v1284 = vunpack.c.l.b16 %v639
      %v1285 = vunpack.c.h.b16 %v639
      %v1286 = vunpack.c.l.b16 %v640
      %v1287 = vunpack.c.h.b16 %v640
      %v1288 = vunpack.c.l.b16 %v641
      %v1289 = vunpack.c.h.b16 %v641
      %v1290 = vunpack.c.l.b16 %v642
      %v1291 = vunpack.c.h.b16 %v642
      %v1292 = vunpack.c.l.b16 %v643
      %v1293 = vunpack.c.h.b16 %v643
      %v1294 = vunpack.c.l.b16 %v644
      %v1295 = vunpack.c.h.b16 %v644
      %v1296 = vunpack.c.l.b16 %v645
      %v1297 = vunpack.c.h.b16 %v645
      %v1298 = vunpack.c.l.b16 %v646
      %v1299 = vunpack.c.h.b16 %v646
      %v1300 = vunpack.c.l.b16 %v647
      %v1301 = vunpack.c.h.b16 %v647
      %v1302 = vunpack.c.l.b16 %v648
      %v1303 = vunpack.c.h.b16 %v648
      %v1304 = vunpack.c.l.b16 %v649
      %v1305 = vunpack.c.h.b16 %v649
      %v1306 = vunpack.c.l.b16 %v650
      %v1307 = vunpack.c.h.b16 %v650
      %v1308 = vunpack.c.l.b16 %v651
      %v1309 = vunpack.c.h.b16 %v651
      %v1310 = vunpack.c.l.b16 %v652
      %v1311 = vunpack.c.h.b16 %v652
      %v1312 = vunpack.c.l.b16 %v653
      %v1313 = vunpack.c.h.b16 %v653
      %v1314 = vunpack.c.l.b16 %v654
      %v1315 = vunpack.c.h.b16 %v654
      %v1316 = vunpack.c.l.b16 %v655
      %v1317 = vunpack.c.h.b16 %v655
      %v1318 = vunpack.c.l.b16 %v656
      %v1319 = vunpack.c.h.b16 %v656
      %v1320 = vunpack.c.l.b16 %v657
      %v1321 = vunpack.c.h.b16 %v657
      %v1322 = vunpack.c.l.b16 %v658
      %v1323 = vunpack.c.h.b16 %v658
      %v1324 = vunpack.c.l.b16 %v659
      %v1325 = vunpack.c.h.b16 %v659
      %v1326 = vunpack.c.l.b16 %v660
      %v1327 = vunpack.c.h.b16 %v660
      %v1328 = vunpack.c.l.b16 %v661
      %v1329 = vunpack.c.h.b16 %v661
      %v1330 = vunpack.c.l.b16 %v662
      %v1331 = vunpack.c.h.b16 %v662
      %v1332 = vunpack.c.l.b16 %v663
      %v1333 = vunpack.c.h.b16 %v663
      %v1334 = vunpack.c.l.b16 %v664
      %v1335 = vunpack.c.h.b16 %v664
      %v1336 = vunpack.c.l.b16 %v665
      %v1337 = vunpack.c.h.b16 %v665
      %v1338 = vunpack.c.l.b16 %v666
      %v1339 = vunpack.c.h.b16 %v666
      %v1340 = vunpack.c.l.b16 %v667
      %v1341 = vunpack.c.h.b16 %v667
      %v1342 = vunpack.c.l.b16 %v668
      %v1343 = vunpack.c.h.b16 %v668
      %v1344 = vunpack.c.l.b16 %v669
      %v1345 = vunpack.c.h.b16 %v669
      %v1346 = vunpack.c.l.b16 %v670
      %v1347 = vunpack.c.h.b16 %v670
      %v1348 = vunpack.c.l.b16 %v671
      %v1349 = vunpack.c.h.b16 %v671
      %v1350 = vunpack.c.l.b16 %v672
      %v1351 = vunpack.c.h.b16 %v672
      %v1352 = vunpack.c.l.b16 %v673
      %v1353 = vunpack.c.h.b16 %v673
      %v1354 = vunpack.c.l.b16 %v674
      %v1355 = vunpack.c.h.b16 %v674
      %v1356 = vunpack.c.l.b16 %v675
      %v1357 = vunpack.c.h.b16 %v675
      %v1358 = vunpack.c.l.b16 %v676
      %v1359 = vunpack.c.h.b16 %v676
      %v1360 = vunpack.c.l.b16 %v677
      %v1361 = vunpack.c.h.b16 %v677
      %v1362 = vunpack.c.l.b16 %v678
      %v1363 = vunpack.c.h.b16 %v678
      %v1364 = vunpack.c.l.b16 %v679
      %v1365 = vunpack.c.h.b16 %v679
      %v1366 = vunpack.c.l.b16 %v680
      %v1367 = vunpack.c.h.b16 %v680
      %v1368 = vunpack.c.l.b16 %v681
      %v1369 = vunpack.c.h.b16 %v681
      %v1370 = vunpack.c.l.b16 %v682
      %v1371 = vunpack.c.h.b16 %v682
      %v1372 = vunpack.c.l.b16 %v683
      %v1373 = vunpack.c.h.b16 %v683
      %v1374 = vunpack.c.l.b16 %v684
      %v1375 = vunpack.c.h.b16 %v684
      %v1376 = vunpack.c.l.b16 %v685
      %v1377 = vunpack.c.h.b16 %v685
      %v1378 = vunpack.c.l.b16 %v686
      %v1379 = vunpack.c.h.b16 %v686
      %v1380 = vunpack.c.l.b16 %v687
      %v1381 = vunpack.c.h.b16 %v687
      %v1382 = vunpack.c.l.b16 %v688
      %v1383 = vunpack.c.h.b16 %v688
      %v1384 = vunpack.c.l.b16 %v689
      %v1385 = vunpack.c.h.b16 %v689
      %v1386 = vunpack.c.l.b16 %v690
      %v1387 = vunpack.c.h.b16 %v690
      %v1388 = vunpack.c.l.b16 %v691
      %v1389 = vunpack.c.h.b16 %v691
      %v1390 = vunpack.c.l.b16 %v692
      %v1391 = vunpack.c.h.b16 %v692
      %v1392 = vunpack.c.l.b16 %v693
      %v1393 = vunpack.c.h.b16 %v693
      %v1394 = vunpack.c.l.b16 %v694
      %v1395 = vunpack.c.h.b16 %v694
      %v1396 = vunpack.c.l.b16 %v695
      %v1397 = vunpack.c.h.b16 %v695
      %v1398 = vunpack.c.l.b16 %v696
      %v1399 = vunpack.c.h.b16 %v696
      %v1400 = vunpack.c.l.b16 %v697
      %v1401 = vunpack.c.h.b16 %v697
      %v1402 = vunpack.c.l.b16 %v698
      %v1403 = vunpack.c.h.b16 %v698
      %v1404 = vunpack.c.l.b16 %v699
      %v1405 = vunpack.c.h.b16 %v699
      %v1406 = vunpack.c.l.b16 %v700
      %v1407 = vunpack.c.h.b16 %v700
      %v1408 = vunpack.c.l.b16 %v701
      %v1409 = vunpack.c.h.b16 %v701
      %v1410 = vunpack.c.l.b16 %v702
      %v1411 = vunpack.c.h.b16 %v702
      %v1412 = vunpack.c.l.b16 %v703
      %v1413 = vunpack.c.h.b16 %v703
      %v1414 = vunpack.c.l.b16 %v704
      %v1415 = vunpack.c.h.b16 %v704
      %v1416 = vunpack.c.l.b16 %v705
      %v1417 = vunpack.c.h.b16 %v705
      %v1418 = vunpack.c.l.b16 %v706
      %v1419 = vunpack.c.h.b16 %v706
      %v1420 = vunpack.c.l.b16 %v707
      %v1421 = vunpack.c.h.b16 %v707
      %v1422 = vunpack.c.l.b16 %v708
      %v1423 = vunpack.c.h.b16 %v708
      %v1424 = vunpack.c.l.b16 %v709
      %v1425 = vunpack.c.h.b16 %v709
      %v1426 = vunpack.c.l.b16 %v710
      %v1427 = vunpack.c.h.b16 %v710
      %v1428 = vunpack.c.l.b16 %v711
      %v1429 = vunpack.c.h.b16 %v711
      %v1430 = vunpack.c.l.b16 %v712
      %v1431 = vunpack.c.h.b16 %v712
      %v1432 = vunpack.c.l.b16 %v713
      %v1433 = vunpack.c.h.b16 %v713
      %v1434 = vunpack.c.l.b16 %v714
      %v1435 = vunpack.c.h.b16 %v714
      %v1436 = vunpack.c.l.b16 %v715
      %v1437 = vunpack.c.h.b16 %v715
      %v1438 = vunpack.c.l.b16 %v716
      %v1439 = vunpack.c.h.b16 %v716
      %v1440 = vunpack.c.l.b16 %v717
      %v1441 = vunpack.c.h.b16 %v717
      %v1442 = vunpack.c.l.b16 %v718
      %v1443 = vunpack.c.h.b16 %v718
      %v1444 = vunpack.c.l.b16 %v719
      %v1445 = vunpack.c.h.b16 %v719
      %v1446 = vunpack.c.l.b16 %v720
      %v1447 = vunpack.c.h.b16 %v720
      %v1448 = vunpack.c.l.b16 %v721
      %v1449 = vunpack.c.h.b16 %v721
      %v1450 = vunpack.c.l.b16 %v722
      %v1451 = vunpack.c.h.b16 %v722
      %v1452 = vunpack.c.l.b16 %v723
      %v1453 = vunpack.c.h.b16 %v723
      %v1454 = vunpack.c.l.b16 %v724
      %v1455 = vunpack.c.h.b16 %v724
      %v1456 = vunpack.c.l.b16 %v725
      %v1457 = vunpack.c.h.b16 %v725
      %v1458 = vunpack.c.l.b16 %v726
      %v1459 = vunpack.c.h.b16 %v726
      %v1460 = vunpack.c.l.b16 %v727
      %v1461 = vunpack.c.h.b16 %v727
      %v1462 = vunpack.c.l.b16 %v728
      %v1463 = vunpack.c.h.b16 %v728
      %v1464 = vunpack.c.l.b16 %v729
      %v1465 = vunpack.c.h.b16 %v729
      %v1466 = vunpack.c.l.b16 %v730
      %v1467 = vunpack.c.h.b16 %v730
      %v1468 = vunpack.c.l.b16 %v731
      %v1469 = vunpack.c.h.b16 %v731
      %v1470 = vunpack.c.l.b16 %v732
      %v1471 = vunpack.c.h.b16 %v732
      %v1472 = vunpack.c.l.b16 %v733
      %v1473 = vunpack.c.h.b16 %v733
      %v1474 = vunpack.c.l.b16 %v734
      %v1475 = vunpack.c.h.b16 %v734
      %v1476 = vunpack.c.l.b16 %v735
      %v1477 = vunpack.c.h.b16 %v735
      %v1478 = vunpack.c.l.b16 %v736
      %v1479 = vunpack.c.h.b16 %v736
      %v1480 = vunpack.c.l.b16 %v737
      %v1481 = vunpack.c.h.b16 %v737
      %v1482 = vunpack.c.l.b16 %v738
      %v1483 = vunpack.c.h.b16 %v738
      %v1484 = vunpack.c.l.b16 %v739
      %v1485 = vunpack.c.h.b16 %v739
      %v1486 = vunpack.c.l.b16 %v740
      %v1487 = vunpack.c.h.b16 %v740
      %v1488 = vunpack.c.l.b16 %v741
      %v1489 = vunpack.c.h.b16 %v741
      %v1490 = vunpack.c.l.b16 %v742
      %v1491 = vunpack.c.h.b16 %v742
      %v1492 = vunpack.c.l.b16 %v743
      %v1493 = vunpack.c.h.b16 %v743
      %v1494 = vunpack.c.l.b16 %v744
      %v1495 = vunpack.c.h.b16 %v744
      %v1496 = vunpack.c.l.b16 %v745
      %v1497 = vunpack.c.h.b16 %v745
      %v1498 = vunpack.c.l.b16 %v746
      %v1499 = vunpack.c.h.b16 %v746
      %v1500 = vunpack.c.l.b16 %v747
      %v1501 = vunpack.c.h.b16 %v747
      %v1502 = vunpack.c.l.b16 %v748
      %v1503 = vunpack.c.h.b16 %v748
      %v1504 = vunpack.c.l.b16 %v749
      %v1505 = vunpack.c.h.b16 %v749
      %v1506 = vunpack.c.l.b16 %v750
      %v1507 = vunpack.c.h.b16 %v750
      %v1508 = vunpack.c.l.b16 %v751
      %v1509 = vunpack.c.h.b16 %v751
      %v1510 = vunpack.c.l.b16 %v752
      %v1511 = vunpack.c.h.b16 %v752
      %v1512 = vunpack.c.l.b16 %v753
      %v1513 = vunpack.c.h.b16 %v753
      %v1514 = vunpack.c.l.b16 %v754
      %v1515 = vunpack.c.h.b16 %v754
      %v1516 = vunpack.c.l.b16 %v755
      %v1517 = vunpack.c.h.b16 %v755
      %v1518 = vunpack.c.l.b16 %v756
      %v1519 = vunpack.c.h.b16 %v756
      %v1520 = vunpack.c.l.b16 %v757
      %v1521 = vunpack.c.h.b16 %v757
      %v1522 = vunpack.c.l.b16 %v758
      %v1523 = vunpack.c.h.b16 %v758
      %v1524 = vunpack.c.l.b16 %v759
      %v1525 = vunpack.c.h.b16 %v759
      %v1526 = vunpack.c.l.b16 %v760
      %v1527 = vunpack.c.h.b16 %v760
      %v1528 = vunpack.c.l.b16 %v761
      %v1529 = vunpack.c.h.b16 %v761
      %v1530 = vpack.c.b16 %v1026, %v1018
      %v1531 = vpack.c.b16 %v1027, %v1019
      %v1532 = vpack.c.b16 %v1028, %v1020
      %v1533 = vpack.c.b16 %v1029, %v1021
      %v1534 = vpack.c.b16 %v1030, %v1022
      %v1535 = vpack.c.b16 %v1031, %v1023
      %v1536 = vpack.c.b16 %v1032, %v1024
      %v1537 = vpack.c.b16 %v1033, %v1025
      %v1538 = vpack.c.b16 %v1042, %v1034
      %v1539 = vpack.c.b16 %v1043, %v1035
      %v1540 = vpack.c.b16 %v1044, %v1036
      %v1541 = vpack.c.b16 %v1045, %v1037
      %v1542 = vpack.c.b16 %v1046, %v1038
      %v1543 = vpack.c.b16 %v1047, %v1039
      %v1544 = vpack.c.b16 %v1048, %v1040
      %v1545 = vpack.c.b16 %v1049, %v1041
      %v1546 = vpack.c.b16 %v1058, %v1050
      %v1547 = vpack.c.b16 %v1059, %v1051
      %v1548 = vpack.c.b16 %v1060, %v1052
      %v1549 = vpack.c.b16 %v1061, %v1053
      %v1550 = vpack.c.b16 %v1062, %v1054
      %v1551 = vpack.c.b16 %v1063, %v1055
      %v1552 = vpack.c.b16 %v1064, %v1056
      %v1553 = vpack.c.b16 %v1065, %v1057
      %v1554 = vpack.c.b16 %v1074, %v1066
      %v1555 = vpack.c.b16 %v1075, %v1067
      %v1556 = vpack.c.b16 %v1076, %v1068
      %v1557 = vpack.c.b16 %v1077, %v1069
      %v1558 = vpack.c.b16 %v1078, %v1070
      %v1559 = vpack.c.b16 %v1079, %v1071
      %v1560 = vpack.c.b16 %v1080, %v1072
      %v1561 = vpack.c.b16 %v1081, %v1073
      %v1562 = vpack.c.b16 %v1090, %v1082
      %v1563 = vpack.c.b16 %v1091, %v1083
      %v1564 = vpack.c.b16 %v1092, %v1084
      %v1565 = vpack.c.b16 %v1093, %v1085
      %v1566 = vpack.c.b16 %v1094, %v1086
      %v1567 = vpack.c.b16 %v1095, %v1087
      %v1568 = vpack.c.b16 %v1096, %v1088
      %v1569 = vpack.c.b16 %v1097, %v1089
      %v1570 = vpack.c.b16 %v1106, %v1098
      %v1571 = vpack.c.b16 %v1107, %v1099
      %v1572 = vpack.c.b16 %v1108, %v1100
      %v1573 = vpack.c.b16 %v1109, %v1101
      %v1574 = vpack.c.b16 %v1110, %v1102
      %v1575 = vpack.c.b16 %v1111, %v1103
      %v1576 = vpack.c.b16 %v1112, %v1104
      %v1577 = vpack.c.b16 %v1113, %v1105
      %v1578 = vpack.c.b16 %v1122, %v1114
      %v1579 = vpack.c.b16 %v1123, %v1115
      %v1580 = vpack.c.b16 %v1124, %v1116
      %v1581 = vpack.c.b16 %v1125, %v1117
      %v1582 = vpack.c.b16 %v1126, %v1118
      %v1583 = vpack.c.b16 %v1127, %v1119
      %v1584 = vpack.c.b16 %v1128, %v1120
      %v1585 = vpack.c.b16 %v1129, %v1121
      %v1586 = vpack.c.b16 %v1138, %v1130
      %v1587 = vpack.c.b16 %v1139, %v1131
      %v1588 = vpack.c.b16 %v1140, %v1132
      %v1589 = vpack.c.b16 %v1141, %v1133
      %v1590 = vpack.c.b16 %v1142, %v1134
      %v1591 = vpack.c.b16 %v1143, %v1135
      %v1592 = vpack.c.b16 %v1144, %v1136
      %v1593 = vpack.c.b16 %v1145, %v1137
      %v1594 = vpack.c.b16 %v1154, %v1146
      %v1595 = vpack.c.b16 %v1155, %v1147
      %v1596 = vpack.c.b16 %v1156, %v1148
      %v1597 = vpack.c.b16 %v1157, %v1149
      %v1598 = vpack.c.b16 %v1158, %v1150
      %v1599 = vpack.c.b16 %v1159, %v1151
      %v1600 = vpack.c.b16 %v1160, %v1152
      %v1601 = vpack.c.b16 %v1161, %v1153
      %v1602 = vpack.c.b16 %v1170, %v1162
      %v1603 = vpack.c.b16 %v1171, %v1163
      %v1604 = vpack.c.b16 %v1172, %v1164
      %v1605 = vpack.c.b16 %v1173, %v1165
      %v1606 = vpack.c.b16 %v1174, %v1166
      %v1607 = vpack.c.b16 %v1175, %v1167
      %v1608 = vpack.c.b16 %v1176, %v1168
      %v1609 = vpack.c.b16 %v1177, %v1169
      %v1610 = vpack.c.b16 %v1186, %v1178
      %v1611 = vpack.c.b16 %v1187, %v1179
      %v1612 = vpack.c.b16 %v1188, %v1180
      %v1613 = vpack.c.b16 %v1189, %v1181
      %v1614 = vpack.c.b16 %v1190, %v1182
      %v1615 = vpack.c.b16 %v1191, %v1183
      %v1616 = vpack.c.b16 %v1192, %v1184
      %v1617 = vpack.c.b16 %v1193, %v1185
      %v1618 = vpack.c.b16 %v1202, %v1194
      %v1619 = vpack.c.b16 %v1203, %v1195
      %v1620 = vpack.c.b16 %v1204, %v1196
      %v1621 = vpack.c.b16 %v1205, %v1197
      %v1622 = vpack.c.b16 %v1206, %v1198
      %v1623 = vpack.c.b16 %v1207, %v1199
      %v1624 = vpack.c.b16 %v1208, %v1200
      %v1625 = vpack.c.b16 %v1209, %v1201
      %v1626 = vpack.c.b16 %v1218, %v1210
      %v1627 = vpack.c.b16 %v1219, %v1211
      %v1628 = vpack.c.b16 %v1220, %v1212
      %v1629 = vpack.c.b16 %v1221, %v1213
      %v1630 = vpack.c.b16 %v1222, %v1214
      %v1631 = vpack.c.b16 %v1223, %v1215
      %v1632 = vpack.c.b16 %v1224, %v1216
      %v1633 = vpack.c.b16 %v1225, %v1217
      %v1634 = vpack.c.b16 %v1234, %v1226
      %v1635 = vpack.c.b16 %v1235, %v1227
      %v1636 = vpack.c.b16 %v1236, %v1228
      %v1637 = vpack.c.b16 %v1237, %v1229
      %v1638 = vpack.c.b16 %v1238, %v1230
      %v1639 = vpack.c.b16 %v1239, %v1231
      %v1640 = vpack.c.b16 %v1240, %v1232
      %v1641 = vpack.c.b16 %v1241, %v1233
      %v1642 = vpack.c.b16 %v1250, %v1242
      %v1643 = vpack.c.b16 %v1251, %v1243
      %v1644 = vpack.c.b16 %v1252, %v1244
      %v1645 = vpack.c.b16 %v1253, %v1245
      %v1646 = vpack.c.b16 %v1254, %v1246
      %v1647 = vpack.c.b16 %v1255, %v1247
      %v1648 = vpack.c.b16 %v1256, %v1248
      %v1649 = vpack.c.b16 %v1257, %v1249
      %v1650 = vpack.c.b16 %v1266, %v1258
      %v1651 = vpack.c.b16 %v1267, %v1259
      %v1652 = vpack.c.b16 %v1268, %v1260
      %v1653 = vpack.c.b16 %v1269, %v1261
      %v1654 = vpack.c.b16 %v1270, %v1262
      %v1655 = vpack.c.b16 %v1271, %v1263
      %v1656 = vpack.c.b16 %v1272, %v1264
      %v1657 = vpack.c.b16 %v1273, %v1265
      %v1658 = vpack.c.b16 %v1282, %v1274
      %v1659 = vpack.c.b16 %v1283, %v1275
      %v1660 = vpack.c.b16 %v1284, %v1276
      %v1661 = vpack.c.b16 %v1285, %v1277
      %v1662 = vpack.c.b16 %v1286, %v1278
      %v1663 = vpack.c.b16 %v1287, %v1279
      %v1664 = vpack.c.b16 %v1288, %v1280
      %v1665 = vpack.c.b16 %v1289, %v1281
      %v1666 = vpack.c.b16 %v1298, %v1290
      %v1667 = vpack.c.b16 %v1299, %v1291
      %v1668 = vpack.c.b16 %v1300, %v1292
      %v1669 = vpack.c.b16 %v1301, %v1293
      %v1670 = vpack.c.b16 %v1302, %v1294
      %v1671 = vpack.c.b16 %v1303, %v1295
      %v1672 = vpack.c.b16 %v1304, %v1296
      %v1673 = vpack.c.b16 %v1305, %v1297
      %v1674 = vpack.c.b16 %v1314, %v1306
      %v1675 = vpack.c.b16 %v1315, %v1307
      %v1676 = vpack.c.b16 %v1316, %v1308
      %v1677 = vpack.c.b16 %v1317, %v1309
      %v1678 = vpack.c.b16 %v1318, %v1310
      %v1679 = vpack.c.b16 %v1319, %v1311
      %v1680 = vpack.c.b16 %v1320, %v1312
      %v1681 = vpack.c.b16 %v1321, %v1313
      %v1682 = vpack.c.b16 %v1330, %v1322
      %v1683 = vpack.c.b16 %v1331, %v1323
      %v1684 = vpack.c.b16 %v1332, %v1324
      %v1685 = vpack.c.b16 %v1333, %v1325
      %v1686 = vpack.c.b16 %v1334, %v1326
      %v1687 = vpack.c.b16 %v1335, %v1327
      %v1688 = vpack.c.b16 %v1336, %v1328
      %v1689 = vpack.c.b16 %v1337, %v1329
      %v1690 = vpack.c.b16 %v1346, %v1338
      %v1691 = vpack.c.b16 %v1347, %v1339
      %v1692 = vpack.c.b16 %v1348, %v1340
      %v1693 = vpack.c.b16 %v1349, %v1341
      %v1694 = vpack.c.b16 %v1350, %v1342
      %v1695 = vpack.c.b16 %v1351, %v1343
      %v1696 = vpack.c.b16 %v1352, %v1344
      %v1697 = vpack.c.b16 %v1353, %v1345
      %v1698 = vpack.c.b16 %v1362, %v1354
      %v1699 = vpack.c.b16 %v1363, %v1355
      %v1700 = vpack.c.b16 %v1364, %v1356
      %v1701 = vpack.c.b16 %v1365, %v1357
      %v1702 = vpack.c.b16 %v1366, %v1358
      %v1703 = vpack.c.b16 %v1367, %v1359
      %v1704 = vpack.c.b16 %v1368, %v1360
      %v1705 = vpack.c.b16 %v1369, %v1361
      %v1706 = vpack.c.b16 %v1378, %v1370
      %v1707 = vpack.c.b16 %v1379, %v1371
      %v1708 = vpack.c.b16 %v1380, %v1372
      %v1709 = vpack.c.b16 %v1381, %v1373
      %v1710 = vpack.c.b16 %v1382, %v1374
      %v1711 = vpack.c.b16 %v1383, %v1375
      %v1712 = vpack.c.b16 %v1384, %v1376
      %v1713 = vpack.c.b16 %v1385, %v1377
      %v1714 = vpack.c.b16 %v1394, %v1386
      %v1715 = vpack.c.b16 %v1395, %v1387
      %v1716 = vpack.c.b16 %v1396, %v1388
      %v1717 = vpack.c.b16 %v1397, %v1389
      %v1718 = vpack.c.b16 %v1398, %v1390
      %v1719 = vpack.c.b16 %v1399, %v1391
      %v1720 = vpack.c.b16 %v1400, %v1392
      %v1721 = vpack.c.b16 %v1401, %v1393
      %v1722 = vpack.c.b16 %v1410, %v1402
      %v1723 = vpack.c.b16 %v1411, %v1403
      %v1724 = vpack.c.b16 %v1412, %v1404
      %v1725 = vpack.c.b16 %v1413, %v1405
      %v1726 = vpack.c.b16 %v1414, %v1406
      %v1727 = vpack.c.b16 %v1415, %v1407
      %v1728 = vpack.c.b16 %v1416, %v1408
      %v1729 = vpack.c.b16 %v1417, %v1409
      %v1730 = vpack.c.b16 %v1426, %v1418
      %v1731 = vpack.c.b16 %v1427, %v1419
      %v1732 = vpack.c.b16 %v1428, %v1420
      %v1733 = vpack.c.b16 %v1429, %v1421
      %v1734 = vpack.c.b16 %v1430, %v1422
      %v1735 = vpack.c.b16 %v1431, %v1423
      %v1736 = vpack.c.b16 %v1432, %v1424
      %v1737 = vpack.c.b16 %v1433, %v1425
      %v1738 = vpack.c.b16 %v1442, %v1434
      %v1739 = vpack.c.b16 %v1443, %v1435
      %v1740 = vpack.c.b16 %v1444, %v1436
      %v1741 = vpack.c.b16 %v1445, %v1437
      %v1742 = vpack.c.b16 %v1446, %v1438
      %v1743 = vpack.c.b16 %v1447, %v1439
      %v1744 = vpack.c.b16 %v1448, %v1440
      %v1745 = vpack.c.b16 %v1449, %v1441
      %v1746 = vpack.c.b16 %v1458, %v1450
      %v1747 = vpack.c.b16 %v1459, %v1451
      %v1748 = vpack.c.b16 %v1460, %v1452
      %v1749 = vpack.c.b16 %v1461, %v1453
      %v1750 = vpack.c.b16 %v1462, %v1454
      %v1751 = vpack.c.b16 %v1463, %v1455
      %v1752 = vpack.c.b16 %v1464, %v1456
      %v1753 = vpack.c.b16 %v1465, %v1457
      %v1754 = vpack.c.b16 %v1474, %v1466
      %v1755 = vpack.c.b16 %v1475, %v1467
      %v1756 = vpack.c.b16 %v1476, %v1468
      %v1757 = vpack.c.b16 %v1477, %v1469
      %v1758 = vpack.c.b16 %v1478, %v1470
      %v1759 = vpack.c.b16 %v1479, %v1471
      %v1760 = vpack.c.b16 %v1480, %v1472
      %v1761 = vpack.c.b16 %v1481, %v1473
      %v1762 = vpack.c.b16 %v1490, %v1482
      %v1763 = vpack.c.b16 %v1491, %v1483
      %v1764 = vpack.c.b16 %v1492, %v1484
      %v1765 = vpack.c.b16 %v1493, %v1485
      %v1766 = vpack.c.b16 %v1494, %v1486
      %v1767 = vpack.c.b16 %v1495, %v1487
      %v1768 = vpack.c.b16 %v1496, %v1488
      %v1769 = vpack.c.b16 %v1497, %v1489
      %v1770 = vpack.c.b16 %v1506, %v1498
      %v1771 = vpack.c.b16 %v1507, %v1499
      %v1772 = vpack.c.b16 %v1508, %v1500
      %v1773 = vpack.c.b16 %v1509, %v1501
      %v1774 = vpack.c.b16 %v1510, %v1502
      %v1775 = vpack.c.b16 %v1511, %v1503
      %v1776 = vpack.c.b16 %v1512, %v1504
      %v1777 = vpack.c.b16 %v1513, %v1505
      %v1778 = vpack.c.b16 %v1522, %v1514
      %v1779 = vpack.c.b16 %v1523, %v1515
      %v1780 = vpack.c.b16 %v1524, %v1516
      %v1781 = vpack.c.b16 %v1525, %v1517
      %v1782 = vpack.c.b16 %v1526, %v1518
      %v1783 = vpack.c.b16 %v1527, %v1519
      %v1784 = vpack.c.b16 %v1528, %v1520
      %v1785 = vpack.c.b16 %v1529, %v1521
      %v2170 = vunpack.c.l.b16 %v314
      %v2171 = vunpack.c.l.b16 %v315
      %v2172 = vunpack.c.l.b16 %v316
      %v2173 = vunpack.c.l.b16 %v317
      %v2174 = vunpack.c.l.b16 %v318
      %v2175 = vunpack.c.l.b16 %v319
      %v2176 = vunpack.c.l.b16 %v320
      %v2177 = vunpack.c.l.b16 %v321
      %v2178 = vunpack.c.l.b16 %v322
      %v2179 = vunpack.c.l.b16 %v323
      %v2180 = vunpack.c.l.b16 %v324
      %v2181 = vunpack.c.l.b16 %v325
      %v2182 = vunpack.c.l.b16 %v326
      %v2183 = vunpack.c.l.b16 %v327
      %v2184 = vunpack.c.l.b16 %v328
      %v2185 = vunpack.c.l.b16 %v329
      %v2186 = vunpack.c.l.b16 %v330
      %v2187 = vunpack.c.l.b16 %v331
      %v2188 = vunpack.c.l.b16 %v332
      %v2189 = vunpack.c.l.b16 %v333
      %v2190 = vunpack.c.l.b16 %v334
      %v2191 = vunpack.c.l.b16 %v335
      %v2192 = vunpack.c.l.b16 %v336
      %v2193 = vunpack.c.l.b16 %v337
      %v2194 = vunpack.c.l.b16 %v338
      %v2195 = vunpack.c.l.b16 %v339
      %v2196 = vunpack.c.l.b16 %v340
      %v2197 = vunpack.c.l.b16 %v341
      %v2198 = vunpack.c.l.b16 %v342
      %v2199 = vunpack.c.l.b16 %v343
      %v2200 = vunpack.c.l.b16 %v344
      %v2201 = vunpack.c.l.b16 %v345
      %v2202 = vunpack.c.l.b16 %v346
      %v2203 = vunpack.c.l.b16 %v347
      %v2204 = vunpack.c.l.b16 %v348
      %v2205 = vunpack.c.l.b16 %v349
      %v2206 = vunpack.c.l.b16 %v350
      %v2207 = vunpack.c.l.b16 %v351
      %v2208 = vunpack.c.l.b16 %v352
      %v2209 = vunpack.c.l.b16 %v353
      %v2210 = vunpack.c.l.b16 %v354
      %v2211 = vunpack.c.l.b16 %v355
      %v2212 = vunpack.c.l.b16 %v356
      %v2213 = vunpack.c.l.b16 %v357
      %v2214 = vunpack.c.l.b16 %v358
      %v2215 = vunpack.c.l.b16 %v359
      %v2216 = vunpack.c.l.b16 %v360
      %v2217 = vunpack.c.l.b16 %v361
      %v2218 = vunpack.c.l.b16 %v362
      %v2219 = vunpack.c.l.b16 %v363
      %v2220 = vunpack.c.l.b16 %v364
      %v2221 = vunpack.c.l.b16 %v365
      %v2222 = vunpack.c.l.b16 %v366
      %v2223 = vunpack.c.l.b16 %v367
      %v2224 = vunpack.c.l.b16 %v368
      %v2225 = vunpack.c.l.b16 %v369
      %v2226 = vunpack.c.l.b16 %v370
      %v2227 = vunpack.c.l.b16 %v371
      %v2228 = vunpack.c.l.b16 %v372
      %v2229 = vunpack.c.l.b16 %v373
      %v2230 = vunpack.c.l.b16 %v374
      %v2231 = vunpack.c.l.b16 %v375
      %v2232 = vunpack.c.l.b16 %v376
      %v2233 = vunpack.c.l.b16 %v377
      %v2234 = vunpack.c.l.b16 %v378
      %v2235 = vunpack.c.l.b16 %v379
      %v2236 = vunpack.c.l.b16 %v380
      %v2237 = vunpack.c.l.b16 %v381
      %v2238 = vunpack.c.l.b16 %v382
      %v2239 = vunpack.c.l.b16 %v383
      %v2240 = vunpack.c.l.b16 %v384
      %v2241 = vunpack.c.l.b16 %v385
      %v2242 = vunpack.c.l.b16 %v386
      %v2243 = vunpack.c.l.b16 %v387
      %v2244 = vunpack.c.l.b16 %v388
      %v2245 = vunpack.c.l.b16 %v389
      %v2246 = vunpack.c.l.b16 %v390
      %v2247 = vunpack.c.l.b16 %v391
      %v2248 = vunpack.c.l.b16 %v392
      %v2249 = vunpack.c.l.b16 %v393
      %v2250 = vunpack.c.l.b16 %v394
      %v2251 = vunpack.c.l.b16 %v395
      %v2252 = vunpack.c.l.b16 %v396
      %v2253 = vunpack.c.l.b16 %v397
      %v2254 = vunpack.c.l.b16 %v398
      %v2255 = vunpack.c.l.b16 %v399
      %v2256 = vunpack.c.l.b16 %v400
      %v2257 = vunpack.c.l.b16 %v401
      %v2258 = vunpack.c.l.b16 %v402
      %v2259 = vunpack.c.l.b16 %v403
      %v2260 = vunpack.c.l.b16 %v404
      %v2261 = vunpack.c.l.b16 %v405
      %v2262 = vunpack.c.l.b16 %v406
      %v2263 = vunpack.c.l.b16 %v407
      %v2264 = vunpack.c.l.b16 %v408
      %v2265 = vunpack.c.l.b16 %v409
      %v2266 = vunpack.c.l.b16 %v410
      %v2267 = vunpack.c.l.b16 %v411
      %v2268 = vunpack.c.l.b16 %v412
      %v2269 = vunpack.c.l.b16 %v413
      %v2270 = vunpack.c.l.b16 %v414
      %v2271 = vunpack.c.l.b16 %v415
      %v2272 = vunpack.c.l.b16 %v416
      %v2273 = vunpack.c.l.b16 %v417
      %v2274 = vunpack.c.l.b16 %v418
      %v2275 = vunpack.c.l.b16 %v419
      %v2276 = vunpack.c.l.b16 %v420
      %v2277 = vunpack.c.l.b16 %v421
      %v2278 = vunpack.c.l.b16 %v422
      %v2279 = vunpack.c.l.b16 %v423
      %v2280 = vunpack.c.l.b16 %v424
      %v2281 = vunpack.c.l.b16 %v425
      %v2282 = vunpack.c.l.b16 %v426
      %v2283 = vunpack.c.l.b16 %v427
      %v2284 = vunpack.c.l.b16 %v428
      %v2285 = vunpack.c.l.b16 %v429
      %v2286 = vunpack.c.l.b16 %v430
      %v2287 = vunpack.c.l.b16 %v431
      %v2288 = vunpack.c.l.b16 %v432
      %v2289 = vunpack.c.l.b16 %v433
      %v2290 = vunpack.c.l.b16 %v434
      %v2291 = vunpack.c.l.b16 %v435
      %v2292 = vunpack.c.l.b16 %v436
      %v2293 = vunpack.c.l.b16 %v437
      %v2294 = vunpack.c.l.b16 %v438
      %v2295 = vunpack.c.l.b16 %v439
      %v2296 = vunpack.c.l.b16 %v440
      %v2297 = vunpack.c.l.b16 %v441
      %v2298 = vpack.c.b16 %v2171, %v2170
      %v2299 = vpack.c.b16 %v2173, %v2172
      %v2300 = vpack.c.b16 %v2175, %v2174
      %v2301 = vpack.c.b16 %v2177, %v2176
      %v2302 = vpack.c.b16 %v2179, %v2178
      %v2303 = vpack.c.b16 %v2181, %v2180
      %v2304 = vpack.c.b16 %v2183, %v2182
      %v2305 = vpack.c.b16 %v2185, %v2184
      %v2306 = vpack.c.b16 %v2187, %v2186
      %v2307 = vpack.c.b16 %v2189, %v2188
      %v2308 = vpack.c.b16 %v2191, %v2190
      %v2309 = vpack.c.b16 %v2193, %v2192
      %v2310 = vpack.c.b16 %v2195, %v2194
      %v2311 = vpack.c.b16 %v2197, %v2196
      %v2312 = vpack.c.b16 %v2199, %v2198
      %v2313 = vpack.c.b16 %v2201, %v2200
      %v2314 = vpack.c.b16 %v2203, %v2202
      %v2315 = vpack.c.b16 %v2205, %v2204
      %v2316 = vpack.c.b16 %v2207, %v2206
      %v2317 = vpack.c.b16 %v2209, %v2208
      %v2318 = vpack.c.b16 %v2211, %v2210
      %v2319 = vpack.c.b16 %v2213, %v2212
      %v2320 = vpack.c.b16 %v2215, %v2214
      %v2321 = vpack.c.b16 %v2217, %v2216
      %v2322 = vpack.c.b16 %v2219, %v2218
      %v2323 = vpack.c.b16 %v2221, %v2220
      %v2324 = vpack.c.b16 %v2223, %v2222
      %v2325 = vpack.c.b16 %v2225, %v2224
      %v2326 = vpack.c.b16 %v2227, %v2226
      %v2327 = vpack.c.b16 %v2229, %v2228
      %v2328 = vpack.c.b16 %v2231, %v2230
      %v2329 = vpack.c.b16 %v2233, %v2232
      %v2330 = vpack.c.b16 %v2235, %v2234
      %v2331 = vpack.c.b16 %v2237, %v2236
      %v2332 = vpack.c.b16 %v2239, %v2238
      %v2333 = vpack.c.b16 %v2241, %v2240
      %v2334 = vpack.c.b16 %v2243, %v2242
      %v2335 = vpack.c.b16 %v2245, %v2244
      %v2336 = vpack.c.b16 %v2247, %v2246
      %v2337 = vpack.c.b16 %v2249, %v2248
      %v2338 = vpack.c.b16 %v2251, %v2250
      %v2339 = vpack.c.b16 %v2253, %v2252
      %v2340 = vpack.c.b16 %v2255, %v2254
      %v2341 = vpack.c.b16 %v2257, %v2256
      %v2342 = vpack.c.b16 %v2259, %v2258
      %v2343 = vpack.c.b16 %v2261, %v2260
      %v2344 = vpack.c.b16 %v2263, %v2262
      %v2345 = vpack.c.b16 %v2265, %v2264
      %v2346 = vpack.c.b16 %v2267, %v2266
      %v2347 = vpack.c.b16 %v2269, %v2268
      %v2348 = vpack.c.b16 %v2271, %v2270
      %v2349 = vpack.c.b16 %v2273, %v2272
      %v2350 = vpack.c.b16 %v2275, %v2274
      %v2351 = vpack.c.b16 %v2277, %v2276
      %v2352 = vpack.c.b16 %v2279, %v2278
      %v2353 = vpack.c.b16 %v2281, %v2280
      %v2354 = vpack.c.b16 %v2283, %v2282
      %v2355 = vpack.c.b16 %v2285, %v2284
      %v2356 = vpack.c.b16 %v2287, %v2286
      %v2357 = vpack.c.b16 %v2289, %v2288
      %v2358 = vpack.c.b16 %v2291, %v2290
      %v2359 = vpack.c.b16 %v2293, %v2292
      %v2360 = vpack.c.b16 %v2295, %v2294
      %v2361 = vpack.c.b16 %v2297, %v2296
      %2426 = vmatprep.subr.bf16.mxu0 0
      %2427 = vmatpush1.bf16.msra.mxu0 %v2305
      %2428 = vmatprep.subr.bf16.mxu0 0
      %2429 = vmatpush1.bf16.msra.mxu0 %v2304
      %2430 = vmatprep.subr.bf16.mxu0 0
      %2431 = vmatpush1.bf16.msra.mxu0 %v2303
      %2432 = vmatprep.subr.bf16.mxu0 0
      %2433 = vmatpush1.bf16.msra.mxu0 %v2302
      %2434 = vmatprep.subr.bf16.mxu0 0
      %2435 = vmatpush1.bf16.msra.mxu0 %v2301
      %2436 = vmatprep.subr.bf16.mxu0 0
      %2437 = vmatpush1.bf16.msra.mxu0 %v2300
      %2438 = vmatprep.subr.bf16.mxu0 0
      %2439 = vmatpush1.bf16.msra.mxu0 %v2299
      %2440 = vmatprep.subr.bf16.mxu0 0
      %2441 = vmatpush1.bf16.msra.mxu0 %v2298
      %2442 = vmatprep.subr.bf16.mxu0 0
      %2443 = vmatpush2.bf16.msra.mxu0 %v2313
      %2444 = vmatprep.subr.bf16.mxu0 0
      %2445 = vmatpush2.bf16.msra.mxu0 %v2312
      %2446 = vmatprep.subr.bf16.mxu0 0
      %2447 = vmatpush2.bf16.msra.mxu0 %v2311
      %2448 = vmatprep.subr.bf16.mxu0 0
      %2449 = vmatpush2.bf16.msra.mxu0 %v2310
      %2450 = vmatprep.subr.bf16.mxu0 0
      %2451 = vmatpush2.bf16.msra.mxu0 %v2309
      %2452 = vmatprep.subr.bf16.mxu0 0
      %2453 = vmatpush2.bf16.msra.mxu0 %v2308
      %2454 = vmatprep.subr.bf16.mxu0 0
      %2455 = vmatpush2.bf16.msra.mxu0 %v2307
      %2456 = vmatprep.subr.bf16.mxu0 0
      %2457 = vmatpush2.bf16.msra.mxu0 %v2306
      %2458 = vmatprep.mubr.bf16.mxu0 %v1531
      %2459 = vmatmul.mubr.bf16.gmra.mxu0 %v1530
      %v2460 = vpop.f32.mrf.mxu0
      %v2461 = vadd.f32 0.0, %v2460
      %v2462 = vpop.f32.mrf.mxu0
      %v2463 = vpop.f32.mrf.mxu0
      %v2464 = vadd.f32 0.0, %v2463
      %v2465 = vpop.f32.mrf.mxu0
      %2466 = vmatprep.mubr.bf16.mxu0 %v1539
      %2467 = vmatmul.mubr.bf16.gmra.mxu0 %v1538
      %v2468 = vpop.f32.mrf.mxu0
      %v2469 = vadd.f32 0.0, %v2468
      %v2470 = vpop.f32.mrf.mxu0
      %v2471 = vpop.f32.mrf.mxu0
      %v2472 = vadd.f32 0.0, %v2471
      %v2473 = vpop.f32.mrf.mxu0
      %2474 = vmatprep.mubr.bf16.mxu0 %v1547
      %2475 = vmatmul.mubr.bf16.gmra.mxu0 %v1546
      %v2476 = vpop.f32.mrf.mxu0
      %v2477 = vadd.f32 0.0, %v2476
      %v2478 = vpop.f32.mrf.mxu0
      %v2479 = vpop.f32.mrf.mxu0
      %v2480 = vadd.f32 0.0, %v2479
      %v2481 = vpop.f32.mrf.mxu0
      %2482 = vmatprep.mubr.bf16.mxu0 %v1555
      %2483 = vmatmul.mubr.bf16.gmra.mxu0 %v1554
      %v2484 = vpop.f32.mrf.mxu0
      %v2485 = vadd.f32 0.0, %v2484
      %v2486 = vpop.f32.mrf.mxu0
      %v2487 = vpop.f32.mrf.mxu0
      %v2488 = vadd.f32 0.0, %v2487
      %v2489 = vpop.f32.mrf.mxu0
      %2490 = vmatprep.mubr.bf16.mxu0 %v1563
      %2491 = vmatmul.mubr.bf16.gmra.mxu0 %v1562
      %v2492 = vpop.f32.mrf.mxu0
      %v2493 = vadd.f32 0.0, %v2492
      %v2494 = vpop.f32.mrf.mxu0
      %v2495 = vpop.f32.mrf.mxu0
      %v2496 = vadd.f32 0.0, %v2495
      %v2497 = vpop.f32.mrf.mxu0
      %2498 = vmatprep.mubr.bf16.mxu0 %v1571
      %2499 = vmatmul.mubr.bf16.gmra.mxu0 %v1570
      %v2500 = vpop.f32.mrf.mxu0
      %v2501 = vadd.f32 0.0, %v2500
      %v2502 = vpop.f32.mrf.mxu0
      %v2503 = vpop.f32.mrf.mxu0
      %v2504 = vadd.f32 0.0, %v2503
      %v2505 = vpop.f32.mrf.mxu0
      %2506 = vmatprep.mubr.bf16.mxu0 %v1579
      %2507 = vmatmul.mubr.bf16.gmra.mxu0 %v1578
      %v2508 = vpop.f32.mrf.mxu0
      %v2509 = vadd.f32 0.0, %v2508
      %v2510 = vpop.f32.mrf.mxu0
      %v2511 = vpop.f32.mrf.mxu0
      %v2512 = vadd.f32 0.0, %v2511
      %v2513 = vpop.f32.mrf.mxu0
      %2514 = vmatprep.mubr.bf16.mxu0 %v1587
      %2515 = vmatmul.mubr.bf16.gmra.mxu0 %v1586
      %v2516 = vpop.f32.mrf.mxu0
      %v2517 = vadd.f32 0.0, %v2516
      %v2518 = vpop.f32.mrf.mxu0
      %v2519 = vpop.f32.mrf.mxu0
      %v2520 = vadd.f32 0.0, %v2519
      %v2521 = vpop.f32.mrf.mxu0
      %2522 = vmatprep.mubr.bf16.mxu0 %v1595
      %2523 = vmatmul.mubr.bf16.gmra.mxu0 %v1594
      %v2524 = vpop.f32.mrf.mxu0
      %v2525 = vadd.f32 0.0, %v2524
      %v2526 = vpop.f32.mrf.mxu0
      %v2527 = vpop.f32.mrf.mxu0
      %v2528 = vadd.f32 0.0, %v2527
      %v2529 = vpop.f32.mrf.mxu0
      %2530 = vmatprep.mubr.bf16.mxu0 %v1603
      %2531 = vmatmul.mubr.bf16.gmra.mxu0 %v1602
      %v2532 = vpop.f32.mrf.mxu0
      %v2533 = vadd.f32 0.0, %v2532
      %v2534 = vpop.f32.mrf.mxu0
      %v2535 = vpop.f32.mrf.mxu0
      %v2536 = vadd.f32 0.0, %v2535
      %v2537 = vpop.f32.mrf.mxu0
      %2538 = vmatprep.mubr.bf16.mxu0 %v1611
      %2539 = vmatmul.mubr.bf16.gmra.mxu0 %v1610
      %v2540 = vpop.f32.mrf.mxu0
      %v2541 = vadd.f32 0.0, %v2540
      %v2542 = vpop.f32.mrf.mxu0
      %v2543 = vpop.f32.mrf.mxu0
      %v2544 = vadd.f32 0.0, %v2543
      %v2545 = vpop.f32.mrf.mxu0
      %2546 = vmatprep.mubr.bf16.mxu0 %v1619
      %2547 = vmatmul.mubr.bf16.gmra.mxu0 %v1618
      %v2548 = vpop.f32.mrf.mxu0
      %v2549 = vadd.f32 0.0, %v2548
      %v2550 = vpop.f32.mrf.mxu0
      %v2551 = vpop.f32.mrf.mxu0
      %v2552 = vadd.f32 0.0, %v2551
      %v2553 = vpop.f32.mrf.mxu0
      %2554 = vmatprep.mubr.bf16.mxu0 %v1627
      %2555 = vmatmul.mubr.bf16.gmra.mxu0 %v1626
      %v2556 = vpop.f32.mrf.mxu0
      %v2557 = vadd.f32 0.0, %v2556
      %v2558 = vpop.f32.mrf.mxu0
      %v2559 = vpop.f32.mrf.mxu0
      %v2560 = vadd.f32 0.0, %v2559
      %v2561 = vpop.f32.mrf.mxu0
      %2562 = vmatprep.mubr.bf16.mxu0 %v1635
      %2563 = vmatmul.mubr.bf16.gmra.mxu0 %v1634
      %v2564 = vpop.f32.mrf.mxu0
      %v2565 = vadd.f32 0.0, %v2564
      %v2566 = vpop.f32.mrf.mxu0
      %v2567 = vpop.f32.mrf.mxu0
      %v2568 = vadd.f32 0.0, %v2567
      %v2569 = vpop.f32.mrf.mxu0
      %2570 = vmatprep.mubr.bf16.mxu0 %v1643
      %2571 = vmatmul.mubr.bf16.gmra.mxu0 %v1642
      %v2572 = vpop.f32.mrf.mxu0
      %v2573 = vadd.f32 0.0, %v2572
      %v2574 = vpop.f32.mrf.mxu0
      %v2575 = vpop.f32.mrf.mxu0
      %v2576 = vadd.f32 0.0, %v2575
      %v2577 = vpop.f32.mrf.mxu0
      %2578 = vmatprep.mubr.bf16.mxu0 %v1651
      %2579 = vmatmul.mubr.bf16.gmra.mxu0 %v1650
      %v2580 = vpop.f32.mrf.mxu0
      %v2581 = vadd.f32 0.0, %v2580
      %v2582 = vpop.f32.mrf.mxu0
      %v2583 = vpop.f32.mrf.mxu0
      %v2584 = vadd.f32 0.0, %v2583
      %v2585 = vpop.f32.mrf.mxu0
      %2586 = vmatprep.mubr.bf16.mxu0 %v1659
      %2587 = vmatmul.mubr.bf16.gmra.mxu0 %v1658
      %v2588 = vpop.f32.mrf.mxu0
      %v2589 = vadd.f32 0.0, %v2588
      %v2590 = vpop.f32.mrf.mxu0
      %v2591 = vpop.f32.mrf.mxu0
      %v2592 = vadd.f32 0.0, %v2591
      %v2593 = vpop.f32.mrf.mxu0
      %2594 = vmatprep.mubr.bf16.mxu0 %v1667
      %2595 = vmatmul.mubr.bf16.gmra.mxu0 %v1666
      %v2596 = vpop.f32.mrf.mxu0
      %v2597 = vadd.f32 0.0, %v2596
      %v2598 = vpop.f32.mrf.mxu0
      %v2599 = vpop.f32.mrf.mxu0
      %v2600 = vadd.f32 0.0, %v2599
      %v2601 = vpop.f32.mrf.mxu0
      %2602 = vmatprep.mubr.bf16.mxu0 %v1675
      %2603 = vmatmul.mubr.bf16.gmra.mxu0 %v1674
      %v2604 = vpop.f32.mrf.mxu0
      %v2605 = vadd.f32 0.0, %v2604
      %v2606 = vpop.f32.mrf.mxu0
      %v2607 = vpop.f32.mrf.mxu0
      %v2608 = vadd.f32 0.0, %v2607
      %v2609 = vpop.f32.mrf.mxu0
      %2610 = vmatprep.mubr.bf16.mxu0 %v1683
      %2611 = vmatmul.mubr.bf16.gmra.mxu0 %v1682
      %v2612 = vpop.f32.mrf.mxu0
      %v2613 = vadd.f32 0.0, %v2612
      %v2614 = vpop.f32.mrf.mxu0
      %v2615 = vpop.f32.mrf.mxu0
      %v2616 = vadd.f32 0.0, %v2615
      %v2617 = vpop.f32.mrf.mxu0
      %2618 = vmatprep.mubr.bf16.mxu0 %v1691
      %2619 = vmatmul.mubr.bf16.gmra.mxu0 %v1690
      %v2620 = vpop.f32.mrf.mxu0
      %v2621 = vadd.f32 0.0, %v2620
      %v2622 = vpop.f32.mrf.mxu0
      %v2623 = vpop.f32.mrf.mxu0
      %v2624 = vadd.f32 0.0, %v2623
      %v2625 = vpop.f32.mrf.mxu0
      %2626 = vmatprep.mubr.bf16.mxu0 %v1699
      %2627 = vmatmul.mubr.bf16.gmra.mxu0 %v1698
      %v2628 = vpop.f32.mrf.mxu0
      %v2629 = vadd.f32 0.0, %v2628
      %v2630 = vpop.f32.mrf.mxu0
      %v2631 = vpop.f32.mrf.mxu0
      %v2632 = vadd.f32 0.0, %v2631
      %v2633 = vpop.f32.mrf.mxu0
      %2634 = vmatprep.mubr.bf16.mxu0 %v1707
      %2635 = vmatmul.mubr.bf16.gmra.mxu0 %v1706
      %v2636 = vpop.f32.mrf.mxu0
      %v2637 = vadd.f32 0.0, %v2636
      %v2638 = vpop.f32.mrf.mxu0
      %v2639 = vpop.f32.mrf.mxu0
      %v2640 = vadd.f32 0.0, %v2639
      %v2641 = vpop.f32.mrf.mxu0
      %2642 = vmatprep.mubr.bf16.mxu0 %v1715
      %2643 = vmatmul.mubr.bf16.gmra.mxu0 %v1714
      %v2644 = vpop.f32.mrf.mxu0
      %v2645 = vadd.f32 0.0, %v2644
      %v2646 = vpop.f32.mrf.mxu0
      %v2647 = vpop.f32.mrf.mxu0
      %v2648 = vadd.f32 0.0, %v2647
      %v2649 = vpop.f32.mrf.mxu0
      %2650 = vmatprep.mubr.bf16.mxu0 %v1723
      %2651 = vmatmul.mubr.bf16.gmra.mxu0 %v1722
      %v2652 = vpop.f32.mrf.mxu0
      %v2653 = vadd.f32 0.0, %v2652
      %v2654 = vpop.f32.mrf.mxu0
      %v2655 = vpop.f32.mrf.mxu0
      %v2656 = vadd.f32 0.0, %v2655
      %v2657 = vpop.f32.mrf.mxu0
      %2658 = vmatprep.mubr.bf16.mxu0 %v1731
      %2659 = vmatmul.mubr.bf16.gmra.mxu0 %v1730
      %v2660 = vpop.f32.mrf.mxu0
      %v2661 = vadd.f32 0.0, %v2660
      %v2662 = vpop.f32.mrf.mxu0
      %v2663 = vpop.f32.mrf.mxu0
      %v2664 = vadd.f32 0.0, %v2663
      %v2665 = vpop.f32.mrf.mxu0
      %2666 = vmatprep.mubr.bf16.mxu0 %v1739
      %2667 = vmatmul.mubr.bf16.gmra.mxu0 %v1738
      %v2668 = vpop.f32.mrf.mxu0
      %v2669 = vadd.f32 0.0, %v2668
      %v2670 = vpop.f32.mrf.mxu0
      %v2671 = vpop.f32.mrf.mxu0
      %v2672 = vadd.f32 0.0, %v2671
      %v2673 = vpop.f32.mrf.mxu0
      %2674 = vmatprep.mubr.bf16.mxu0 %v1747
      %2675 = vmatmul.mubr.bf16.gmra.mxu0 %v1746
      %v2676 = vpop.f32.mrf.mxu0
      %v2677 = vadd.f32 0.0, %v2676
      %v2678 = vpop.f32.mrf.mxu0
      %v2679 = vpop.f32.mrf.mxu0
      %v2680 = vadd.f32 0.0, %v2679
      %v2681 = vpop.f32.mrf.mxu0
      %2682 = vmatprep.mubr.bf16.mxu0 %v1755
      %2683 = vmatmul.mubr.bf16.gmra.mxu0 %v1754
      %v2684 = vpop.f32.mrf.mxu0
      %v2685 = vadd.f32 0.0, %v2684
      %v2686 = vpop.f32.mrf.mxu0
      %v2687 = vpop.f32.mrf.mxu0
      %v2688 = vadd.f32 0.0, %v2687
      %v2689 = vpop.f32.mrf.mxu0
      %2690 = vmatprep.mubr.bf16.mxu0 %v1763
      %2691 = vmatmul.mubr.bf16.gmra.mxu0 %v1762
      %v2692 = vpop.f32.mrf.mxu0
      %v2693 = vadd.f32 0.0, %v2692
      %v2694 = vpop.f32.mrf.mxu0
      %v2695 = vpop.f32.mrf.mxu0
      %v2696 = vadd.f32 0.0, %v2695
      %v2697 = vpop.f32.mrf.mxu0
      %2698 = vmatprep.mubr.bf16.mxu0 %v1771
      %2699 = vmatmul.mubr.bf16.gmra.mxu0 %v1770
      %v2700 = vpop.f32.mrf.mxu0
      %v2701 = vadd.f32 0.0, %v2700
      %v2702 = vpop.f32.mrf.mxu0
      %v2703 = vpop.f32.mrf.mxu0
      %v2704 = vadd.f32 0.0, %v2703
      %v2705 = vpop.f32.mrf.mxu0
      %2706 = vmatprep.mubr.bf16.mxu0 %v1779
      %2707 = vmatmul.mubr.bf16.gmra.mxu0 %v1778
      %v2708 = vpop.f32.mrf.mxu0
      %v2709 = vadd.f32 0.0, %v2708
      %v2710 = vpop.f32.mrf.mxu0
      %v2711 = vpop.f32.mrf.mxu0
      %v2712 = vadd.f32 0.0, %v2711
      %v2713 = vpop.f32.mrf.mxu0
      %2714 = vdwg.mxu0
      %2715 = vmatprep.subr.bf16.mxu0 0
      %2716 = vmatpush1.bf16.msra.mxu0 %v2321
      %2717 = vmatprep.subr.bf16.mxu0 0
      %2718 = vmatpush1.bf16.msra.mxu0 %v2320
      %2719 = vmatprep.subr.bf16.mxu0 0
      %2720 = vmatpush1.bf16.msra.mxu0 %v2319
      %2721 = vmatprep.subr.bf16.mxu0 0
      %2722 = vmatpush1.bf16.msra.mxu0 %v2318
      %2723 = vmatprep.subr.bf16.mxu0 0
      %2724 = vmatpush1.bf16.msra.mxu0 %v2317
      %2725 = vmatprep.subr.bf16.mxu0 0
      %2726 = vmatpush1.bf16.msra.mxu0 %v2316
      %2727 = vmatprep.subr.bf16.mxu0 0
      %2728 = vmatpush1.bf16.msra.mxu0 %v2315
      %2729 = vmatprep.subr.bf16.mxu0 0
      %2730 = vmatpush1.bf16.msra.mxu0 %v2314
      %2731 = vmatprep.subr.bf16.mxu0 0
      %2732 = vmatpush2.bf16.msra.mxu0 %v2329
      %2733 = vmatprep.subr.bf16.mxu0 0
      %2734 = vmatpush2.bf16.msra.mxu0 %v2328
      %2735 = vmatprep.subr.bf16.mxu0 0
      %2736 = vmatpush2.bf16.msra.mxu0 %v2327
      %2737 = vmatprep.subr.bf16.mxu0 0
      %2738 = vmatpush2.bf16.msra.mxu0 %v2326
      %2739 = vmatprep.subr.bf16.mxu0 0
      %2740 = vmatpush2.bf16.msra.mxu0 %v2325
      %2741 = vmatprep.subr.bf16.mxu0 0
      %2742 = vmatpush2.bf16.msra.mxu0 %v2324
      %2743 = vmatprep.subr.bf16.mxu0 0
      %2744 = vmatpush2.bf16.msra.mxu0 %v2323
      %2745 = vmatprep.subr.bf16.mxu0 0
      %2746 = vmatpush2.bf16.msra.mxu0 %v2322
      %2747 = vmatprep.mubr.bf16.mxu0 %v1533
      %2748 = vmatmul.mubr.bf16.gmra.mxu0 %v1532
      %v2749 = vpop.f32.mrf.mxu0
      %v2750 = vadd.f32 %v2461, %v2749
      %v2751 = vpop.f32.mrf.mxu0
      %v2752 = vpop.f32.mrf.mxu0
      %v2753 = vadd.f32 %v2464, %v2752
      %v2754 = vpop.f32.mrf.mxu0
      %2755 = vmatprep.mubr.bf16.mxu0 %v1541
      %2756 = vmatmul.mubr.bf16.gmra.mxu0 %v1540
      %v2757 = vpop.f32.mrf.mxu0
      %v2758 = vadd.f32 %v2469, %v2757
      %v2759 = vpop.f32.mrf.mxu0
      %v2760 = vpop.f32.mrf.mxu0
      %v2761 = vadd.f32 %v2472, %v2760
      %v2762 = vpop.f32.mrf.mxu0
      %2763 = vmatprep.mubr.bf16.mxu0 %v1549
      %2764 = vmatmul.mubr.bf16.gmra.mxu0 %v1548
      %v2765 = vpop.f32.mrf.mxu0
      %v2766 = vadd.f32 %v2477, %v2765
      %v2767 = vpop.f32.mrf.mxu0
      %v2768 = vpop.f32.mrf.mxu0
      %v2769 = vadd.f32 %v2480, %v2768
      %v2770 = vpop.f32.mrf.mxu0
      %2771 = vmatprep.mubr.bf16.mxu0 %v1557
      %2772 = vmatmul.mubr.bf16.gmra.mxu0 %v1556
      %v2773 = vpop.f32.mrf.mxu0
      %v2774 = vadd.f32 %v2485, %v2773
      %v2775 = vpop.f32.mrf.mxu0
      %v2776 = vpop.f32.mrf.mxu0
      %v2777 = vadd.f32 %v2488, %v2776
      %v2778 = vpop.f32.mrf.mxu0
      %2779 = vmatprep.mubr.bf16.mxu0 %v1565
      %2780 = vmatmul.mubr.bf16.gmra.mxu0 %v1564
      %v2781 = vpop.f32.mrf.mxu0
      %v2782 = vadd.f32 %v2493, %v2781
      %v2783 = vpop.f32.mrf.mxu0
      %v2784 = vpop.f32.mrf.mxu0
      %v2785 = vadd.f32 %v2496, %v2784
      %v2786 = vpop.f32.mrf.mxu0
      %2787 = vmatprep.mubr.bf16.mxu0 %v1573
      %2788 = vmatmul.mubr.bf16.gmra.mxu0 %v1572
      %v2789 = vpop.f32.mrf.mxu0
      %v2790 = vadd.f32 %v2501, %v2789
      %v2791 = vpop.f32.mrf.mxu0
      %v2792 = vpop.f32.mrf.mxu0
      %v2793 = vadd.f32 %v2504, %v2792
      %v2794 = vpop.f32.mrf.mxu0
      %2795 = vmatprep.mubr.bf16.mxu0 %v1581
      %2796 = vmatmul.mubr.bf16.gmra.mxu0 %v1580
      %v2797 = vpop.f32.mrf.mxu0
      %v2798 = vadd.f32 %v2509, %v2797
      %v2799 = vpop.f32.mrf.mxu0
      %v2800 = vpop.f32.mrf.mxu0
      %v2801 = vadd.f32 %v2512, %v2800
      %v2802 = vpop.f32.mrf.mxu0
      %2803 = vmatprep.mubr.bf16.mxu0 %v1589
      %2804 = vmatmul.mubr.bf16.gmra.mxu0 %v1588
      %v2805 = vpop.f32.mrf.mxu0
      %v2806 = vadd.f32 %v2517, %v2805
      %v2807 = vpop.f32.mrf.mxu0
      %v2808 = vpop.f32.mrf.mxu0
      %v2809 = vadd.f32 %v2520, %v2808
      %v2810 = vpop.f32.mrf.mxu0
      %2811 = vmatprep.mubr.bf16.mxu0 %v1597
      %2812 = vmatmul.mubr.bf16.gmra.mxu0 %v1596
      %v2813 = vpop.f32.mrf.mxu0
      %v2814 = vadd.f32 %v2525, %v2813
      %v2815 = vpop.f32.mrf.mxu0
      %v2816 = vpop.f32.mrf.mxu0
      %v2817 = vadd.f32 %v2528, %v2816
      %v2818 = vpop.f32.mrf.mxu0
      %2819 = vmatprep.mubr.bf16.mxu0 %v1605
      %2820 = vmatmul.mubr.bf16.gmra.mxu0 %v1604
      %v2821 = vpop.f32.mrf.mxu0
      %v2822 = vadd.f32 %v2533, %v2821
      %v2823 = vpop.f32.mrf.mxu0
      %v2824 = vpop.f32.mrf.mxu0
      %v2825 = vadd.f32 %v2536, %v2824
      %v2826 = vpop.f32.mrf.mxu0
      %2827 = vmatprep.mubr.bf16.mxu0 %v1613
      %2828 = vmatmul.mubr.bf16.gmra.mxu0 %v1612
      %v2829 = vpop.f32.mrf.mxu0
      %v2830 = vadd.f32 %v2541, %v2829
      %v2831 = vpop.f32.mrf.mxu0
      %v2832 = vpop.f32.mrf.mxu0
      %v2833 = vadd.f32 %v2544, %v2832
      %v2834 = vpop.f32.mrf.mxu0
      %2835 = vmatprep.mubr.bf16.mxu0 %v1621
      %2836 = vmatmul.mubr.bf16.gmra.mxu0 %v1620
      %v2837 = vpop.f32.mrf.mxu0
      %v2838 = vadd.f32 %v2549, %v2837
      %v2839 = vpop.f32.mrf.mxu0
      %v2840 = vpop.f32.mrf.mxu0
      %v2841 = vadd.f32 %v2552, %v2840
      %v2842 = vpop.f32.mrf.mxu0
      %2843 = vmatprep.mubr.bf16.mxu0 %v1629
      %2844 = vmatmul.mubr.bf16.gmra.mxu0 %v1628
      %v2845 = vpop.f32.mrf.mxu0
      %v2846 = vadd.f32 %v2557, %v2845
      %v2847 = vpop.f32.mrf.mxu0
      %v2848 = vpop.f32.mrf.mxu0
      %v2849 = vadd.f32 %v2560, %v2848
      %v2850 = vpop.f32.mrf.mxu0
      %2851 = vmatprep.mubr.bf16.mxu0 %v1637
      %2852 = vmatmul.mubr.bf16.gmra.mxu0 %v1636
      %v2853 = vpop.f32.mrf.mxu0
      %v2854 = vadd.f32 %v2565, %v2853
      %v2855 = vpop.f32.mrf.mxu0
      %v2856 = vpop.f32.mrf.mxu0
      %v2857 = vadd.f32 %v2568, %v2856
      %v2858 = vpop.f32.mrf.mxu0
      %2859 = vmatprep.mubr.bf16.mxu0 %v1645
      %2860 = vmatmul.mubr.bf16.gmra.mxu0 %v1644
      %v2861 = vpop.f32.mrf.mxu0
      %v2862 = vadd.f32 %v2573, %v2861
      %v2863 = vpop.f32.mrf.mxu0
      %v2864 = vpop.f32.mrf.mxu0
      %v2865 = vadd.f32 %v2576, %v2864
      %v2866 = vpop.f32.mrf.mxu0
      %2867 = vmatprep.mubr.bf16.mxu0 %v1653
      %2868 = vmatmul.mubr.bf16.gmra.mxu0 %v1652
      %v2869 = vpop.f32.mrf.mxu0
      %v2870 = vadd.f32 %v2581, %v2869
      %v2871 = vpop.f32.mrf.mxu0
      %v2872 = vpop.f32.mrf.mxu0
      %v2873 = vadd.f32 %v2584, %v2872
      %v2874 = vpop.f32.mrf.mxu0
      %2875 = vmatprep.mubr.bf16.mxu0 %v1661
      %2876 = vmatmul.mubr.bf16.gmra.mxu0 %v1660
      %v2877 = vpop.f32.mrf.mxu0
      %v2878 = vadd.f32 %v2589, %v2877
      %v2879 = vpop.f32.mrf.mxu0
      %v2880 = vpop.f32.mrf.mxu0
      %v2881 = vadd.f32 %v2592, %v2880
      %v2882 = vpop.f32.mrf.mxu0
      %2883 = vmatprep.mubr.bf16.mxu0 %v1669
      %2884 = vmatmul.mubr.bf16.gmra.mxu0 %v1668
      %v2885 = vpop.f32.mrf.mxu0
      %v2886 = vadd.f32 %v2597, %v2885
      %v2887 = vpop.f32.mrf.mxu0
      %v2888 = vpop.f32.mrf.mxu0
      %v2889 = vadd.f32 %v2600, %v2888
      %v2890 = vpop.f32.mrf.mxu0
      %2891 = vmatprep.mubr.bf16.mxu0 %v1677
      %2892 = vmatmul.mubr.bf16.gmra.mxu0 %v1676
      %v2893 = vpop.f32.mrf.mxu0
      %v2894 = vadd.f32 %v2605, %v2893
      %v2895 = vpop.f32.mrf.mxu0
      %v2896 = vpop.f32.mrf.mxu0
      %v2897 = vadd.f32 %v2608, %v2896
      %v2898 = vpop.f32.mrf.mxu0
      %2899 = vmatprep.mubr.bf16.mxu0 %v1685
      %2900 = vmatmul.mubr.bf16.gmra.mxu0 %v1684
      %v2901 = vpop.f32.mrf.mxu0
      %v2902 = vadd.f32 %v2613, %v2901
      %v2903 = vpop.f32.mrf.mxu0
      %v2904 = vpop.f32.mrf.mxu0
      %v2905 = vadd.f32 %v2616, %v2904
      %v2906 = vpop.f32.mrf.mxu0
      %2907 = vmatprep.mubr.bf16.mxu0 %v1693
      %2908 = vmatmul.mubr.bf16.gmra.mxu0 %v1692
      %v2909 = vpop.f32.mrf.mxu0
      %v2910 = vadd.f32 %v2621, %v2909
      %v2911 = vpop.f32.mrf.mxu0
      %v2912 = vpop.f32.mrf.mxu0
      %v2913 = vadd.f32 %v2624, %v2912
      %v2914 = vpop.f32.mrf.mxu0
      %2915 = vmatprep.mubr.bf16.mxu0 %v1701
      %2916 = vmatmul.mubr.bf16.gmra.mxu0 %v1700
      %v2917 = vpop.f32.mrf.mxu0
      %v2918 = vadd.f32 %v2629, %v2917
      %v2919 = vpop.f32.mrf.mxu0
      %v2920 = vpop.f32.mrf.mxu0
      %v2921 = vadd.f32 %v2632, %v2920
      %v2922 = vpop.f32.mrf.mxu0
      %2923 = vmatprep.mubr.bf16.mxu0 %v1709
      %2924 = vmatmul.mubr.bf16.gmra.mxu0 %v1708
      %v2925 = vpop.f32.mrf.mxu0
      %v2926 = vadd.f32 %v2637, %v2925
      %v2927 = vpop.f32.mrf.mxu0
      %v2928 = vpop.f32.mrf.mxu0
      %v2929 = vadd.f32 %v2640, %v2928
      %v2930 = vpop.f32.mrf.mxu0
      %2931 = vmatprep.mubr.bf16.mxu0 %v1717
      %2932 = vmatmul.mubr.bf16.gmra.mxu0 %v1716
      %v2933 = vpop.f32.mrf.mxu0
      %v2934 = vadd.f32 %v2645, %v2933
      %v2935 = vpop.f32.mrf.mxu0
      %v2936 = vpop.f32.mrf.mxu0
      %v2937 = vadd.f32 %v2648, %v2936
      %v2938 = vpop.f32.mrf.mxu0
      %2939 = vmatprep.mubr.bf16.mxu0 %v1725
      %2940 = vmatmul.mubr.bf16.gmra.mxu0 %v1724
      %v2941 = vpop.f32.mrf.mxu0
      %v2942 = vadd.f32 %v2653, %v2941
      %v2943 = vpop.f32.mrf.mxu0
      %v2944 = vpop.f32.mrf.mxu0
      %v2945 = vadd.f32 %v2656, %v2944
      %v2946 = vpop.f32.mrf.mxu0
      %2947 = vmatprep.mubr.bf16.mxu0 %v1733
      %2948 = vmatmul.mubr.bf16.gmra.mxu0 %v1732
      %v2949 = vpop.f32.mrf.mxu0
      %v2950 = vadd.f32 %v2661, %v2949
      %v2951 = vpop.f32.mrf.mxu0
      %v2952 = vpop.f32.mrf.mxu0
      %v2953 = vadd.f32 %v2664, %v2952
      %v2954 = vpop.f32.mrf.mxu0
      %2955 = vmatprep.mubr.bf16.mxu0 %v1741
      %2956 = vmatmul.mubr.bf16.gmra.mxu0 %v1740
      %v2957 = vpop.f32.mrf.mxu0
      %v2958 = vadd.f32 %v2669, %v2957
      %v2959 = vpop.f32.mrf.mxu0
      %v2960 = vpop.f32.mrf.mxu0
      %v2961 = vadd.f32 %v2672, %v2960
      %v2962 = vpop.f32.mrf.mxu0
      %2963 = vmatprep.mubr.bf16.mxu0 %v1749
      %2964 = vmatmul.mubr.bf16.gmra.mxu0 %v1748
      %v2965 = vpop.f32.mrf.mxu0
      %v2966 = vadd.f32 %v2677, %v2965
      %v2967 = vpop.f32.mrf.mxu0
      %v2968 = vpop.f32.mrf.mxu0
      %v2969 = vadd.f32 %v2680, %v2968
      %v2970 = vpop.f32.mrf.mxu0
      %2971 = vmatprep.mubr.bf16.mxu0 %v1757
      %2972 = vmatmul.mubr.bf16.gmra.mxu0 %v1756
      %v2973 = vpop.f32.mrf.mxu0
      %v2974 = vadd.f32 %v2685, %v2973
      %v2975 = vpop.f32.mrf.mxu0
      %v2976 = vpop.f32.mrf.mxu0
      %v2977 = vadd.f32 %v2688, %v2976
      %v2978 = vpop.f32.mrf.mxu0
      %2979 = vmatprep.mubr.bf16.mxu0 %v1765
      %2980 = vmatmul.mubr.bf16.gmra.mxu0 %v1764
      %v2981 = vpop.f32.mrf.mxu0
      %v2982 = vadd.f32 %v2693, %v2981
      %v2983 = vpop.f32.mrf.mxu0
      %v2984 = vpop.f32.mrf.mxu0
      %v2985 = vadd.f32 %v2696, %v2984
      %v2986 = vpop.f32.mrf.mxu0
      %2987 = vmatprep.mubr.bf16.mxu0 %v1773
      %2988 = vmatmul.mubr.bf16.gmra.mxu0 %v1772
      %v2989 = vpop.f32.mrf.mxu0
      %v2990 = vadd.f32 %v2701, %v2989
      %v2991 = vpop.f32.mrf.mxu0
      %v2992 = vpop.f32.mrf.mxu0
      %v2993 = vadd.f32 %v2704, %v2992
      %v2994 = vpop.f32.mrf.mxu0
      %2995 = vmatprep.mubr.bf16.mxu0 %v1781
      %2996 = vmatmul.mubr.bf16.gmra.mxu0 %v1780
      %v2997 = vpop.f32.mrf.mxu0
      %v2998 = vadd.f32 %v2709, %v2997
      %v2999 = vpop.f32.mrf.mxu0
      %v3000 = vpop.f32.mrf.mxu0
      %v3001 = vadd.f32 %v2712, %v3000
      %v3002 = vpop.f32.mrf.mxu0
      %3003 = vdwg.mxu0
      %3004 = vmatprep.subr.bf16.mxu0 0
      %3005 = vmatpush1.bf16.msra.mxu0 %v2337
      %3006 = vmatprep.subr.bf16.mxu0 0
      %3007 = vmatpush1.bf16.msra.mxu0 %v2336
      %3008 = vmatprep.subr.bf16.mxu0 0
      %3009 = vmatpush1.bf16.msra.mxu0 %v2335
      %3010 = vmatprep.subr.bf16.mxu0 0
      %3011 = vmatpush1.bf16.msra.mxu0 %v2334
      %3012 = vmatprep.subr.bf16.mxu0 0
      %3013 = vmatpush1.bf16.msra.mxu0 %v2333
      %3014 = vmatprep.subr.bf16.mxu0 0
      %3015 = vmatpush1.bf16.msra.mxu0 %v2332
      %3016 = vmatprep.subr.bf16.mxu0 0
      %3017 = vmatpush1.bf16.msra.mxu0 %v2331
      %3018 = vmatprep.subr.bf16.mxu0 0
      %3019 = vmatpush1.bf16.msra.mxu0 %v2330
      %3020 = vmatprep.subr.bf16.mxu0 0
      %3021 = vmatpush2.bf16.msra.mxu0 %v2345
      %3022 = vmatprep.subr.bf16.mxu0 0
      %3023 = vmatpush2.bf16.msra.mxu0 %v2344
      %3024 = vmatprep.subr.bf16.mxu0 0
      %3025 = vmatpush2.bf16.msra.mxu0 %v2343
      %3026 = vmatprep.subr.bf16.mxu0 0
      %3027 = vmatpush2.bf16.msra.mxu0 %v2342
      %3028 = vmatprep.subr.bf16.mxu0 0
      %3029 = vmatpush2.bf16.msra.mxu0 %v2341
      %3030 = vmatprep.subr.bf16.mxu0 0
      %3031 = vmatpush2.bf16.msra.mxu0 %v2340
      %3032 = vmatprep.subr.bf16.mxu0 0
      %3033 = vmatpush2.bf16.msra.mxu0 %v2339
      %3034 = vmatprep.subr.bf16.mxu0 0
      %3035 = vmatpush2.bf16.msra.mxu0 %v2338
      %3036 = vmatprep.mubr.bf16.mxu0 %v1535
      %3037 = vmatmul.mubr.bf16.gmra.mxu0 %v1534
      %v3038 = vpop.f32.mrf.mxu0
      %v3039 = vadd.f32 %v2750, %v3038
      %v3040 = vpop.f32.mrf.mxu0
      %v3041 = vpop.f32.mrf.mxu0
      %v3042 = vadd.f32 %v2753, %v3041
      %v3043 = vpop.f32.mrf.mxu0
      %3044 = vmatprep.mubr.bf16.mxu0 %v1543
      %3045 = vmatmul.mubr.bf16.gmra.mxu0 %v1542
      %v3046 = vpop.f32.mrf.mxu0
      %v3047 = vadd.f32 %v2758, %v3046
      %v3048 = vpop.f32.mrf.mxu0
      %v3049 = vpop.f32.mrf.mxu0
      %v3050 = vadd.f32 %v2761, %v3049
      %v3051 = vpop.f32.mrf.mxu0
      %3052 = vmatprep.mubr.bf16.mxu0 %v1551
      %3053 = vmatmul.mubr.bf16.gmra.mxu0 %v1550
      %v3054 = vpop.f32.mrf.mxu0
      %v3055 = vadd.f32 %v2766, %v3054
      %v3056 = vpop.f32.mrf.mxu0
      %v3057 = vpop.f32.mrf.mxu0
      %v3058 = vadd.f32 %v2769, %v3057
      %v3059 = vpop.f32.mrf.mxu0
      %3060 = vmatprep.mubr.bf16.mxu0 %v1559
      %3061 = vmatmul.mubr.bf16.gmra.mxu0 %v1558
      %v3062 = vpop.f32.mrf.mxu0
      %v3063 = vadd.f32 %v2774, %v3062
      %v3064 = vpop.f32.mrf.mxu0
      %v3065 = vpop.f32.mrf.mxu0
      %v3066 = vadd.f32 %v2777, %v3065
      %v3067 = vpop.f32.mrf.mxu0
      %3068 = vmatprep.mubr.bf16.mxu0 %v1567
      %3069 = vmatmul.mubr.bf16.gmra.mxu0 %v1566
      %v3070 = vpop.f32.mrf.mxu0
      %v3071 = vadd.f32 %v2782, %v3070
      %v3072 = vpop.f32.mrf.mxu0
      %v3073 = vpop.f32.mrf.mxu0
      %v3074 = vadd.f32 %v2785, %v3073
      %v3075 = vpop.f32.mrf.mxu0
      %3076 = vmatprep.mubr.bf16.mxu0 %v1575
      %3077 = vmatmul.mubr.bf16.gmra.mxu0 %v1574
      %v3078 = vpop.f32.mrf.mxu0
      %v3079 = vadd.f32 %v2790, %v3078
      %v3080 = vpop.f32.mrf.mxu0
      %v3081 = vpop.f32.mrf.mxu0
      %v3082 = vadd.f32 %v2793, %v3081
      %v3083 = vpop.f32.mrf.mxu0
      %3084 = vmatprep.mubr.bf16.mxu0 %v1583
      %3085 = vmatmul.mubr.bf16.gmra.mxu0 %v1582
      %v3086 = vpop.f32.mrf.mxu0
      %v3087 = vadd.f32 %v2798, %v3086
      %v3088 = vpop.f32.mrf.mxu0
      %v3089 = vpop.f32.mrf.mxu0
      %v3090 = vadd.f32 %v2801, %v3089
      %v3091 = vpop.f32.mrf.mxu0
      %3092 = vmatprep.mubr.bf16.mxu0 %v1591
      %3093 = vmatmul.mubr.bf16.gmra.mxu0 %v1590
      %v3094 = vpop.f32.mrf.mxu0
      %v3095 = vadd.f32 %v2806, %v3094
      %v3096 = vpop.f32.mrf.mxu0
      %v3097 = vpop.f32.mrf.mxu0
      %v3098 = vadd.f32 %v2809, %v3097
      %v3099 = vpop.f32.mrf.mxu0
      %3100 = vmatprep.mubr.bf16.mxu0 %v1599
      %3101 = vmatmul.mubr.bf16.gmra.mxu0 %v1598
      %v3102 = vpop.f32.mrf.mxu0
      %v3103 = vadd.f32 %v2814, %v3102
      %v3104 = vpop.f32.mrf.mxu0
      %v3105 = vpop.f32.mrf.mxu0
      %v3106 = vadd.f32 %v2817, %v3105
      %v3107 = vpop.f32.mrf.mxu0
      %3108 = vmatprep.mubr.bf16.mxu0 %v1607
      %3109 = vmatmul.mubr.bf16.gmra.mxu0 %v1606
      %v3110 = vpop.f32.mrf.mxu0
      %v3111 = vadd.f32 %v2822, %v3110
      %v3112 = vpop.f32.mrf.mxu0
      %v3113 = vpop.f32.mrf.mxu0
      %v3114 = vadd.f32 %v2825, %v3113
      %v3115 = vpop.f32.mrf.mxu0
      %3116 = vmatprep.mubr.bf16.mxu0 %v1615
      %3117 = vmatmul.mubr.bf16.gmra.mxu0 %v1614
      %v3118 = vpop.f32.mrf.mxu0
      %v3119 = vadd.f32 %v2830, %v3118
      %v3120 = vpop.f32.mrf.mxu0
      %v3121 = vpop.f32.mrf.mxu0
      %v3122 = vadd.f32 %v2833, %v3121
      %v3123 = vpop.f32.mrf.mxu0
      %3124 = vmatprep.mubr.bf16.mxu0 %v1623
      %3125 = vmatmul.mubr.bf16.gmra.mxu0 %v1622
      %v3126 = vpop.f32.mrf.mxu0
      %v3127 = vadd.f32 %v2838, %v3126
      %v3128 = vpop.f32.mrf.mxu0
      %v3129 = vpop.f32.mrf.mxu0
      %v3130 = vadd.f32 %v2841, %v3129
      %v3131 = vpop.f32.mrf.mxu0
      %3132 = vmatprep.mubr.bf16.mxu0 %v1631
      %3133 = vmatmul.mubr.bf16.gmra.mxu0 %v1630
      %v3134 = vpop.f32.mrf.mxu0
      %v3135 = vadd.f32 %v2846, %v3134
      %v3136 = vpop.f32.mrf.mxu0
      %v3137 = vpop.f32.mrf.mxu0
      %v3138 = vadd.f32 %v2849, %v3137
      %v3139 = vpop.f32.mrf.mxu0
      %3140 = vmatprep.mubr.bf16.mxu0 %v1639
      %3141 = vmatmul.mubr.bf16.gmra.mxu0 %v1638
      %v3142 = vpop.f32.mrf.mxu0
      %v3143 = vadd.f32 %v2854, %v3142
      %v3144 = vpop.f32.mrf.mxu0
      %v3145 = vpop.f32.mrf.mxu0
      %v3146 = vadd.f32 %v2857, %v3145
      %v3147 = vpop.f32.mrf.mxu0
      %3148 = vmatprep.mubr.bf16.mxu0 %v1647
      %3149 = vmatmul.mubr.bf16.gmra.mxu0 %v1646
      %v3150 = vpop.f32.mrf.mxu0
      %v3151 = vadd.f32 %v2862, %v3150
      %v3152 = vpop.f32.mrf.mxu0
      %v3153 = vpop.f32.mrf.mxu0
      %v3154 = vadd.f32 %v2865, %v3153
      %v3155 = vpop.f32.mrf.mxu0
      %3156 = vmatprep.mubr.bf16.mxu0 %v1655
      %3157 = vmatmul.mubr.bf16.gmra.mxu0 %v1654
      %v3158 = vpop.f32.mrf.mxu0
      %v3159 = vadd.f32 %v2870, %v3158
      %v3160 = vpop.f32.mrf.mxu0
      %v3161 = vpop.f32.mrf.mxu0
      %v3162 = vadd.f32 %v2873, %v3161
      %v3163 = vpop.f32.mrf.mxu0
      %3164 = vmatprep.mubr.bf16.mxu0 %v1663
      %3165 = vmatmul.mubr.bf16.gmra.mxu0 %v1662
      %v3166 = vpop.f32.mrf.mxu0
      %v3167 = vadd.f32 %v2878, %v3166
      %v3168 = vpop.f32.mrf.mxu0
      %v3169 = vpop.f32.mrf.mxu0
      %v3170 = vadd.f32 %v2881, %v3169
      %v3171 = vpop.f32.mrf.mxu0
      %3172 = vmatprep.mubr.bf16.mxu0 %v1671
      %3173 = vmatmul.mubr.bf16.gmra.mxu0 %v1670
      %v3174 = vpop.f32.mrf.mxu0
      %v3175 = vadd.f32 %v2886, %v3174
      %v3176 = vpop.f32.mrf.mxu0
      %v3177 = vpop.f32.mrf.mxu0
      %v3178 = vadd.f32 %v2889, %v3177
      %v3179 = vpop.f32.mrf.mxu0
      %3180 = vmatprep.mubr.bf16.mxu0 %v1679
      %3181 = vmatmul.mubr.bf16.gmra.mxu0 %v1678
      %v3182 = vpop.f32.mrf.mxu0
      %v3183 = vadd.f32 %v2894, %v3182
      %v3184 = vpop.f32.mrf.mxu0
      %v3185 = vpop.f32.mrf.mxu0
      %v3186 = vadd.f32 %v2897, %v3185
      %v3187 = vpop.f32.mrf.mxu0
      %3188 = vmatprep.mubr.bf16.mxu0 %v1687
      %3189 = vmatmul.mubr.bf16.gmra.mxu0 %v1686
      %v3190 = vpop.f32.mrf.mxu0
      %v3191 = vadd.f32 %v2902, %v3190
      %v3192 = vpop.f32.mrf.mxu0
      %v3193 = vpop.f32.mrf.mxu0
      %v3194 = vadd.f32 %v2905, %v3193
      %v3195 = vpop.f32.mrf.mxu0
      %3196 = vmatprep.mubr.bf16.mxu0 %v1695
      %3197 = vmatmul.mubr.bf16.gmra.mxu0 %v1694
      %v3198 = vpop.f32.mrf.mxu0
      %v3199 = vadd.f32 %v2910, %v3198
      %v3200 = vpop.f32.mrf.mxu0
      %v3201 = vpop.f32.mrf.mxu0
      %v3202 = vadd.f32 %v2913, %v3201
      %v3203 = vpop.f32.mrf.mxu0
      %3204 = vmatprep.mubr.bf16.mxu0 %v1703
      %3205 = vmatmul.mubr.bf16.gmra.mxu0 %v1702
      %v3206 = vpop.f32.mrf.mxu0
      %v3207 = vadd.f32 %v2918, %v3206
      %v3208 = vpop.f32.mrf.mxu0
      %v3209 = vpop.f32.mrf.mxu0
      %v3210 = vadd.f32 %v2921, %v3209
      %v3211 = vpop.f32.mrf.mxu0
      %3212 = vmatprep.mubr.bf16.mxu0 %v1711
      %3213 = vmatmul.mubr.bf16.gmra.mxu0 %v1710
      %v3214 = vpop.f32.mrf.mxu0
      %v3215 = vadd.f32 %v2926, %v3214
      %v3216 = vpop.f32.mrf.mxu0
      %v3217 = vpop.f32.mrf.mxu0
      %v3218 = vadd.f32 %v2929, %v3217
      %v3219 = vpop.f32.mrf.mxu0
      %3220 = vmatprep.mubr.bf16.mxu0 %v1719
      %3221 = vmatmul.mubr.bf16.gmra.mxu0 %v1718
      %v3222 = vpop.f32.mrf.mxu0
      %v3223 = vadd.f32 %v2934, %v3222
      %v3224 = vpop.f32.mrf.mxu0
      %v3225 = vpop.f32.mrf.mxu0
      %v3226 = vadd.f32 %v2937, %v3225
      %v3227 = vpop.f32.mrf.mxu0
      %3228 = vmatprep.mubr.bf16.mxu0 %v1727
      %3229 = vmatmul.mubr.bf16.gmra.mxu0 %v1726
      %v3230 = vpop.f32.mrf.mxu0
      %v3231 = vadd.f32 %v2942, %v3230
      %v3232 = vpop.f32.mrf.mxu0
      %v3233 = vpop.f32.mrf.mxu0
      %v3234 = vadd.f32 %v2945, %v3233
      %v3235 = vpop.f32.mrf.mxu0
      %3236 = vmatprep.mubr.bf16.mxu0 %v1735
      %3237 = vmatmul.mubr.bf16.gmra.mxu0 %v1734
      %v3238 = vpop.f32.mrf.mxu0
      %v3239 = vadd.f32 %v2950, %v3238
      %v3240 = vpop.f32.mrf.mxu0
      %v3241 = vpop.f32.mrf.mxu0
      %v3242 = vadd.f32 %v2953, %v3241
      %v3243 = vpop.f32.mrf.mxu0
      %3244 = vmatprep.mubr.bf16.mxu0 %v1743
      %3245 = vmatmul.mubr.bf16.gmra.mxu0 %v1742
      %v3246 = vpop.f32.mrf.mxu0
      %v3247 = vadd.f32 %v2958, %v3246
      %v3248 = vpop.f32.mrf.mxu0
      %v3249 = vpop.f32.mrf.mxu0
      %v3250 = vadd.f32 %v2961, %v3249
      %v3251 = vpop.f32.mrf.mxu0
      %3252 = vmatprep.mubr.bf16.mxu0 %v1751
      %3253 = vmatmul.mubr.bf16.gmra.mxu0 %v1750
      %v3254 = vpop.f32.mrf.mxu0
      %v3255 = vadd.f32 %v2966, %v3254
      %v3256 = vpop.f32.mrf.mxu0
      %v3257 = vpop.f32.mrf.mxu0
      %v3258 = vadd.f32 %v2969, %v3257
      %v3259 = vpop.f32.mrf.mxu0
      %3260 = vmatprep.mubr.bf16.mxu0 %v1759
      %3261 = vmatmul.mubr.bf16.gmra.mxu0 %v1758
      %v3262 = vpop.f32.mrf.mxu0
      %v3263 = vadd.f32 %v2974, %v3262
      %v3264 = vpop.f32.mrf.mxu0
      %v3265 = vpop.f32.mrf.mxu0
      %v3266 = vadd.f32 %v2977, %v3265
      %v3267 = vpop.f32.mrf.mxu0
      %3268 = vmatprep.mubr.bf16.mxu0 %v1767
      %3269 = vmatmul.mubr.bf16.gmra.mxu0 %v1766
      %v3270 = vpop.f32.mrf.mxu0
      %v3271 = vadd.f32 %v2982, %v3270
      %v3272 = vpop.f32.mrf.mxu0
      %v3273 = vpop.f32.mrf.mxu0
      %v3274 = vadd.f32 %v2985, %v3273
      %v3275 = vpop.f32.mrf.mxu0
      %3276 = vmatprep.mubr.bf16.mxu0 %v1775
      %3277 = vmatmul.mubr.bf16.gmra.mxu0 %v1774
      %v3278 = vpop.f32.mrf.mxu0
      %v3279 = vadd.f32 %v2990, %v3278
      %v3280 = vpop.f32.mrf.mxu0
      %v3281 = vpop.f32.mrf.mxu0
      %v3282 = vadd.f32 %v2993, %v3281
      %v3283 = vpop.f32.mrf.mxu0
      %3284 = vmatprep.mubr.bf16.mxu0 %v1783
      %3285 = vmatmul.mubr.bf16.gmra.mxu0 %v1782
      %v3286 = vpop.f32.mrf.mxu0
      %v3287 = vadd.f32 %v2998, %v3286
      %v3288 = vpop.f32.mrf.mxu0
      %v3289 = vpop.f32.mrf.mxu0
      %v3290 = vadd.f32 %v3001, %v3289
      %v3291 = vpop.f32.mrf.mxu0
      %3292 = vdwg.mxu0
      %3293 = vmatprep.subr.bf16.mxu0 0
      %3294 = vmatpush1.bf16.msra.mxu0 %v2353
      %3295 = vmatprep.subr.bf16.mxu0 0
      %3296 = vmatpush1.bf16.msra.mxu0 %v2352
      %3297 = vmatprep.subr.bf16.mxu0 0
      %3298 = vmatpush1.bf16.msra.mxu0 %v2351
      %3299 = vmatprep.subr.bf16.mxu0 0
      %3300 = vmatpush1.bf16.msra.mxu0 %v2350
      %3301 = vmatprep.subr.bf16.mxu0 0
      %3302 = vmatpush1.bf16.msra.mxu0 %v2349
      %3303 = vmatprep.subr.bf16.mxu0 0
      %3304 = vmatpush1.bf16.msra.mxu0 %v2348
      %3305 = vmatprep.subr.bf16.mxu0 0
      %3306 = vmatpush1.bf16.msra.mxu0 %v2347
      %3307 = vmatprep.subr.bf16.mxu0 0
      %3308 = vmatpush1.bf16.msra.mxu0 %v2346
      %3309 = vmatprep.subr.bf16.mxu0 0
      %3310 = vmatpush2.bf16.msra.mxu0 %v2361
      %3311 = vmatprep.subr.bf16.mxu0 0
      %3312 = vmatpush2.bf16.msra.mxu0 %v2360
      %3313 = vmatprep.subr.bf16.mxu0 0
      %3314 = vmatpush2.bf16.msra.mxu0 %v2359
      %3315 = vmatprep.subr.bf16.mxu0 0
      %3316 = vmatpush2.bf16.msra.mxu0 %v2358
      %3317 = vmatprep.subr.bf16.mxu0 0
      %3318 = vmatpush2.bf16.msra.mxu0 %v2357
      %3319 = vmatprep.subr.bf16.mxu0 0
      %3320 = vmatpush2.bf16.msra.mxu0 %v2356
      %3321 = vmatprep.subr.bf16.mxu0 0
      %3322 = vmatpush2.bf16.msra.mxu0 %v2355
      %3323 = vmatprep.subr.bf16.mxu0 0
      %3324 = vmatpush2.bf16.msra.mxu0 %v2354
      %3325 = vmatprep.mubr.bf16.mxu0 %v1537
      %3326 = vmatmul.mubr.bf16.gmra.mxu0 %v1536
      %v3327 = vpop.f32.mrf.mxu0
      %v3328 = vadd.f32 %v3039, %v3327
      %v3329 = vpop.f32.mrf.mxu0
      %v3330 = vpop.f32.mrf.mxu0
      %v3331 = vadd.f32 %v3042, %v3330
      %v3332 = vpop.f32.mrf.mxu0
      %3333 = vmatprep.mubr.bf16.mxu0 %v1545
      %3334 = vmatmul.mubr.bf16.gmra.mxu0 %v1544
      %v3335 = vpop.f32.mrf.mxu0
      %v3336 = vadd.f32 %v3047, %v3335
      %v3337 = vpop.f32.mrf.mxu0
      %v3338 = vpop.f32.mrf.mxu0
      %v3339 = vadd.f32 %v3050, %v3338
      %v3340 = vpop.f32.mrf.mxu0
      %3341 = vmatprep.mubr.bf16.mxu0 %v1553
      %3342 = vmatmul.mubr.bf16.gmra.mxu0 %v1552
      %v3343 = vpop.f32.mrf.mxu0
      %v3344 = vadd.f32 %v3055, %v3343
      %v3345 = vpop.f32.mrf.mxu0
      %v3346 = vpop.f32.mrf.mxu0
      %v3347 = vadd.f32 %v3058, %v3346
      %v3348 = vpop.f32.mrf.mxu0
      %3349 = vmatprep.mubr.bf16.mxu0 %v1561
      %3350 = vmatmul.mubr.bf16.gmra.mxu0 %v1560
      %v3351 = vpop.f32.mrf.mxu0
      %v3352 = vadd.f32 %v3063, %v3351
      %v3353 = vpop.f32.mrf.mxu0
      %v3354 = vpop.f32.mrf.mxu0
      %v3355 = vadd.f32 %v3066, %v3354
      %v3356 = vpop.f32.mrf.mxu0
      %3357 = vmatprep.mubr.bf16.mxu0 %v1569
      %3358 = vmatmul.mubr.bf16.gmra.mxu0 %v1568
      %v3359 = vpop.f32.mrf.mxu0
      %v3360 = vadd.f32 %v3071, %v3359
      %v3361 = vpop.f32.mrf.mxu0
      %v3362 = vpop.f32.mrf.mxu0
      %v3363 = vadd.f32 %v3074, %v3362
      %v3364 = vpop.f32.mrf.mxu0
      %3365 = vmatprep.mubr.bf16.mxu0 %v1577
      %3366 = vmatmul.mubr.bf16.gmra.mxu0 %v1576
      %v3367 = vpop.f32.mrf.mxu0
      %v3368 = vadd.f32 %v3079, %v3367
      %v3369 = vpop.f32.mrf.mxu0
      %v3370 = vpop.f32.mrf.mxu0
      %v3371 = vadd.f32 %v3082, %v3370
      %v3372 = vpop.f32.mrf.mxu0
      %3373 = vmatprep.mubr.bf16.mxu0 %v1585
      %3374 = vmatmul.mubr.bf16.gmra.mxu0 %v1584
      %v3375 = vpop.f32.mrf.mxu0
      %v3376 = vadd.f32 %v3087, %v3375
      %v3377 = vpop.f32.mrf.mxu0
      %v3378 = vpop.f32.mrf.mxu0
      %v3379 = vadd.f32 %v3090, %v3378
      %v3380 = vpop.f32.mrf.mxu0
      %3381 = vmatprep.mubr.bf16.mxu0 %v1593
      %3382 = vmatmul.mubr.bf16.gmra.mxu0 %v1592
      %v3383 = vpop.f32.mrf.mxu0
      %v3384 = vadd.f32 %v3095, %v3383
      %v3385 = vpop.f32.mrf.mxu0
      %v3386 = vpop.f32.mrf.mxu0
      %v3387 = vadd.f32 %v3098, %v3386
      %v3388 = vpop.f32.mrf.mxu0
      %3389 = vmatprep.mubr.bf16.mxu0 %v1601
      %3390 = vmatmul.mubr.bf16.gmra.mxu0 %v1600
      %v3391 = vpop.f32.mrf.mxu0
      %v3392 = vadd.f32 %v3103, %v3391
      %v3393 = vpop.f32.mrf.mxu0
      %v3394 = vpop.f32.mrf.mxu0
      %v3395 = vadd.f32 %v3106, %v3394
      %v3396 = vpop.f32.mrf.mxu0
      %3397 = vmatprep.mubr.bf16.mxu0 %v1609
      %3398 = vmatmul.mubr.bf16.gmra.mxu0 %v1608
      %v3399 = vpop.f32.mrf.mxu0
      %v3400 = vadd.f32 %v3111, %v3399
      %v3401 = vpop.f32.mrf.mxu0
      %v3402 = vpop.f32.mrf.mxu0
      %v3403 = vadd.f32 %v3114, %v3402
      %v3404 = vpop.f32.mrf.mxu0
      %3405 = vmatprep.mubr.bf16.mxu0 %v1617
      %3406 = vmatmul.mubr.bf16.gmra.mxu0 %v1616
      %v3407 = vpop.f32.mrf.mxu0
      %v3408 = vadd.f32 %v3119, %v3407
      %v3409 = vpop.f32.mrf.mxu0
      %v3410 = vpop.f32.mrf.mxu0
      %v3411 = vadd.f32 %v3122, %v3410
      %v3412 = vpop.f32.mrf.mxu0
      %3413 = vmatprep.mubr.bf16.mxu0 %v1625
      %3414 = vmatmul.mubr.bf16.gmra.mxu0 %v1624
      %v3415 = vpop.f32.mrf.mxu0
      %v3416 = vadd.f32 %v3127, %v3415
      %v3417 = vpop.f32.mrf.mxu0
      %v3418 = vpop.f32.mrf.mxu0
      %v3419 = vadd.f32 %v3130, %v3418
      %v3420 = vpop.f32.mrf.mxu0
      %3421 = vmatprep.mubr.bf16.mxu0 %v1633
      %3422 = vmatmul.mubr.bf16.gmra.mxu0 %v1632
      %v3423 = vpop.f32.mrf.mxu0
      %v3424 = vadd.f32 %v3135, %v3423
      %v3425 = vpop.f32.mrf.mxu0
      %v3426 = vpop.f32.mrf.mxu0
      %v3427 = vadd.f32 %v3138, %v3426
      %v3428 = vpop.f32.mrf.mxu0
      %3429 = vmatprep.mubr.bf16.mxu0 %v1641
      %3430 = vmatmul.mubr.bf16.gmra.mxu0 %v1640
      %v3431 = vpop.f32.mrf.mxu0
      %v3432 = vadd.f32 %v3143, %v3431
      %v3433 = vpop.f32.mrf.mxu0
      %v3434 = vpop.f32.mrf.mxu0
      %v3435 = vadd.f32 %v3146, %v3434
      %v3436 = vpop.f32.mrf.mxu0
      %3437 = vmatprep.mubr.bf16.mxu0 %v1649
      %3438 = vmatmul.mubr.bf16.gmra.mxu0 %v1648
      %v3439 = vpop.f32.mrf.mxu0
      %v3440 = vadd.f32 %v3151, %v3439
      %v3441 = vpop.f32.mrf.mxu0
      %v3442 = vpop.f32.mrf.mxu0
      %v3443 = vadd.f32 %v3154, %v3442
      %v3444 = vpop.f32.mrf.mxu0
      %3445 = vmatprep.mubr.bf16.mxu0 %v1657
      %3446 = vmatmul.mubr.bf16.gmra.mxu0 %v1656
      %v3447 = vpop.f32.mrf.mxu0
      %v3448 = vadd.f32 %v3159, %v3447
      %v3449 = vpop.f32.mrf.mxu0
      %v3450 = vpop.f32.mrf.mxu0
      %v3451 = vadd.f32 %v3162, %v3450
      %v3452 = vpop.f32.mrf.mxu0
      %3453 = vmatprep.mubr.bf16.mxu0 %v1665
      %3454 = vmatmul.mubr.bf16.gmra.mxu0 %v1664
      %v3455 = vpop.f32.mrf.mxu0
      %v3456 = vadd.f32 %v3167, %v3455
      %v3457 = vpop.f32.mrf.mxu0
      %v3458 = vpop.f32.mrf.mxu0
      %v3459 = vadd.f32 %v3170, %v3458
      %v3460 = vpop.f32.mrf.mxu0
      %3461 = vmatprep.mubr.bf16.mxu0 %v1673
      %3462 = vmatmul.mubr.bf16.gmra.mxu0 %v1672
      %v3463 = vpop.f32.mrf.mxu0
      %v3464 = vadd.f32 %v3175, %v3463
      %v3465 = vpop.f32.mrf.mxu0
      %v3466 = vpop.f32.mrf.mxu0
      %v3467 = vadd.f32 %v3178, %v3466
      %v3468 = vpop.f32.mrf.mxu0
      %3469 = vmatprep.mubr.bf16.mxu0 %v1681
      %3470 = vmatmul.mubr.bf16.gmra.mxu0 %v1680
      %v3471 = vpop.f32.mrf.mxu0
      %v3472 = vadd.f32 %v3183, %v3471
      %v3473 = vpop.f32.mrf.mxu0
      %v3474 = vpop.f32.mrf.mxu0
      %v3475 = vadd.f32 %v3186, %v3474
      %v3476 = vpop.f32.mrf.mxu0
      %3477 = vmatprep.mubr.bf16.mxu0 %v1689
      %3478 = vmatmul.mubr.bf16.gmra.mxu0 %v1688
      %v3479 = vpop.f32.mrf.mxu0
      %v3480 = vadd.f32 %v3191, %v3479
      %v3481 = vpop.f32.mrf.mxu0
      %v3482 = vpop.f32.mrf.mxu0
      %v3483 = vadd.f32 %v3194, %v3482
      %v3484 = vpop.f32.mrf.mxu0
      %3485 = vmatprep.mubr.bf16.mxu0 %v1697
      %3486 = vmatmul.mubr.bf16.gmra.mxu0 %v1696
      %v3487 = vpop.f32.mrf.mxu0
      %v3488 = vadd.f32 %v3199, %v3487
      %v3489 = vpop.f32.mrf.mxu0
      %v3490 = vpop.f32.mrf.mxu0
      %v3491 = vadd.f32 %v3202, %v3490
      %v3492 = vpop.f32.mrf.mxu0
      %3493 = vmatprep.mubr.bf16.mxu0 %v1705
      %3494 = vmatmul.mubr.bf16.gmra.mxu0 %v1704
      %v3495 = vpop.f32.mrf.mxu0
      %v3496 = vadd.f32 %v3207, %v3495
      %v3497 = vpop.f32.mrf.mxu0
      %v3498 = vpop.f32.mrf.mxu0
      %v3499 = vadd.f32 %v3210, %v3498
      %v3500 = vpop.f32.mrf.mxu0
      %3501 = vmatprep.mubr.bf16.mxu0 %v1713
      %3502 = vmatmul.mubr.bf16.gmra.mxu0 %v1712
      %v3503 = vpop.f32.mrf.mxu0
      %v3504 = vadd.f32 %v3215, %v3503
      %v3505 = vpop.f32.mrf.mxu0
      %v3506 = vpop.f32.mrf.mxu0
      %v3507 = vadd.f32 %v3218, %v3506
      %v3508 = vpop.f32.mrf.mxu0
      %3509 = vmatprep.mubr.bf16.mxu0 %v1721
      %3510 = vmatmul.mubr.bf16.gmra.mxu0 %v1720
      %v3511 = vpop.f32.mrf.mxu0
      %v3512 = vadd.f32 %v3223, %v3511
      %v3513 = vpop.f32.mrf.mxu0
      %v3514 = vpop.f32.mrf.mxu0
      %v3515 = vadd.f32 %v3226, %v3514
      %v3516 = vpop.f32.mrf.mxu0
      %3517 = vmatprep.mubr.bf16.mxu0 %v1729
      %3518 = vmatmul.mubr.bf16.gmra.mxu0 %v1728
      %v3519 = vpop.f32.mrf.mxu0
      %v3520 = vadd.f32 %v3231, %v3519
      %v3521 = vpop.f32.mrf.mxu0
      %v3522 = vpop.f32.mrf.mxu0
      %v3523 = vadd.f32 %v3234, %v3522
      %v3524 = vpop.f32.mrf.mxu0
      %3525 = vmatprep.mubr.bf16.mxu0 %v1737
      %3526 = vmatmul.mubr.bf16.gmra.mxu0 %v1736
      %v3527 = vpop.f32.mrf.mxu0
      %v3528 = vadd.f32 %v3239, %v3527
      %v3529 = vpop.f32.mrf.mxu0
      %v3530 = vpop.f32.mrf.mxu0
      %v3531 = vadd.f32 %v3242, %v3530
      %v3532 = vpop.f32.mrf.mxu0
      %3533 = vmatprep.mubr.bf16.mxu0 %v1745
      %3534 = vmatmul.mubr.bf16.gmra.mxu0 %v1744
      %v3535 = vpop.f32.mrf.mxu0
      %v3536 = vadd.f32 %v3247, %v3535
      %v3537 = vpop.f32.mrf.mxu0
      %v3538 = vpop.f32.mrf.mxu0
      %v3539 = vadd.f32 %v3250, %v3538
      %v3540 = vpop.f32.mrf.mxu0
      %3541 = vmatprep.mubr.bf16.mxu0 %v1753
      %3542 = vmatmul.mubr.bf16.gmra.mxu0 %v1752
      %v3543 = vpop.f32.mrf.mxu0
      %v3544 = vadd.f32 %v3255, %v3543
      %v3545 = vpop.f32.mrf.mxu0
      %v3546 = vpop.f32.mrf.mxu0
      %v3547 = vadd.f32 %v3258, %v3546
      %v3548 = vpop.f32.mrf.mxu0
      %3549 = vmatprep.mubr.bf16.mxu0 %v1761
      %3550 = vmatmul.mubr.bf16.gmra.mxu0 %v1760
      %v3551 = vpop.f32.mrf.mxu0
      %v3552 = vadd.f32 %v3263, %v3551
      %v3553 = vpop.f32.mrf.mxu0
      %v3554 = vpop.f32.mrf.mxu0
      %v3555 = vadd.f32 %v3266, %v3554
      %v3556 = vpop.f32.mrf.mxu0
      %3557 = vmatprep.mubr.bf16.mxu0 %v1769
      %3558 = vmatmul.mubr.bf16.gmra.mxu0 %v1768
      %v3559 = vpop.f32.mrf.mxu0
      %v3560 = vadd.f32 %v3271, %v3559
      %v3561 = vpop.f32.mrf.mxu0
      %v3562 = vpop.f32.mrf.mxu0
      %v3563 = vadd.f32 %v3274, %v3562
      %v3564 = vpop.f32.mrf.mxu0
      %3565 = vmatprep.mubr.bf16.mxu0 %v1777
      %3566 = vmatmul.mubr.bf16.gmra.mxu0 %v1776
      %v3567 = vpop.f32.mrf.mxu0
      %v3568 = vadd.f32 %v3279, %v3567
      %v3569 = vpop.f32.mrf.mxu0
      %v3570 = vpop.f32.mrf.mxu0
      %v3571 = vadd.f32 %v3282, %v3570
      %v3572 = vpop.f32.mrf.mxu0
      %3573 = vmatprep.mubr.bf16.mxu0 %v1785
      %3574 = vmatmul.mubr.bf16.gmra.mxu0 %v1784
      %v3575 = vpop.f32.mrf.mxu0
      %v3576 = vadd.f32 %v3287, %v3575
      %v3577 = vpop.f32.mrf.mxu0
      %v3578 = vpop.f32.mrf.mxu0
      %v3579 = vadd.f32 %v3290, %v3578
      %v3580 = vpop.f32.mrf.mxu0
      %3581 = vdwg.mxu0
      %v3582 = vadd.f32 %v442, %v3328
      %v3583 = vadd.f32 %v443, %v3331
      %v3584 = vadd.f32 %v444, %v3336
      %v3585 = vadd.f32 %v445, %v3339
      %v3586 = vadd.f32 %v446, %v3344
      %v3587 = vadd.f32 %v447, %v3347
      %v3588 = vadd.f32 %v448, %v3352
      %v3589 = vadd.f32 %v449, %v3355
      %v3590 = vadd.f32 %v450, %v3360
      %v3591 = vadd.f32 %v451, %v3363
      %v3592 = vadd.f32 %v452, %v3368
      %v3593 = vadd.f32 %v453, %v3371
      %v3594 = vadd.f32 %v454, %v3376
      %v3595 = vadd.f32 %v455, %v3379
      %v3596 = vadd.f32 %v456, %v3384
      %v3597 = vadd.f32 %v457, %v3387
      %v3598 = vadd.f32 %v458, %v3392
      %v3599 = vadd.f32 %v459, %v3395
      %v3600 = vadd.f32 %v460, %v3400
      %v3601 = vadd.f32 %v461, %v3403
      %v3602 = vadd.f32 %v462, %v3408
      %v3603 = vadd.f32 %v463, %v3411
      %v3604 = vadd.f32 %v464, %v3416
      %v3605 = vadd.f32 %v465, %v3419
      %v3606 = vadd.f32 %v466, %v3424
      %v3607 = vadd.f32 %v467, %v3427
      %v3608 = vadd.f32 %v468, %v3432
      %v3609 = vadd.f32 %v469, %v3435
      %v3610 = vadd.f32 %v470, %v3440
      %v3611 = vadd.f32 %v471, %v3443
      %v3612 = vadd.f32 %v472, %v3448
      %v3613 = vadd.f32 %v473, %v3451
      %v3614 = vadd.f32 %v474, %v3456
      %v3615 = vadd.f32 %v475, %v3459
      %v3616 = vadd.f32 %v476, %v3464
      %v3617 = vadd.f32 %v477, %v3467
      %v3618 = vadd.f32 %v478, %v3472
      %v3619 = vadd.f32 %v479, %v3475
      %v3620 = vadd.f32 %v480, %v3480
      %v3621 = vadd.f32 %v481, %v3483
      %v3622 = vadd.f32 %v482, %v3488
      %v3623 = vadd.f32 %v483, %v3491
      %v3624 = vadd.f32 %v484, %v3496
      %v3625 = vadd.f32 %v485, %v3499
      %v3626 = vadd.f32 %v486, %v3504
      %v3627 = vadd.f32 %v487, %v3507
      %v3628 = vadd.f32 %v488, %v3512
      %v3629 = vadd.f32 %v489, %v3515
      %v3630 = vadd.f32 %v490, %v3520
      %v3631 = vadd.f32 %v491, %v3523
      %v3632 = vadd.f32 %v492, %v3528
      %v3633 = vadd.f32 %v493, %v3531
      %v3634 = vadd.f32 %v494, %v3536
      %v3635 = vadd.f32 %v495, %v3539
      %v3636 = vadd.f32 %v496, %v3544
      %v3637 = vadd.f32 %v497, %v3547
      %v3638 = vadd.f32 %v498, %v3552
      %v3639 = vadd.f32 %v499, %v3555
      %v3640 = vadd.f32 %v500, %v3560
      %v3641 = vadd.f32 %v501, %v3563
      %v3642 = vadd.f32 %v502, %v3568
      %v3643 = vadd.f32 %v503, %v3571
      %v3644 = vadd.f32 %v504, %v3576
      %v3645 = vadd.f32 %v505, %v3579
      %3646 = vst [vmem:[#allocation2] sm:$0xff] %v3582
      %3647 = vst [vmem:[#allocation2 + $0x8] sm:$0xff] %v3583
      %3648 = vst [vmem:[#allocation2 + $0x10] sm:$0xff] %v3584
      %3649 = vst [vmem:[#allocation2 + $0x18] sm:$0xff] %v3585
      %3650 = vst [vmem:[#allocation2 + $0x20] sm:$0xff] %v3586
      %3651 = vst [vmem:[#allocation2 + $0x28] sm:$0xff] %v3587
      %3652 = vst [vmem:[#allocation2 + $0x30] sm:$0xff] %v3588
      %3653 = vst [vmem:[#allocation2 + $0x38] sm:$0xff] %v3589
      %3654 = vst [vmem:[#allocation2 + $0x40] sm:$0xff] %v3590
      %3655 = vst [vmem:[#allocation2 + $0x48] sm:$0xff] %v3591
      %3656 = vst [vmem:[#allocation2 + $0x50] sm:$0xff] %v3592
      %3657 = vst [vmem:[#allocation2 + $0x58] sm:$0xff] %v3593
      %3658 = vst [vmem:[#allocation2 + $0x60] sm:$0xff] %v3594
      %3659 = vst [vmem:[#allocation2 + $0x68] sm:$0xff] %v3595
      %3660 = vst [vmem:[#allocation2 + $0x70] sm:$0xff] %v3596
      %3661 = vst [vmem:[#allocation2 + $0x78] sm:$0xff] %v3597
      %3662 = vst [vmem:[#allocation2 + $0x80] sm:$0xff] %v3598
      %3663 = vst [vmem:[#allocation2 + $0x88] sm:$0xff] %v3599
      %3664 = vst [vmem:[#allocation2 + $0x90] sm:$0xff] %v3600
      %3665 = vst [vmem:[#allocation2 + $0x98] sm:$0xff] %v3601
      %3666 = vst [vmem:[#allocation2 + $0xa0] sm:$0xff] %v3602
      %3667 = vst [vmem:[#allocation2 + $0xa8] sm:$0xff] %v3603
      %3668 = vst [vmem:[#allocation2 + $0xb0] sm:$0xff] %v3604
      %3669 = vst [vmem:[#allocation2 + $0xb8] sm:$0xff] %v3605
      %3670 = vst [vmem:[#allocation2 + $0xc0] sm:$0xff] %v3606
      %3671 = vst [vmem:[#allocation2 + $0xc8] sm:$0xff] %v3607
      %3672 = vst [vmem:[#allocation2 + $0xd0] sm:$0xff] %v3608
      %3673 = vst [vmem:[#allocation2 + $0xd8] sm:$0xff] %v3609
      %3674 = vst [vmem:[#allocation2 + $0xe0] sm:$0xff] %v3610
      %3675 = vst [vmem:[#allocation2 + $0xe8] sm:$0xff] %v3611
      %3676 = vst [vmem:[#allocation2 + $0xf0] sm:$0xff] %v3612
      %3677 = vst [vmem:[#allocation2 + $0xf8] sm:$0xff] %v3613
      %3678 = vst [vmem:[#allocation2 + $0x100] sm:$0xff] %v3614
      %3679 = vst [vmem:[#allocation2 + $0x108] sm:$0xff] %v3615
      %3680 = vst [vmem:[#allocation2 + $0x110] sm:$0xff] %v3616
      %3681 = vst [vmem:[#allocation2 + $0x118] sm:$0xff] %v3617
      %3682 = vst [vmem:[#allocation2 + $0x120] sm:$0xff] %v3618
      %3683 = vst [vmem:[#allocation2 + $0x128] sm:$0xff] %v3619
      %3684 = vst [vmem:[#allocation2 + $0x130] sm:$0xff] %v3620
      %3685 = vst [vmem:[#allocation2 + $0x138] sm:$0xff] %v3621
      %3686 = vst [vmem:[#allocation2 + $0x140] sm:$0xff] %v3622
      %3687 = vst [vmem:[#allocation2 + $0x148] sm:$0xff] %v3623
      %3688 = vst [vmem:[#allocation2 + $0x150] sm:$0xff] %v3624
      %3689 = vst [vmem:[#allocation2 + $0x158] sm:$0xff] %v3625
      %3690 = vst [vmem:[#allocation2 + $0x160] sm:$0xff] %v3626
      %3691 = vst [vmem:[#allocation2 + $0x168] sm:$0xff] %v3627
      %3692 = vst [vmem:[#allocation2 + $0x170] sm:$0xff] %v3628
      %3693 = vst [vmem:[#allocation2 + $0x178] sm:$0xff] %v3629
      %3694 = vst [vmem:[#allocation2 + $0x180] sm:$0xff] %v3630
      %3695 = vst [vmem:[#allocation2 + $0x188] sm:$0xff] %v3631
      %3696 = vst [vmem:[#allocation2 + $0x190] sm:$0xff] %v3632
      %3697 = vst [vmem:[#allocation2 + $0x198] sm:$0xff] %v3633
      %3698 = vst [vmem:[#allocation2 + $0x1a0] sm:$0xff] %v3634
      %3699 = vst [vmem:[#allocation2 + $0x1a8] sm:$0xff] %v3635
      %3700 = vst [vmem:[#allocation2 + $0x1b0] sm:$0xff] %v3636
      %3701 = vst [vmem:[#allocation2 + $0x1b8] sm:$0xff] %v3637
      %3702 = vst [vmem:[#allocation2 + $0x1c0] sm:$0xff] %v3638
      %3703 = vst [vmem:[#allocation2 + $0x1c8] sm:$0xff] %v3639
      %3704 = vst [vmem:[#allocation2 + $0x1d0] sm:$0xff] %v3640
      %3705 = vst [vmem:[#allocation2 + $0x1d8] sm:$0xff] %v3641
      %3706 = vst [vmem:[#allocation2 + $0x1e0] sm:$0xff] %v3642
      %3707 = vst [vmem:[#allocation2 + $0x1e8] sm:$0xff] %v3643
      %3708 = vst [vmem:[#allocation2 + $0x1f0] sm:$0xff] %v3644
      %3709 = vst [vmem:[#allocation2 + $0x1f8] sm:$0xff] %v3645
      // Predicated region
      $region41: #{backbone_forward.2} parent=35 // pred_check
        %p3710 = pneg %p233
      $region42: #{backbone_forward.2} parent=35 // pred_check_branch
        %3712 = sbr.rel (%p3710) target = $region44
      $region43: #{backbone_forward.2} parent=35 // pred_region
        %v3713 = vld [vmem:[#allocation2] sm:$0xff]
        %v3714 = vld [vmem:[#allocation2 + $0x8] sm:$0xff]
        %v3715 = vld [vmem:[#allocation2 + $0x10] sm:$0xff]
        %v3716 = vld [vmem:[#allocation2 + $0x18] sm:$0xff]
        %v3717 = vld [vmem:[#allocation2 + $0x20] sm:$0xff]
        %v3718 = vld [vmem:[#allocation2 + $0x28] sm:$0xff]
        %v3719 = vld [vmem:[#allocation2 + $0x30] sm:$0xff]
        %v3720 = vld [vmem:[#allocation2 + $0x38] sm:$0xff]
        %v3721 = vld [vmem:[#allocation2 + $0x40] sm:$0xff]
        %v3722 = vld [vmem:[#allocation2 + $0x48] sm:$0xff]
        %v3723 = vld [vmem:[#allocation2 + $0x50] sm:$0xff]
        %v3724 = vld [vmem:[#allocation2 + $0x58] sm:$0xff]
        %v3725 = vld [vmem:[#allocation2 + $0x60] sm:$0xff]
        %v3726 = vld [vmem:[#allocation2 + $0x68] sm:$0xff]
        %v3727 = vld [vmem:[#allocation2 + $0x70] sm:$0xff]
        %v3728 = vld [vmem:[#allocation2 + $0x78] sm:$0xff]
        %v3729 = vld [vmem:[#allocation2 + $0x80] sm:$0xff]
        %v3730 = vld [vmem:[#allocation2 + $0x88] sm:$0xff]
        %v3731 = vld [vmem:[#allocation2 + $0x90] sm:$0xff]
        %v3732 = vld [vmem:[#allocation2 + $0x98] sm:$0xff]
        %v3733 = vld [vmem:[#allocation2 + $0xa0] sm:$0xff]
        %v3734 = vld [vmem:[#allocation2 + $0xa8] sm:$0xff]
        %v3735 = vld [vmem:[#allocation2 + $0xb0] sm:$0xff]
        %v3736 = vld [vmem:[#allocation2 + $0xb8] sm:$0xff]
        %v3737 = vld [vmem:[#allocation2 + $0xc0] sm:$0xff]
        %v3738 = vld [vmem:[#allocation2 + $0xc8] sm:$0xff]
        %v3739 = vld [vmem:[#allocation2 + $0xd0] sm:$0xff]
        %v3740 = vld [vmem:[#allocation2 + $0xd8] sm:$0xff]
        %v3741 = vld [vmem:[#allocation2 + $0xe0] sm:$0xff]
        %v3742 = vld [vmem:[#allocation2 + $0xe8] sm:$0xff]
        %v3743 = vld [vmem:[#allocation2 + $0xf0] sm:$0xff]
        %v3744 = vld [vmem:[#allocation2 + $0xf8] sm:$0xff]
        %v3745 = vld [vmem:[#allocation2 + $0x100] sm:$0xff]
        %v3746 = vld [vmem:[#allocation2 + $0x108] sm:$0xff]
        %v3747 = vld [vmem:[#allocation2 + $0x110] sm:$0xff]
        %v3748 = vld [vmem:[#allocation2 + $0x118] sm:$0xff]
        %v3749 = vld [vmem:[#allocation2 + $0x120] sm:$0xff]
        %v3750 = vld [vmem:[#allocation2 + $0x128] sm:$0xff]
        %v3751 = vld [vmem:[#allocation2 + $0x130] sm:$0xff]
        %v3752 = vld [vmem:[#allocation2 + $0x138] sm:$0xff]
        %v3753 = vld [vmem:[#allocation2 + $0x140] sm:$0xff]
        %v3754 = vld [vmem:[#allocation2 + $0x148] sm:$0xff]
        %v3755 = vld [vmem:[#allocation2 + $0x150] sm:$0xff]
        %v3756 = vld [vmem:[#allocation2 + $0x158] sm:$0xff]
        %v3757 = vld [vmem:[#allocation2 + $0x160] sm:$0xff]
        %v3758 = vld [vmem:[#allocation2 + $0x168] sm:$0xff]
        %v3759 = vld [vmem:[#allocation2 + $0x170] sm:$0xff]
        %v3760 = vld [vmem:[#allocation2 + $0x178] sm:$0xff]
        %v3761 = vld [vmem:[#allocation2 + $0x180] sm:$0xff]
        %v3762 = vld [vmem:[#allocation2 + $0x188] sm:$0xff]
        %v3763 = vld [vmem:[#allocation2 + $0x190] sm:$0xff]
        %v3764 = vld [vmem:[#allocation2 + $0x198] sm:$0xff]
        %v3765 = vld [vmem:[#allocation2 + $0x1a0] sm:$0xff]
        %v3766 = vld [vmem:[#allocation2 + $0x1a8] sm:$0xff]
        %v3767 = vld [vmem:[#allocation2 + $0x1b0] sm:$0xff]
        %v3768 = vld [vmem:[#allocation2 + $0x1b8] sm:$0xff]
        %v3769 = vld [vmem:[#allocation2 + $0x1c0] sm:$0xff]
        %v3770 = vld [vmem:[#allocation2 + $0x1c8] sm:$0xff]
        %v3771 = vld [vmem:[#allocation2 + $0x1d0] sm:$0xff]
        %v3772 = vld [vmem:[#allocation2 + $0x1d8] sm:$0xff]
        %v3773 = vld [vmem:[#allocation2 + $0x1e0] sm:$0xff]
        %v3774 = vld [vmem:[#allocation2 + $0x1e8] sm:$0xff]
        %v3775 = vld [vmem:[#allocation2 + $0x1f0] sm:$0xff]
        %v3776 = vld [vmem:[#allocation2 + $0x1f8] sm:$0xff]
        %v3777 = vmax.f32 %v3713, 0.0
        %v3778 = vmax.f32 %v3714, 0.0
        %v3779 = vmax.f32 %v3715, 0.0
        %v3780 = vmax.f32 %v3716, 0.0
        %v3781 = vmax.f32 %v3717, 0.0
        %v3782 = vmax.f32 %v3718, 0.0
        %v3783 = vmax.f32 %v3719, 0.0
        %v3784 = vmax.f32 %v3720, 0.0
        %v3785 = vmax.f32 %v3721, 0.0
        %v3786 = vmax.f32 %v3722, 0.0
        %v3787 = vmax.f32 %v3723, 0.0
        %v3788 = vmax.f32 %v3724, 0.0
        %v3789 = vmax.f32 %v3725, 0.0
        %v3790 = vmax.f32 %v3726, 0.0
        %v3791 = vmax.f32 %v3727, 0.0
        %v3792 = vmax.f32 %v3728, 0.0
        %v3793 = vmax.f32 %v3729, 0.0
        %v3794 = vmax.f32 %v3730, 0.0
        %v3795 = vmax.f32 %v3731, 0.0
        %v3796 = vmax.f32 %v3732, 0.0
        %v3797 = vmax.f32 %v3733, 0.0
        %v3798 = vmax.f32 %v3734, 0.0
        %v3799 = vmax.f32 %v3735, 0.0
        %v3800 = vmax.f32 %v3736, 0.0
        %v3801 = vmax.f32 %v3737, 0.0
        %v3802 = vmax.f32 %v3738, 0.0
        %v3803 = vmax.f32 %v3739, 0.0
        %v3804 = vmax.f32 %v3740, 0.0
        %v3805 = vmax.f32 %v3741, 0.0
        %v3806 = vmax.f32 %v3742, 0.0
        %v3807 = vmax.f32 %v3743, 0.0
        %v3808 = vmax.f32 %v3744, 0.0
        %v3809 = vmax.f32 %v3745, 0.0
        %v3810 = vmax.f32 %v3746, 0.0
        %v3811 = vmax.f32 %v3747, 0.0
        %v3812 = vmax.f32 %v3748, 0.0
        %v3813 = vmax.f32 %v3749, 0.0
        %v3814 = vmax.f32 %v3750, 0.0
        %v3815 = vmax.f32 %v3751, 0.0
        %v3816 = vmax.f32 %v3752, 0.0
        %v3817 = vmax.f32 %v3753, 0.0
        %v3818 = vmax.f32 %v3754, 0.0
        %v3819 = vmax.f32 %v3755, 0.0
        %v3820 = vmax.f32 %v3756, 0.0
        %v3821 = vmax.f32 %v3757, 0.0
        %v3822 = vmax.f32 %v3758, 0.0
        %v3823 = vmax.f32 %v3759, 0.0
        %v3824 = vmax.f32 %v3760, 0.0
        %v3825 = vmax.f32 %v3761, 0.0
        %v3826 = vmax.f32 %v3762, 0.0
        %v3827 = vmax.f32 %v3763, 0.0
        %v3828 = vmax.f32 %v3764, 0.0
        %v3829 = vmax.f32 %v3765, 0.0
        %v3830 = vmax.f32 %v3766, 0.0
        %v3831 = vmax.f32 %v3767, 0.0
        %v3832 = vmax.f32 %v3768, 0.0
        %v3833 = vmax.f32 %v3769, 0.0
        %v3834 = vmax.f32 %v3770, 0.0
        %v3835 = vmax.f32 %v3771, 0.0
        %v3836 = vmax.f32 %v3772, 0.0
        %v3837 = vmax.f32 %v3773, 0.0
        %v3838 = vmax.f32 %v3774, 0.0
        %v3839 = vmax.f32 %v3775, 0.0
        %v3840 = vmax.f32 %v3776, 0.0
        %v3841 = vpack.c.bf16 %v3778, %v3777
        %v3842 = vpack.c.bf16 %v3780, %v3779
        %v3843 = vpack.c.bf16 %v3782, %v3781
        %v3844 = vpack.c.bf16 %v3784, %v3783
        %v3845 = vpack.c.bf16 %v3786, %v3785
        %v3846 = vpack.c.bf16 %v3788, %v3787
        %v3847 = vpack.c.bf16 %v3790, %v3789
        %v3848 = vpack.c.bf16 %v3792, %v3791
        %v3849 = vpack.c.bf16 %v3794, %v3793
        %v3850 = vpack.c.bf16 %v3796, %v3795
        %v3851 = vpack.c.bf16 %v3798, %v3797
        %v3852 = vpack.c.bf16 %v3800, %v3799
        %v3853 = vpack.c.bf16 %v3802, %v3801
        %v3854 = vpack.c.bf16 %v3804, %v3803
        %v3855 = vpack.c.bf16 %v3806, %v3805
        %v3856 = vpack.c.bf16 %v3808, %v3807
        %v3857 = vpack.c.bf16 %v3810, %v3809
        %v3858 = vpack.c.bf16 %v3812, %v3811
        %v3859 = vpack.c.bf16 %v3814, %v3813
        %v3860 = vpack.c.bf16 %v3816, %v3815
        %v3861 = vpack.c.bf16 %v3818, %v3817
        %v3862 = vpack.c.bf16 %v3820, %v3819
        %v3863 = vpack.c.bf16 %v3822, %v3821
        %v3864 = vpack.c.bf16 %v3824, %v3823
        %v3865 = vpack.c.bf16 %v3826, %v3825
        %v3866 = vpack.c.bf16 %v3828, %v3827
        %v3867 = vpack.c.bf16 %v3830, %v3829
        %v3868 = vpack.c.bf16 %v3832, %v3831
        %v3869 = vpack.c.bf16 %v3834, %v3833
        %v3870 = vpack.c.bf16 %v3836, %v3835
        %v3871 = vpack.c.bf16 %v3838, %v3837
        %v3872 = vpack.c.bf16 %v3840, %v3839
        %v3873 = vld [vmem:[%s3] sm:$0xf]
        %v3874 = vld [vmem:[%s3 + $0x4] sm:$0xf]
        %v3875 = vld [vmem:[%s3 + $0x8] sm:$0xf]
        %v3876 = vld [vmem:[%s3 + $0xc] sm:$0xf]
        %v3877 = vld [vmem:[%s3 + $0x10] sm:$0xf]
        %v3878 = vld [vmem:[%s3 + $0x14] sm:$0xf]
        %v3879 = vld [vmem:[%s3 + $0x18] sm:$0xf]
        %v3880 = vld [vmem:[%s3 + $0x1c] sm:$0xf]
        %v3881 = vld [vmem:[%s3 + $0x20] sm:$0xf]
        %v3882 = vld [vmem:[%s3 + $0x24] sm:$0xf]
        %v3883 = vld [vmem:[%s3 + $0x28] sm:$0xf]
        %v3884 = vld [vmem:[%s3 + $0x2c] sm:$0xf]
        %v3885 = vld [vmem:[%s3 + $0x30] sm:$0xf]
        %v3886 = vld [vmem:[%s3 + $0x34] sm:$0xf]
        %v3887 = vld [vmem:[%s3 + $0x38] sm:$0xf]
        %v3888 = vld [vmem:[%s3 + $0x3c] sm:$0xf]
        %v3905 = vunpack.c.l.b16 %v3873
        %v3906 = vunpack.c.l.b16 %v3874
        %v3907 = vunpack.c.l.b16 %v3875
        %v3908 = vunpack.c.l.b16 %v3876
        %v3909 = vunpack.c.l.b16 %v3877
        %v3910 = vunpack.c.l.b16 %v3878
        %v3911 = vunpack.c.l.b16 %v3879
        %v3912 = vunpack.c.l.b16 %v3880
        %v3913 = vunpack.c.l.b16 %v3881
        %v3914 = vunpack.c.l.b16 %v3882
        %v3915 = vunpack.c.l.b16 %v3883
        %v3916 = vunpack.c.l.b16 %v3884
        %v3917 = vunpack.c.l.b16 %v3885
        %v3918 = vunpack.c.l.b16 %v3886
        %v3919 = vunpack.c.l.b16 %v3887
        %v3920 = vunpack.c.l.b16 %v3888
        %v3921 = vpack.c.b16 %v3906, %v3905
        %v3922 = vpack.c.b16 %v3908, %v3907
        %v3923 = vpack.c.b16 %v3910, %v3909
        %v3924 = vpack.c.b16 %v3912, %v3911
        %v3925 = vpack.c.b16 %v3914, %v3913
        %v3926 = vpack.c.b16 %v3916, %v3915
        %v3927 = vpack.c.b16 %v3918, %v3917
        %v3928 = vpack.c.b16 %v3920, %v3919
        %3937 = vmatprep.subr.bf16.mxu0 0
        %3938 = vmatpush1.bf16.msra.mxu0 %v3928
        %3939 = vmatprep.subr.bf16.mxu0 0
        %3940 = vmatpush1.bf16.msra.mxu0 %v3927
        %3941 = vmatprep.subr.bf16.mxu0 0
        %3942 = vmatpush1.bf16.msra.mxu0 %v3926
        %3943 = vmatprep.subr.bf16.mxu0 0
        %3944 = vmatpush1.bf16.msra.mxu0 %v3925
        %3945 = vmatprep.subr.bf16.mxu0 0
        %3946 = vmatpush1.bf16.msra.mxu0 %v3924
        %3947 = vmatprep.subr.bf16.mxu0 0
        %3948 = vmatpush1.bf16.msra.mxu0 %v3923
        %3949 = vmatprep.subr.bf16.mxu0 0
        %3950 = vmatpush1.bf16.msra.mxu0 %v3922
        %3951 = vmatprep.subr.bf16.mxu0 0
        %3952 = vmatpush1.bf16.msra.mxu0 %v3921
        %3953 = vmatprep.subr.bf16.mxu0 0
        %3954 = vmatpush2.bf16.msra.mxu0 0
        %3955 = vmatprep.subr.bf16.mxu0 0
        %3956 = vmatpush2.bf16.msra.mxu0 0
        %3957 = vmatprep.subr.bf16.mxu0 0
        %3958 = vmatpush2.bf16.msra.mxu0 0
        %3959 = vmatprep.subr.bf16.mxu0 0
        %3960 = vmatpush2.bf16.msra.mxu0 0
        %3961 = vmatprep.subr.bf16.mxu0 0
        %3962 = vmatpush2.bf16.msra.mxu0 0
        %3963 = vmatprep.subr.bf16.mxu0 0
        %3964 = vmatpush2.bf16.msra.mxu0 0
        %3965 = vmatprep.subr.bf16.mxu0 0
        %3966 = vmatpush2.bf16.msra.mxu0 0
        %3967 = vmatprep.subr.bf16.mxu0 0
        %3968 = vmatpush2.bf16.msra.mxu0 0
        %3969 = vmatprep.mubr.bf16.mxu0 0
        %3970 = vmatmul.mubr.bf16.gmra.mxu0 %v3841
        %v3971 = vpop.f32.mrf.mxu0
        %v3972 = vadd.f32 0.0, %v3971
        %v3973 = vpop.f32.mrf.mxu0
        %v3974 = vpop.f32.mrf.mxu0
        %v3975 = vadd.f32 0.0, %v3974
        %v3976 = vpop.f32.mrf.mxu0
        %3977 = vmatprep.mubr.bf16.mxu0 0
        %3978 = vmatmul.mubr.bf16.gmra.mxu0 %v3842
        %v3979 = vpop.f32.mrf.mxu0
        %v3980 = vadd.f32 0.0, %v3979
        %v3981 = vpop.f32.mrf.mxu0
        %v3982 = vpop.f32.mrf.mxu0
        %v3983 = vadd.f32 0.0, %v3982
        %v3984 = vpop.f32.mrf.mxu0
        %3985 = vmatprep.mubr.bf16.mxu0 0
        %3986 = vmatmul.mubr.bf16.gmra.mxu0 %v3843
        %v3987 = vpop.f32.mrf.mxu0
        %v3988 = vadd.f32 0.0, %v3987
        %v3989 = vpop.f32.mrf.mxu0
        %v3990 = vpop.f32.mrf.mxu0
        %v3991 = vadd.f32 0.0, %v3990
        %v3992 = vpop.f32.mrf.mxu0
        %3993 = vmatprep.mubr.bf16.mxu0 0
        %3994 = vmatmul.mubr.bf16.gmra.mxu0 %v3844
        %v3995 = vpop.f32.mrf.mxu0
        %v3996 = vadd.f32 0.0, %v3995
        %v3997 = vpop.f32.mrf.mxu0
        %v3998 = vpop.f32.mrf.mxu0
        %v3999 = vadd.f32 0.0, %v3998
        %v4000 = vpop.f32.mrf.mxu0
        %4001 = vmatprep.mubr.bf16.mxu0 0
        %4002 = vmatmul.mubr.bf16.gmra.mxu0 %v3845
        %v4003 = vpop.f32.mrf.mxu0
        %v4004 = vadd.f32 0.0, %v4003
        %v4005 = vpop.f32.mrf.mxu0
        %v4006 = vpop.f32.mrf.mxu0
        %v4007 = vadd.f32 0.0, %v4006
        %v4008 = vpop.f32.mrf.mxu0
        %4009 = vmatprep.mubr.bf16.mxu0 0
        %4010 = vmatmul.mubr.bf16.gmra.mxu0 %v3846
        %v4011 = vpop.f32.mrf.mxu0
        %v4012 = vadd.f32 0.0, %v4011
        %v4013 = vpop.f32.mrf.mxu0
        %v4014 = vpop.f32.mrf.mxu0
        %v4015 = vadd.f32 0.0, %v4014
        %v4016 = vpop.f32.mrf.mxu0
        %4017 = vmatprep.mubr.bf16.mxu0 0
        %4018 = vmatmul.mubr.bf16.gmra.mxu0 %v3847
        %v4019 = vpop.f32.mrf.mxu0
        %v4020 = vadd.f32 0.0, %v4019
        %v4021 = vpop.f32.mrf.mxu0
        %v4022 = vpop.f32.mrf.mxu0
        %v4023 = vadd.f32 0.0, %v4022
        %v4024 = vpop.f32.mrf.mxu0
        %4025 = vmatprep.mubr.bf16.mxu0 0
        %4026 = vmatmul.mubr.bf16.gmra.mxu0 %v3848
        %v4027 = vpop.f32.mrf.mxu0
        %v4028 = vadd.f32 0.0, %v4027
        %v4029 = vpop.f32.mrf.mxu0
        %v4030 = vpop.f32.mrf.mxu0
        %v4031 = vadd.f32 0.0, %v4030
        %v4032 = vpop.f32.mrf.mxu0
        %4033 = vmatprep.mubr.bf16.mxu0 0
        %4034 = vmatmul.mubr.bf16.gmra.mxu0 %v3849
        %v4035 = vpop.f32.mrf.mxu0
        %v4036 = vadd.f32 0.0, %v4035
        %v4037 = vpop.f32.mrf.mxu0
        %v4038 = vpop.f32.mrf.mxu0
        %v4039 = vadd.f32 0.0, %v4038
        %v4040 = vpop.f32.mrf.mxu0
        %4041 = vmatprep.mubr.bf16.mxu0 0
        %4042 = vmatmul.mubr.bf16.gmra.mxu0 %v3850
        %v4043 = vpop.f32.mrf.mxu0
        %v4044 = vadd.f32 0.0, %v4043
        %v4045 = vpop.f32.mrf.mxu0
        %v4046 = vpop.f32.mrf.mxu0
        %v4047 = vadd.f32 0.0, %v4046
        %v4048 = vpop.f32.mrf.mxu0
        %4049 = vmatprep.mubr.bf16.mxu0 0
        %4050 = vmatmul.mubr.bf16.gmra.mxu0 %v3851
        %v4051 = vpop.f32.mrf.mxu0
        %v4052 = vadd.f32 0.0, %v4051
        %v4053 = vpop.f32.mrf.mxu0
        %v4054 = vpop.f32.mrf.mxu0
        %v4055 = vadd.f32 0.0, %v4054
        %v4056 = vpop.f32.mrf.mxu0
        %4057 = vmatprep.mubr.bf16.mxu0 0
        %4058 = vmatmul.mubr.bf16.gmra.mxu0 %v3852
        %v4059 = vpop.f32.mrf.mxu0
        %v4060 = vadd.f32 0.0, %v4059
        %v4061 = vpop.f32.mrf.mxu0
        %v4062 = vpop.f32.mrf.mxu0
        %v4063 = vadd.f32 0.0, %v4062
        %v4064 = vpop.f32.mrf.mxu0
        %4065 = vmatprep.mubr.bf16.mxu0 0
        %4066 = vmatmul.mubr.bf16.gmra.mxu0 %v3853
        %v4067 = vpop.f32.mrf.mxu0
        %v4068 = vadd.f32 0.0, %v4067
        %v4069 = vpop.f32.mrf.mxu0
        %v4070 = vpop.f32.mrf.mxu0
        %v4071 = vadd.f32 0.0, %v4070
        %v4072 = vpop.f32.mrf.mxu0
        %4073 = vmatprep.mubr.bf16.mxu0 0
        %4074 = vmatmul.mubr.bf16.gmra.mxu0 %v3854
        %v4075 = vpop.f32.mrf.mxu0
        %v4076 = vadd.f32 0.0, %v4075
        %v4077 = vpop.f32.mrf.mxu0
        %v4078 = vpop.f32.mrf.mxu0
        %v4079 = vadd.f32 0.0, %v4078
        %v4080 = vpop.f32.mrf.mxu0
        %4081 = vmatprep.mubr.bf16.mxu0 0
        %4082 = vmatmul.mubr.bf16.gmra.mxu0 %v3855
        %v4083 = vpop.f32.mrf.mxu0
        %v4084 = vadd.f32 0.0, %v4083
        %v4085 = vpop.f32.mrf.mxu0
        %v4086 = vpop.f32.mrf.mxu0
        %v4087 = vadd.f32 0.0, %v4086
        %v4088 = vpop.f32.mrf.mxu0
        %4089 = vmatprep.mubr.bf16.mxu0 0
        %4090 = vmatmul.mubr.bf16.gmra.mxu0 %v3856
        %v4091 = vpop.f32.mrf.mxu0
        %v4092 = vadd.f32 0.0, %v4091
        %v4093 = vpop.f32.mrf.mxu0
        %v4094 = vpop.f32.mrf.mxu0
        %v4095 = vadd.f32 0.0, %v4094
        %v4096 = vpop.f32.mrf.mxu0
        %4097 = vmatprep.mubr.bf16.mxu0 0
        %4098 = vmatmul.mubr.bf16.gmra.mxu0 %v3857
        %v4099 = vpop.f32.mrf.mxu0
        %v4100 = vadd.f32 0.0, %v4099
        %v4101 = vpop.f32.mrf.mxu0
        %v4102 = vpop.f32.mrf.mxu0
        %v4103 = vadd.f32 0.0, %v4102
        %v4104 = vpop.f32.mrf.mxu0
        %4105 = vmatprep.mubr.bf16.mxu0 0
        %4106 = vmatmul.mubr.bf16.gmra.mxu0 %v3858
        %v4107 = vpop.f32.mrf.mxu0
        %v4108 = vadd.f32 0.0, %v4107
        %v4109 = vpop.f32.mrf.mxu0
        %v4110 = vpop.f32.mrf.mxu0
        %v4111 = vadd.f32 0.0, %v4110
        %v4112 = vpop.f32.mrf.mxu0
        %4113 = vmatprep.mubr.bf16.mxu0 0
        %4114 = vmatmul.mubr.bf16.gmra.mxu0 %v3859
        %v4115 = vpop.f32.mrf.mxu0
        %v4116 = vadd.f32 0.0, %v4115
        %v4117 = vpop.f32.mrf.mxu0
        %v4118 = vpop.f32.mrf.mxu0
        %v4119 = vadd.f32 0.0, %v4118
        %v4120 = vpop.f32.mrf.mxu0
        %4121 = vmatprep.mubr.bf16.mxu0 0
        %4122 = vmatmul.mubr.bf16.gmra.mxu0 %v3860
        %v4123 = vpop.f32.mrf.mxu0
        %v4124 = vadd.f32 0.0, %v4123
        %v4125 = vpop.f32.mrf.mxu0
        %v4126 = vpop.f32.mrf.mxu0
        %v4127 = vadd.f32 0.0, %v4126
        %v4128 = vpop.f32.mrf.mxu0
        %4129 = vmatprep.mubr.bf16.mxu0 0
        %4130 = vmatmul.mubr.bf16.gmra.mxu0 %v3861
        %v4131 = vpop.f32.mrf.mxu0
        %v4132 = vadd.f32 0.0, %v4131
        %v4133 = vpop.f32.mrf.mxu0
        %v4134 = vpop.f32.mrf.mxu0
        %v4135 = vadd.f32 0.0, %v4134
        %v4136 = vpop.f32.mrf.mxu0
        %4137 = vmatprep.mubr.bf16.mxu0 0
        %4138 = vmatmul.mubr.bf16.gmra.mxu0 %v3862
        %v4139 = vpop.f32.mrf.mxu0
        %v4140 = vadd.f32 0.0, %v4139
        %v4141 = vpop.f32.mrf.mxu0
        %v4142 = vpop.f32.mrf.mxu0
        %v4143 = vadd.f32 0.0, %v4142
        %v4144 = vpop.f32.mrf.mxu0
        %4145 = vmatprep.mubr.bf16.mxu0 0
        %4146 = vmatmul.mubr.bf16.gmra.mxu0 %v3863
        %v4147 = vpop.f32.mrf.mxu0
        %v4148 = vadd.f32 0.0, %v4147
        %v4149 = vpop.f32.mrf.mxu0
        %v4150 = vpop.f32.mrf.mxu0
        %v4151 = vadd.f32 0.0, %v4150
        %v4152 = vpop.f32.mrf.mxu0
        %4153 = vmatprep.mubr.bf16.mxu0 0
        %4154 = vmatmul.mubr.bf16.gmra.mxu0 %v3864
        %v4155 = vpop.f32.mrf.mxu0
        %v4156 = vadd.f32 0.0, %v4155
        %v4157 = vpop.f32.mrf.mxu0
        %v4158 = vpop.f32.mrf.mxu0
        %v4159 = vadd.f32 0.0, %v4158
        %v4160 = vpop.f32.mrf.mxu0
        %4161 = vmatprep.mubr.bf16.mxu0 0
        %4162 = vmatmul.mubr.bf16.gmra.mxu0 %v3865
        %v4163 = vpop.f32.mrf.mxu0
        %v4164 = vadd.f32 0.0, %v4163
        %v4165 = vpop.f32.mrf.mxu0
        %v4166 = vpop.f32.mrf.mxu0
        %v4167 = vadd.f32 0.0, %v4166
        %v4168 = vpop.f32.mrf.mxu0
        %4169 = vmatprep.mubr.bf16.mxu0 0
        %4170 = vmatmul.mubr.bf16.gmra.mxu0 %v3866
        %v4171 = vpop.f32.mrf.mxu0
        %v4172 = vadd.f32 0.0, %v4171
        %v4173 = vpop.f32.mrf.mxu0
        %v4174 = vpop.f32.mrf.mxu0
        %v4175 = vadd.f32 0.0, %v4174
        %v4176 = vpop.f32.mrf.mxu0
        %4177 = vmatprep.mubr.bf16.mxu0 0
        %4178 = vmatmul.mubr.bf16.gmra.mxu0 %v3867
        %v4179 = vpop.f32.mrf.mxu0
        %v4180 = vadd.f32 0.0, %v4179
        %v4181 = vpop.f32.mrf.mxu0
        %v4182 = vpop.f32.mrf.mxu0
        %v4183 = vadd.f32 0.0, %v4182
        %v4184 = vpop.f32.mrf.mxu0
        %4185 = vmatprep.mubr.bf16.mxu0 0
        %4186 = vmatmul.mubr.bf16.gmra.mxu0 %v3868
        %v4187 = vpop.f32.mrf.mxu0
        %v4188 = vadd.f32 0.0, %v4187
        %v4189 = vpop.f32.mrf.mxu0
        %v4190 = vpop.f32.mrf.mxu0
        %v4191 = vadd.f32 0.0, %v4190
        %v4192 = vpop.f32.mrf.mxu0
        %4193 = vmatprep.mubr.bf16.mxu0 0
        %4194 = vmatmul.mubr.bf16.gmra.mxu0 %v3869
        %v4195 = vpop.f32.mrf.mxu0
        %v4196 = vadd.f32 0.0, %v4195
        %v4197 = vpop.f32.mrf.mxu0
        %v4198 = vpop.f32.mrf.mxu0
        %v4199 = vadd.f32 0.0, %v4198
        %v4200 = vpop.f32.mrf.mxu0
        %4201 = vmatprep.mubr.bf16.mxu0 0
        %4202 = vmatmul.mubr.bf16.gmra.mxu0 %v3870
        %v4203 = vpop.f32.mrf.mxu0
        %v4204 = vadd.f32 0.0, %v4203
        %v4205 = vpop.f32.mrf.mxu0
        %v4206 = vpop.f32.mrf.mxu0
        %v4207 = vadd.f32 0.0, %v4206
        %v4208 = vpop.f32.mrf.mxu0
        %4209 = vmatprep.mubr.bf16.mxu0 0
        %4210 = vmatmul.mubr.bf16.gmra.mxu0 %v3871
        %v4211 = vpop.f32.mrf.mxu0
        %v4212 = vadd.f32 0.0, %v4211
        %v4213 = vpop.f32.mrf.mxu0
        %v4214 = vpop.f32.mrf.mxu0
        %v4215 = vadd.f32 0.0, %v4214
        %v4216 = vpop.f32.mrf.mxu0
        %4217 = vmatprep.mubr.bf16.mxu0 0
        %4218 = vmatmul.mubr.bf16.gmra.mxu0 %v3872
        %v4219 = vpop.f32.mrf.mxu0
        %v4220 = vadd.f32 0.0, %v4219
        %v4221 = vpop.f32.mrf.mxu0
        %v4222 = vpop.f32.mrf.mxu0
        %v4223 = vadd.f32 0.0, %v4222
        %v4224 = vpop.f32.mrf.mxu0
        %4225 = vdwg.mxu0
        %v4226 = vpack.c.bf16 %v3975, %v3972
        %v4227 = vpack.c.bf16 %v3983, %v3980
        %v4228 = vpack.c.bf16 %v3991, %v3988
        %v4229 = vpack.c.bf16 %v3999, %v3996
        %v4230 = vpack.c.bf16 %v4007, %v4004
        %v4231 = vpack.c.bf16 %v4015, %v4012
        %v4232 = vpack.c.bf16 %v4023, %v4020
        %v4233 = vpack.c.bf16 %v4031, %v4028
        %v4234 = vpack.c.bf16 %v4039, %v4036
        %v4235 = vpack.c.bf16 %v4047, %v4044
        %v4236 = vpack.c.bf16 %v4055, %v4052
        %v4237 = vpack.c.bf16 %v4063, %v4060
        %v4238 = vpack.c.bf16 %v4071, %v4068
        %v4239 = vpack.c.bf16 %v4079, %v4076
        %v4240 = vpack.c.bf16 %v4087, %v4084
        %v4241 = vpack.c.bf16 %v4095, %v4092
        %v4242 = vpack.c.bf16 %v4103, %v4100
        %v4243 = vpack.c.bf16 %v4111, %v4108
        %v4244 = vpack.c.bf16 %v4119, %v4116
        %v4245 = vpack.c.bf16 %v4127, %v4124
        %v4246 = vpack.c.bf16 %v4135, %v4132
        %v4247 = vpack.c.bf16 %v4143, %v4140
        %v4248 = vpack.c.bf16 %v4151, %v4148
        %v4249 = vpack.c.bf16 %v4159, %v4156
        %v4250 = vpack.c.bf16 %v4167, %v4164
        %v4251 = vpack.c.bf16 %v4175, %v4172
        %v4252 = vpack.c.bf16 %v4183, %v4180
        %v4253 = vpack.c.bf16 %v4191, %v4188
        %v4254 = vpack.c.bf16 %v4199, %v4196
        %v4255 = vpack.c.bf16 %v4207, %v4204
        %v4256 = vpack.c.bf16 %v4215, %v4212
        %v4257 = vpack.c.bf16 %v4223, %v4220
        %v4290 = vunpack.c.l.b16 %v4226
        %v4291 = vunpack.c.h.b16 %v4226
        %v4292 = vunpack.c.l.b16 %v4227
        %v4293 = vunpack.c.h.b16 %v4227
        %v4294 = vunpack.c.l.b16 %v4228
        %v4295 = vunpack.c.h.b16 %v4228
        %v4296 = vunpack.c.l.b16 %v4229
        %v4297 = vunpack.c.h.b16 %v4229
        %v4298 = vunpack.c.l.b16 %v4230
        %v4299 = vunpack.c.h.b16 %v4230
        %v4300 = vunpack.c.l.b16 %v4231
        %v4301 = vunpack.c.h.b16 %v4231
        %v4302 = vunpack.c.l.b16 %v4232
        %v4303 = vunpack.c.h.b16 %v4232
        %v4304 = vunpack.c.l.b16 %v4233
        %v4305 = vunpack.c.h.b16 %v4233
        %v4306 = vunpack.c.l.b16 %v4234
        %v4307 = vunpack.c.h.b16 %v4234
        %v4308 = vunpack.c.l.b16 %v4235
        %v4309 = vunpack.c.h.b16 %v4235
        %v4310 = vunpack.c.l.b16 %v4236
        %v4311 = vunpack.c.h.b16 %v4236
        %v4312 = vunpack.c.l.b16 %v4237
        %v4313 = vunpack.c.h.b16 %v4237
        %v4314 = vunpack.c.l.b16 %v4238
        %v4315 = vunpack.c.h.b16 %v4238
        %v4316 = vunpack.c.l.b16 %v4239
        %v4317 = vunpack.c.h.b16 %v4239
        %v4318 = vunpack.c.l.b16 %v4240
        %v4319 = vunpack.c.h.b16 %v4240
        %v4320 = vunpack.c.l.b16 %v4241
        %v4321 = vunpack.c.h.b16 %v4241
        %v4322 = vunpack.c.l.b16 %v4242
        %v4323 = vunpack.c.h.b16 %v4242
        %v4324 = vunpack.c.l.b16 %v4243
        %v4325 = vunpack.c.h.b16 %v4243
        %v4326 = vunpack.c.l.b16 %v4244
        %v4327 = vunpack.c.h.b16 %v4244
        %v4328 = vunpack.c.l.b16 %v4245
        %v4329 = vunpack.c.h.b16 %v4245
        %v4330 = vunpack.c.l.b16 %v4246
        %v4331 = vunpack.c.h.b16 %v4246
        %v4332 = vunpack.c.l.b16 %v4247
        %v4333 = vunpack.c.h.b16 %v4247
        %v4334 = vunpack.c.l.b16 %v4248
        %v4335 = vunpack.c.h.b16 %v4248
        %v4336 = vunpack.c.l.b16 %v4249
        %v4337 = vunpack.c.h.b16 %v4249
        %v4338 = vunpack.c.l.b16 %v4250
        %v4339 = vunpack.c.h.b16 %v4250
        %v4340 = vunpack.c.l.b16 %v4251
        %v4341 = vunpack.c.h.b16 %v4251
        %v4342 = vunpack.c.l.b16 %v4252
        %v4343 = vunpack.c.h.b16 %v4252
        %v4344 = vunpack.c.l.b16 %v4253
        %v4345 = vunpack.c.h.b16 %v4253
        %v4346 = vunpack.c.l.b16 %v4254
        %v4347 = vunpack.c.h.b16 %v4254
        %v4348 = vunpack.c.l.b16 %v4255
        %v4349 = vunpack.c.h.b16 %v4255
        %v4350 = vunpack.c.l.b16 %v4256
        %v4351 = vunpack.c.h.b16 %v4256
        %v4352 = vunpack.c.l.b16 %v4257
        %v4353 = vunpack.c.h.b16 %v4257
        %v4354 = vpack.c.b16 %v4290, %v4290
        %v4355 = vpack.c.b16 %v4291, %v4291
        %v4356 = vpack.c.b16 %v4292, %v4292
        %v4357 = vpack.c.b16 %v4293, %v4293
        %v4358 = vpack.c.b16 %v4294, %v4294
        %v4359 = vpack.c.b16 %v4295, %v4295
        %v4360 = vpack.c.b16 %v4296, %v4296
        %v4361 = vpack.c.b16 %v4297, %v4297
        %v4362 = vpack.c.b16 %v4298, %v4298
        %v4363 = vpack.c.b16 %v4299, %v4299
        %v4364 = vpack.c.b16 %v4300, %v4300
        %v4365 = vpack.c.b16 %v4301, %v4301
        %v4366 = vpack.c.b16 %v4302, %v4302
        %v4367 = vpack.c.b16 %v4303, %v4303
        %v4368 = vpack.c.b16 %v4304, %v4304
        %v4369 = vpack.c.b16 %v4305, %v4305
        %v4370 = vpack.c.b16 %v4306, %v4306
        %v4371 = vpack.c.b16 %v4307, %v4307
        %v4372 = vpack.c.b16 %v4308, %v4308
        %v4373 = vpack.c.b16 %v4309, %v4309
        %v4374 = vpack.c.b16 %v4310, %v4310
        %v4375 = vpack.c.b16 %v4311, %v4311
        %v4376 = vpack.c.b16 %v4312, %v4312
        %v4377 = vpack.c.b16 %v4313, %v4313
        %v4378 = vpack.c.b16 %v4314, %v4314
        %v4379 = vpack.c.b16 %v4315, %v4315
        %v4380 = vpack.c.b16 %v4316, %v4316
        %v4381 = vpack.c.b16 %v4317, %v4317
        %v4382 = vpack.c.b16 %v4318, %v4318
        %v4383 = vpack.c.b16 %v4319, %v4319
        %v4384 = vpack.c.b16 %v4320, %v4320
        %v4385 = vpack.c.b16 %v4321, %v4321
        %v4386 = vpack.c.b16 %v4322, %v4322
        %v4387 = vpack.c.b16 %v4323, %v4323
        %v4388 = vpack.c.b16 %v4324, %v4324
        %v4389 = vpack.c.b16 %v4325, %v4325
        %v4390 = vpack.c.b16 %v4326, %v4326
        %v4391 = vpack.c.b16 %v4327, %v4327
        %v4392 = vpack.c.b16 %v4328, %v4328
        %v4393 = vpack.c.b16 %v4329, %v4329
        %v4394 = vpack.c.b16 %v4330, %v4330
        %v4395 = vpack.c.b16 %v4331, %v4331
        %v4396 = vpack.c.b16 %v4332, %v4332
        %v4397 = vpack.c.b16 %v4333, %v4333
        %v4398 = vpack.c.b16 %v4334, %v4334
        %v4399 = vpack.c.b16 %v4335, %v4335
        %v4400 = vpack.c.b16 %v4336, %v4336
        %v4401 = vpack.c.b16 %v4337, %v4337
        %v4402 = vpack.c.b16 %v4338, %v4338
        %v4403 = vpack.c.b16 %v4339, %v4339
        %v4404 = vpack.c.b16 %v4340, %v4340
        %v4405 = vpack.c.b16 %v4341, %v4341
        %v4406 = vpack.c.b16 %v4342, %v4342
        %v4407 = vpack.c.b16 %v4343, %v4343
        %v4408 = vpack.c.b16 %v4344, %v4344
        %v4409 = vpack.c.b16 %v4345, %v4345
        %v4410 = vpack.c.b16 %v4346, %v4346
        %v4411 = vpack.c.b16 %v4347, %v4347
        %v4412 = vpack.c.b16 %v4348, %v4348
        %v4413 = vpack.c.b16 %v4349, %v4349
        %v4414 = vpack.c.b16 %v4350, %v4350
        %v4415 = vpack.c.b16 %v4351, %v4351
        %v4416 = vpack.c.b16 %v4352, %v4352
        %v4417 = vpack.c.b16 %v4353, %v4353
        %4482 = vst [vmem:[%s230] sm:$0xf] %v4354
        %4483 = vst [vmem:[%s230 + $0x4] sm:$0xf] %v4355
        %4484 = vst [vmem:[%s230 + $0x8] sm:$0xf] %v4356
        %4485 = vst [vmem:[%s230 + $0xc] sm:$0xf] %v4357
        %4486 = vst [vmem:[%s230 + $0x10] sm:$0xf] %v4358
        %4487 = vst [vmem:[%s230 + $0x14] sm:$0xf] %v4359
        %4488 = vst [vmem:[%s230 + $0x18] sm:$0xf] %v4360
        %4489 = vst [vmem:[%s230 + $0x1c] sm:$0xf] %v4361
        %4490 = vst [vmem:[%s230 + $0x20] sm:$0xf] %v4362
        %4491 = vst [vmem:[%s230 + $0x24] sm:$0xf] %v4363
        %4492 = vst [vmem:[%s230 + $0x28] sm:$0xf] %v4364
        %4493 = vst [vmem:[%s230 + $0x2c] sm:$0xf] %v4365
        %4494 = vst [vmem:[%s230 + $0x30] sm:$0xf] %v4366
        %4495 = vst [vmem:[%s230 + $0x34] sm:$0xf] %v4367
        %4496 = vst [vmem:[%s230 + $0x38] sm:$0xf] %v4368
        %4497 = vst [vmem:[%s230 + $0x3c] sm:$0xf] %v4369
        %4498 = vst [vmem:[%s230 + $0x40] sm:$0xf] %v4370
        %4499 = vst [vmem:[%s230 + $0x44] sm:$0xf] %v4371
        %4500 = vst [vmem:[%s230 + $0x48] sm:$0xf] %v4372
        %4501 = vst [vmem:[%s230 + $0x4c] sm:$0xf] %v4373
        %4502 = vst [vmem:[%s230 + $0x50] sm:$0xf] %v4374
        %4503 = vst [vmem:[%s230 + $0x54] sm:$0xf] %v4375
        %4504 = vst [vmem:[%s230 + $0x58] sm:$0xf] %v4376
        %4505 = vst [vmem:[%s230 + $0x5c] sm:$0xf] %v4377
        %4506 = vst [vmem:[%s230 + $0x60] sm:$0xf] %v4378
        %4507 = vst [vmem:[%s230 + $0x64] sm:$0xf] %v4379
        %4508 = vst [vmem:[%s230 + $0x68] sm:$0xf] %v4380
        %4509 = vst [vmem:[%s230 + $0x6c] sm:$0xf] %v4381
        %4510 = vst [vmem:[%s230 + $0x70] sm:$0xf] %v4382
        %4511 = vst [vmem:[%s230 + $0x74] sm:$0xf] %v4383
        %4512 = vst [vmem:[%s230 + $0x78] sm:$0xf] %v4384
        %4513 = vst [vmem:[%s230 + $0x7c] sm:$0xf] %v4385
        %4514 = vst [vmem:[%s230 + $0x80] sm:$0xf] %v4386
        %4515 = vst [vmem:[%s230 + $0x84] sm:$0xf] %v4387
        %4516 = vst [vmem:[%s230 + $0x88] sm:$0xf] %v4388
        %4517 = vst [vmem:[%s230 + $0x8c] sm:$0xf] %v4389
        %4518 = vst [vmem:[%s230 + $0x90] sm:$0xf] %v4390
        %4519 = vst [vmem:[%s230 + $0x94] sm:$0xf] %v4391
        %4520 = vst [vmem:[%s230 + $0x98] sm:$0xf] %v4392
        %4521 = vst [vmem:[%s230 + $0x9c] sm:$0xf] %v4393
        %4522 = vst [vmem:[%s230 + $0xa0] sm:$0xf] %v4394
        %4523 = vst [vmem:[%s230 + $0xa4] sm:$0xf] %v4395
        %4524 = vst [vmem:[%s230 + $0xa8] sm:$0xf] %v4396
        %4525 = vst [vmem:[%s230 + $0xac] sm:$0xf] %v4397
        %4526 = vst [vmem:[%s230 + $0xb0] sm:$0xf] %v4398
        %4527 = vst [vmem:[%s230 + $0xb4] sm:$0xf] %v4399
        %4528 = vst [vmem:[%s230 + $0xb8] sm:$0xf] %v4400
        %4529 = vst [vmem:[%s230 + $0xbc] sm:$0xf] %v4401
        %4530 = vst [vmem:[%s230 + $0xc0] sm:$0xf] %v4402
        %4531 = vst [vmem:[%s230 + $0xc4] sm:$0xf] %v4403
        %4532 = vst [vmem:[%s230 + $0xc8] sm:$0xf] %v4404
        %4533 = vst [vmem:[%s230 + $0xcc] sm:$0xf] %v4405
        %4534 = vst [vmem:[%s230 + $0xd0] sm:$0xf] %v4406
        %4535 = vst [vmem:[%s230 + $0xd4] sm:$0xf] %v4407
        %4536 = vst [vmem:[%s230 + $0xd8] sm:$0xf] %v4408
        %4537 = vst [vmem:[%s230 + $0xdc] sm:$0xf] %v4409
        %4538 = vst [vmem:[%s230 + $0xe0] sm:$0xf] %v4410
        %4539 = vst [vmem:[%s230 + $0xe4] sm:$0xf] %v4411
        %4540 = vst [vmem:[%s230 + $0xe8] sm:$0xf] %v4412
        %4541 = vst [vmem:[%s230 + $0xec] sm:$0xf] %v4413
        %4542 = vst [vmem:[%s230 + $0xf0] sm:$0xf] %v4414
        %4543 = vst [vmem:[%s230 + $0xf4] sm:$0xf] %v4415
        %4544 = vst [vmem:[%s230 + $0xf8] sm:$0xf] %v4416
        %4545 = vst [vmem:[%s230 + $0xfc] sm:$0xf] %v4417
      $region44: #{backbone_forward.2} parent=35 // pred_fallthru
        _
      %s4546 = smul.u32 64, %s19
      %p4547 = scmp.lt.s32.totalorder %s4546, 127
      %s4548 = scalar_select %p4547, %s4546, 127
      %s4549 = smul.addr %s4548, 4
      %s4550 = scalar_lea.vmem %s4, %s4549
      // Predicated region
      $region45: #{backbone_forward.2} parent=35 // pred_check
        %p4551 = pneg %p136
      $region46: #{backbone_forward.2} parent=35 // pred_check_branch
        %4553 = sbr.rel (%p4551) target = $region48
      $region47: #{backbone_forward.2} parent=35 // pred_region
        %s4554 = smul.u32 64, %s19
      $region48: #{backbone_forward.2} parent=35 // pred_fallthru
        _
    $region36: #{backbone_forward.2} parent=5 // pred_fallthru
      _
    %p4555 = scmp.le.s32.totalorder 2, %s10
    // Predicated region
    $region49: #{backbone_forward.2} parent=5 // pred_check
      %p4556 = pneg %p4555
    $region50: #{backbone_forward.2} parent=5 // pred_check_branch
      %4558 = sbr.rel (%p4556) target = $region52
    $region51: #{backbone_forward.2} parent=5 // pred_region
      %s4559 = ssub.s32 %s10, 2
      // Predicated region
      $region53: #{backbone_forward.2} parent=51 // pred_check
        %p4560 = pneg %p142
      $region54: #{backbone_forward.2} parent=51 // pred_check_branch
        %4562 = sbr.rel (%p4560) target = $region56
      $region55: #{backbone_forward.2} parent=51 // pred_region
        %s4563 = smul.u32 64, %s21
        %p4564 = scmp.lt.s32.totalorder %s4563, 127
        %s4565 = scalar_select %p4564, %s4563, 127
        %s4566 = smul.addr %s4565, 4
        %s4567 = scalar_lea.vmem %s4, %s4566
      $region56: #{backbone_forward.2} parent=51 // pred_fallthru
        _
    $region52: #{backbone_forward.2} parent=5 // pred_fallthru
      _
  $region6: #{backbone_forward.2} parent=0 // loop_footer
    %s14 = sadd.s32 1, %s10
  $region7: #{backbone_forward.2} parent=0 // loop_footer_branch
    %9 = sbr.rel target = $region3
  $region8: #{backbone_forward.2} parent=0 // loop_exit
    _

</llo_original>
